<compile_context>
chip_gen: v5e
topology: v5e:2x2
jax: 0.10.0
libtpu: 0.0.40
codegen_flags: <defaults>
</compile_context>

<pallas_src>
import functools

import jax
import jax.numpy as jnp
from jax.experimental import pallas as pl
from jax.experimental.pallas import tpu as pltpu


def _bottleneck_kernel(x_ref, w1_ref, b1_ref, w2_ref, b2_ref, w3_ref, b3_ref,
                       out_ref, pad_ref, *, H, W, Cin, P, Cout):
    """One batch element.

    x_ref:   (1, H, W, Cin)  bf16
    w1_ref:  (Cin, P)        bf16  conv1 1x1 weights (BN1 scale folded in)
    b1_ref:  (1, P)          f32   BN1 bias
    w2_ref:  (9, P, P)       bf16  conv2 3x3 taps, k = 3*dy + dx (BN2 folded)
    b2_ref:  (1, P)          f32   BN2 bias
    w3_ref:  (P, Cout)       bf16  conv3 1x1 weights (BN3 folded)
    b3_ref:  (1, Cout)       f32   BN3 bias
    out_ref: (1, H, W, Cout) bf16
    pad_ref: (H+2, W+2, P)   bf16  zero-haloed conv1 activation scratch
    """
    xf = x_ref[0].reshape(H * W, Cin)                          # bf16

    # ---- conv1 (1x1) + bias + relu --------------------------------------
    m1 = jnp.dot(xf, w1_ref[...], preferred_element_type=jnp.float32)
    m1 = jnp.maximum(m1 + b1_ref[...], 0.0).astype(jnp.bfloat16)   # (H*W, P)

    # ---- conv2 (3x3, stride=1, pad=1): 9 accumulating MXU dots -----------
    # Zero only the 1-pixel halo strips; the interior is overwritten below.
    # (Per-step on purpose — safe under megacore "parallel" sharding.)
    zrow = jnp.zeros((1, W + 2, P), jnp.bfloat16)
    zcol = jnp.zeros((H, 1, P), jnp.bfloat16)
    pad_ref[0:1, :, :] = zrow
    pad_ref[H + 1:H + 2, :, :] = zrow
    pad_ref[1:H + 1, 0:1, :] = zcol
    pad_ref[1:H + 1, W + 1:W + 2, :] = zcol
    pad_ref[1:H + 1, 1:W + 1, :] = m1.reshape(H, W, P)

    acc = jnp.zeros((H * W, P), jnp.float32)
    k = 0
    for dy in range(3):
        for dx in range(3):
            window = pad_ref[dy:dy + H, dx:dx + W, :].reshape(H * W, P)
            acc = acc + jnp.dot(window, w2_ref[k],
                                preferred_element_type=jnp.float32)
            k += 1
    m2 = jnp.maximum(acc + b2_ref[...], 0.0).astype(jnp.bfloat16)  # (H*W, P)

    # ---- conv3 (1x1) + bias ----------------------------------------------
    o = jnp.dot(m2, w3_ref[...], preferred_element_type=jnp.float32)
    o = o + b3_ref[...]                                        # (H*W, Cout) f32

    # ---- residual add (re-read x; short live range) + relu ---------------
    res = x_ref[0].reshape(H * W, Cin).astype(jnp.float32)
    o = jnp.maximum(o + res, 0.0)
    out_ref[0] = o.reshape(H, W, Cout).astype(out_ref.dtype)


def _fold_params(params):
    """Fold eval-mode BN scale into the conv weights (bf16); keep f32 biases."""
    w1, s1, b1, w2, s2, b2, w3, s3, b3 = params
    p = w2.shape[3]
    w1f = (w1 * s1[0]).astype(jnp.bfloat16)                    # (Cin, P)
    w2t = (w2 * s2[0]).astype(jnp.bfloat16).reshape(9, p, p)   # (9, P, P) k=3*dy+dx
    w3f = (w3 * s3[0]).astype(jnp.bfloat16)                    # (P, Cout)
    return (w1f, b1.astype(jnp.float32), w2t, b2.astype(jnp.float32),
            w3f, b3.astype(jnp.float32))


def _vmem_bytes(H, W, Cin, P, Cout, weight_buffers):
    """Exact-ish VMEM need: pipelined operand buffers + scratch + live temps."""
    bf16, f32 = 2, 4
    x_block = 2 * H * W * Cin * bf16             # input, double-buffered
    out_block = 2 * H * W * Cout * bf16          # output, double-buffered
    weights = (Cin * P + 9 * P * P + P * Cout) * bf16
    biases = (2 * P + Cout) * f32
    pad = (H + 2) * (W + 2) * P * bf16
    temps = H * W * (P * f32                     # conv2 f32 accumulator
                     + P * bf16                  # m1 / m2 bf16 activations
                     + Cout * f32                # conv3 f32 output
                     + Cin * f32)                # f32 residual read of x
    return x_block + out_block + weight_buffers * (weights + biases) + pad + temps


def _const_spec(a, single_buffer):
    """BlockSpec for a grid-invariant operand (weights/biases)."""
    if single_buffer:
        # Block index never changes across the grid: one VMEM buffer suffices.
        return pl.BlockSpec(a.shape, lambda i: (0,) * a.ndim,
                            pipeline_mode=pl.Buffered(1))
    return pl.BlockSpec(a.shape, lambda i: (0,) * a.ndim)


def _pallas_bottleneck(x_nhwc, folded, *, single_buffer_weights):
    N, H, W, Cin = x_nhwc.shape
    w1f, b1, w2t, b2, w3f, b3 = folded
    P = w1f.shape[1]
    Cout = w3f.shape[1]
    assert Cout == Cin, "downsample=None requires inplanes == planes * expansion"

    kernel = functools.partial(_bottleneck_kernel,
                               H=H, W=W, Cin=Cin, P=P, Cout=Cout)

    # Explicit VMEM budget: exact sum + 25% headroom, capped per generation.
    wbuf = 1 if single_buffer_weights else 2
    need = _vmem_bytes(H, W, Cin, P, Cout, wbuf)
    try:
        cap = int(pltpu.get_tpu_info().vmem_capacity_bytes)
    except Exception:  # conservative default: v7x per-TensorCore VMEM
        cap = 64 << 20
    ceiling = min(cap - (8 << 20), 100 << 20)
    vmem_limit = int(min(max(int(need * 1.25) + (4 << 20), 16 << 20), ceiling))

    consts = [w1f, b1, w2t, b2, w3f, b3]
    return pl.pallas_call(
        kernel,
        out_shape=jax.ShapeDtypeStruct((N, H, W, Cout), jnp.bfloat16),
        grid_spec=pltpu.PrefetchScalarGridSpec(
            num_scalar_prefetch=0,
            grid=(N,),
            in_specs=[pl.BlockSpec((1, H, W, Cin), lambda i: (i, 0, 0, 0))]
                     + [_const_spec(a, single_buffer_weights) for a in consts],
            out_specs=pl.BlockSpec((1, H, W, Cout), lambda i: (i, 0, 0, 0)),
            scratch_shapes=[pltpu.VMEM((H + 2, W + 2, P), jnp.bfloat16)],
        ),
        compiler_params=pltpu.CompilerParams(
            dimension_semantics=("parallel",),
            vmem_limit_bytes=vmem_limit),
    )(x_nhwc, *consts)


def bottleneck_forward_nhwc(x_nhwc, params):
    """x_nhwc: (N, H, W, Cin) float. Returns (N, H, W, Cin) bfloat16."""
    folded = _fold_params(params)
    x = x_nhwc.astype(jnp.bfloat16)
    try:
        return _pallas_bottleneck(x, folded, single_buffer_weights=True)
    except Exception:
        # pl.Buffered(1) (single-buffered constant operands) not accepted by
        # this jax/libtpu — fall back to default double buffering.
        return _pallas_bottleneck(x, folded, single_buffer_weights=False)


def bottleneck_forward(x_nchw, params, out_dtype=None):
    """PyTorch-layout compatibility wrapper: (N, Cin, H, W) in / out.

    Prefer bottleneck_forward_nhwc and keep the model NHWC end-to-end — each
    transpose here is an extra full HBM read+write around a mem-bound block.
    """
    x_nhwc = jnp.transpose(x_nchw, (0, 2, 3, 1))
    out = bottleneck_forward_nhwc(x_nhwc, params)
    out = jnp.transpose(out, (0, 3, 1, 2))
    return out.astype(out_dtype if out_dtype is not None else x_nchw.dtype)


def make_params(key, inplanes, planes, dtype=jnp.float32):
    """Deterministic synthetic parameters matching Bottleneck.__init__ shapes,
    with eval-mode BatchNorm expressed as per-channel (scale, bias)."""
    expansion = 4
    cout = planes * expansion
    ks = jax.random.split(key, 15)
    eps = 1e-5

    def fold_bn(kg, kb, km, kv, C):
        gamma = 1.0 + 0.1 * jax.random.normal(kg, (C,), dtype)
        beta = 0.1 * jax.random.normal(kb, (C,), dtype)
        mean = 0.1 * jax.random.normal(km, (C,), dtype)
        var = jnp.abs(jax.random.normal(kv, (C,), dtype)) + 0.5
        scale = gamma / jnp.sqrt(var + eps)
        bias = beta - mean * scale
        return scale.reshape(1, C), bias.reshape(1, C)

    # conv1: torch (planes, inplanes, 1, 1) -> (inplanes, planes)
    w1 = 0.1 * jax.random.normal(ks[0], (planes, inplanes), dtype)
    w1 = jnp.transpose(w1, (1, 0))
    s1, b1 = fold_bn(ks[1], ks[2], ks[3], ks[4], planes)

    # conv2: torch (planes, planes, 3, 3) -> HWIO (3, 3, planes_in, planes_out)
    w2 = 0.1 * jax.random.normal(ks[5], (planes, planes, 3, 3), dtype)
    w2 = jnp.transpose(w2, (2, 3, 1, 0))
    s2, b2 = fold_bn(ks[6], ks[7], ks[8], ks[9], planes)

    # conv3: torch (planes*4, planes, 1, 1) -> (planes, planes*4)
    w3 = 0.1 * jax.random.normal(ks[10], (cout, planes), dtype)
    w3 = jnp.transpose(w3, (1, 0))
    s3, b3 = fold_bn(ks[11], ks[12], ks[13], ks[14], cout)

    return (w1, s1, b1, w2, s2, b2, w3, s3, b3)


def reference_forward_nhwc(x_nhwc, params):
    """Pure-JAX NHWC reference with the same bf16 rounding points as the kernel."""
    w1f, b1, w2t, b2, w3f, b3 = _fold_params(params)
    P = w1f.shape[1]
    w2f = w2t.reshape(3, 3, P, P)
    x = x_nhwc.astype(jnp.bfloat16)

    o = jnp.einsum('nhwc,co->nhwo', x, w1f,
                   preferred_element_type=jnp.float32) + b1[0]
    o = jnp.maximum(o, 0.0).astype(jnp.bfloat16)
    o = jax.lax.conv_general_dilated(
        o, w2f, window_strides=(1, 1), padding=((1, 1), (1, 1)),
        dimension_numbers=('NHWC', 'HWIO', 'NHWC'),
        preferred_element_type=jnp.float32)
    o = jnp.maximum(o + b2[0], 0.0).astype(jnp.bfloat16)
    o = jnp.einsum('nhwc,co->nhwo', o, w3f,
                   preferred_element_type=jnp.float32) + b3[0]
    o = jnp.maximum(o + x.astype(jnp.float32), 0.0)
    return o.astype(jnp.bfloat16)


if __name__ == "__main__":
    key = jax.random.PRNGKey(0)
    planes = 4
    inplanes = planes * 4            # downsample=None => identity residual
    N, H, W = 2, 16, 16

    kx, kp = jax.random.split(key)
    x_nhwc = jax.random.normal(kx, (N, H, W, inplanes), jnp.float32)
    params = make_params(kp, inplanes, planes)

    out = jax.block_until_ready(bottleneck_forward_nhwc(x_nhwc, params))
    assert out.shape == (N, H, W, inplanes), out.shape
    assert out.dtype == jnp.bfloat16, out.dtype

    ref = reference_forward_nhwc(x_nhwc, params)
    out_f32 = out.astype(jnp.float32)
    ref_f32 = ref.astype(jnp.float32)
    max_err = float(jnp.max(jnp.abs(out_f32 - ref_f32)))
    assert jnp.allclose(out_f32, ref_f32, atol=2e-2, rtol=2e-2), max_err

    # PyTorch-layout compatibility path (adds NCHW<->NHWC transposes).
    x_nchw = jnp.transpose(x_nhwc, (0, 3, 1, 2))
    out_nchw = jax.block_until_ready(bottleneck_forward(x_nchw, params))
    assert out_nchw.shape == (N, inplanes, H, W)
    ref_nchw = jnp.transpose(ref_f32, (0, 3, 1, 2))
    assert jnp.allclose(out_nchw, ref_nchw, atol=2e-2, rtol=2e-2)

    print("KERNEL_OK")
</pallas_src>

<mosaic_0001>
module attributes {stable_mosaic.version = 11 : i64} {
  func.func @_bottleneck_kernel(%arg0: i32, %arg1: memref<1x16x16x16xbf16, #tpu.memory_space<vmem>>, %arg2: memref<16x4xbf16, #tpu.memory_space<vmem>>, %arg3: memref<1x4xf32, #tpu.memory_space<vmem>>, %arg4: memref<9x4x4xbf16, #tpu.memory_space<vmem>>, %arg5: memref<1x4xf32, #tpu.memory_space<vmem>>, %arg6: memref<4x16xbf16, #tpu.memory_space<vmem>>, %arg7: memref<1x16xf32, #tpu.memory_space<vmem>>, %arg8: memref<1x16x16x16xbf16, #tpu.memory_space<vmem>>, %arg9: memref<18x18x4xbf16, #tpu.memory_space<vmem>>) attributes {dimension_semantics = [#tpu.dimension_semantics<parallel>], iteration_bounds = array<i64: 2>, scalar_prefetch = 0 : i64, scratch_operands = 1 : i64, tpu.core_type = #tpu.core_type<tc>, window_params = [{transform_indices = @transform_0, window_bounds = array<i64: 1, 16, 16, 16>}, {pipeline_mode = #tpu.pipeline_mode<synchronous>, transform_indices = @transform_1, window_bounds = array<i64: 16, 4>}, {pipeline_mode = #tpu.pipeline_mode<synchronous>, transform_indices = @transform_2, window_bounds = array<i64: 1, 4>}, {pipeline_mode = #tpu.pipeline_mode<synchronous>, transform_indices = @transform_3, window_bounds = array<i64: 9, 4, 4>}, {pipeline_mode = #tpu.pipeline_mode<synchronous>, transform_indices = @transform_4, window_bounds = array<i64: 1, 4>}, {pipeline_mode = #tpu.pipeline_mode<synchronous>, transform_indices = @transform_5, window_bounds = array<i64: 4, 16>}, {pipeline_mode = #tpu.pipeline_mode<synchronous>, transform_indices = @transform_6, window_bounds = array<i64: 1, 16>}, {transform_indices = @transform_7, window_bounds = array<i64: 1, 16, 16, 16>}]} {
    %c0 = arith.constant 0 : index
    %c0_0 = arith.constant 0 : index
    %c0_1 = arith.constant 0 : index
    %c0_2 = arith.constant 0 : index
    %0 = vector.load %arg1[%c0, %c0_0, %c0_1, %c0_2] : memref<1x16x16x16xbf16, #tpu.memory_space<vmem>>, vector<1x16x16x16xbf16>
    %1 = vector.shape_cast %0 : vector<1x16x16x16xbf16> to vector<16x16x16xbf16>
    %2 = vector.shape_cast %1 : vector<16x16x16xbf16> to vector<256x16xbf16>
    %c0_3 = arith.constant 0 : index
    %c0_4 = arith.constant 0 : index
    %3 = vector.load %arg2[%c0_3, %c0_4] : memref<16x4xbf16, #tpu.memory_space<vmem>>, vector<16x4xbf16>
    %cst = arith.constant dense<0.000000e+00> : vector<256x4xf32>
    %4 = tpu.matmul %2, %3, %cst {dimension_numbers = #tpu.dot_dimension_numbers<[1], [0], [0], [1], [0, 0, 1, 1], [], []>} : vector<256x16xbf16>, vector<16x4xbf16>, vector<256x4xf32> -> vector<256x4xf32>
    %c0_5 = arith.constant 0 : index
    %c0_6 = arith.constant 0 : index
    %5 = vector.load %arg3[%c0_5, %c0_6] : memref<1x4xf32, #tpu.memory_space<vmem>>, vector<1x4xf32>
    %6 = vector.broadcast %5 : vector<1x4xf32> to vector<256x4xf32>
    %7 = arith.addf %4, %6 : vector<256x4xf32>
    %cst_7 = arith.constant 0.000000e+00 : f32
    %8 = vector.broadcast %cst_7 : f32 to vector<256x4xf32>
    %9 = arith.maximumf %7, %8 : vector<256x4xf32>
    %10 = arith.truncf %9 : vector<256x4xf32> to vector<256x4xbf16>
    %cst_8 = arith.constant 0.000000e+00 : bf16
    %11 = vector.broadcast %cst_8 : bf16 to vector<1x18x4xbf16>
    %cst_9 = arith.constant 0.000000e+00 : bf16
    %12 = vector.broadcast %cst_9 : bf16 to vector<16x1x4xbf16>
    %c0_10 = arith.constant 0 : index
    %c0_11 = arith.constant 0 : index
    %c0_12 = arith.constant 0 : index
    %13 = vector.load %arg9[%c0_10, %c0_11, %c0_12] : memref<18x18x4xbf16, #tpu.memory_space<vmem>>, vector<1x18x4xbf16>
    tpu.vector_store %arg9[%c0_10, %c0_11, %c0_12], %11 {strides = array<i32>} : memref<18x18x4xbf16, #tpu.memory_space<vmem>>, vector<1x18x4xbf16>,
    %c17 = arith.constant 17 : index
    %c0_13 = arith.constant 0 : index
    %c0_14 = arith.constant 0 : index
    %14 = vector.load %arg9[%c17, %c0_13, %c0_14] : memref<18x18x4xbf16, #tpu.memory_space<vmem>>, vector<1x18x4xbf16>
    tpu.vector_store %arg9[%c17, %c0_13, %c0_14], %11 {strides = array<i32>} : memref<18x18x4xbf16, #tpu.memory_space<vmem>>, vector<1x18x4xbf16>,
    %c1 = arith.constant 1 : index
    %c0_15 = arith.constant 0 : index
    %c0_16 = arith.constant 0 : index
    %15 = vector.load %arg9[%c1, %c0_15, %c0_16] : memref<18x18x4xbf16, #tpu.memory_space<vmem>>, vector<16x1x4xbf16>
    tpu.vector_store %arg9[%c1, %c0_15, %c0_16], %12 {strides = array<i32>} : memref<18x18x4xbf16, #tpu.memory_space<vmem>>, vector<16x1x4xbf16>,
    %c1_17 = arith.constant 1 : index
    %c17_18 = arith.constant 17 : index
    %c0_19 = arith.constant 0 : index
    %16 = vector.load %arg9[%c1_17, %c17_18, %c0_19] : memref<18x18x4xbf16, #tpu.memory_space<vmem>>, vector<16x1x4xbf16>
    tpu.vector_store %arg9[%c1_17, %c17_18, %c0_19], %12 {strides = array<i32>} : memref<18x18x4xbf16, #tpu.memory_space<vmem>>, vector<16x1x4xbf16>,
    %17 = vector.shape_cast %10 : vector<256x4xbf16> to vector<16x16x4xbf16>
    %c1_20 = arith.constant 1 : index
    %c1_21 = arith.constant 1 : index
    %c0_22 = arith.constant 0 : index
    %18 = vector.load %arg9[%c1_20, %c1_21, %c0_22] : memref<18x18x4xbf16, #tpu.memory_space<vmem>>, vector<16x16x4xbf16>
    tpu.vector_store %arg9[%c1_20, %c1_21, %c0_22], %17 {strides = array<i32>} : memref<18x18x4xbf16, #tpu.memory_space<vmem>>, vector<16x16x4xbf16>,
    %cst_23 = arith.constant 0.000000e+00 : f32
    %19 = vector.broadcast %cst_23 : f32 to vector<256x4xf32>
    %c0_24 = arith.constant 0 : index
    %c0_25 = arith.constant 0 : index
    %c0_26 = arith.constant 0 : index
    %20 = vector.load %arg9[%c0_24, %c0_25, %c0_26] : memref<18x18x4xbf16, #tpu.memory_space<vmem>>, vector<16x16x4xbf16>
    %21 = vector.shape_cast %20 : vector<16x16x4xbf16> to vector<256x4xbf16>
    %c0_27 = arith.constant 0 : index
    %c0_28 = arith.constant 0 : index
    %c0_29 = arith.constant 0 : index
    %22 = vector.load %arg4[%c0_27, %c0_28, %c0_29] : memref<9x4x4xbf16, #tpu.memory_space<vmem>>, vector<1x4x4xbf16>
    %23 = vector.shape_cast %22 : vector<1x4x4xbf16> to vector<4x4xbf16>
    %cst_30 = arith.constant dense<0.000000e+00> : vector<256x4xf32>
    %24 = tpu.matmul %21, %23, %cst_30 {dimension_numbers = #tpu.dot_dimension_numbers<[1], [0], [0], [1], [0, 0, 1, 1], [], []>} : vector<256x4xbf16>, vector<4x4xbf16>, vector<256x4xf32> -> vector<256x4xf32>
    %25 = arith.addf %19, %24 : vector<256x4xf32>
    %c0_31 = arith.constant 0 : index
    %c1_32 = arith.constant 1 : index
    %c0_33 = arith.constant 0 : index
    %26 = vector.load %arg9[%c0_31, %c1_32, %c0_33] : memref<18x18x4xbf16, #tpu.memory_space<vmem>>, vector<16x16x4xbf16>
    %27 = vector.shape_cast %26 : vector<16x16x4xbf16> to vector<256x4xbf16>
    %c1_34 = arith.constant 1 : index
    %c0_35 = arith.constant 0 : index
    %c0_36 = arith.constant 0 : index
    %28 = vector.load %arg4[%c1_34, %c0_35, %c0_36] : memref<9x4x4xbf16, #tpu.memory_space<vmem>>, vector<1x4x4xbf16>
    %29 = vector.shape_cast %28 : vector<1x4x4xbf16> to vector<4x4xbf16>
    %cst_37 = arith.constant dense<0.000000e+00> : vector<256x4xf32>
    %30 = tpu.matmul %27, %29, %cst_37 {dimension_numbers = #tpu.dot_dimension_numbers<[1], [0], [0], [1], [0, 0, 1, 1], [], []>} : vector<256x4xbf16>, vector<4x4xbf16>, vector<256x4xf32> -> vector<256x4xf32>
    %31 = arith.addf %25, %30 : vector<256x4xf32>
    %c0_38 = arith.constant 0 : index
    %c2 = arith.constant 2 : index
    %c0_39 = arith.constant 0 : index
    %32 = vector.load %arg9[%c0_38, %c2, %c0_39] : memref<18x18x4xbf16, #tpu.memory_space<vmem>>, vector<16x16x4xbf16>
    %33 = vector.shape_cast %32 : vector<16x16x4xbf16> to vector<256x4xbf16>
    %c2_40 = arith.constant 2 : index
    %c0_41 = arith.constant 0 : index
    %c0_42 = arith.constant 0 : index
    %34 = vector.load %arg4[%c2_40, %c0_41, %c0_42] : memref<9x4x4xbf16, #tpu.memory_space<vmem>>, vector<1x4x4xbf16>
    %35 = vector.shape_cast %34 : vector<1x4x4xbf16> to vector<4x4xbf16>
    %cst_43 = arith.constant dense<0.000000e+00> : vector<256x4xf32>
    %36 = tpu.matmul %33, %35, %cst_43 {dimension_numbers = #tpu.dot_dimension_numbers<[1], [0], [0], [1], [0, 0, 1, 1], [], []>} : vector<256x4xbf16>, vector<4x4xbf16>, vector<256x4xf32> -> vector<256x4xf32>
    %37 = arith.addf %31, %36 : vector<256x4xf32>
    %c1_44 = arith.constant 1 : index
    %c0_45 = arith.constant 0 : index
    %c0_46 = arith.constant 0 : index
    %38 = vector.load %arg9[%c1_44, %c0_45, %c0_46] : memref<18x18x4xbf16, #tpu.memory_space<vmem>>, vector<16x16x4xbf16>
    %39 = vector.shape_cast %38 : vector<16x16x4xbf16> to vector<256x4xbf16>
    %c3 = arith.constant 3 : index
    %c0_47 = arith.constant 0 : index
    %c0_48 = arith.constant 0 : index
    %40 = vector.load %arg4[%c3, %c0_47, %c0_48] : memref<9x4x4xbf16, #tpu.memory_space<vmem>>, vector<1x4x4xbf16>
    %41 = vector.shape_cast %40 : vector<1x4x4xbf16> to vector<4x4xbf16>
    %cst_49 = arith.constant dense<0.000000e+00> : vector<256x4xf32>
    %42 = tpu.matmul %39, %41, %cst_49 {dimension_numbers = #tpu.dot_dimension_numbers<[1], [0], [0], [1], [0, 0, 1, 1], [], []>} : vector<256x4xbf16>, vector<4x4xbf16>, vector<256x4xf32> -> vector<256x4xf32>
    %43 = arith.addf %37, %42 : vector<256x4xf32>
    %c1_50 = arith.constant 1 : index
    %c1_51 = arith.constant 1 : index
    %c0_52 = arith.constant 0 : index
    %44 = vector.load %arg9[%c1_50, %c1_51, %c0_52] : memref<18x18x4xbf16, #tpu.memory_space<vmem>>, vector<16x16x4xbf16>
    %45 = vector.shape_cast %44 : vector<16x16x4xbf16> to vector<256x4xbf16>
    %c4 = arith.constant 4 : index
    %c0_53 = arith.constant 0 : index
    %c0_54 = arith.constant 0 : index
    %46 = vector.load %arg4[%c4, %c0_53, %c0_54] : memref<9x4x4xbf16, #tpu.memory_space<vmem>>, vector<1x4x4xbf16>
    %47 = vector.shape_cast %46 : vector<1x4x4xbf16> to vector<4x4xbf16>
    %cst_55 = arith.constant dense<0.000000e+00> : vector<256x4xf32>
    %48 = tpu.matmul %45, %47, %cst_55 {dimension_numbers = #tpu.dot_dimension_numbers<[1], [0], [0], [1], [0, 0, 1, 1], [], []>} : vector<256x4xbf16>, vector<4x4xbf16>, vector<256x4xf32> -> vector<256x4xf32>
    %49 = arith.addf %43, %48 : vector<256x4xf32>
    %c1_56 = arith.constant 1 : index
    %c2_57 = arith.constant 2 : index
    %c0_58 = arith.constant 0 : index
    %50 = vector.load %arg9[%c1_56, %c2_57, %c0_58] : memref<18x18x4xbf16, #tpu.memory_space<vmem>>, vector<16x16x4xbf16>
    %51 = vector.shape_cast %50 : vector<16x16x4xbf16> to vector<256x4xbf16>
    %c5 = arith.constant 5 : index
    %c0_59 = arith.constant 0 : index
    %c0_60 = arith.constant 0 : index
    %52 = vector.load %arg4[%c5, %c0_59, %c0_60] : memref<9x4x4xbf16, #tpu.memory_space<vmem>>, vector<1x4x4xbf16>
    %53 = vector.shape_cast %52 : vector<1x4x4xbf16> to vector<4x4xbf16>
    %cst_61 = arith.constant dense<0.000000e+00> : vector<256x4xf32>
    %54 = tpu.matmul %51, %53, %cst_61 {dimension_numbers = #tpu.dot_dimension_numbers<[1], [0], [0], [1], [0, 0, 1, 1], [], []>} : vector<256x4xbf16>, vector<4x4xbf16>, vector<256x4xf32> -> vector<256x4xf32>
    %55 = arith.addf %49, %54 : vector<256x4xf32>
    %c2_62 = arith.constant 2 : index
    %c0_63 = arith.constant 0 : index
    %c0_64 = arith.constant 0 : index
    %56 = vector.load %arg9[%c2_62, %c0_63, %c0_64] : memref<18x18x4xbf16, #tpu.memory_space<vmem>>, vector<16x16x4xbf16>
    %57 = vector.shape_cast %56 : vector<16x16x4xbf16> to vector<256x4xbf16>
    %c6 = arith.constant 6 : index
    %c0_65 = arith.constant 0 : index
    %c0_66 = arith.constant 0 : index
    %58 = vector.load %arg4[%c6, %c0_65, %c0_66] : memref<9x4x4xbf16, #tpu.memory_space<vmem>>, vector<1x4x4xbf16>
    %59 = vector.shape_cast %58 : vector<1x4x4xbf16> to vector<4x4xbf16>
    %cst_67 = arith.constant dense<0.000000e+00> : vector<256x4xf32>
    %60 = tpu.matmul %57, %59, %cst_67 {dimension_numbers = #tpu.dot_dimension_numbers<[1], [0], [0], [1], [0, 0, 1, 1], [], []>} : vector<256x4xbf16>, vector<4x4xbf16>, vector<256x4xf32> -> vector<256x4xf32>
    %61 = arith.addf %55, %60 : vector<256x4xf32>
    %c2_68 = arith.constant 2 : index
    %c1_69 = arith.constant 1 : index
    %c0_70 = arith.constant 0 : index
    %62 = vector.load %arg9[%c2_68, %c1_69, %c0_70] : memref<18x18x4xbf16, #tpu.memory_space<vmem>>, vector<16x16x4xbf16>
    %63 = vector.shape_cast %62 : vector<16x16x4xbf16> to vector<256x4xbf16>
    %c7 = arith.constant 7 : index
    %c0_71 = arith.constant 0 : index
    %c0_72 = arith.constant 0 : index
    %64 = vector.load %arg4[%c7, %c0_71, %c0_72] : memref<9x4x4xbf16, #tpu.memory_space<vmem>>, vector<1x4x4xbf16>
    %65 = vector.shape_cast %64 : vector<1x4x4xbf16> to vector<4x4xbf16>
    %cst_73 = arith.constant dense<0.000000e+00> : vector<256x4xf32>
    %66 = tpu.matmul %63, %65, %cst_73 {dimension_numbers = #tpu.dot_dimension_numbers<[1], [0], [0], [1], [0, 0, 1, 1], [], []>} : vector<256x4xbf16>, vector<4x4xbf16>, vector<256x4xf32> -> vector<256x4xf32>
    %67 = arith.addf %61, %66 : vector<256x4xf32>
    %c2_74 = arith.constant 2 : index
    %c2_75 = arith.constant 2 : index
    %c0_76 = arith.constant 0 : index
    %68 = vector.load %arg9[%c2_74, %c2_75, %c0_76] : memref<18x18x4xbf16, #tpu.memory_space<vmem>>, vector<16x16x4xbf16>
    %69 = vector.shape_cast %68 : vector<16x16x4xbf16> to vector<256x4xbf16>
    %c8 = arith.constant 8 : index
    %c0_77 = arith.constant 0 : index
    %c0_78 = arith.constant 0 : index
    %70 = vector.load %arg4[%c8, %c0_77, %c0_78] : memref<9x4x4xbf16, #tpu.memory_space<vmem>>, vector<1x4x4xbf16>
    %71 = vector.shape_cast %70 : vector<1x4x4xbf16> to vector<4x4xbf16>
    %cst_79 = arith.constant dense<0.000000e+00> : vector<256x4xf32>
    %72 = tpu.matmul %69, %71, %cst_79 {dimension_numbers = #tpu.dot_dimension_numbers<[1], [0], [0], [1], [0, 0, 1, 1], [], []>} : vector<256x4xbf16>, vector<4x4xbf16>, vector<256x4xf32> -> vector<256x4xf32>
    %73 = arith.addf %67, %72 : vector<256x4xf32>
    %c0_80 = arith.constant 0 : index
    %c0_81 = arith.constant 0 : index
    %74 = vector.load %arg5[%c0_80, %c0_81] : memref<1x4xf32, #tpu.memory_space<vmem>>, vector<1x4xf32>
    %75 = vector.broadcast %74 : vector<1x4xf32> to vector<256x4xf32>
    %76 = arith.addf %73, %75 : vector<256x4xf32>
    %cst_82 = arith.constant 0.000000e+00 : f32
    %77 = vector.broadcast %cst_82 : f32 to vector<256x4xf32>
    %78 = arith.maximumf %76, %77 : vector<256x4xf32>
    %79 = arith.truncf %78 : vector<256x4xf32> to vector<256x4xbf16>
    %c0_83 = arith.constant 0 : index
    %c0_84 = arith.constant 0 : index
    %80 = vector.load %arg6[%c0_83, %c0_84] : memref<4x16xbf16, #tpu.memory_space<vmem>>, vector<4x16xbf16>
    %cst_85 = arith.constant dense<0.000000e+00> : vector<256x16xf32>
    %81 = tpu.matmul %79, %80, %cst_85 {dimension_numbers = #tpu.dot_dimension_numbers<[1], [0], [0], [1], [0, 0, 1, 1], [], []>} : vector<256x4xbf16>, vector<4x16xbf16>, vector<256x16xf32> -> vector<256x16xf32>
    %c0_86 = arith.constant 0 : index
    %c0_87 = arith.constant 0 : index
    %82 = vector.load %arg7[%c0_86, %c0_87] : memref<1x16xf32, #tpu.memory_space<vmem>>, vector<1x16xf32>
    %83 = vector.broadcast %82 : vector<1x16xf32> to vector<256x16xf32>
    %84 = arith.addf %81, %83 : vector<256x16xf32>
    %c0_88 = arith.constant 0 : index
    %c0_89 = arith.constant 0 : index
    %c0_90 = arith.constant 0 : index
    %c0_91 = arith.constant 0 : index
    %85 = vector.load %arg1[%c0_88, %c0_89, %c0_90, %c0_91] : memref<1x16x16x16xbf16, #tpu.memory_space<vmem>>, vector<1x16x16x16xbf16>
    %86 = vector.shape_cast %85 : vector<1x16x16x16xbf16> to vector<16x16x16xbf16>
    %87 = vector.shape_cast %86 : vector<16x16x16xbf16> to vector<256x16xbf16>
    %88 = arith.extf %87 : vector<256x16xbf16> to vector<256x16xf32>
    %89 = arith.addf %84, %88 : vector<256x16xf32>
    %cst_92 = arith.constant 0.000000e+00 : f32
    %90 = vector.broadcast %cst_92 : f32 to vector<256x16xf32>
    %91 = arith.maximumf %89, %90 : vector<256x16xf32>
    %92 = vector.shape_cast %91 : vector<256x16xf32> to vector<16x16x16xf32>
    %93 = arith.truncf %92 : vector<16x16x16xf32> to vector<16x16x16xbf16>
    %c0_93 = arith.constant 0 : index
    %c0_94 = arith.constant 0 : index
    %c0_95 = arith.constant 0 : index
    %c0_96 = arith.constant 0 : index
    %94 = vector.load %arg8[%c0_93, %c0_94, %c0_95, %c0_96] : memref<1x16x16x16xbf16, #tpu.memory_space<vmem>>, vector<1x16x16x16xbf16>
    %95 = vector.shape_cast %94 : vector<1x16x16x16xbf16> to vector<16x16x16xbf16>
    %96 = vector.shape_cast %93 : vector<16x16x16xbf16> to vector<1x16x16x16xbf16>
    tpu.vector_store %arg8[%c0_93, %c0_94, %c0_95, %c0_96], %96 {strides = array<i32>} : memref<1x16x16x16xbf16, #tpu.memory_space<vmem>>, vector<1x16x16x16xbf16>,
    return
  }
  func.func @transform_0(%arg0: i32) -> (i32, i32, i32, i32) {
    %c0_i32 = arith.constant 0 : i32
    %c0_i32_0 = arith.constant 0 : i32
    %c0_i32_1 = arith.constant 0 : i32
    %c0_i32_2 = arith.constant 0 : i32
    return %arg0, %c0_i32, %c0_i32_0, %c0_i32_1 : i32, i32, i32, i32
  }
  func.func @transform_1(%arg0: i32) -> (i32, i32) {
    %c0_i32 = arith.constant 0 : i32
    %c0_i32_0 = arith.constant 0 : i32
    %c0_i32_1 = arith.constant 0 : i32
    return %c0_i32, %c0_i32_0 : i32, i32
  }
  func.func @transform_2(%arg0: i32) -> (i32, i32) {
    %c0_i32 = arith.constant 0 : i32
    %c0_i32_0 = arith.constant 0 : i32
    %c0_i32_1 = arith.constant 0 : i32
    return %c0_i32, %c0_i32_0 : i32, i32
  }
  func.func @transform_3(%arg0: i32) -> (i32, i32, i32) {
    %c0_i32 = arith.constant 0 : i32
    %c0_i32_0 = arith.constant 0 : i32
    %c0_i32_1 = arith.constant 0 : i32
    %c0_i32_2 = arith.constant 0 : i32
    return %c0_i32, %c0_i32_0, %c0_i32_1 : i32, i32, i32
  }
  func.func @transform_4(%arg0: i32) -> (i32, i32) {
    %c0_i32 = arith.constant 0 : i32
    %c0_i32_0 = arith.constant 0 : i32
    %c0_i32_1 = arith.constant 0 : i32
    return %c0_i32, %c0_i32_0 : i32, i32
  }
  func.func @transform_5(%arg0: i32) -> (i32, i32) {
    %c0_i32 = arith.constant 0 : i32
    %c0_i32_0 = arith.constant 0 : i32
    %c0_i32_1 = arith.constant 0 : i32
    return %c0_i32, %c0_i32_0 : i32, i32
  }
  func.func @transform_6(%arg0: i32) -> (i32, i32) {
    %c0_i32 = arith.constant 0 : i32
    %c0_i32_0 = arith.constant 0 : i32
    %c0_i32_1 = arith.constant 0 : i32
    return %c0_i32, %c0_i32_0 : i32, i32
  }
  func.func @transform_7(%arg0: i32) -> (i32, i32, i32, i32) {
    %c0_i32 = arith.constant 0 : i32
    %c0_i32_0 = arith.constant 0 : i32
    %c0_i32_1 = arith.constant 0 : i32
    %c0_i32_2 = arith.constant 0 : i32
    return %arg0, %c0_i32, %c0_i32_0, %c0_i32_1 : i32, i32, i32, i32
  }
}

module attributes {stable_mosaic.version = 11 : i64} {
  func.func @_bottleneck_kernel(%arg0: i32, %arg1: memref<1x16x16x16xbf16, #tpu.memory_space<vmem>>, %arg2: memref<16x4xbf16, #tpu.memory_space<vmem>>, %arg3: memref<1x4xf32, #tpu.memory_space<vmem>>, %arg4: memref<9x4x4xbf16, #tpu.memory_space<vmem>>, %arg5: memref<1x4xf32, #tpu.memory_space<vmem>>, %arg6: memref<4x16xbf16, #tpu.memory_space<vmem>>, %arg7: memref<1x16xf32, #tpu.memory_space<vmem>>, %arg8: memref<1x16x16x16xbf16, #tpu.memory_space<vmem>>, %arg9: memref<18x18x4xbf16, #tpu.memory_space<vmem>>) attributes {dimension_semantics = [#tpu.dimension_semantics<parallel>], iteration_bounds = array<i64: 2>, scalar_prefetch = 0 : i64, scratch_operands = 1 : i64, tpu.core_type = #tpu.core_type<tc>, window_params = [{transform_indices = @transform_0, window_bounds = array<i64: 1, 16, 16, 16>}, {pipeline_mode = #tpu.pipeline_mode<synchronous>, transform_indices = @transform_1, window_bounds = array<i64: 16, 4>}, {pipeline_mode = #tpu.pipeline_mode<synchronous>, transform_indices = @transform_2, window_bounds = array<i64: 1, 4>}, {pipeline_mode = #tpu.pipeline_mode<synchronous>, transform_indices = @transform_3, window_bounds = array<i64: 9, 4, 4>}, {pipeline_mode = #tpu.pipeline_mode<synchronous>, transform_indices = @transform_4, window_bounds = array<i64: 1, 4>}, {pipeline_mode = #tpu.pipeline_mode<synchronous>, transform_indices = @transform_5, window_bounds = array<i64: 4, 16>}, {pipeline_mode = #tpu.pipeline_mode<synchronous>, transform_indices = @transform_6, window_bounds = array<i64: 1, 16>}, {transform_indices = @transform_7, window_bounds = array<i64: 1, 16, 16, 16>}]} {
    %c0 = arith.constant 0 : index
    %c0_0 = arith.constant 0 : index
    %c0_1 = arith.constant 0 : index
    %c0_2 = arith.constant 0 : index
    %0 = vector.load %arg1[%c0, %c0_0, %c0_1, %c0_2] : memref<1x16x16x16xbf16, #tpu.memory_space<vmem>>, vector<1x16x16x16xbf16>
    %1 = vector.shape_cast %0 : vector<1x16x16x16xbf16> to vector<16x16x16xbf16>
    %2 = vector.shape_cast %1 : vector<16x16x16xbf16> to vector<256x16xbf16>
    %c0_3 = arith.constant 0 : index
    %c0_4 = arith.constant 0 : index
    %3 = vector.load %arg2[%c0_3, %c0_4] : memref<16x4xbf16, #tpu.memory_space<vmem>>, vector<16x4xbf16>
    %cst = arith.constant dense<0.000000e+00> : vector<256x4xf32>
    %4 = tpu.matmul %2, %3, %cst {dimension_numbers = #tpu.dot_dimension_numbers<[1], [0], [0], [1], [0, 0, 1, 1], [], []>} : vector<256x16xbf16>, vector<16x4xbf16>, vector<256x4xf32> -> vector<256x4xf32>
    %c0_5 = arith.constant 0 : index
    %c0_6 = arith.constant 0 : index
    %5 = vector.load %arg3[%c0_5, %c0_6] : memref<1x4xf32, #tpu.memory_space<vmem>>, vector<1x4xf32>
    %6 = vector.broadcast %5 : vector<1x4xf32> to vector<256x4xf32>
    %7 = arith.addf %4, %6 : vector<256x4xf32>
    %cst_7 = arith.constant 0.000000e+00 : f32
    %8 = vector.broadcast %cst_7 : f32 to vector<256x4xf32>
    %9 = arith.maximumf %7, %8 : vector<256x4xf32>
    %10 = arith.truncf %9 : vector<256x4xf32> to vector<256x4xbf16>
    %cst_8 = arith.constant 0.000000e+00 : bf16
    %11 = vector.broadcast %cst_8 : bf16 to vector<1x18x4xbf16>
    %cst_9 = arith.constant 0.000000e+00 : bf16
    %12 = vector.broadcast %cst_9 : bf16 to vector<16x1x4xbf16>
    %c0_10 = arith.constant 0 : index
    %c0_11 = arith.constant 0 : index
    %c0_12 = arith.constant 0 : index
    %13 = vector.load %arg9[%c0_10, %c0_11, %c0_12] : memref<18x18x4xbf16, #tpu.memory_space<vmem>>, vector<1x18x4xbf16>
    tpu.vector_store %arg9[%c0_10, %c0_11, %c0_12], %11 {strides = array<i32>} : memref<18x18x4xbf16, #tpu.memory_space<vmem>>, vector<1x18x4xbf16>,
    %c17 = arith.constant 17 : index
    %c0_13 = arith.constant 0 : index
    %c0_14 = arith.constant 0 : index
    %14 = vector.load %arg9[%c17, %c0_13, %c0_14] : memref<18x18x4xbf16, #tpu.memory_space<vmem>>, vector<1x18x4xbf16>
    tpu.vector_store %arg9[%c17, %c0_13, %c0_14], %11 {strides = array<i32>} : memref<18x18x4xbf16, #tpu.memory_space<vmem>>, vector<1x18x4xbf16>,
    %c1 = arith.constant 1 : index
    %c0_15 = arith.constant 0 : index
    %c0_16 = arith.constant 0 : index
    %15 = vector.load %arg9[%c1, %c0_15, %c0_16] : memref<18x18x4xbf16, #tpu.memory_space<vmem>>, vector<16x1x4xbf16>
    tpu.vector_store %arg9[%c1, %c0_15, %c0_16], %12 {strides = array<i32>} : memref<18x18x4xbf16, #tpu.memory_space<vmem>>, vector<16x1x4xbf16>,
    %c1_17 = arith.constant 1 : index
    %c17_18 = arith.constant 17 : index
    %c0_19 = arith.constant 0 : index
    %16 = vector.load %arg9[%c1_17, %c17_18, %c0_19] : memref<18x18x4xbf16, #tpu.memory_space<vmem>>, vector<16x1x4xbf16>
    tpu.vector_store %arg9[%c1_17, %c17_18, %c0_19], %12 {strides = array<i32>} : memref<18x18x4xbf16, #tpu.memory_space<vmem>>, vector<16x1x4xbf16>,
    %17 = vector.shape_cast %10 : vector<256x4xbf16> to vector<16x16x4xbf16>
    %c1_20 = arith.constant 1 : index
    %c1_21 = arith.constant 1 : index
    %c0_22 = arith.constant 0 : index
    %18 = vector.load %arg9[%c1_20, %c1_21, %c0_22] : memref<18x18x4xbf16, #tpu.memory_space<vmem>>, vector<16x16x4xbf16>
    tpu.vector_store %arg9[%c1_20, %c1_21, %c0_22], %17 {strides = array<i32>} : memref<18x18x4xbf16, #tpu.memory_space<vmem>>, vector<16x16x4xbf16>,
    %cst_23 = arith.constant 0.000000e+00 : f32
    %19 = vector.broadcast %cst_23 : f32 to vector<256x4xf32>
    %c0_24 = arith.constant 0 : index
    %c0_25 = arith.constant 0 : index
    %c0_26 = arith.constant 0 : index
    %20 = vector.load %arg9[%c0_24, %c0_25, %c0_26] : memref<18x18x4xbf16, #tpu.memory_space<vmem>>, vector<16x16x4xbf16>
    %21 = vector.shape_cast %20 : vector<16x16x4xbf16> to vector<256x4xbf16>
    %c0_27 = arith.constant 0 : index
    %c0_28 = arith.constant 0 : index
    %c0_29 = arith.constant 0 : index
    %22 = vector.load %arg4[%c0_27, %c0_28, %c0_29] : memref<9x4x4xbf16, #tpu.memory_space<vmem>>, vector<1x4x4xbf16>
    %23 = vector.shape_cast %22 : vector<1x4x4xbf16> to vector<4x4xbf16>
    %cst_30 = arith.constant dense<0.000000e+00> : vector<256x4xf32>
    %24 = tpu.matmul %21, %23, %cst_30 {dimension_numbers = #tpu.dot_dimension_numbers<[1], [0], [0], [1], [0, 0, 1, 1], [], []>} : vector<256x4xbf16>, vector<4x4xbf16>, vector<256x4xf32> -> vector<256x4xf32>
    %25 = arith.addf %19, %24 : vector<256x4xf32>
    %c0_31 = arith.constant 0 : index
    %c1_32 = arith.constant 1 : index
    %c0_33 = arith.constant 0 : index
    %26 = vector.load %arg9[%c0_31, %c1_32, %c0_33] : memref<18x18x4xbf16, #tpu.memory_space<vmem>>, vector<16x16x4xbf16>
    %27 = vector.shape_cast %26 : vector<16x16x4xbf16> to vector<256x4xbf16>
    %c1_34 = arith.constant 1 : index
    %c0_35 = arith.constant 0 : index
    %c0_36 = arith.constant 0 : index
    %28 = vector.load %arg4[%c1_34, %c0_35, %c0_36] : memref<9x4x4xbf16, #tpu.memory_space<vmem>>, vector<1x4x4xbf16>
    %29 = vector.shape_cast %28 : vector<1x4x4xbf16> to vector<4x4xbf16>
    %cst_37 = arith.constant dense<0.000000e+00> : vector<256x4xf32>
    %30 = tpu.matmul %27, %29, %cst_37 {dimension_numbers = #tpu.dot_dimension_numbers<[1], [0], [0], [1], [0, 0, 1, 1], [], []>} : vector<256x4xbf16>, vector<4x4xbf16>, vector<256x4xf32> -> vector<256x4xf32>
    %31 = arith.addf %25, %30 : vector<256x4xf32>
    %c0_38 = arith.constant 0 : index
    %c2 = arith.constant 2 : index
    %c0_39 = arith.constant 0 : index
    %32 = vector.load %arg9[%c0_38, %c2, %c0_39] : memref<18x18x4xbf16, #tpu.memory_space<vmem>>, vector<16x16x4xbf16>
    %33 = vector.shape_cast %32 : vector<16x16x4xbf16> to vector<256x4xbf16>
    %c2_40 = arith.constant 2 : index
    %c0_41 = arith.constant 0 : index
    %c0_42 = arith.constant 0 : index
    %34 = vector.load %arg4[%c2_40, %c0_41, %c0_42] : memref<9x4x4xbf16, #tpu.memory_space<vmem>>, vector<1x4x4xbf16>
    %35 = vector.shape_cast %34 : vector<1x4x4xbf16> to vector<4x4xbf16>
    %cst_43 = arith.constant dense<0.000000e+00> : vector<256x4xf32>
    %36 = tpu.matmul %33, %35, %cst_43 {dimension_numbers = #tpu.dot_dimension_numbers<[1], [0], [0], [1], [0, 0, 1, 1], [], []>} : vector<256x4xbf16>, vector<4x4xbf16>, vector<256x4xf32> -> vector<256x4xf32>
    %37 = arith.addf %31, %36 : vector<256x4xf32>
    %c1_44 = arith.constant 1 : index
    %c0_45 = arith.constant 0 : index
    %c0_46 = arith.constant 0 : index
    %38 = vector.load %arg9[%c1_44, %c0_45, %c0_46] : memref<18x18x4xbf16, #tpu.memory_space<vmem>>, vector<16x16x4xbf16>
    %39 = vector.shape_cast %38 : vector<16x16x4xbf16> to vector<256x4xbf16>
    %c3 = arith.constant 3 : index
    %c0_47 = arith.constant 0 : index
    %c0_48 = arith.constant 0 : index
    %40 = vector.load %arg4[%c3, %c0_47, %c0_48] : memref<9x4x4xbf16, #tpu.memory_space<vmem>>, vector<1x4x4xbf16>
    %41 = vector.shape_cast %40 : vector<1x4x4xbf16> to vector<4x4xbf16>
    %cst_49 = arith.constant dense<0.000000e+00> : vector<256x4xf32>
    %42 = tpu.matmul %39, %41, %cst_49 {dimension_numbers = #tpu.dot_dimension_numbers<[1], [0], [0], [1], [0, 0, 1, 1], [], []>} : vector<256x4xbf16>, vector<4x4xbf16>, vector<256x4xf32> -> vector<256x4xf32>
    %43 = arith.addf %37, %42 : vector<256x4xf32>
    %c1_50 = arith.constant 1 : index
    %c1_51 = arith.constant 1 : index
    %c0_52 = arith.constant 0 : index
    %44 = vector.load %arg9[%c1_50, %c1_51, %c0_52] : memref<18x18x4xbf16, #tpu.memory_space<vmem>>, vector<16x16x4xbf16>
    %45 = vector.shape_cast %44 : vector<16x16x4xbf16> to vector<256x4xbf16>
    %c4 = arith.constant 4 : index
    %c0_53 = arith.constant 0 : index
    %c0_54 = arith.constant 0 : index
    %46 = vector.load %arg4[%c4, %c0_53, %c0_54] : memref<9x4x4xbf16, #tpu.memory_space<vmem>>, vector<1x4x4xbf16>
    %47 = vector.shape_cast %46 : vector<1x4x4xbf16> to vector<4x4xbf16>
    %cst_55 = arith.constant dense<0.000000e+00> : vector<256x4xf32>
    %48 = tpu.matmul %45, %47, %cst_55 {dimension_numbers = #tpu.dot_dimension_numbers<[1], [0], [0], [1], [0, 0, 1, 1], [], []>} : vector<256x4xbf16>, vector<4x4xbf16>, vector<256x4xf32> -> vector<256x4xf32>
    %49 = arith.addf %43, %48 : vector<256x4xf32>
    %c1_56 = arith.constant 1 : index
    %c2_57 = arith.constant 2 : index
    %c0_58 = arith.constant 0 : index
    %50 = vector.load %arg9[%c1_56, %c2_57, %c0_58] : memref<18x18x4xbf16, #tpu.memory_space<vmem>>, vector<16x16x4xbf16>
    %51 = vector.shape_cast %50 : vector<16x16x4xbf16> to vector<256x4xbf16>
    %c5 = arith.constant 5 : index
    %c0_59 = arith.constant 0 : index
    %c0_60 = arith.constant 0 : index
    %52 = vector.load %arg4[%c5, %c0_59, %c0_60] : memref<9x4x4xbf16, #tpu.memory_space<vmem>>, vector<1x4x4xbf16>
    %53 = vector.shape_cast %52 : vector<1x4x4xbf16> to vector<4x4xbf16>
    %cst_61 = arith.constant dense<0.000000e+00> : vector<256x4xf32>
    %54 = tpu.matmul %51, %53, %cst_61 {dimension_numbers = #tpu.dot_dimension_numbers<[1], [0], [0], [1], [0, 0, 1, 1], [], []>} : vector<256x4xbf16>, vector<4x4xbf16>, vector<256x4xf32> -> vector<256x4xf32>
    %55 = arith.addf %49, %54 : vector<256x4xf32>
    %c2_62 = arith.constant 2 : index
    %c0_63 = arith.constant 0 : index
    %c0_64 = arith.constant 0 : index
    %56 = vector.load %arg9[%c2_62, %c0_63, %c0_64] : memref<18x18x4xbf16, #tpu.memory_space<vmem>>, vector<16x16x4xbf16>
    %57 = vector.shape_cast %56 : vector<16x16x4xbf16> to vector<256x4xbf16>
    %c6 = arith.constant 6 : index
    %c0_65 = arith.constant 0 : index
    %c0_66 = arith.constant 0 : index
    %58 = vector.load %arg4[%c6, %c0_65, %c0_66] : memref<9x4x4xbf16, #tpu.memory_space<vmem>>, vector<1x4x4xbf16>
    %59 = vector.shape_cast %58 : vector<1x4x4xbf16> to vector<4x4xbf16>
    %cst_67 = arith.constant dense<0.000000e+00> : vector<256x4xf32>
    %60 = tpu.matmul %57, %59, %cst_67 {dimension_numbers = #tpu.dot_dimension_numbers<[1], [0], [0], [1], [0, 0, 1, 1], [], []>} : vector<256x4xbf16>, vector<4x4xbf16>, vector<256x4xf32> -> vector<256x4xf32>
    %61 = arith.addf %55, %60 : vector<256x4xf32>
    %c2_68 = arith.constant 2 : index
    %c1_69 = arith.constant 1 : index
    %c0_70 = arith.constant 0 : index
    %62 = vector.load %arg9[%c2_68, %c1_69, %c0_70] : memref<18x18x4xbf16, #tpu.memory_space<vmem>>, vector<16x16x4xbf16>
    %63 = vector.shape_cast %62 : vector<16x16x4xbf16> to vector<256x4xbf16>
    %c7 = arith.constant 7 : index
    %c0_71 = arith.constant 0 : index
    %c0_72 = arith.constant 0 : index
    %64 = vector.load %arg4[%c7, %c0_71, %c0_72] : memref<9x4x4xbf16, #tpu.memory_space<vmem>>, vector<1x4x4xbf16>
    %65 = vector.shape_cast %64 : vector<1x4x4xbf16> to vector<4x4xbf16>
    %cst_73 = arith.constant dense<0.000000e+00> : vector<256x4xf32>
    %66 = tpu.matmul %63, %65, %cst_73 {dimension_numbers = #tpu.dot_dimension_numbers<[1], [0], [0], [1], [0, 0, 1, 1], [], []>} : vector<256x4xbf16>, vector<4x4xbf16>, vector<256x4xf32> -> vector<256x4xf32>
    %67 = arith.addf %61, %66 : vector<256x4xf32>
    %c2_74 = arith.constant 2 : index
    %c2_75 = arith.constant 2 : index
    %c0_76 = arith.constant 0 : index
    %68 = vector.load %arg9[%c2_74, %c2_75, %c0_76] : memref<18x18x4xbf16, #tpu.memory_space<vmem>>, vector<16x16x4xbf16>
    %69 = vector.shape_cast %68 : vector<16x16x4xbf16> to vector<256x4xbf16>
    %c8 = arith.constant 8 : index
    %c0_77 = arith.constant 0 : index
    %c0_78 = arith.constant 0 : index
    %70 = vector.load %arg4[%c8, %c0_77, %c0_78] : memref<9x4x4xbf16, #tpu.memory_space<vmem>>, vector<1x4x4xbf16>
    %71 = vector.shape_cast %70 : vector<1x4x4xbf16> to vector<4x4xbf16>
    %cst_79 = arith.constant dense<0.000000e+00> : vector<256x4xf32>
    %72 = tpu.matmul %69, %71, %cst_79 {dimension_numbers = #tpu.dot_dimension_numbers<[1], [0], [0], [1], [0, 0, 1, 1], [], []>} : vector<256x4xbf16>, vector<4x4xbf16>, vector<256x4xf32> -> vector<256x4xf32>
    %73 = arith.addf %67, %72 : vector<256x4xf32>
    %c0_80 = arith.constant 0 : index
    %c0_81 = arith.constant 0 : index
    %74 = vector.load %arg5[%c0_80, %c0_81] : memref<1x4xf32, #tpu.memory_space<vmem>>, vector<1x4xf32>
    %75 = vector.broadcast %74 : vector<1x4xf32> to vector<256x4xf32>
    %76 = arith.addf %73, %75 : vector<256x4xf32>
    %cst_82 = arith.constant 0.000000e+00 : f32
    %77 = vector.broadcast %cst_82 : f32 to vector<256x4xf32>
    %78 = arith.maximumf %76, %77 : vector<256x4xf32>
    %79 = arith.truncf %78 : vector<256x4xf32> to vector<256x4xbf16>
    %c0_83 = arith.constant 0 : index
    %c0_84 = arith.constant 0 : index
    %80 = vector.load %arg6[%c0_83, %c0_84] : memref<4x16xbf16, #tpu.memory_space<vmem>>, vector<4x16xbf16>
    %cst_85 = arith.constant dense<0.000000e+00> : vector<256x16xf32>
    %81 = tpu.matmul %79, %80, %cst_85 {dimension_numbers = #tpu.dot_dimension_numbers<[1], [0], [0], [1], [0, 0, 1, 1], [], []>} : vector<256x4xbf16>, vector<4x16xbf16>, vector<256x16xf32> -> vector<256x16xf32>
    %c0_86 = arith.constant 0 : index
    %c0_87 = arith.constant 0 : index
    %82 = vector.load %arg7[%c0_86, %c0_87] : memref<1x16xf32, #tpu.memory_space<vmem>>, vector<1x16xf32>
    %83 = vector.broadcast %82 : vector<1x16xf32> to vector<256x16xf32>
    %84 = arith.addf %81, %83 : vector<256x16xf32>
    %c0_88 = arith.constant 0 : index
    %c0_89 = arith.constant 0 : index
    %c0_90 = arith.constant 0 : index
    %c0_91 = arith.constant 0 : index
    %85 = vector.load %arg1[%c0_88, %c0_89, %c0_90, %c0_91] : memref<1x16x16x16xbf16, #tpu.memory_space<vmem>>, vector<1x16x16x16xbf16>
    %86 = vector.shape_cast %85 : vector<1x16x16x16xbf16> to vector<16x16x16xbf16>
    %87 = vector.shape_cast %86 : vector<16x16x16xbf16> to vector<256x16xbf16>
    %88 = arith.extf %87 : vector<256x16xbf16> to vector<256x16xf32>
    %89 = arith.addf %84, %88 : vector<256x16xf32>
    %cst_92 = arith.constant 0.000000e+00 : f32
    %90 = vector.broadcast %cst_92 : f32 to vector<256x16xf32>
    %91 = arith.maximumf %89, %90 : vector<256x16xf32>
    %92 = vector.shape_cast %91 : vector<256x16xf32> to vector<16x16x16xf32>
    %93 = arith.truncf %92 : vector<16x16x16xf32> to vector<16x16x16xbf16>
    %c0_93 = arith.constant 0 : index
    %c0_94 = arith.constant 0 : index
    %c0_95 = arith.constant 0 : index
    %c0_96 = arith.constant 0 : index
    %94 = vector.load %arg8[%c0_93, %c0_94, %c0_95, %c0_96] : memref<1x16x16x16xbf16, #tpu.memory_space<vmem>>, vector<1x16x16x16xbf16>
    %95 = vector.shape_cast %94 : vector<1x16x16x16xbf16> to vector<16x16x16xbf16>
    %96 = vector.shape_cast %93 : vector<16x16x16xbf16> to vector<1x16x16x16xbf16>
    tpu.vector_store %arg8[%c0_93, %c0_94, %c0_95, %c0_96], %96 {strides = array<i32>} : memref<1x16x16x16xbf16, #tpu.memory_space<vmem>>, vector<1x16x16x16xbf16>,
    return
  }
  func.func @transform_0(%arg0: i32) -> (i32, i32, i32, i32) {
    %c0_i32 = arith.constant 0 : i32
    %c0_i32_0 = arith.constant 0 : i32
    %c0_i32_1 = arith.constant 0 : i32
    %c0_i32_2 = arith.constant 0 : i32
    return %arg0, %c0_i32, %c0_i32_0, %c0_i32_1 : i32, i32, i32, i32
  }
  func.func @transform_1(%arg0: i32) -> (i32, i32) {
    %c0_i32 = arith.constant 0 : i32
    %c0_i32_0 = arith.constant 0 : i32
    %c0_i32_1 = arith.constant 0 : i32
    return %c0_i32, %c0_i32_0 : i32, i32
  }
  func.func @transform_2(%arg0: i32) -> (i32, i32) {
    %c0_i32 = arith.constant 0 : i32
    %c0_i32_0 = arith.constant 0 : i32
    %c0_i32_1 = arith.constant 0 : i32
    return %c0_i32, %c0_i32_0 : i32, i32
  }
  func.func @transform_3(%arg0: i32) -> (i32, i32, i32) {
    %c0_i32 = arith.constant 0 : i32
    %c0_i32_0 = arith.constant 0 : i32
    %c0_i32_1 = arith.constant 0 : i32
    %c0_i32_2 = arith.constant 0 : i32
    return %c0_i32, %c0_i32_0, %c0_i32_1 : i32, i32, i32
  }
  func.func @transform_4(%arg0: i32) -> (i32, i32) {
    %c0_i32 = arith.constant 0 : i32
    %c0_i32_0 = arith.constant 0 : i32
    %c0_i32_1 = arith.constant 0 : i32
    return %c0_i32, %c0_i32_0 : i32, i32
  }
  func.func @transform_5(%arg0: i32) -> (i32, i32) {
    %c0_i32 = arith.constant 0 : i32
    %c0_i32_0 = arith.constant 0 : i32
    %c0_i32_1 = arith.constant 0 : i32
    return %c0_i32, %c0_i32_0 : i32, i32
  }
  func.func @transform_6(%arg0: i32) -> (i32, i32) {
    %c0_i32 = arith.constant 0 : i32
    %c0_i32_0 = arith.constant 0 : i32
    %c0_i32_1 = arith.constant 0 : i32
    return %c0_i32, %c0_i32_0 : i32, i32
  }
  func.func @transform_7(%arg0: i32) -> (i32, i32, i32, i32) {
    %c0_i32 = arith.constant 0 : i32
    %c0_i32_0 = arith.constant 0 : i32
    %c0_i32_1 = arith.constant 0 : i32
    %c0_i32_2 = arith.constant 0 : i32
    return %arg0, %c0_i32, %c0_i32_0, %c0_i32_1 : i32, i32, i32, i32
  }
}

</mosaic_0001>

<llo_original>
// kernel: tpu_custom_call.1
$region0: #{tpu_custom_call.1}
  #allocation0 [shape = 'u32[]', space=smem, size = 0x4, offset = 0x4, fixed_abs, tag = 'smem constant byte address 0x4 - core index']
  #allocation1 [shape = 'u32[72,128]{1,0:T(1,128)}', space=vmem, size = 0x9000, scoped, tag = 'internal scratch']
  #allocation2 [shape = 'bf16[18,18,4]{2,1,0:T(8,128)(2,1)}', space=vmem, size = 0x1b000, scoped, tag = 'scratch operand']
  %s0 = inlined_call_operand.hbm [shape: bf16[2,16,16,16], index: 0, kind: input, shape index: {}]
  %s1 = inlined_call_operand.vmem [shape: bf16[16,4], index: 1, kind: input, shape index: {}]
  %s2 = inlined_call_operand.vmem [shape: f32[1,4], index: 2, kind: input, shape index: {}]
  %s3 = inlined_call_operand.vmem [shape: bf16[9,4,4], index: 3, kind: input, shape index: {}]
  %s4 = inlined_call_operand.vmem [shape: f32[1,4], index: 4, kind: input, shape index: {}]
  %s5 = inlined_call_operand.vmem [shape: bf16[4,16], index: 5, kind: input, shape index: {}]
  %s6 = inlined_call_operand.vmem [shape: f32[1,16], index: 6, kind: input, shape index: {}]
  %s7 = inlined_call_operand.hbm [shape: bf16[2,16,16,16], index: 7, kind: output, shape index: {}]
  %s8 = sld [smem:[#allocation0]]
  $region65: #{tpu_custom_call.1} parent=0
    _
  %s10 = ssub.s32 1, %s8
  %s11 = scalar_select 0, %s10, %s8
  $region1: #{tpu_custom_call.1} parent=0
    #allocation3 [shape = 'u8[131072]{0}', space=vmem, size = 0x20000, scoped, tag = 'input window, operand 0']
    #allocation4 [shape = 's32[2]{0}', space=sflag, size = 0x8, scoped, tag = 'scoped memory for tpu_custom_call.1']
    #allocation5 [shape = 's32[2]{0}', space=sflag, size = 0x8, scoped, tag = 'scoped memory for tpu_custom_call.1']
    #allocation6 [shape = 'u8[131072]{0}', space=vmem, size = 0x20000, scoped, tag = 'output window, operand 0']
    %12 = vsyncpa [#allocation4], 0
    %s13 = scalar_lea.sflag [#allocation4], 1
    %14 = vsyncpa %s13, 0
    %15 = vsyncpa [#allocation5], 0
    %s16 = scalar_lea.sflag [#allocation5], 1
    %17 = vsyncpa %s16, 0
    loop: start=0, step=1, limit=4
    $region2: #{tpu_custom_call.1} parent=1 // loop_pre_header
      _
    $region3: #{tpu_custom_call.1} parent=1 // loop_header
      %s19 = sphi 0, %s23
      %p20 = scmp.ge.s32.totalorder %s19, 4
      %s29 = sphi 0, %s31
      %s32 = sphi 0, %s29
      %s33 = sphi 0, %s32
      %s49 = sphi 0, %s33
      %s53 = sphi 0, %s53
      %s55 = sphi 0, %s53
      %s56 = sphi 0, %s55
      %s70 = sphi 0, %s56
      %s74 = sphi 0, %s74
      %s76 = sphi 0, %s74
      %s77 = sphi 0, %s76
      %s91 = sphi 0, %s77
      %s95 = sphi 0, %s95
      %s97 = sphi 0, %s95
      %s98 = sphi 0, %s97
      %s112 = sphi 0, %s98
      %s116 = sphi 0, %s116
      %s118 = sphi 0, %s116
      %s119 = sphi 0, %s118
      %s133 = sphi 0, %s119
      %s137 = sphi 0, %s137
      %s139 = sphi 0, %s137
      %s140 = sphi 0, %s139
      %s154 = sphi 0, %s140
      %s158 = sphi 0, %s158
      %s160 = sphi 0, %s158
      %s161 = sphi 0, %s160
      %s175 = sphi 0, %s161
      %s181 = sphi 0, %s183
      %s184 = sphi 0, %s181
      %s185 = sphi 0, %s184
      %s201 = sphi 0, %s185
    $region4: #{tpu_custom_call.1} parent=1 // loop_header_branch
      %22 = sbr.rel (%p20) target = $region8
    $region5: #{tpu_custom_call.1} parent=1 // loop_body
      %s24 = ssub.s32 %s19, 1
      %s25 = ssub.s32 %s19, 2
      %s26 = sadd.s32 %s19, 1
      %s27 = ssub.s32 %s19, %s26
      %p28 = scmp.eq.s32.totalorder %s27, 0
      %s30 = sadd.s32 %s29, 1
      %s31 = scalar_select %p28, %s29, %s30
      %p34 = pneg %p28
      %p35 = scmp.eq.s32.totalorder %s19, 1
      %p36 = por %p34, %p35
      %p37 = scmp.ne.s32.totalorder %s29, %s32
      %p38 = scmp.eq.s32.totalorder %s19, 0
      %p39 = por %p37, %p38
      %p40 = scmp.ne.s32.totalorder %s29, %s32
      %p41 = scmp.eq.s32.totalorder %s24, 1
      %p42 = por %p40, %p41
      %p43 = scmp.ne.s32.totalorder %s32, %s33
      %p44 = scmp.eq.s32.totalorder %s24, 0
      %p45 = por %p43, %p44
      %p46 = scmp.ne.s32.totalorder %s32, %s33
      %p47 = scmp.eq.s32.totalorder %s25, 1
      %p48 = por %p46, %p47
      %p50 = scmp.ne.s32.totalorder %s33, %s49
      %p51 = scmp.eq.s32.totalorder %s25, 0
      %p52 = por %p50, %p51
      %s54 = sadd.s32 %s53, 1
      %p57 = scmp.eq.s32.totalorder %s19, 1
      %p58 = scmp.ne.s32.totalorder %s53, %s55
      %p59 = scmp.eq.s32.totalorder %s19, 0
      %p60 = por %p58, %p59
      %p61 = scmp.ne.s32.totalorder %s53, %s55
      %p62 = scmp.eq.s32.totalorder %s24, 1
      %p63 = por %p61, %p62
      %p64 = scmp.ne.s32.totalorder %s55, %s56
      %p65 = scmp.eq.s32.totalorder %s24, 0
      %p66 = por %p64, %p65
      %p67 = scmp.ne.s32.totalorder %s55, %s56
      %p68 = scmp.eq.s32.totalorder %s25, 1
      %p69 = por %p67, %p68
      %p71 = scmp.ne.s32.totalorder %s56, %s70
      %p72 = scmp.eq.s32.totalorder %s25, 0
      %p73 = por %p71, %p72
      %s75 = sadd.s32 %s74, 1
      %p78 = scmp.eq.s32.totalorder %s19, 1
      %p79 = scmp.ne.s32.totalorder %s74, %s76
      %p80 = scmp.eq.s32.totalorder %s19, 0
      %p81 = por %p79, %p80
      %p82 = scmp.ne.s32.totalorder %s74, %s76
      %p83 = scmp.eq.s32.totalorder %s24, 1
      %p84 = por %p82, %p83
      %p85 = scmp.ne.s32.totalorder %s76, %s77
      %p86 = scmp.eq.s32.totalorder %s24, 0
      %p87 = por %p85, %p86
      %p88 = scmp.ne.s32.totalorder %s76, %s77
      %p89 = scmp.eq.s32.totalorder %s25, 1
      %p90 = por %p88, %p89
      %p92 = scmp.ne.s32.totalorder %s77, %s91
      %p93 = scmp.eq.s32.totalorder %s25, 0
      %p94 = por %p92, %p93
      %s96 = sadd.s32 %s95, 1
      %p99 = scmp.eq.s32.totalorder %s19, 1
      %p100 = scmp.ne.s32.totalorder %s95, %s97
      %p101 = scmp.eq.s32.totalorder %s19, 0
      %p102 = por %p100, %p101
      %p103 = scmp.ne.s32.totalorder %s95, %s97
      %p104 = scmp.eq.s32.totalorder %s24, 1
      %p105 = por %p103, %p104
      %p106 = scmp.ne.s32.totalorder %s97, %s98
      %p107 = scmp.eq.s32.totalorder %s24, 0
      %p108 = por %p106, %p107
      %p109 = scmp.ne.s32.totalorder %s97, %s98
      %p110 = scmp.eq.s32.totalorder %s25, 1
      %p111 = por %p109, %p110
      %p113 = scmp.ne.s32.totalorder %s98, %s112
      %p114 = scmp.eq.s32.totalorder %s25, 0
      %p115 = por %p113, %p114
      %s117 = sadd.s32 %s116, 1
      %p120 = scmp.eq.s32.totalorder %s19, 1
      %p121 = scmp.ne.s32.totalorder %s116, %s118
      %p122 = scmp.eq.s32.totalorder %s19, 0
      %p123 = por %p121, %p122
      %p124 = scmp.ne.s32.totalorder %s116, %s118
      %p125 = scmp.eq.s32.totalorder %s24, 1
      %p126 = por %p124, %p125
      %p127 = scmp.ne.s32.totalorder %s118, %s119
      %p128 = scmp.eq.s32.totalorder %s24, 0
      %p129 = por %p127, %p128
      %p130 = scmp.ne.s32.totalorder %s118, %s119
      %p131 = scmp.eq.s32.totalorder %s25, 1
      %p132 = por %p130, %p131
      %p134 = scmp.ne.s32.totalorder %s119, %s133
      %p135 = scmp.eq.s32.totalorder %s25, 0
      %p136 = por %p134, %p135
      %s138 = sadd.s32 %s137, 1
      %p141 = scmp.eq.s32.totalorder %s19, 1
      %p142 = scmp.ne.s32.totalorder %s137, %s139
      %p143 = scmp.eq.s32.totalorder %s19, 0
      %p144 = por %p142, %p143
      %p145 = scmp.ne.s32.totalorder %s137, %s139
      %p146 = scmp.eq.s32.totalorder %s24, 1
      %p147 = por %p145, %p146
      %p148 = scmp.ne.s32.totalorder %s139, %s140
      %p149 = scmp.eq.s32.totalorder %s24, 0
      %p150 = por %p148, %p149
      %p151 = scmp.ne.s32.totalorder %s139, %s140
      %p152 = scmp.eq.s32.totalorder %s25, 1
      %p153 = por %p151, %p152
      %p155 = scmp.ne.s32.totalorder %s140, %s154
      %p156 = scmp.eq.s32.totalorder %s25, 0
      %p157 = por %p155, %p156
      %s159 = sadd.s32 %s158, 1
      %p162 = scmp.eq.s32.totalorder %s19, 1
      %p163 = scmp.ne.s32.totalorder %s158, %s160
      %p164 = scmp.eq.s32.totalorder %s19, 0
      %p165 = por %p163, %p164
      %p166 = scmp.ne.s32.totalorder %s158, %s160
      %p167 = scmp.eq.s32.totalorder %s24, 1
      %p168 = por %p166, %p167
      %p169 = scmp.ne.s32.totalorder %s160, %s161
      %p170 = scmp.eq.s32.totalorder %s24, 0
      %p171 = por %p169, %p170
      %p172 = scmp.ne.s32.totalorder %s160, %s161
      %p173 = scmp.eq.s32.totalorder %s25, 1
      %p174 = por %p172, %p173
      %p176 = scmp.ne.s32.totalorder %s161, %s175
      %p177 = scmp.eq.s32.totalorder %s25, 0
      %p178 = por %p176, %p177
      %s179 = ssub.s32 %s19, %s26
      %p180 = scmp.eq.s32.totalorder %s179, 0
      %s182 = sadd.s32 %s181, 1
      %s183 = scalar_select %p180, %s181, %s182
      %p186 = pneg %p180
      %p187 = scmp.eq.s32.totalorder %s19, 1
      %p188 = por %p186, %p187
      %p189 = scmp.ne.s32.totalorder %s181, %s184
      %p190 = scmp.eq.s32.totalorder %s19, 0
      %p191 = por %p189, %p190
      %p192 = scmp.ne.s32.totalorder %s181, %s184
      %p193 = scmp.eq.s32.totalorder %s24, 1
      %p194 = por %p192, %p193
      %p195 = scmp.ne.s32.totalorder %s184, %s185
      %p196 = scmp.eq.s32.totalorder %s24, 0
      %p197 = por %p195, %p196
      %p198 = scmp.ne.s32.totalorder %s184, %s185
      %p199 = scmp.eq.s32.totalorder %s25, 1
      %p200 = por %p198, %p199
      %p202 = scmp.ne.s32.totalorder %s185, %s201
      %p203 = scmp.eq.s32.totalorder %s25, 0
      %p204 = por %p202, %p203
      %p205 = scmp.le.s32.totalorder 1, %s19
      %p206 = scmp.lt.s32.totalorder %s19, 3
      %p207 = pnand %p205, %p206
      %p208 = pneg %p207
      // Predicated region
      $region9: #{tpu_custom_call.1} parent=5 // pred_check
        _
      $region10: #{tpu_custom_call.1} parent=5 // pred_check_branch
        %210 = sbr.rel (%p207) target = $region12
      $region11: #{tpu_custom_call.1} parent=5 // pred_region
        %s211 = ssub.s32 %s19, 1
        // Predicated region
        $region13: #{tpu_custom_call.1} parent=11 // pred_check
          %p212 = pneg %p66
        $region14: #{tpu_custom_call.1} parent=11 // pred_check_branch
          %214 = sbr.rel (%p212) target = $region16
        $region15: #{tpu_custom_call.1} parent=11 // pred_region
          _
        $region16: #{tpu_custom_call.1} parent=11 // pred_fallthru
          _
        // Predicated region
        $region17: #{tpu_custom_call.1} parent=11 // pred_check
          %p215 = pneg %p87
        $region18: #{tpu_custom_call.1} parent=11 // pred_check_branch
          %217 = sbr.rel (%p215) target = $region20
        $region19: #{tpu_custom_call.1} parent=11 // pred_region
          _
        $region20: #{tpu_custom_call.1} parent=11 // pred_fallthru
          _
        // Predicated region
        $region21: #{tpu_custom_call.1} parent=11 // pred_check
          %p218 = pneg %p108
        $region22: #{tpu_custom_call.1} parent=11 // pred_check_branch
          %220 = sbr.rel (%p218) target = $region24
        $region23: #{tpu_custom_call.1} parent=11 // pred_region
          _
        $region24: #{tpu_custom_call.1} parent=11 // pred_fallthru
          _
        // Predicated region
        $region25: #{tpu_custom_call.1} parent=11 // pred_check
          %p221 = pneg %p129
        $region26: #{tpu_custom_call.1} parent=11 // pred_check_branch
          %223 = sbr.rel (%p221) target = $region28
        $region27: #{tpu_custom_call.1} parent=11 // pred_region
          _
        $region28: #{tpu_custom_call.1} parent=11 // pred_fallthru
          _
        // Predicated region
        $region29: #{tpu_custom_call.1} parent=11 // pred_check
          %p224 = pneg %p150
        $region30: #{tpu_custom_call.1} parent=11 // pred_check_branch
          %226 = sbr.rel (%p224) target = $region32
        $region31: #{tpu_custom_call.1} parent=11 // pred_region
          _
        $region32: #{tpu_custom_call.1} parent=11 // pred_fallthru
          _
        // Predicated region
        $region33: #{tpu_custom_call.1} parent=11 // pred_check
          %p227 = pneg %p171
        $region34: #{tpu_custom_call.1} parent=11 // pred_check_branch
          %229 = sbr.rel (%p227) target = $region36
        $region35: #{tpu_custom_call.1} parent=11 // pred_region
          _
        $region36: #{tpu_custom_call.1} parent=11 // pred_fallthru
          _
      $region12: #{tpu_custom_call.1} parent=5 // pred_fallthru
        _
      %p230 = scmp.lt.s32.totalorder %s19, 2
      // Predicated region
      $region37: #{tpu_custom_call.1} parent=5 // pred_check
        %p231 = pneg %p230
      $region38: #{tpu_custom_call.1} parent=5 // pred_check_branch
        %233 = sbr.rel (%p231) target = $region40
      $region39: #{tpu_custom_call.1} parent=5 // pred_region
        // Predicated region
        $region41: #{tpu_custom_call.1} parent=39 // pred_check
          %p234 = pneg %p39
        $region42: #{tpu_custom_call.1} parent=39 // pred_check_branch
          %236 = sbr.rel (%p234) target = $region44
        $region43: #{tpu_custom_call.1} parent=39 // pred_region
          %s237 = sand.u32 %s29, 1
          %s238 = scalar_lea.sflag [#allocation4], %s237
          %s239 = sand.u32 %s29, 1
          %s240 = smul.addr %s239, 128
          %s241 = scalar_lea.vmem [#allocation3], %s240
          %243 = vsyncadd %s238, 0
          %s244 = smul.addr %s19, 32
          %s245 = smul.addr %s244, 4
          %s246 = scalar_lea.hbm %s0, %s245
          %s247 = sshll.u32 %s246, 4
          %s248 = int_to_ptr.hbm [resolvable:$true] %s247
          %s249 = sshll.u32 %s241, 4
          %s250 = int_to_ptr.vmem [resolvable:$true] %s249
          %255 = dma.hbm_to_vmem [thread:$0]  %s248, 2048, %s250, %s238, 64, 64, 4
        $region44: #{tpu_custom_call.1} parent=39 // pred_fallthru
          _
      $region40: #{tpu_custom_call.1} parent=5 // pred_fallthru
        _
      %p256 = scmp.le.s32.totalorder 1, %s19
      %p257 = scmp.lt.s32.totalorder %s19, 3
      %p258 = pnand %p256, %p257
      %p259 = pneg %p258
      // Predicated region
      $region45: #{tpu_custom_call.1} parent=5 // pred_check
        _
      $region46: #{tpu_custom_call.1} parent=5 // pred_check_branch
        %261 = sbr.rel (%p258) target = $region48
      $region47: #{tpu_custom_call.1} parent=5 // pred_region
        %s262 = ssub.s32 %s19, 1
        %s263 = sand.u32 %s32, 1
        %s264 = scalar_lea.sflag [#allocation4], %s263
        %s265 = sand.u32 %s32, 1
        %s266 = smul.addr %s265, 128
        %s267 = scalar_lea.vmem [#allocation3], %s266
        // Predicated region
        $region49: #{tpu_custom_call.1} parent=47 // pred_check
          %p268 = pneg %p45
        $region50: #{tpu_custom_call.1} parent=47 // pred_check_branch
          %270 = sbr.rel (%p268) target = $region52
        $region51: #{tpu_custom_call.1} parent=47 // pred_region
          %272 = dma.done %s264, 2048
        $region52: #{tpu_custom_call.1} parent=47 // pred_fallthru
          _
        %s273 = sand.u32 %s32, 1
        %s274 = scalar_lea.sflag [#allocation4], %s273
        %s275 = sand.u32 %s32, 1
        %s276 = smul.addr %s275, 128
        %s277 = scalar_lea.vmem [#allocation3], %s276
        %p278 = pneg %p45
        %p279 = pneg %p42
        %p280 = pneg %p66
        %p281 = pneg %p63
        %p282 = pneg %p87
        %p283 = pneg %p84
        %p284 = pneg %p108
        %p285 = pneg %p105
        %p286 = pneg %p129
        %p287 = pneg %p126
        %p288 = pneg %p150
        %p289 = pneg %p147
        %p290 = pneg %p171
        %p291 = pneg %p168
        %p292 = pneg %p197
        %p293 = pneg %p194
        %s294 = sand.u32 %s184, 1
        %s295 = scalar_lea.sflag [#allocation5], %s294
        %s296 = sand.u32 %s184, 1
        %s297 = smul.addr %s296, 128
        %s298 = scalar_lea.vmem [#allocation6], %s297
        %v300 = vld [vmem:[%s267] sm:$0xf]
        %v301 = vld [vmem:[%s267 + $0x4] sm:$0xf]
        %v302 = vld [vmem:[%s267 + $0x8] sm:$0xf]
        %v303 = vld [vmem:[%s267 + $0xc] sm:$0xf]
        %v304 = vld [vmem:[%s267 + $0x10] sm:$0xf]
        %v305 = vld [vmem:[%s267 + $0x14] sm:$0xf]
        %v306 = vld [vmem:[%s267 + $0x18] sm:$0xf]
        %v307 = vld [vmem:[%s267 + $0x1c] sm:$0xf]
        %v308 = vld [vmem:[%s267 + $0x20] sm:$0xf]
        %v309 = vld [vmem:[%s267 + $0x24] sm:$0xf]
        %v310 = vld [vmem:[%s267 + $0x28] sm:$0xf]
        %v311 = vld [vmem:[%s267 + $0x2c] sm:$0xf]
        %v312 = vld [vmem:[%s267 + $0x30] sm:$0xf]
        %v313 = vld [vmem:[%s267 + $0x34] sm:$0xf]
        %v314 = vld [vmem:[%s267 + $0x38] sm:$0xf]
        %v315 = vld [vmem:[%s267 + $0x3c] sm:$0xf]
        %v316 = vld [vmem:[%s267 + $0x40] sm:$0xf]
        %v317 = vld [vmem:[%s267 + $0x44] sm:$0xf]
        %v318 = vld [vmem:[%s267 + $0x48] sm:$0xf]
        %v319 = vld [vmem:[%s267 + $0x4c] sm:$0xf]
        %v320 = vld [vmem:[%s267 + $0x50] sm:$0xf]
        %v321 = vld [vmem:[%s267 + $0x54] sm:$0xf]
        %v322 = vld [vmem:[%s267 + $0x58] sm:$0xf]
        %v323 = vld [vmem:[%s267 + $0x5c] sm:$0xf]
        %v324 = vld [vmem:[%s267 + $0x60] sm:$0xf]
        %v325 = vld [vmem:[%s267 + $0x64] sm:$0xf]
        %v326 = vld [vmem:[%s267 + $0x68] sm:$0xf]
        %v327 = vld [vmem:[%s267 + $0x6c] sm:$0xf]
        %v328 = vld [vmem:[%s267 + $0x70] sm:$0xf]
        %v329 = vld [vmem:[%s267 + $0x74] sm:$0xf]
        %v330 = vld [vmem:[%s267 + $0x78] sm:$0xf]
        %v331 = vld [vmem:[%s267 + $0x7c] sm:$0xf]
        %v332 = vld [vmem:[%s1] sm:$0xf]
        %v333 = vld [vmem:[%s1 + $0x4] sm:$0xf]
        %v334 = vld [vmem:[%s2] sm:$0x1]
        %v336 = vperm.slane %v334, 0
        %v370 = vunpack.c.l.b16 %v300
        %v371 = vunpack.c.l.b16 %v301
        %v372 = vunpack.c.l.b16 %v302
        %v373 = vunpack.c.l.b16 %v303
        %v374 = vunpack.c.l.b16 %v304
        %v375 = vunpack.c.l.b16 %v305
        %v376 = vunpack.c.l.b16 %v306
        %v377 = vunpack.c.l.b16 %v307
        %v378 = vunpack.c.l.b16 %v308
        %v379 = vunpack.c.l.b16 %v309
        %v380 = vunpack.c.l.b16 %v310
        %v381 = vunpack.c.l.b16 %v311
        %v382 = vunpack.c.l.b16 %v312
        %v383 = vunpack.c.l.b16 %v313
        %v384 = vunpack.c.l.b16 %v314
        %v385 = vunpack.c.l.b16 %v315
        %v386 = vunpack.c.l.b16 %v316
        %v387 = vunpack.c.l.b16 %v317
        %v388 = vunpack.c.l.b16 %v318
        %v389 = vunpack.c.l.b16 %v319
        %v390 = vunpack.c.l.b16 %v320
        %v391 = vunpack.c.l.b16 %v321
        %v392 = vunpack.c.l.b16 %v322
        %v393 = vunpack.c.l.b16 %v323
        %v394 = vunpack.c.l.b16 %v324
        %v395 = vunpack.c.l.b16 %v325
        %v396 = vunpack.c.l.b16 %v326
        %v397 = vunpack.c.l.b16 %v327
        %v398 = vunpack.c.l.b16 %v328
        %v399 = vunpack.c.l.b16 %v329
        %v400 = vunpack.c.l.b16 %v330
        %v401 = vunpack.c.l.b16 %v331
        %v402 = vpack.c.b16 %v371, %v370
        %v403 = vpack.c.b16 %v373, %v372
        %v404 = vpack.c.b16 %v375, %v374
        %v405 = vpack.c.b16 %v377, %v376
        %v406 = vpack.c.b16 %v379, %v378
        %v407 = vpack.c.b16 %v381, %v380
        %v408 = vpack.c.b16 %v383, %v382
        %v409 = vpack.c.b16 %v385, %v384
        %v410 = vpack.c.b16 %v387, %v386
        %v411 = vpack.c.b16 %v389, %v388
        %v412 = vpack.c.b16 %v391, %v390
        %v413 = vpack.c.b16 %v393, %v392
        %v414 = vpack.c.b16 %v395, %v394
        %v415 = vpack.c.b16 %v397, %v396
        %v416 = vpack.c.b16 %v399, %v398
        %v417 = vpack.c.b16 %v401, %v400
        %v420 = vunpack.c.l.b16 %v332
        %v421 = vunpack.c.l.b16 %v333
        %v422 = vpack.c.b16 %v421, %v420
        %vm424 = vcmask 130048
        %v426 = vsel %vm424, %v402, 0
        %v429 = vsel %vm424, %v403, 0
        %v432 = vsel %vm424, %v404, 0
        %v435 = vsel %vm424, %v405, 0
        %v438 = vsel %vm424, %v406, 0
        %v441 = vsel %vm424, %v407, 0
        %v444 = vsel %vm424, %v408, 0
        %v447 = vsel %vm424, %v409, 0
        %v450 = vsel %vm424, %v410, 0
        %v453 = vsel %vm424, %v411, 0
        %v456 = vsel %vm424, %v412, 0
        %v459 = vsel %vm424, %v413, 0
        %v462 = vsel %vm424, %v414, 0
        %v465 = vsel %vm424, %v415, 0
        %v468 = vsel %vm424, %v416, 0
        %v471 = vsel %vm424, %v417, 0
        %473 = vmatpush.bf16.msra.mxu0 0
        %474 = vmatpush.bf16.msra.mxu0 0
        %475 = vmatpush.bf16.msra.mxu0 0
        %476 = vmatpush.bf16.msra.mxu0 0
        %477 = vmatpush.bf16.msra.mxu0 0
        %478 = vmatpush.bf16.msra.mxu0 0
        %479 = vmatpush.bf16.msra.mxu0 0
        %480 = vmatpush.bf16.msra.mxu0 %v422
        %481 = vmatmul.bf16.gmra.mxu0 %v426
        %v482 = vpop.f32.mrf.mxu0
        %v483 = vadd.f32 %v336, %v482
        %v484 = vpop.f32.mrf.mxu0
        %v485 = vadd.f32 %v336, %v484
        %486 = vmatmul.bf16.gmra.mxu0 %v429
        %v487 = vpop.f32.mrf.mxu0
        %v488 = vadd.f32 %v336, %v487
        %v489 = vpop.f32.mrf.mxu0
        %v490 = vadd.f32 %v336, %v489
        %491 = vmatmul.bf16.gmra.mxu0 %v432
        %v492 = vpop.f32.mrf.mxu0
        %v493 = vadd.f32 %v336, %v492
        %v494 = vpop.f32.mrf.mxu0
        %v495 = vadd.f32 %v336, %v494
        %496 = vmatmul.bf16.gmra.mxu0 %v435
        %v497 = vpop.f32.mrf.mxu0
        %v498 = vadd.f32 %v336, %v497
        %v499 = vpop.f32.mrf.mxu0
        %v500 = vadd.f32 %v336, %v499
        %501 = vmatmul.bf16.gmra.mxu0 %v438
        %v502 = vpop.f32.mrf.mxu0
        %v503 = vadd.f32 %v336, %v502
        %v504 = vpop.f32.mrf.mxu0
        %v505 = vadd.f32 %v336, %v504
        %506 = vmatmul.bf16.gmra.mxu0 %v441
        %v507 = vpop.f32.mrf.mxu0
        %v508 = vadd.f32 %v336, %v507
        %v509 = vpop.f32.mrf.mxu0
        %v510 = vadd.f32 %v336, %v509
        %511 = vmatmul.bf16.gmra.mxu0 %v444
        %v512 = vpop.f32.mrf.mxu0
        %v513 = vadd.f32 %v336, %v512
        %v514 = vpop.f32.mrf.mxu0
        %v515 = vadd.f32 %v336, %v514
        %516 = vmatmul.bf16.gmra.mxu0 %v447
        %v517 = vpop.f32.mrf.mxu0
        %v518 = vadd.f32 %v336, %v517
        %v519 = vpop.f32.mrf.mxu0
        %v520 = vadd.f32 %v336, %v519
        %521 = vmatmul.bf16.gmra.mxu0 %v450
        %v522 = vpop.f32.mrf.mxu0
        %v523 = vadd.f32 %v336, %v522
        %v524 = vpop.f32.mrf.mxu0
        %v525 = vadd.f32 %v336, %v524
        %526 = vmatmul.bf16.gmra.mxu0 %v453
        %v527 = vpop.f32.mrf.mxu0
        %v528 = vadd.f32 %v336, %v527
        %v529 = vpop.f32.mrf.mxu0
        %v530 = vadd.f32 %v336, %v529
        %531 = vmatmul.bf16.gmra.mxu0 %v456
        %v532 = vpop.f32.mrf.mxu0
        %v533 = vadd.f32 %v336, %v532
        %v534 = vpop.f32.mrf.mxu0
        %v535 = vadd.f32 %v336, %v534
        %536 = vmatmul.bf16.gmra.mxu0 %v459
        %v537 = vpop.f32.mrf.mxu0
        %v538 = vadd.f32 %v336, %v537
        %v539 = vpop.f32.mrf.mxu0
        %v540 = vadd.f32 %v336, %v539
        %541 = vmatmul.bf16.gmra.mxu0 %v462
        %v542 = vpop.f32.mrf.mxu0
        %v543 = vadd.f32 %v336, %v542
        %v544 = vpop.f32.mrf.mxu0
        %v545 = vadd.f32 %v336, %v544
        %546 = vmatmul.bf16.gmra.mxu0 %v465
        %v547 = vpop.f32.mrf.mxu0
        %v548 = vadd.f32 %v336, %v547
        %v549 = vpop.f32.mrf.mxu0
        %v550 = vadd.f32 %v336, %v549
        %551 = vmatmul.bf16.gmra.mxu0 %v468
        %v552 = vpop.f32.mrf.mxu0
        %v553 = vadd.f32 %v336, %v552
        %v554 = vpop.f32.mrf.mxu0
        %v555 = vadd.f32 %v336, %v554
        %556 = vmatmul.bf16.gmra.mxu0 %v471
        %v557 = vpop.f32.mrf.mxu0
        %v558 = vadd.f32 %v336, %v557
        %v559 = vpop.f32.mrf.mxu0
        %v560 = vadd.f32 %v336, %v559
        %561 = vdwg.mxu0
        %v562 = vmax.f32 %v483, 0.0
        %v563 = vmax.f32 %v485, 0.0
        %v564 = vmax.f32 %v488, 0.0
        %v565 = vmax.f32 %v490, 0.0
        %v566 = vmax.f32 %v493, 0.0
        %v567 = vmax.f32 %v495, 0.0
        %v568 = vmax.f32 %v498, 0.0
        %v569 = vmax.f32 %v500, 0.0
        %v570 = vmax.f32 %v503, 0.0
        %v571 = vmax.f32 %v505, 0.0
        %v572 = vmax.f32 %v508, 0.0
        %v573 = vmax.f32 %v510, 0.0
        %v574 = vmax.f32 %v513, 0.0
        %v575 = vmax.f32 %v515, 0.0
        %v576 = vmax.f32 %v518, 0.0
        %v577 = vmax.f32 %v520, 0.0
        %v578 = vmax.f32 %v523, 0.0
        %v579 = vmax.f32 %v525, 0.0
        %v580 = vmax.f32 %v528, 0.0
        %v581 = vmax.f32 %v530, 0.0
        %v582 = vmax.f32 %v533, 0.0
        %v583 = vmax.f32 %v535, 0.0
        %v584 = vmax.f32 %v538, 0.0
        %v585 = vmax.f32 %v540, 0.0
        %v586 = vmax.f32 %v543, 0.0
        %v587 = vmax.f32 %v545, 0.0
        %v588 = vmax.f32 %v548, 0.0
        %v589 = vmax.f32 %v550, 0.0
        %v590 = vmax.f32 %v553, 0.0
        %v591 = vmax.f32 %v555, 0.0
        %v592 = vmax.f32 %v558, 0.0
        %v593 = vmax.f32 %v560, 0.0
        %v594 = vpack.c.bf16 %v562, %v562
        %v595 = vpack.c.bf16 %v563, %v563
        %v596 = vpack.c.bf16 %v564, %v564
        %v597 = vpack.c.bf16 %v565, %v565
        %v598 = vpack.c.bf16 %v566, %v566
        %v599 = vpack.c.bf16 %v567, %v567
        %v600 = vpack.c.bf16 %v568, %v568
        %v601 = vpack.c.bf16 %v569, %v569
        %v602 = vpack.c.bf16 %v570, %v570
        %v603 = vpack.c.bf16 %v571, %v571
        %v604 = vpack.c.bf16 %v572, %v572
        %v605 = vpack.c.bf16 %v573, %v573
        %v606 = vpack.c.bf16 %v574, %v574
        %v607 = vpack.c.bf16 %v575, %v575
        %v608 = vpack.c.bf16 %v576, %v576
        %v609 = vpack.c.bf16 %v577, %v577
        %v610 = vpack.c.bf16 %v578, %v578
        %v611 = vpack.c.bf16 %v579, %v579
        %v612 = vpack.c.bf16 %v580, %v580
        %v613 = vpack.c.bf16 %v581, %v581
        %v614 = vpack.c.bf16 %v582, %v582
        %v615 = vpack.c.bf16 %v583, %v583
        %v616 = vpack.c.bf16 %v584, %v584
        %v617 = vpack.c.bf16 %v585, %v585
        %v618 = vpack.c.bf16 %v586, %v586
        %v619 = vpack.c.bf16 %v587, %v587
        %v620 = vpack.c.bf16 %v588, %v588
        %v621 = vpack.c.bf16 %v589, %v589
        %v622 = vpack.c.bf16 %v590, %v590
        %v623 = vpack.c.bf16 %v591, %v591
        %v624 = vpack.c.bf16 %v592, %v592
        %v625 = vpack.c.bf16 %v593, %v593
        %vm626 = vcmask 27648
        %627 = vst.msk [vmem:[#allocation2] sm:$0xf] %vm626, 0
        %628 = vst.msk [vmem:[#allocation2 + $0x4] sm:$0xf] %vm626, 0
        %vm629 = vcmask 24576
        %630 = vst.msk [vmem:[#allocation2 + $0x8] sm:$0x1] %vm629, 0
        %s631 = scalar_lea.vmem [#allocation2], 204
        %632 = vst.msk [vmem:[%s631] sm:$0xf] %vm626, 0
        %633 = vst.msk [vmem:[%s631 + $0x4] sm:$0xf] %vm626, 0
        %634 = vst.msk [vmem:[%s631 + $0x8] sm:$0x1] %vm629, 0
        %s635 = scalar_lea.vmem [#allocation2], 12
        %vm636 = vcmask 24576
        %vm637 = vsmask.f32 256
        %vm638 = vmand %vm636, %vm637
        %v639 = vld [vmem:[%s635] sm:$0x1]
        %v640 = vsel %vm638, 0, %v639
        %641 = vst [vmem:[%s635] sm:$0x1] %v640
        %v642 = vld [vmem:[%s635 + $0xc] sm:$0x1]
        %v643 = vsel %vm638, 0, %v642
        %644 = vst [vmem:[%s635 + $0xc] sm:$0x1] %v643
        %v645 = vld [vmem:[%s635 + $0x18] sm:$0x1]
        %v646 = vsel %vm638, 0, %v645
        %647 = vst [vmem:[%s635 + $0x18] sm:$0x1] %v646
        %v648 = vld [vmem:[%s635 + $0x24] sm:$0x1]
        %v649 = vsel %vm638, 0, %v648
        %650 = vst [vmem:[%s635 + $0x24] sm:$0x1] %v649
        %v651 = vld [vmem:[%s635 + $0x30] sm:$0x1]
        %v652 = vsel %vm638, 0, %v651
        %653 = vst [vmem:[%s635 + $0x30] sm:$0x1] %v652
        %v654 = vld [vmem:[%s635 + $0x3c] sm:$0x1]
        %v655 = vsel %vm638, 0, %v654
        %656 = vst [vmem:[%s635 + $0x3c] sm:$0x1] %v655
        %v657 = vld [vmem:[%s635 + $0x48] sm:$0x1]
        %v658 = vsel %vm638, 0, %v657
        %659 = vst [vmem:[%s635 + $0x48] sm:$0x1] %v658
        %v660 = vld [vmem:[%s635 + $0x54] sm:$0x1]
        %v661 = vsel %vm638, 0, %v660
        %662 = vst [vmem:[%s635 + $0x54] sm:$0x1] %v661
        %v663 = vld [vmem:[%s635 + $0x60] sm:$0x1]
        %v664 = vsel %vm638, 0, %v663
        %665 = vst [vmem:[%s635 + $0x60] sm:$0x1] %v664
        %v666 = vld [vmem:[%s635 + $0x6c] sm:$0x1]
        %v667 = vsel %vm638, 0, %v666
        %668 = vst [vmem:[%s635 + $0x6c] sm:$0x1] %v667
        %v669 = vld [vmem:[%s635 + $0x78] sm:$0x1]
        %v670 = vsel %vm638, 0, %v669
        %671 = vst [vmem:[%s635 + $0x78] sm:$0x1] %v670
        %v672 = vld [vmem:[%s635 + $0x84] sm:$0x1]
        %v673 = vsel %vm638, 0, %v672
        %674 = vst [vmem:[%s635 + $0x84] sm:$0x1] %v673
        %v675 = vld [vmem:[%s635 + $0x90] sm:$0x1]
        %v676 = vsel %vm638, 0, %v675
        %677 = vst [vmem:[%s635 + $0x90] sm:$0x1] %v676
        %v678 = vld [vmem:[%s635 + $0x9c] sm:$0x1]
        %v679 = vsel %vm638, 0, %v678
        %680 = vst [vmem:[%s635 + $0x9c] sm:$0x1] %v679
        %v681 = vld [vmem:[%s635 + $0xa8] sm:$0x1]
        %v682 = vsel %vm638, 0, %v681
        %683 = vst [vmem:[%s635 + $0xa8] sm:$0x1] %v682
        %v684 = vld [vmem:[%s635 + $0xb4] sm:$0x1]
        %v685 = vsel %vm638, 0, %v684
        %686 = vst [vmem:[%s635 + $0xb4] sm:$0x1] %v685
        %vm687 = vsmask.f32 7938
        %vm688 = vmand %vm636, %vm687
        %v689 = vld [vmem:[%s635 + $0x8] sm:$0x1]
        %v690 = vsel %vm688, 0, %v689
        %691 = vst [vmem:[%s635 + $0x8] sm:$0x1] %v690
        %v692 = vld [vmem:[%s635 + $0x14] sm:$0x1]
        %v693 = vsel %vm688, 0, %v692
        %694 = vst [vmem:[%s635 + $0x14] sm:$0x1] %v693
        %v695 = vld [vmem:[%s635 + $0x20] sm:$0x1]
        %v696 = vsel %vm688, 0, %v695
        %697 = vst [vmem:[%s635 + $0x20] sm:$0x1] %v696
        %v698 = vld [vmem:[%s635 + $0x2c] sm:$0x1]
        %v699 = vsel %vm688, 0, %v698
        %700 = vst [vmem:[%s635 + $0x2c] sm:$0x1] %v699
        %v701 = vld [vmem:[%s635 + $0x38] sm:$0x1]
        %v702 = vsel %vm688, 0, %v701
        %703 = vst [vmem:[%s635 + $0x38] sm:$0x1] %v702
        %v704 = vld [vmem:[%s635 + $0x44] sm:$0x1]
        %v705 = vsel %vm688, 0, %v704
        %706 = vst [vmem:[%s635 + $0x44] sm:$0x1] %v705
        %v707 = vld [vmem:[%s635 + $0x50] sm:$0x1]
        %v708 = vsel %vm688, 0, %v707
        %709 = vst [vmem:[%s635 + $0x50] sm:$0x1] %v708
        %v710 = vld [vmem:[%s635 + $0x5c] sm:$0x1]
        %v711 = vsel %vm688, 0, %v710
        %712 = vst [vmem:[%s635 + $0x5c] sm:$0x1] %v711
        %v713 = vld [vmem:[%s635 + $0x68] sm:$0x1]
        %v714 = vsel %vm688, 0, %v713
        %715 = vst [vmem:[%s635 + $0x68] sm:$0x1] %v714
        %v716 = vld [vmem:[%s635 + $0x74] sm:$0x1]
        %v717 = vsel %vm688, 0, %v716
        %718 = vst [vmem:[%s635 + $0x74] sm:$0x1] %v717
        %v719 = vld [vmem:[%s635 + $0x80] sm:$0x1]
        %v720 = vsel %vm688, 0, %v719
        %721 = vst [vmem:[%s635 + $0x80] sm:$0x1] %v720
        %v722 = vld [vmem:[%s635 + $0x8c] sm:$0x1]
        %v723 = vsel %vm688, 0, %v722
        %724 = vst [vmem:[%s635 + $0x8c] sm:$0x1] %v723
        %v725 = vld [vmem:[%s635 + $0x98] sm:$0x1]
        %v726 = vsel %vm688, 0, %v725
        %727 = vst [vmem:[%s635 + $0x98] sm:$0x1] %v726
        %v728 = vld [vmem:[%s635 + $0xa4] sm:$0x1]
        %v729 = vsel %vm688, 0, %v728
        %730 = vst [vmem:[%s635 + $0xa4] sm:$0x1] %v729
        %v731 = vld [vmem:[%s635 + $0xb0] sm:$0x1]
        %v732 = vsel %vm688, 0, %v731
        %733 = vst [vmem:[%s635 + $0xb0] sm:$0x1] %v732
        %v734 = vld [vmem:[%s635 + $0xbc] sm:$0x1]
        %v735 = vsel %vm688, 0, %v734
        %736 = vst [vmem:[%s635 + $0xbc] sm:$0x1] %v735
        %vm737 = vsmask.f32 4368
        %vm738 = vmor %vm637, %vm737
        %v740 = vshrl.u32 %v594, 16
        %v742 = vrot.slane %v740, 7
        %v743 = vshll.u32 %v594, 16
        %v745 = vor.u32 %v742, %v743
        %v746 = vrot.slane %v742, 4
        %v748 = vshrl.u32 %v595, 16
        %v750 = vrot.slane %v748, 7
        %v751 = vshll.u32 %v595, 16
        %v753 = vor.u32 %v750, %v751
        %v754 = vsel %vm738, %v746, %v753
        %v755 = vrot.slane %v750, 4
        %v757 = vshrl.u32 %v596, 16
        %v759 = vrot.slane %v757, 7
        %v760 = vshll.u32 %v596, 16
        %v762 = vor.u32 %v759, %v760
        %v763 = vrot.slane %v759, 4
        %v765 = vshrl.u32 %v597, 16
        %v767 = vrot.slane %v765, 7
        %v768 = vshll.u32 %v597, 16
        %v770 = vor.u32 %v767, %v768
        %v771 = vsel %vm738, %v763, %v770
        %v772 = vrot.slane %v767, 4
        %v774 = vshrl.u32 %v598, 16
        %v776 = vrot.slane %v774, 7
        %v777 = vshll.u32 %v598, 16
        %v779 = vor.u32 %v776, %v777
        %v780 = vrot.slane %v776, 4
        %v782 = vshrl.u32 %v599, 16
        %v784 = vrot.slane %v782, 7
        %v785 = vshll.u32 %v599, 16
        %v787 = vor.u32 %v784, %v785
        %v788 = vsel %vm738, %v780, %v787
        %v789 = vrot.slane %v784, 4
        %v791 = vshrl.u32 %v600, 16
        %v793 = vrot.slane %v791, 7
        %v794 = vshll.u32 %v600, 16
        %v796 = vor.u32 %v793, %v794
        %v797 = vrot.slane %v793, 4
        %v799 = vshrl.u32 %v601, 16
        %v801 = vrot.slane %v799, 7
        %v802 = vshll.u32 %v601, 16
        %v804 = vor.u32 %v801, %v802
        %v805 = vsel %vm738, %v797, %v804
        %v806 = vrot.slane %v801, 4
        %v808 = vshrl.u32 %v602, 16
        %v810 = vrot.slane %v808, 7
        %v811 = vshll.u32 %v602, 16
        %v813 = vor.u32 %v810, %v811
        %v814 = vrot.slane %v810, 4
        %v816 = vshrl.u32 %v603, 16
        %v818 = vrot.slane %v816, 7
        %v819 = vshll.u32 %v603, 16
        %v821 = vor.u32 %v818, %v819
        %v822 = vsel %vm738, %v814, %v821
        %v823 = vrot.slane %v818, 4
        %v825 = vshrl.u32 %v604, 16
        %v827 = vrot.slane %v825, 7
        %v828 = vshll.u32 %v604, 16
        %v830 = vor.u32 %v827, %v828
        %v831 = vrot.slane %v827, 4
        %v833 = vshrl.u32 %v605, 16
        %v835 = vrot.slane %v833, 7
        %v836 = vshll.u32 %v605, 16
        %v838 = vor.u32 %v835, %v836
        %v839 = vsel %vm738, %v831, %v838
        %v840 = vrot.slane %v835, 4
        %v842 = vshrl.u32 %v606, 16
        %v844 = vrot.slane %v842, 7
        %v845 = vshll.u32 %v606, 16
        %v847 = vor.u32 %v844, %v845
        %v848 = vrot.slane %v844, 4
        %v850 = vshrl.u32 %v607, 16
        %v852 = vrot.slane %v850, 7
        %v853 = vshll.u32 %v607, 16
        %v855 = vor.u32 %v852, %v853
        %v856 = vsel %vm738, %v848, %v855
        %v857 = vrot.slane %v852, 4
        %v859 = vshrl.u32 %v608, 16
        %v861 = vrot.slane %v859, 7
        %v862 = vshll.u32 %v608, 16
        %v864 = vor.u32 %v861, %v862
        %v865 = vrot.slane %v861, 4
        %v867 = vshrl.u32 %v609, 16
        %v869 = vrot.slane %v867, 7
        %v870 = vshll.u32 %v609, 16
        %v872 = vor.u32 %v869, %v870
        %v873 = vsel %vm738, %v865, %v872
        %v874 = vrot.slane %v869, 4
        %v876 = vshrl.u32 %v610, 16
        %v878 = vrot.slane %v876, 7
        %v879 = vshll.u32 %v610, 16
        %v881 = vor.u32 %v878, %v879
        %v882 = vrot.slane %v878, 4
        %v884 = vshrl.u32 %v611, 16
        %v886 = vrot.slane %v884, 7
        %v887 = vshll.u32 %v611, 16
        %v889 = vor.u32 %v886, %v887
        %v890 = vsel %vm738, %v882, %v889
        %v891 = vrot.slane %v886, 4
        %v893 = vshrl.u32 %v612, 16
        %v895 = vrot.slane %v893, 7
        %v896 = vshll.u32 %v612, 16
        %v898 = vor.u32 %v895, %v896
        %v899 = vrot.slane %v895, 4
        %v901 = vshrl.u32 %v613, 16
        %v903 = vrot.slane %v901, 7
        %v904 = vshll.u32 %v613, 16
        %v906 = vor.u32 %v903, %v904
        %v907 = vsel %vm738, %v899, %v906
        %v908 = vrot.slane %v903, 4
        %v910 = vshrl.u32 %v614, 16
        %v912 = vrot.slane %v910, 7
        %v913 = vshll.u32 %v614, 16
        %v915 = vor.u32 %v912, %v913
        %v916 = vrot.slane %v912, 4
        %v918 = vshrl.u32 %v615, 16
        %v920 = vrot.slane %v918, 7
        %v921 = vshll.u32 %v615, 16
        %v923 = vor.u32 %v920, %v921
        %v924 = vsel %vm738, %v916, %v923
        %v925 = vrot.slane %v920, 4
        %v927 = vshrl.u32 %v616, 16
        %v929 = vrot.slane %v927, 7
        %v930 = vshll.u32 %v616, 16
        %v932 = vor.u32 %v929, %v930
        %v933 = vrot.slane %v929, 4
        %v935 = vshrl.u32 %v617, 16
        %v937 = vrot.slane %v935, 7
        %v938 = vshll.u32 %v617, 16
        %v940 = vor.u32 %v937, %v938
        %v941 = vsel %vm738, %v933, %v940
        %v942 = vrot.slane %v937, 4
        %v944 = vshrl.u32 %v618, 16
        %v946 = vrot.slane %v944, 7
        %v947 = vshll.u32 %v618, 16
        %v949 = vor.u32 %v946, %v947
        %v950 = vrot.slane %v946, 4
        %v952 = vshrl.u32 %v619, 16
        %v954 = vrot.slane %v952, 7
        %v955 = vshll.u32 %v619, 16
        %v957 = vor.u32 %v954, %v955
        %v958 = vsel %vm738, %v950, %v957
        %v959 = vrot.slane %v954, 4
        %v961 = vshrl.u32 %v620, 16
        %v963 = vrot.slane %v961, 7
        %v964 = vshll.u32 %v620, 16
        %v966 = vor.u32 %v963, %v964
        %v967 = vrot.slane %v963, 4
        %v969 = vshrl.u32 %v621, 16
        %v971 = vrot.slane %v969, 7
        %v972 = vshll.u32 %v621, 16
        %v974 = vor.u32 %v971, %v972
        %v975 = vsel %vm738, %v967, %v974
        %v976 = vrot.slane %v971, 4
        %v978 = vshrl.u32 %v622, 16
        %v980 = vrot.slane %v978, 7
        %v981 = vshll.u32 %v622, 16
        %v983 = vor.u32 %v980, %v981
        %v984 = vrot.slane %v980, 4
        %v986 = vshrl.u32 %v623, 16
        %v988 = vrot.slane %v986, 7
        %v989 = vshll.u32 %v623, 16
        %v991 = vor.u32 %v988, %v989
        %v992 = vsel %vm738, %v984, %v991
        %v993 = vrot.slane %v988, 4
        %v995 = vshrl.u32 %v624, 16
        %v997 = vrot.slane %v995, 7
        %v998 = vshll.u32 %v624, 16
        %v1000 = vor.u32 %v997, %v998
        %v1001 = vrot.slane %v997, 4
        %v1003 = vshrl.u32 %v625, 16
        %v1005 = vrot.slane %v1003, 7
        %v1006 = vshll.u32 %v625, 16
        %v1008 = vor.u32 %v1005, %v1006
        %v1009 = vsel %vm738, %v1001, %v1008
        %v1010 = vrot.slane %v1005, 4
        %vm1059 = vcmask 27648
        %vm1060 = vmand %vm1059, %vm687
        %v1061 = vld [vmem:[%s635] sm:$0xf]
        %v1062 = vsel %vm1060, %v745, %v1061
        %1063 = vst [vmem:[%s635] sm:$0xf] %v1062
        %1064 = vst.msk [vmem:[%s635 + $0x4] sm:$0xf] %vm626, %v754
        %v1065 = vld [vmem:[%s635 + $0x8] sm:$0x1]
        %v1066 = vsel %vm638, %v755, %v1065
        %1067 = vst [vmem:[%s635 + $0x8] sm:$0x1] %v1066
        %v1068 = vld [vmem:[%s635 + $0xc] sm:$0xf]
        %v1069 = vsel %vm1060, %v762, %v1068
        %1070 = vst [vmem:[%s635 + $0xc] sm:$0xf] %v1069
        %1071 = vst.msk [vmem:[%s635 + $0x10] sm:$0xf] %vm626, %v771
        %v1072 = vld [vmem:[%s635 + $0x14] sm:$0x1]
        %v1073 = vsel %vm638, %v772, %v1072
        %1074 = vst [vmem:[%s635 + $0x14] sm:$0x1] %v1073
        %v1075 = vld [vmem:[%s635 + $0x18] sm:$0xf]
        %v1076 = vsel %vm1060, %v779, %v1075
        %1077 = vst [vmem:[%s635 + $0x18] sm:$0xf] %v1076
        %1078 = vst.msk [vmem:[%s635 + $0x1c] sm:$0xf] %vm626, %v788
        %v1079 = vld [vmem:[%s635 + $0x20] sm:$0x1]
        %v1080 = vsel %vm638, %v789, %v1079
        %1081 = vst [vmem:[%s635 + $0x20] sm:$0x1] %v1080
        %v1082 = vld [vmem:[%s635 + $0x24] sm:$0xf]
        %v1083 = vsel %vm1060, %v796, %v1082
        %1084 = vst [vmem:[%s635 + $0x24] sm:$0xf] %v1083
        %1085 = vst.msk [vmem:[%s635 + $0x28] sm:$0xf] %vm626, %v805
        %v1086 = vld [vmem:[%s635 + $0x2c] sm:$0x1]
        %v1087 = vsel %vm638, %v806, %v1086
        %1088 = vst [vmem:[%s635 + $0x2c] sm:$0x1] %v1087
        %v1089 = vld [vmem:[%s635 + $0x30] sm:$0xf]
        %v1090 = vsel %vm1060, %v813, %v1089
        %1091 = vst [vmem:[%s635 + $0x30] sm:$0xf] %v1090
        %1092 = vst.msk [vmem:[%s635 + $0x34] sm:$0xf] %vm626, %v822
        %v1093 = vld [vmem:[%s635 + $0x38] sm:$0x1]
        %v1094 = vsel %vm638, %v823, %v1093
        %1095 = vst [vmem:[%s635 + $0x38] sm:$0x1] %v1094
        %v1096 = vld [vmem:[%s635 + $0x3c] sm:$0xf]
        %v1097 = vsel %vm1060, %v830, %v1096
        %1098 = vst [vmem:[%s635 + $0x3c] sm:$0xf] %v1097
        %1099 = vst.msk [vmem:[%s635 + $0x40] sm:$0xf] %vm626, %v839
        %v1100 = vld [vmem:[%s635 + $0x44] sm:$0x1]
        %v1101 = vsel %vm638, %v840, %v1100
        %1102 = vst [vmem:[%s635 + $0x44] sm:$0x1] %v1101
        %v1103 = vld [vmem:[%s635 + $0x48] sm:$0xf]
        %v1104 = vsel %vm1060, %v847, %v1103
        %1105 = vst [vmem:[%s635 + $0x48] sm:$0xf] %v1104
        %1106 = vst.msk [vmem:[%s635 + $0x4c] sm:$0xf] %vm626, %v856
        %v1107 = vld [vmem:[%s635 + $0x50] sm:$0x1]
        %v1108 = vsel %vm638, %v857, %v1107
        %1109 = vst [vmem:[%s635 + $0x50] sm:$0x1] %v1108
        %v1110 = vld [vmem:[%s635 + $0x54] sm:$0xf]
        %v1111 = vsel %vm1060, %v864, %v1110
        %1112 = vst [vmem:[%s635 + $0x54] sm:$0xf] %v1111
        %1113 = vst.msk [vmem:[%s635 + $0x58] sm:$0xf] %vm626, %v873
        %v1114 = vld [vmem:[%s635 + $0x5c] sm:$0x1]
        %v1115 = vsel %vm638, %v874, %v1114
        %1116 = vst [vmem:[%s635 + $0x5c] sm:$0x1] %v1115
        %v1117 = vld [vmem:[%s635 + $0x60] sm:$0xf]
        %v1118 = vsel %vm1060, %v881, %v1117
        %1119 = vst [vmem:[%s635 + $0x60] sm:$0xf] %v1118
        %1120 = vst.msk [vmem:[%s635 + $0x64] sm:$0xf] %vm626, %v890
        %v1121 = vld [vmem:[%s635 + $0x68] sm:$0x1]
        %v1122 = vsel %vm638, %v891, %v1121
        %1123 = vst [vmem:[%s635 + $0x68] sm:$0x1] %v1122
        %v1124 = vld [vmem:[%s635 + $0x6c] sm:$0xf]
        %v1125 = vsel %vm1060, %v898, %v1124
        %1126 = vst [vmem:[%s635 + $0x6c] sm:$0xf] %v1125
        %1127 = vst.msk [vmem:[%s635 + $0x70] sm:$0xf] %vm626, %v907
        %v1128 = vld [vmem:[%s635 + $0x74] sm:$0x1]
        %v1129 = vsel %vm638, %v908, %v1128
        %1130 = vst [vmem:[%s635 + $0x74] sm:$0x1] %v1129
        %v1131 = vld [vmem:[%s635 + $0x78] sm:$0xf]
        %v1132 = vsel %vm1060, %v915, %v1131
        %1133 = vst [vmem:[%s635 + $0x78] sm:$0xf] %v1132
        %1134 = vst.msk [vmem:[%s635 + $0x7c] sm:$0xf] %vm626, %v924
        %v1135 = vld [vmem:[%s635 + $0x80] sm:$0x1]
        %v1136 = vsel %vm638, %v925, %v1135
        %1137 = vst [vmem:[%s635 + $0x80] sm:$0x1] %v1136
        %v1138 = vld [vmem:[%s635 + $0x84] sm:$0xf]
        %v1139 = vsel %vm1060, %v932, %v1138
        %1140 = vst [vmem:[%s635 + $0x84] sm:$0xf] %v1139
        %1141 = vst.msk [vmem:[%s635 + $0x88] sm:$0xf] %vm626, %v941
        %v1142 = vld [vmem:[%s635 + $0x8c] sm:$0x1]
        %v1143 = vsel %vm638, %v942, %v1142
        %1144 = vst [vmem:[%s635 + $0x8c] sm:$0x1] %v1143
        %v1145 = vld [vmem:[%s635 + $0x90] sm:$0xf]
        %v1146 = vsel %vm1060, %v949, %v1145
        %1147 = vst [vmem:[%s635 + $0x90] sm:$0xf] %v1146
        %1148 = vst.msk [vmem:[%s635 + $0x94] sm:$0xf] %vm626, %v958
        %v1149 = vld [vmem:[%s635 + $0x98] sm:$0x1]
        %v1150 = vsel %vm638, %v959, %v1149
        %1151 = vst [vmem:[%s635 + $0x98] sm:$0x1] %v1150
        %v1152 = vld [vmem:[%s635 + $0x9c] sm:$0xf]
        %v1153 = vsel %vm1060, %v966, %v1152
        %1154 = vst [vmem:[%s635 + $0x9c] sm:$0xf] %v1153
        %1155 = vst.msk [vmem:[%s635 + $0xa0] sm:$0xf] %vm626, %v975
        %v1156 = vld [vmem:[%s635 + $0xa4] sm:$0x1]
        %v1157 = vsel %vm638, %v976, %v1156
        %1158 = vst [vmem:[%s635 + $0xa4] sm:$0x1] %v1157
        %v1159 = vld [vmem:[%s635 + $0xa8] sm:$0xf]
        %v1160 = vsel %vm1060, %v983, %v1159
        %1161 = vst [vmem:[%s635 + $0xa8] sm:$0xf] %v1160
        %1162 = vst.msk [vmem:[%s635 + $0xac] sm:$0xf] %vm626, %v992
        %v1163 = vld [vmem:[%s635 + $0xb0] sm:$0x1]
        %v1164 = vsel %vm638, %v993, %v1163
        %1165 = vst [vmem:[%s635 + $0xb0] sm:$0x1] %v1164
        %v1166 = vld [vmem:[%s635 + $0xb4] sm:$0xf]
        %v1167 = vsel %vm1060, %v1000, %v1166
        %1168 = vst [vmem:[%s635 + $0xb4] sm:$0xf] %v1167
        %1169 = vst.msk [vmem:[%s635 + $0xb8] sm:$0xf] %vm626, %v1009
        %v1170 = vld [vmem:[%s635 + $0xbc] sm:$0x1]
        %v1171 = vsel %vm638, %v1010, %v1170
        %1172 = vst [vmem:[%s635 + $0xbc] sm:$0x1] %v1171
        %v1173 = vld [vmem:[#allocation2] sm:$0xf]
        %v1174 = vld [vmem:[#allocation2 + $0x4] sm:$0xf]
        %v1175 = vld [vmem:[#allocation2 + $0xc] sm:$0xf]
        %v1176 = vld [vmem:[#allocation2 + $0x10] sm:$0xf]
        %v1177 = vld [vmem:[#allocation2 + $0x18] sm:$0xf]
        %v1178 = vld [vmem:[#allocation2 + $0x1c] sm:$0xf]
        %v1179 = vld [vmem:[#allocation2 + $0x24] sm:$0xf]
        %v1180 = vld [vmem:[#allocation2 + $0x28] sm:$0xf]
        %v1181 = vld [vmem:[#allocation2 + $0x30] sm:$0xf]
        %v1182 = vld [vmem:[#allocation2 + $0x34] sm:$0xf]
        %v1183 = vld [vmem:[#allocation2 + $0x3c] sm:$0xf]
        %v1184 = vld [vmem:[#allocation2 + $0x40] sm:$0xf]
        %v1185 = vld [vmem:[#allocation2 + $0x48] sm:$0xf]
        %v1186 = vld [vmem:[#allocation2 + $0x4c] sm:$0xf]
        %v1187 = vld [vmem:[#allocation2 + $0x54] sm:$0xf]
        %v1188 = vld [vmem:[#allocation2 + $0x58] sm:$0xf]
        %v1189 = vld [vmem:[#allocation2 + $0x60] sm:$0xf]
        %v1190 = vld [vmem:[#allocation2 + $0x64] sm:$0xf]
        %v1191 = vld [vmem:[#allocation2 + $0x6c] sm:$0xf]
        %v1192 = vld [vmem:[#allocation2 + $0x70] sm:$0xf]
        %v1193 = vld [vmem:[#allocation2 + $0x78] sm:$0xf]
        %v1194 = vld [vmem:[#allocation2 + $0x7c] sm:$0xf]
        %v1195 = vld [vmem:[#allocation2 + $0x84] sm:$0xf]
        %v1196 = vld [vmem:[#allocation2 + $0x88] sm:$0xf]
        %v1197 = vld [vmem:[#allocation2 + $0x90] sm:$0xf]
        %v1198 = vld [vmem:[#allocation2 + $0x94] sm:$0xf]
        %v1199 = vld [vmem:[#allocation2 + $0x9c] sm:$0xf]
        %v1200 = vld [vmem:[#allocation2 + $0xa0] sm:$0xf]
        %v1201 = vld [vmem:[#allocation2 + $0xa8] sm:$0xf]
        %v1202 = vld [vmem:[#allocation2 + $0xac] sm:$0xf]
        %v1203 = vld [vmem:[#allocation2 + $0xb4] sm:$0xf]
        %v1204 = vld [vmem:[#allocation2 + $0xb8] sm:$0xf]
        %v1205 = vld [vmem:[%s3] sm:$0x3]
        %v1206 = vld [vmem:[#allocation2 + $0x8] sm:$0x1]
        %v1207 = vld [vmem:[#allocation2 + $0x14] sm:$0x1]
        %v1208 = vld [vmem:[#allocation2 + $0x20] sm:$0x1]
        %v1209 = vld [vmem:[#allocation2 + $0x2c] sm:$0x1]
        %v1210 = vld [vmem:[#allocation2 + $0x38] sm:$0x1]
        %v1211 = vld [vmem:[#allocation2 + $0x44] sm:$0x1]
        %v1212 = vld [vmem:[#allocation2 + $0x50] sm:$0x1]
        %v1213 = vld [vmem:[#allocation2 + $0x5c] sm:$0x1]
        %v1214 = vld [vmem:[#allocation2 + $0x68] sm:$0x1]
        %v1215 = vld [vmem:[#allocation2 + $0x74] sm:$0x1]
        %v1216 = vld [vmem:[#allocation2 + $0x80] sm:$0x1]
        %v1217 = vld [vmem:[#allocation2 + $0x8c] sm:$0x1]
        %v1218 = vld [vmem:[#allocation2 + $0x98] sm:$0x1]
        %v1219 = vld [vmem:[#allocation2 + $0xa4] sm:$0x1]
        %v1220 = vld [vmem:[#allocation2 + $0xb0] sm:$0x1]
        %v1221 = vld [vmem:[#allocation2 + $0xbc] sm:$0x1]
        %vm1222 = vsmask.f32 3328
        %vm1223 = vsmask.f32 7440
        %vm1224 = vmor %vm1222, %vm1223
        %v1226 = vshrl.u32 %v1173, 16
        %v1228 = vrot.slane %v1226, 4
        %v1229 = vshll.u32 %v1173, 16
        %v1231 = vrot.slane %v1229, 5
        %v1232 = vor.u32 %v1228, %v1231
        %v1233 = vrot.slane %v1232, 4
        %v1235 = vshll.u32 %v1174, 16
        %v1237 = vrot.slane %v1235, 5
        %v1238 = vsel %vm1224, %v1233, %v1237
        %v1239 = vshrl.u32 %v1174, 16
        %v1241 = vrot.slane %v1239, 4
        %v1242 = vor.u32 %v1241, %v1237
        %v1243 = vrot.slane %v1242, 4
        %v1245 = vshll.u32 %v1206, 16
        %v1247 = vrot.slane %v1245, 5
        %v1248 = vsel %vm1224, %v1243, %v1247
        %v1250 = vshrl.u32 %v1175, 16
        %v1252 = vrot.slane %v1250, 4
        %v1253 = vshll.u32 %v1175, 16
        %v1255 = vrot.slane %v1253, 5
        %v1256 = vor.u32 %v1252, %v1255
        %v1257 = vrot.slane %v1256, 4
        %v1259 = vshll.u32 %v1176, 16
        %v1261 = vrot.slane %v1259, 5
        %v1262 = vsel %vm1224, %v1257, %v1261
        %v1263 = vshrl.u32 %v1176, 16
        %v1265 = vrot.slane %v1263, 4
        %v1266 = vor.u32 %v1265, %v1261
        %v1267 = vrot.slane %v1266, 4
        %v1269 = vshll.u32 %v1207, 16
        %v1271 = vrot.slane %v1269, 5
        %v1272 = vsel %vm1224, %v1267, %v1271
        %v1274 = vshrl.u32 %v1177, 16
        %v1276 = vrot.slane %v1274, 4
        %v1277 = vshll.u32 %v1177, 16
        %v1279 = vrot.slane %v1277, 5
        %v1280 = vor.u32 %v1276, %v1279
        %v1281 = vrot.slane %v1280, 4
        %v1283 = vshll.u32 %v1178, 16
        %v1285 = vrot.slane %v1283, 5
        %v1286 = vsel %vm1224, %v1281, %v1285
        %v1287 = vshrl.u32 %v1178, 16
        %v1289 = vrot.slane %v1287, 4
        %v1290 = vor.u32 %v1289, %v1285
        %v1291 = vrot.slane %v1290, 4
        %v1293 = vshll.u32 %v1208, 16
        %v1295 = vrot.slane %v1293, 5
        %v1296 = vsel %vm1224, %v1291, %v1295
        %v1298 = vshrl.u32 %v1179, 16
        %v1300 = vrot.slane %v1298, 4
        %v1301 = vshll.u32 %v1179, 16
        %v1303 = vrot.slane %v1301, 5
        %v1304 = vor.u32 %v1300, %v1303
        %v1305 = vrot.slane %v1304, 4
        %v1307 = vshll.u32 %v1180, 16
        %v1309 = vrot.slane %v1307, 5
        %v1310 = vsel %vm1224, %v1305, %v1309
        %v1311 = vshrl.u32 %v1180, 16
        %v1313 = vrot.slane %v1311, 4
        %v1314 = vor.u32 %v1313, %v1309
        %v1315 = vrot.slane %v1314, 4
        %v1317 = vshll.u32 %v1209, 16
        %v1319 = vrot.slane %v1317, 5
        %v1320 = vsel %vm1224, %v1315, %v1319
        %v1322 = vshrl.u32 %v1181, 16
        %v1324 = vrot.slane %v1322, 4
        %v1325 = vshll.u32 %v1181, 16
        %v1327 = vrot.slane %v1325, 5
        %v1328 = vor.u32 %v1324, %v1327
        %v1329 = vrot.slane %v1328, 4
        %v1331 = vshll.u32 %v1182, 16
        %v1333 = vrot.slane %v1331, 5
        %v1334 = vsel %vm1224, %v1329, %v1333
        %v1335 = vshrl.u32 %v1182, 16
        %v1337 = vrot.slane %v1335, 4
        %v1338 = vor.u32 %v1337, %v1333
        %v1339 = vrot.slane %v1338, 4
        %v1341 = vshll.u32 %v1210, 16
        %v1343 = vrot.slane %v1341, 5
        %v1344 = vsel %vm1224, %v1339, %v1343
        %v1346 = vshrl.u32 %v1183, 16
        %v1348 = vrot.slane %v1346, 4
        %v1349 = vshll.u32 %v1183, 16
        %v1351 = vrot.slane %v1349, 5
        %v1352 = vor.u32 %v1348, %v1351
        %v1353 = vrot.slane %v1352, 4
        %v1355 = vshll.u32 %v1184, 16
        %v1357 = vrot.slane %v1355, 5
        %v1358 = vsel %vm1224, %v1353, %v1357
        %v1359 = vshrl.u32 %v1184, 16
        %v1361 = vrot.slane %v1359, 4
        %v1362 = vor.u32 %v1361, %v1357
        %v1363 = vrot.slane %v1362, 4
        %v1365 = vshll.u32 %v1211, 16
        %v1367 = vrot.slane %v1365, 5
        %v1368 = vsel %vm1224, %v1363, %v1367
        %v1370 = vshrl.u32 %v1185, 16
        %v1372 = vrot.slane %v1370, 4
        %v1373 = vshll.u32 %v1185, 16
        %v1375 = vrot.slane %v1373, 5
        %v1376 = vor.u32 %v1372, %v1375
        %v1377 = vrot.slane %v1376, 4
        %v1379 = vshll.u32 %v1186, 16
        %v1381 = vrot.slane %v1379, 5
        %v1382 = vsel %vm1224, %v1377, %v1381
        %v1383 = vshrl.u32 %v1186, 16
        %v1385 = vrot.slane %v1383, 4
        %v1386 = vor.u32 %v1385, %v1381
        %v1387 = vrot.slane %v1386, 4
        %v1389 = vshll.u32 %v1212, 16
        %v1391 = vrot.slane %v1389, 5
        %v1392 = vsel %vm1224, %v1387, %v1391
        %v1394 = vshrl.u32 %v1187, 16
        %v1396 = vrot.slane %v1394, 4
        %v1397 = vshll.u32 %v1187, 16
        %v1399 = vrot.slane %v1397, 5
        %v1400 = vor.u32 %v1396, %v1399
        %v1401 = vrot.slane %v1400, 4
        %v1403 = vshll.u32 %v1188, 16
        %v1405 = vrot.slane %v1403, 5
        %v1406 = vsel %vm1224, %v1401, %v1405
        %v1407 = vshrl.u32 %v1188, 16
        %v1409 = vrot.slane %v1407, 4
        %v1410 = vor.u32 %v1409, %v1405
        %v1411 = vrot.slane %v1410, 4
        %v1413 = vshll.u32 %v1213, 16
        %v1415 = vrot.slane %v1413, 5
        %v1416 = vsel %vm1224, %v1411, %v1415
        %v1418 = vshrl.u32 %v1189, 16
        %v1420 = vrot.slane %v1418, 4
        %v1421 = vshll.u32 %v1189, 16
        %v1423 = vrot.slane %v1421, 5
        %v1424 = vor.u32 %v1420, %v1423
        %v1425 = vrot.slane %v1424, 4
        %v1427 = vshll.u32 %v1190, 16
        %v1429 = vrot.slane %v1427, 5
        %v1430 = vsel %vm1224, %v1425, %v1429
        %v1431 = vshrl.u32 %v1190, 16
        %v1433 = vrot.slane %v1431, 4
        %v1434 = vor.u32 %v1433, %v1429
        %v1435 = vrot.slane %v1434, 4
        %v1437 = vshll.u32 %v1214, 16
        %v1439 = vrot.slane %v1437, 5
        %v1440 = vsel %vm1224, %v1435, %v1439
        %v1442 = vshrl.u32 %v1191, 16
        %v1444 = vrot.slane %v1442, 4
        %v1445 = vshll.u32 %v1191, 16
        %v1447 = vrot.slane %v1445, 5
        %v1448 = vor.u32 %v1444, %v1447
        %v1449 = vrot.slane %v1448, 4
        %v1451 = vshll.u32 %v1192, 16
        %v1453 = vrot.slane %v1451, 5
        %v1454 = vsel %vm1224, %v1449, %v1453
        %v1455 = vshrl.u32 %v1192, 16
        %v1457 = vrot.slane %v1455, 4
        %v1458 = vor.u32 %v1457, %v1453
        %v1459 = vrot.slane %v1458, 4
        %v1461 = vshll.u32 %v1215, 16
        %v1463 = vrot.slane %v1461, 5
        %v1464 = vsel %vm1224, %v1459, %v1463
        %v1466 = vshrl.u32 %v1193, 16
        %v1468 = vrot.slane %v1466, 4
        %v1469 = vshll.u32 %v1193, 16
        %v1471 = vrot.slane %v1469, 5
        %v1472 = vor.u32 %v1468, %v1471
        %v1473 = vrot.slane %v1472, 4
        %v1475 = vshll.u32 %v1194, 16
        %v1477 = vrot.slane %v1475, 5
        %v1478 = vsel %vm1224, %v1473, %v1477
        %v1479 = vshrl.u32 %v1194, 16
        %v1481 = vrot.slane %v1479, 4
        %v1482 = vor.u32 %v1481, %v1477
        %v1483 = vrot.slane %v1482, 4
        %v1485 = vshll.u32 %v1216, 16
        %v1487 = vrot.slane %v1485, 5
        %v1488 = vsel %vm1224, %v1483, %v1487
        %v1490 = vshrl.u32 %v1195, 16
        %v1492 = vrot.slane %v1490, 4
        %v1493 = vshll.u32 %v1195, 16
        %v1495 = vrot.slane %v1493, 5
        %v1496 = vor.u32 %v1492, %v1495
        %v1497 = vrot.slane %v1496, 4
        %v1499 = vshll.u32 %v1196, 16
        %v1501 = vrot.slane %v1499, 5
        %v1502 = vsel %vm1224, %v1497, %v1501
        %v1503 = vshrl.u32 %v1196, 16
        %v1505 = vrot.slane %v1503, 4
        %v1506 = vor.u32 %v1505, %v1501
        %v1507 = vrot.slane %v1506, 4
        %v1509 = vshll.u32 %v1217, 16
        %v1511 = vrot.slane %v1509, 5
        %v1512 = vsel %vm1224, %v1507, %v1511
        %v1514 = vshrl.u32 %v1197, 16
        %v1516 = vrot.slane %v1514, 4
        %v1517 = vshll.u32 %v1197, 16
        %v1519 = vrot.slane %v1517, 5
        %v1520 = vor.u32 %v1516, %v1519
        %v1521 = vrot.slane %v1520, 4
        %v1523 = vshll.u32 %v1198, 16
        %v1525 = vrot.slane %v1523, 5
        %v1526 = vsel %vm1224, %v1521, %v1525
        %v1527 = vshrl.u32 %v1198, 16
        %v1529 = vrot.slane %v1527, 4
        %v1530 = vor.u32 %v1529, %v1525
        %v1531 = vrot.slane %v1530, 4
        %v1533 = vshll.u32 %v1218, 16
        %v1535 = vrot.slane %v1533, 5
        %v1536 = vsel %vm1224, %v1531, %v1535
        %v1538 = vshrl.u32 %v1199, 16
        %v1540 = vrot.slane %v1538, 4
        %v1541 = vshll.u32 %v1199, 16
        %v1543 = vrot.slane %v1541, 5
        %v1544 = vor.u32 %v1540, %v1543
        %v1545 = vrot.slane %v1544, 4
        %v1547 = vshll.u32 %v1200, 16
        %v1549 = vrot.slane %v1547, 5
        %v1550 = vsel %vm1224, %v1545, %v1549
        %v1551 = vshrl.u32 %v1200, 16
        %v1553 = vrot.slane %v1551, 4
        %v1554 = vor.u32 %v1553, %v1549
        %v1555 = vrot.slane %v1554, 4
        %v1557 = vshll.u32 %v1219, 16
        %v1559 = vrot.slane %v1557, 5
        %v1560 = vsel %vm1224, %v1555, %v1559
        %v1562 = vshrl.u32 %v1201, 16
        %v1564 = vrot.slane %v1562, 4
        %v1565 = vshll.u32 %v1201, 16
        %v1567 = vrot.slane %v1565, 5
        %v1568 = vor.u32 %v1564, %v1567
        %v1569 = vrot.slane %v1568, 4
        %v1571 = vshll.u32 %v1202, 16
        %v1573 = vrot.slane %v1571, 5
        %v1574 = vsel %vm1224, %v1569, %v1573
        %v1575 = vshrl.u32 %v1202, 16
        %v1577 = vrot.slane %v1575, 4
        %v1578 = vor.u32 %v1577, %v1573
        %v1579 = vrot.slane %v1578, 4
        %v1581 = vshll.u32 %v1220, 16
        %v1583 = vrot.slane %v1581, 5
        %v1584 = vsel %vm1224, %v1579, %v1583
        %v1586 = vshrl.u32 %v1203, 16
        %v1588 = vrot.slane %v1586, 4
        %v1589 = vshll.u32 %v1203, 16
        %v1591 = vrot.slane %v1589, 5
        %v1592 = vor.u32 %v1588, %v1591
        %v1593 = vrot.slane %v1592, 4
        %v1595 = vshll.u32 %v1204, 16
        %v1597 = vrot.slane %v1595, 5
        %v1598 = vsel %vm1224, %v1593, %v1597
        %v1599 = vshrl.u32 %v1204, 16
        %v1601 = vrot.slane %v1599, 4
        %v1602 = vor.u32 %v1601, %v1597
        %v1603 = vrot.slane %v1602, 4
        %v1605 = vshll.u32 %v1221, 16
        %v1607 = vrot.slane %v1605, 5
        %v1608 = vsel %vm1224, %v1603, %v1607
        %s1609 = scalar_lea.vmem %s3, 2
        %v1610 = vld [vmem:[%s1609] sm:$0x3]
        %v1611 = vunpack.c.l.b16 %v1238
        %v1612 = vunpack.c.l.b16 %v1248
        %v1613 = vunpack.c.l.b16 %v1262
        %v1614 = vunpack.c.l.b16 %v1272
        %v1615 = vunpack.c.l.b16 %v1286
        %v1616 = vunpack.c.l.b16 %v1296
        %v1617 = vunpack.c.l.b16 %v1310
        %v1618 = vunpack.c.l.b16 %v1320
        %v1619 = vunpack.c.l.b16 %v1334
        %v1620 = vunpack.c.l.b16 %v1344
        %v1621 = vunpack.c.l.b16 %v1358
        %v1622 = vunpack.c.l.b16 %v1368
        %v1623 = vunpack.c.l.b16 %v1382
        %v1624 = vunpack.c.l.b16 %v1392
        %v1625 = vunpack.c.l.b16 %v1406
        %v1626 = vunpack.c.l.b16 %v1416
        %v1627 = vunpack.c.l.b16 %v1430
        %v1628 = vunpack.c.l.b16 %v1440
        %v1629 = vunpack.c.l.b16 %v1454
        %v1630 = vunpack.c.l.b16 %v1464
        %v1631 = vunpack.c.l.b16 %v1478
        %v1632 = vunpack.c.l.b16 %v1488
        %v1633 = vunpack.c.l.b16 %v1502
        %v1634 = vunpack.c.l.b16 %v1512
        %v1635 = vunpack.c.l.b16 %v1526
        %v1636 = vunpack.c.l.b16 %v1536
        %v1637 = vunpack.c.l.b16 %v1550
        %v1638 = vunpack.c.l.b16 %v1560
        %v1639 = vunpack.c.l.b16 %v1574
        %v1640 = vunpack.c.l.b16 %v1584
        %v1641 = vunpack.c.l.b16 %v1598
        %v1642 = vunpack.c.l.b16 %v1608
        %v1643 = vpack.c.b16 %v1612, %v1611
        %v1644 = vpack.c.b16 %v1614, %v1613
        %v1645 = vpack.c.b16 %v1616, %v1615
        %v1646 = vpack.c.b16 %v1618, %v1617
        %v1647 = vpack.c.b16 %v1620, %v1619
        %v1648 = vpack.c.b16 %v1622, %v1621
        %v1649 = vpack.c.b16 %v1624, %v1623
        %v1650 = vpack.c.b16 %v1626, %v1625
        %v1651 = vpack.c.b16 %v1628, %v1627
        %v1652 = vpack.c.b16 %v1630, %v1629
        %v1653 = vpack.c.b16 %v1632, %v1631
        %v1654 = vpack.c.b16 %v1634, %v1633
        %v1655 = vpack.c.b16 %v1636, %v1635
        %v1656 = vpack.c.b16 %v1638, %v1637
        %v1657 = vpack.c.b16 %v1640, %v1639
        %v1658 = vpack.c.b16 %v1642, %v1641
        %vm1659 = vcmask 31744
        %v1661 = vsel %vm1659, %v1643, 0
        %v1664 = vsel %vm1659, %v1644, 0
        %v1667 = vsel %vm1659, %v1645, 0
        %v1670 = vsel %vm1659, %v1646, 0
        %v1673 = vsel %vm1659, %v1647, 0
        %v1676 = vsel %vm1659, %v1648, 0
        %v1679 = vsel %vm1659, %v1649, 0
        %v1682 = vsel %vm1659, %v1650, 0
        %v1685 = vsel %vm1659, %v1651, 0
        %v1688 = vsel %vm1659, %v1652, 0
        %v1691 = vsel %vm1659, %v1653, 0
        %v1694 = vsel %vm1659, %v1654, 0
        %v1697 = vsel %vm1659, %v1655, 0
        %v1700 = vsel %vm1659, %v1656, 0
        %v1703 = vsel %vm1659, %v1657, 0
        %v1706 = vsel %vm1659, %v1658, 0
        %vm1708 = vcmask 1041408
        %v1710 = vsel %vm1708, %v1610, 0
        %1712 = vmatpush.bf16.msra.mxu0 0
        %1713 = vmatpush.bf16.msra.mxu0 0
        %1714 = vmatpush.bf16.msra.mxu0 0
        %1715 = vmatpush.bf16.msra.mxu0 0
        %1716 = vmatpush.bf16.msra.mxu0 0
        %1717 = vmatpush.bf16.msra.mxu0 0
        %1718 = vmatpush.bf16.msra.mxu0 0
        %1719 = vmatpush.bf16.msra.mxu0 %v1710
        %1720 = vmatmul.bf16.gmra.mxu0 %v1661
        %v1721 = vpop.f32.mrf.mxu0
        %v1722 = vadd.f32 0.0, %v1721
        %v1723 = vpop.f32.mrf.mxu0
        %v1724 = vadd.f32 0.0, %v1723
        %1725 = vmatmul.bf16.gmra.mxu0 %v1664
        %v1726 = vpop.f32.mrf.mxu0
        %v1727 = vadd.f32 0.0, %v1726
        %v1728 = vpop.f32.mrf.mxu0
        %v1729 = vadd.f32 0.0, %v1728
        %1730 = vmatmul.bf16.gmra.mxu0 %v1667
        %v1731 = vpop.f32.mrf.mxu0
        %v1732 = vadd.f32 0.0, %v1731
        %v1733 = vpop.f32.mrf.mxu0
        %v1734 = vadd.f32 0.0, %v1733
        %1735 = vmatmul.bf16.gmra.mxu0 %v1670
        %v1736 = vpop.f32.mrf.mxu0
        %v1737 = vadd.f32 0.0, %v1736
        %v1738 = vpop.f32.mrf.mxu0
        %v1739 = vadd.f32 0.0, %v1738
        %1740 = vmatmul.bf16.gmra.mxu0 %v1673
        %v1741 = vpop.f32.mrf.mxu0
        %v1742 = vadd.f32 0.0, %v1741
        %v1743 = vpop.f32.mrf.mxu0
        %v1744 = vadd.f32 0.0, %v1743
        %1745 = vmatmul.bf16.gmra.mxu0 %v1676
        %v1746 = vpop.f32.mrf.mxu0
        %v1747 = vadd.f32 0.0, %v1746
        %v1748 = vpop.f32.mrf.mxu0
        %v1749 = vadd.f32 0.0, %v1748
        %1750 = vmatmul.bf16.gmra.mxu0 %v1679
        %v1751 = vpop.f32.mrf.mxu0
        %v1752 = vadd.f32 0.0, %v1751
        %v1753 = vpop.f32.mrf.mxu0
        %v1754 = vadd.f32 0.0, %v1753
        %1755 = vmatmul.bf16.gmra.mxu0 %v1682
        %v1756 = vpop.f32.mrf.mxu0
        %v1757 = vadd.f32 0.0, %v1756
        %v1758 = vpop.f32.mrf.mxu0
        %v1759 = vadd.f32 0.0, %v1758
        %1760 = vmatmul.bf16.gmra.mxu0 %v1685
        %v1761 = vpop.f32.mrf.mxu0
        %v1762 = vadd.f32 0.0, %v1761
        %v1763 = vpop.f32.mrf.mxu0
        %v1764 = vadd.f32 0.0, %v1763
        %1765 = vmatmul.bf16.gmra.mxu0 %v1688
        %v1766 = vpop.f32.mrf.mxu0
        %v1767 = vadd.f32 0.0, %v1766
        %v1768 = vpop.f32.mrf.mxu0
        %v1769 = vadd.f32 0.0, %v1768
        %1770 = vmatmul.bf16.gmra.mxu0 %v1691
        %v1771 = vpop.f32.mrf.mxu0
        %v1772 = vadd.f32 0.0, %v1771
        %v1773 = vpop.f32.mrf.mxu0
        %v1774 = vadd.f32 0.0, %v1773
        %1775 = vmatmul.bf16.gmra.mxu0 %v1694
        %v1776 = vpop.f32.mrf.mxu0
        %v1777 = vadd.f32 0.0, %v1776
        %v1778 = vpop.f32.mrf.mxu0
        %v1779 = vadd.f32 0.0, %v1778
        %1780 = vmatmul.bf16.gmra.mxu0 %v1697
        %v1781 = vpop.f32.mrf.mxu0
        %v1782 = vadd.f32 0.0, %v1781
        %v1783 = vpop.f32.mrf.mxu0
        %v1784 = vadd.f32 0.0, %v1783
        %1785 = vmatmul.bf16.gmra.mxu0 %v1700
        %v1786 = vpop.f32.mrf.mxu0
        %v1787 = vadd.f32 0.0, %v1786
        %v1788 = vpop.f32.mrf.mxu0
        %v1789 = vadd.f32 0.0, %v1788
        %1790 = vmatmul.bf16.gmra.mxu0 %v1703
        %v1791 = vpop.f32.mrf.mxu0
        %v1792 = vadd.f32 0.0, %v1791
        %v1793 = vpop.f32.mrf.mxu0
        %v1794 = vadd.f32 0.0, %v1793
        %1795 = vmatmul.bf16.gmra.mxu0 %v1706
        %v1796 = vpop.f32.mrf.mxu0
        %v1797 = vadd.f32 0.0, %v1796
        %v1798 = vpop.f32.mrf.mxu0
        %v1799 = vadd.f32 0.0, %v1798
        %1800 = vdwg.mxu0
        %v1833 = vunpack.c.l.b16 %v1173
        %v1834 = vunpack.c.l.b16 %v1174
        %v1835 = vunpack.c.l.b16 %v1175
        %v1836 = vunpack.c.l.b16 %v1176
        %v1837 = vunpack.c.l.b16 %v1177
        %v1838 = vunpack.c.l.b16 %v1178
        %v1839 = vunpack.c.l.b16 %v1179
        %v1840 = vunpack.c.l.b16 %v1180
        %v1841 = vunpack.c.l.b16 %v1181
        %v1842 = vunpack.c.l.b16 %v1182
        %v1843 = vunpack.c.l.b16 %v1183
        %v1844 = vunpack.c.l.b16 %v1184
        %v1845 = vunpack.c.l.b16 %v1185
        %v1846 = vunpack.c.l.b16 %v1186
        %v1847 = vunpack.c.l.b16 %v1187
        %v1848 = vunpack.c.l.b16 %v1188
        %v1849 = vunpack.c.l.b16 %v1189
        %v1850 = vunpack.c.l.b16 %v1190
        %v1851 = vunpack.c.l.b16 %v1191
        %v1852 = vunpack.c.l.b16 %v1192
        %v1853 = vunpack.c.l.b16 %v1193
        %v1854 = vunpack.c.l.b16 %v1194
        %v1855 = vunpack.c.l.b16 %v1195
        %v1856 = vunpack.c.l.b16 %v1196
        %v1857 = vunpack.c.l.b16 %v1197
        %v1858 = vunpack.c.l.b16 %v1198
        %v1859 = vunpack.c.l.b16 %v1199
        %v1860 = vunpack.c.l.b16 %v1200
        %v1861 = vunpack.c.l.b16 %v1201
        %v1862 = vunpack.c.l.b16 %v1202
        %v1863 = vunpack.c.l.b16 %v1203
        %v1864 = vunpack.c.l.b16 %v1204
        %v1865 = vpack.c.b16 %v1834, %v1833
        %v1866 = vpack.c.b16 %v1836, %v1835
        %v1867 = vpack.c.b16 %v1838, %v1837
        %v1868 = vpack.c.b16 %v1840, %v1839
        %v1869 = vpack.c.b16 %v1842, %v1841
        %v1870 = vpack.c.b16 %v1844, %v1843
        %v1871 = vpack.c.b16 %v1846, %v1845
        %v1872 = vpack.c.b16 %v1848, %v1847
        %v1873 = vpack.c.b16 %v1850, %v1849
        %v1874 = vpack.c.b16 %v1852, %v1851
        %v1875 = vpack.c.b16 %v1854, %v1853
        %v1876 = vpack.c.b16 %v1856, %v1855
        %v1877 = vpack.c.b16 %v1858, %v1857
        %v1878 = vpack.c.b16 %v1860, %v1859
        %v1879 = vpack.c.b16 %v1862, %v1861
        %v1880 = vpack.c.b16 %v1864, %v1863
        %v1882 = vsel %vm1659, %v1865, 0
        %v1885 = vsel %vm1659, %v1866, 0
        %v1888 = vsel %vm1659, %v1867, 0
        %v1891 = vsel %vm1659, %v1868, 0
        %v1894 = vsel %vm1659, %v1869, 0
        %v1897 = vsel %vm1659, %v1870, 0
        %v1900 = vsel %vm1659, %v1871, 0
        %v1903 = vsel %vm1659, %v1872, 0
        %v1906 = vsel %vm1659, %v1873, 0
        %v1909 = vsel %vm1659, %v1874, 0
        %v1912 = vsel %vm1659, %v1875, 0
        %v1915 = vsel %vm1659, %v1876, 0
        %v1918 = vsel %vm1659, %v1877, 0
        %v1921 = vsel %vm1659, %v1878, 0
        %v1924 = vsel %vm1659, %v1879, 0
        %v1927 = vsel %vm1659, %v1880, 0
        %v1930 = vsel %vm1708, %v1205, 0
        %1932 = vmatpush.bf16.msra.mxu0 0
        %1933 = vmatpush.bf16.msra.mxu0 0
        %1934 = vmatpush.bf16.msra.mxu0 0
        %1935 = vmatpush.bf16.msra.mxu0 0
        %1936 = vmatpush.bf16.msra.mxu0 0
        %1937 = vmatpush.bf16.msra.mxu0 0
        %1938 = vmatpush.bf16.msra.mxu0 0
        %1939 = vmatpush.bf16.msra.mxu0 %v1930
        %1940 = vmatmul.bf16.gmra.mxu0 %v1882
        %v1941 = vpop.f32.mrf.mxu0
        %v1942 = vadd.f32 %v1722, %v1941
        %v1943 = vpop.f32.mrf.mxu0
        %v1944 = vadd.f32 %v1724, %v1943
        %1945 = vmatmul.bf16.gmra.mxu0 %v1885
        %v1946 = vpop.f32.mrf.mxu0
        %v1947 = vadd.f32 %v1727, %v1946
        %v1948 = vpop.f32.mrf.mxu0
        %v1949 = vadd.f32 %v1729, %v1948
        %1950 = vmatmul.bf16.gmra.mxu0 %v1888
        %v1951 = vpop.f32.mrf.mxu0
        %v1952 = vadd.f32 %v1732, %v1951
        %v1953 = vpop.f32.mrf.mxu0
        %v1954 = vadd.f32 %v1734, %v1953
        %1955 = vmatmul.bf16.gmra.mxu0 %v1891
        %v1956 = vpop.f32.mrf.mxu0
        %v1957 = vadd.f32 %v1737, %v1956
        %v1958 = vpop.f32.mrf.mxu0
        %v1959 = vadd.f32 %v1739, %v1958
        %1960 = vmatmul.bf16.gmra.mxu0 %v1894
        %v1961 = vpop.f32.mrf.mxu0
        %v1962 = vadd.f32 %v1742, %v1961
        %v1963 = vpop.f32.mrf.mxu0
        %v1964 = vadd.f32 %v1744, %v1963
        %1965 = vmatmul.bf16.gmra.mxu0 %v1897
        %v1966 = vpop.f32.mrf.mxu0
        %v1967 = vadd.f32 %v1747, %v1966
        %v1968 = vpop.f32.mrf.mxu0
        %v1969 = vadd.f32 %v1749, %v1968
        %1970 = vmatmul.bf16.gmra.mxu0 %v1900
        %v1971 = vpop.f32.mrf.mxu0
        %v1972 = vadd.f32 %v1752, %v1971
        %v1973 = vpop.f32.mrf.mxu0
        %v1974 = vadd.f32 %v1754, %v1973
        %1975 = vmatmul.bf16.gmra.mxu0 %v1903
        %v1976 = vpop.f32.mrf.mxu0
        %v1977 = vadd.f32 %v1757, %v1976
        %v1978 = vpop.f32.mrf.mxu0
        %v1979 = vadd.f32 %v1759, %v1978
        %1980 = vmatmul.bf16.gmra.mxu0 %v1906
        %v1981 = vpop.f32.mrf.mxu0
        %v1982 = vadd.f32 %v1762, %v1981
        %v1983 = vpop.f32.mrf.mxu0
        %v1984 = vadd.f32 %v1764, %v1983
        %1985 = vmatmul.bf16.gmra.mxu0 %v1909
        %v1986 = vpop.f32.mrf.mxu0
        %v1987 = vadd.f32 %v1767, %v1986
        %v1988 = vpop.f32.mrf.mxu0
        %v1989 = vadd.f32 %v1769, %v1988
        %1990 = vmatmul.bf16.gmra.mxu0 %v1912
        %v1991 = vpop.f32.mrf.mxu0
        %v1992 = vadd.f32 %v1772, %v1991
        %v1993 = vpop.f32.mrf.mxu0
        %v1994 = vadd.f32 %v1774, %v1993
        %1995 = vmatmul.bf16.gmra.mxu0 %v1915
        %v1996 = vpop.f32.mrf.mxu0
        %v1997 = vadd.f32 %v1777, %v1996
        %v1998 = vpop.f32.mrf.mxu0
        %v1999 = vadd.f32 %v1779, %v1998
        %2000 = vmatmul.bf16.gmra.mxu0 %v1918
        %v2001 = vpop.f32.mrf.mxu0
        %v2002 = vadd.f32 %v1782, %v2001
        %v2003 = vpop.f32.mrf.mxu0
        %v2004 = vadd.f32 %v1784, %v2003
        %2005 = vmatmul.bf16.gmra.mxu0 %v1921
        %v2006 = vpop.f32.mrf.mxu0
        %v2007 = vadd.f32 %v1787, %v2006
        %v2008 = vpop.f32.mrf.mxu0
        %v2009 = vadd.f32 %v1789, %v2008
        %2010 = vmatmul.bf16.gmra.mxu0 %v1924
        %v2011 = vpop.f32.mrf.mxu0
        %v2012 = vadd.f32 %v1792, %v2011
        %v2013 = vpop.f32.mrf.mxu0
        %v2014 = vadd.f32 %v1794, %v2013
        %2015 = vmatmul.bf16.gmra.mxu0 %v1927
        %v2016 = vpop.f32.mrf.mxu0
        %v2017 = vadd.f32 %v1797, %v2016
        %v2018 = vpop.f32.mrf.mxu0
        %v2019 = vadd.f32 %v1799, %v2018
        %2020 = vdwg.mxu0
        %v2021 = vld [vmem:[#allocation2] sm:$0xe]
        %v2022 = vld [vmem:[#allocation2 + $0xc] sm:$0xe]
        %v2023 = vld [vmem:[#allocation2 + $0x18] sm:$0xe]
        %v2024 = vld [vmem:[#allocation2 + $0x24] sm:$0xe]
        %v2025 = vld [vmem:[#allocation2 + $0x30] sm:$0xe]
        %v2026 = vld [vmem:[#allocation2 + $0x3c] sm:$0xe]
        %v2027 = vld [vmem:[#allocation2 + $0x48] sm:$0xe]
        %v2028 = vld [vmem:[#allocation2 + $0x54] sm:$0xe]
        %v2029 = vld [vmem:[#allocation2 + $0x60] sm:$0xe]
        %v2030 = vld [vmem:[#allocation2 + $0x6c] sm:$0xe]
        %v2031 = vld [vmem:[#allocation2 + $0x78] sm:$0xe]
        %v2032 = vld [vmem:[#allocation2 + $0x84] sm:$0xe]
        %v2033 = vld [vmem:[#allocation2 + $0x90] sm:$0xe]
        %v2034 = vld [vmem:[#allocation2 + $0x9c] sm:$0xe]
        %v2035 = vld [vmem:[#allocation2 + $0xa8] sm:$0xe]
        %v2036 = vld [vmem:[#allocation2 + $0xb4] sm:$0xe]
        %vm2069 = vcmask 1042432
        %vm2070 = vcmask 1046532
        %vm2071 = vmor %vm2069, %vm2070
        %v2072 = vrot.slane %v2021, 5
        %v2073 = vrot.slane %v2072, 4
        %v2074 = vrot.slane %v1174, 5
        %v2075 = vsel %vm2071, %v2073, %v2074
        %v2076 = vrot.slane %v2074, 4
        %v2077 = vrot.slane %v1206, 5
        %v2078 = vsel %vm2071, %v2076, %v2077
        %v2079 = vrot.slane %v2022, 5
        %v2080 = vrot.slane %v2079, 4
        %v2081 = vrot.slane %v1176, 5
        %v2082 = vsel %vm2071, %v2080, %v2081
        %v2083 = vrot.slane %v2081, 4
        %v2084 = vrot.slane %v1207, 5
        %v2085 = vsel %vm2071, %v2083, %v2084
        %v2086 = vrot.slane %v2023, 5
        %v2087 = vrot.slane %v2086, 4
        %v2088 = vrot.slane %v1178, 5
        %v2089 = vsel %vm2071, %v2087, %v2088
        %v2090 = vrot.slane %v2088, 4
        %v2091 = vrot.slane %v1208, 5
        %v2092 = vsel %vm2071, %v2090, %v2091
        %v2093 = vrot.slane %v2024, 5
        %v2094 = vrot.slane %v2093, 4
        %v2095 = vrot.slane %v1180, 5
        %v2096 = vsel %vm2071, %v2094, %v2095
        %v2097 = vrot.slane %v2095, 4
        %v2098 = vrot.slane %v1209, 5
        %v2099 = vsel %vm2071, %v2097, %v2098
        %v2100 = vrot.slane %v2025, 5
        %v2101 = vrot.slane %v2100, 4
        %v2102 = vrot.slane %v1182, 5
        %v2103 = vsel %vm2071, %v2101, %v2102
        %v2104 = vrot.slane %v2102, 4
        %v2105 = vrot.slane %v1210, 5
        %v2106 = vsel %vm2071, %v2104, %v2105
        %v2107 = vrot.slane %v2026, 5
        %v2108 = vrot.slane %v2107, 4
        %v2109 = vrot.slane %v1184, 5
        %v2110 = vsel %vm2071, %v2108, %v2109
        %v2111 = vrot.slane %v2109, 4
        %v2112 = vrot.slane %v1211, 5
        %v2113 = vsel %vm2071, %v2111, %v2112
        %v2114 = vrot.slane %v2027, 5
        %v2115 = vrot.slane %v2114, 4
        %v2116 = vrot.slane %v1186, 5
        %v2117 = vsel %vm2071, %v2115, %v2116
        %v2118 = vrot.slane %v2116, 4
        %v2119 = vrot.slane %v1212, 5
        %v2120 = vsel %vm2071, %v2118, %v2119
        %v2121 = vrot.slane %v2028, 5
        %v2122 = vrot.slane %v2121, 4
        %v2123 = vrot.slane %v1188, 5
        %v2124 = vsel %vm2071, %v2122, %v2123
        %v2125 = vrot.slane %v2123, 4
        %v2126 = vrot.slane %v1213, 5
        %v2127 = vsel %vm2071, %v2125, %v2126
        %v2128 = vrot.slane %v2029, 5
        %v2129 = vrot.slane %v2128, 4
        %v2130 = vrot.slane %v1190, 5
        %v2131 = vsel %vm2071, %v2129, %v2130
        %v2132 = vrot.slane %v2130, 4
        %v2133 = vrot.slane %v1214, 5
        %v2134 = vsel %vm2071, %v2132, %v2133
        %v2135 = vrot.slane %v2030, 5
        %v2136 = vrot.slane %v2135, 4
        %v2137 = vrot.slane %v1192, 5
        %v2138 = vsel %vm2071, %v2136, %v2137
        %v2139 = vrot.slane %v2137, 4
        %v2140 = vrot.slane %v1215, 5
        %v2141 = vsel %vm2071, %v2139, %v2140
        %v2142 = vrot.slane %v2031, 5
        %v2143 = vrot.slane %v2142, 4
        %v2144 = vrot.slane %v1194, 5
        %v2145 = vsel %vm2071, %v2143, %v2144
        %v2146 = vrot.slane %v2144, 4
        %v2147 = vrot.slane %v1216, 5
        %v2148 = vsel %vm2071, %v2146, %v2147
        %v2149 = vrot.slane %v2032, 5
        %v2150 = vrot.slane %v2149, 4
        %v2151 = vrot.slane %v1196, 5
        %v2152 = vsel %vm2071, %v2150, %v2151
        %v2153 = vrot.slane %v2151, 4
        %v2154 = vrot.slane %v1217, 5
        %v2155 = vsel %vm2071, %v2153, %v2154
        %v2156 = vrot.slane %v2033, 5
        %v2157 = vrot.slane %v2156, 4
        %v2158 = vrot.slane %v1198, 5
        %v2159 = vsel %vm2071, %v2157, %v2158
        %v2160 = vrot.slane %v2158, 4
        %v2161 = vrot.slane %v1218, 5
        %v2162 = vsel %vm2071, %v2160, %v2161
        %v2163 = vrot.slane %v2034, 5
        %v2164 = vrot.slane %v2163, 4
        %v2165 = vrot.slane %v1200, 5
        %v2166 = vsel %vm2071, %v2164, %v2165
        %v2167 = vrot.slane %v2165, 4
        %v2168 = vrot.slane %v1219, 5
        %v2169 = vsel %vm2071, %v2167, %v2168
        %v2170 = vrot.slane %v2035, 5
        %v2171 = vrot.slane %v2170, 4
        %v2172 = vrot.slane %v1202, 5
        %v2173 = vsel %vm2071, %v2171, %v2172
        %v2174 = vrot.slane %v2172, 4
        %v2175 = vrot.slane %v1220, 5
        %v2176 = vsel %vm2071, %v2174, %v2175
        %v2177 = vrot.slane %v2036, 5
        %v2178 = vrot.slane %v2177, 4
        %v2179 = vrot.slane %v1204, 5
        %v2180 = vsel %vm2071, %v2178, %v2179
        %v2181 = vrot.slane %v2179, 4
        %v2182 = vrot.slane %v1221, 5
        %v2183 = vsel %vm2071, %v2181, %v2182
        %s2184 = scalar_lea.vmem %s3, 4
        %v2185 = vld [vmem:[%s2184] sm:$0x3]
        %v2186 = vunpack.c.l.b16 %v2075
        %v2187 = vunpack.c.l.b16 %v2078
        %v2188 = vunpack.c.l.b16 %v2082
        %v2189 = vunpack.c.l.b16 %v2085
        %v2190 = vunpack.c.l.b16 %v2089
        %v2191 = vunpack.c.l.b16 %v2092
        %v2192 = vunpack.c.l.b16 %v2096
        %v2193 = vunpack.c.l.b16 %v2099
        %v2194 = vunpack.c.l.b16 %v2103
        %v2195 = vunpack.c.l.b16 %v2106
        %v2196 = vunpack.c.l.b16 %v2110
        %v2197 = vunpack.c.l.b16 %v2113
        %v2198 = vunpack.c.l.b16 %v2117
        %v2199 = vunpack.c.l.b16 %v2120
        %v2200 = vunpack.c.l.b16 %v2124
        %v2201 = vunpack.c.l.b16 %v2127
        %v2202 = vunpack.c.l.b16 %v2131
        %v2203 = vunpack.c.l.b16 %v2134
        %v2204 = vunpack.c.l.b16 %v2138
        %v2205 = vunpack.c.l.b16 %v2141
        %v2206 = vunpack.c.l.b16 %v2145
        %v2207 = vunpack.c.l.b16 %v2148
        %v2208 = vunpack.c.l.b16 %v2152
        %v2209 = vunpack.c.l.b16 %v2155
        %v2210 = vunpack.c.l.b16 %v2159
        %v2211 = vunpack.c.l.b16 %v2162
        %v2212 = vunpack.c.l.b16 %v2166
        %v2213 = vunpack.c.l.b16 %v2169
        %v2214 = vunpack.c.l.b16 %v2173
        %v2215 = vunpack.c.l.b16 %v2176
        %v2216 = vunpack.c.l.b16 %v2180
        %v2217 = vunpack.c.l.b16 %v2183
        %v2218 = vpack.c.b16 %v2187, %v2186
        %v2219 = vpack.c.b16 %v2189, %v2188
        %v2220 = vpack.c.b16 %v2191, %v2190
        %v2221 = vpack.c.b16 %v2193, %v2192
        %v2222 = vpack.c.b16 %v2195, %v2194
        %v2223 = vpack.c.b16 %v2197, %v2196
        %v2224 = vpack.c.b16 %v2199, %v2198
        %v2225 = vpack.c.b16 %v2201, %v2200
        %v2226 = vpack.c.b16 %v2203, %v2202
        %v2227 = vpack.c.b16 %v2205, %v2204
        %v2228 = vpack.c.b16 %v2207, %v2206
        %v2229 = vpack.c.b16 %v2209, %v2208
        %v2230 = vpack.c.b16 %v2211, %v2210
        %v2231 = vpack.c.b16 %v2213, %v2212
        %v2232 = vpack.c.b16 %v2215, %v2214
        %v2233 = vpack.c.b16 %v2217, %v2216
        %v2235 = vsel %vm1659, %v2218, 0
        %v2238 = vsel %vm1659, %v2219, 0
        %v2241 = vsel %vm1659, %v2220, 0
        %v2244 = vsel %vm1659, %v2221, 0
        %v2247 = vsel %vm1659, %v2222, 0
        %v2250 = vsel %vm1659, %v2223, 0
        %v2253 = vsel %vm1659, %v2224, 0
        %v2256 = vsel %vm1659, %v2225, 0
        %v2259 = vsel %vm1659, %v2226, 0
        %v2262 = vsel %vm1659, %v2227, 0
        %v2265 = vsel %vm1659, %v2228, 0
        %v2268 = vsel %vm1659, %v2229, 0
        %v2271 = vsel %vm1659, %v2230, 0
        %v2274 = vsel %vm1659, %v2231, 0
        %v2277 = vsel %vm1659, %v2232, 0
        %v2280 = vsel %vm1659, %v2233, 0
        %v2283 = vsel %vm1708, %v2185, 0
        %2285 = vmatpush.bf16.msra.mxu0 0
        %2286 = vmatpush.bf16.msra.mxu0 0
        %2287 = vmatpush.bf16.msra.mxu0 0
        %2288 = vmatpush.bf16.msra.mxu0 0
        %2289 = vmatpush.bf16.msra.mxu0 0
        %2290 = vmatpush.bf16.msra.mxu0 0
        %2291 = vmatpush.bf16.msra.mxu0 0
        %2292 = vmatpush.bf16.msra.mxu0 %v2283
        %2293 = vmatmul.bf16.gmra.mxu0 %v2235
        %v2294 = vpop.f32.mrf.mxu0
        %v2295 = vadd.f32 0.0, %v2294
        %v2296 = vpop.f32.mrf.mxu0
        %v2297 = vadd.f32 0.0, %v2296
        %2298 = vmatmul.bf16.gmra.mxu0 %v2238
        %v2299 = vpop.f32.mrf.mxu0
        %v2300 = vadd.f32 0.0, %v2299
        %v2301 = vpop.f32.mrf.mxu0
        %v2302 = vadd.f32 0.0, %v2301
        %2303 = vmatmul.bf16.gmra.mxu0 %v2241
        %v2304 = vpop.f32.mrf.mxu0
        %v2305 = vadd.f32 0.0, %v2304
        %v2306 = vpop.f32.mrf.mxu0
        %v2307 = vadd.f32 0.0, %v2306
        %2308 = vmatmul.bf16.gmra.mxu0 %v2244
        %v2309 = vpop.f32.mrf.mxu0
        %v2310 = vadd.f32 0.0, %v2309
        %v2311 = vpop.f32.mrf.mxu0
        %v2312 = vadd.f32 0.0, %v2311
        %2313 = vmatmul.bf16.gmra.mxu0 %v2247
        %v2314 = vpop.f32.mrf.mxu0
        %v2315 = vadd.f32 0.0, %v2314
        %v2316 = vpop.f32.mrf.mxu0
        %v2317 = vadd.f32 0.0, %v2316
        %2318 = vmatmul.bf16.gmra.mxu0 %v2250
        %v2319 = vpop.f32.mrf.mxu0
        %v2320 = vadd.f32 0.0, %v2319
        %v2321 = vpop.f32.mrf.mxu0
        %v2322 = vadd.f32 0.0, %v2321
        %2323 = vmatmul.bf16.gmra.mxu0 %v2253
        %v2324 = vpop.f32.mrf.mxu0
        %v2325 = vadd.f32 0.0, %v2324
        %v2326 = vpop.f32.mrf.mxu0
        %v2327 = vadd.f32 0.0, %v2326
        %2328 = vmatmul.bf16.gmra.mxu0 %v2256
        %v2329 = vpop.f32.mrf.mxu0
        %v2330 = vadd.f32 0.0, %v2329
        %v2331 = vpop.f32.mrf.mxu0
        %v2332 = vadd.f32 0.0, %v2331
        %2333 = vmatmul.bf16.gmra.mxu0 %v2259
        %v2334 = vpop.f32.mrf.mxu0
        %v2335 = vadd.f32 0.0, %v2334
        %v2336 = vpop.f32.mrf.mxu0
        %v2337 = vadd.f32 0.0, %v2336
        %2338 = vmatmul.bf16.gmra.mxu0 %v2262
        %v2339 = vpop.f32.mrf.mxu0
        %v2340 = vadd.f32 0.0, %v2339
        %v2341 = vpop.f32.mrf.mxu0
        %v2342 = vadd.f32 0.0, %v2341
        %2343 = vmatmul.bf16.gmra.mxu0 %v2265
        %v2344 = vpop.f32.mrf.mxu0
        %v2345 = vadd.f32 0.0, %v2344
        %v2346 = vpop.f32.mrf.mxu0
        %v2347 = vadd.f32 0.0, %v2346
        %2348 = vmatmul.bf16.gmra.mxu0 %v2268
        %v2349 = vpop.f32.mrf.mxu0
        %v2350 = vadd.f32 0.0, %v2349
        %v2351 = vpop.f32.mrf.mxu0
        %v2352 = vadd.f32 0.0, %v2351
        %2353 = vmatmul.bf16.gmra.mxu0 %v2271
        %v2354 = vpop.f32.mrf.mxu0
        %v2355 = vadd.f32 0.0, %v2354
        %v2356 = vpop.f32.mrf.mxu0
        %v2357 = vadd.f32 0.0, %v2356
        %2358 = vmatmul.bf16.gmra.mxu0 %v2274
        %v2359 = vpop.f32.mrf.mxu0
        %v2360 = vadd.f32 0.0, %v2359
        %v2361 = vpop.f32.mrf.mxu0
        %v2362 = vadd.f32 0.0, %v2361
        %2363 = vmatmul.bf16.gmra.mxu0 %v2277
        %v2364 = vpop.f32.mrf.mxu0
        %v2365 = vadd.f32 0.0, %v2364
        %v2366 = vpop.f32.mrf.mxu0
        %v2367 = vadd.f32 0.0, %v2366
        %2368 = vmatmul.bf16.gmra.mxu0 %v2280
        %v2369 = vpop.f32.mrf.mxu0
        %v2370 = vadd.f32 0.0, %v2369
        %v2371 = vpop.f32.mrf.mxu0
        %v2372 = vadd.f32 0.0, %v2371
        %2373 = vdwg.mxu0
        %v2374 = vadd.f32 %v1942, %v2295
        %v2375 = vadd.f32 %v1944, %v2297
        %v2376 = vadd.f32 %v1947, %v2300
        %v2377 = vadd.f32 %v1949, %v2302
        %v2378 = vadd.f32 %v1952, %v2305
        %v2379 = vadd.f32 %v1954, %v2307
        %v2380 = vadd.f32 %v1957, %v2310
        %v2381 = vadd.f32 %v1959, %v2312
        %v2382 = vadd.f32 %v1962, %v2315
        %v2383 = vadd.f32 %v1964, %v2317
        %v2384 = vadd.f32 %v1967, %v2320
        %v2385 = vadd.f32 %v1969, %v2322
        %v2386 = vadd.f32 %v1972, %v2325
        %v2387 = vadd.f32 %v1974, %v2327
        %v2388 = vadd.f32 %v1977, %v2330
        %v2389 = vadd.f32 %v1979, %v2332
        %v2390 = vadd.f32 %v1982, %v2335
        %v2391 = vadd.f32 %v1984, %v2337
        %v2392 = vadd.f32 %v1987, %v2340
        %v2393 = vadd.f32 %v1989, %v2342
        %v2394 = vadd.f32 %v1992, %v2345
        %v2395 = vadd.f32 %v1994, %v2347
        %v2396 = vadd.f32 %v1997, %v2350
        %v2397 = vadd.f32 %v1999, %v2352
        %v2398 = vadd.f32 %v2002, %v2355
        %v2399 = vadd.f32 %v2004, %v2357
        %v2400 = vadd.f32 %v2007, %v2360
        %v2401 = vadd.f32 %v2009, %v2362
        %v2402 = vadd.f32 %v2012, %v2365
        %v2403 = vadd.f32 %v2014, %v2367
        %v2404 = vadd.f32 %v2017, %v2370
        %v2405 = vadd.f32 %v2019, %v2372
        %v2406 = vld [vmem:[%s635] sm:$0xf]
        %v2407 = vld [vmem:[%s635 + $0x4] sm:$0xf]
        %v2408 = vld [vmem:[%s635 + $0xc] sm:$0xf]
        %v2409 = vld [vmem:[%s635 + $0x10] sm:$0xf]
        %v2410 = vld [vmem:[%s635 + $0x18] sm:$0xf]
        %v2411 = vld [vmem:[%s635 + $0x1c] sm:$0xf]
        %v2412 = vld [vmem:[%s635 + $0x24] sm:$0xf]
        %v2413 = vld [vmem:[%s635 + $0x28] sm:$0xf]
        %v2414 = vld [vmem:[%s635 + $0x30] sm:$0xf]
        %v2415 = vld [vmem:[%s635 + $0x34] sm:$0xf]
        %v2416 = vld [vmem:[%s635 + $0x3c] sm:$0xf]
        %v2417 = vld [vmem:[%s635 + $0x40] sm:$0xf]
        %v2418 = vld [vmem:[%s635 + $0x48] sm:$0xf]
        %v2419 = vld [vmem:[%s635 + $0x4c] sm:$0xf]
        %v2420 = vld [vmem:[%s635 + $0x54] sm:$0xf]
        %v2421 = vld [vmem:[%s635 + $0x58] sm:$0xf]
        %v2422 = vld [vmem:[%s635 + $0x60] sm:$0xf]
        %v2423 = vld [vmem:[%s635 + $0x64] sm:$0xf]
        %v2424 = vld [vmem:[%s635 + $0x6c] sm:$0xf]
        %v2425 = vld [vmem:[%s635 + $0x70] sm:$0xf]
        %v2426 = vld [vmem:[%s635 + $0x78] sm:$0xf]
        %v2427 = vld [vmem:[%s635 + $0x7c] sm:$0xf]
        %v2428 = vld [vmem:[%s635 + $0x84] sm:$0xf]
        %v2429 = vld [vmem:[%s635 + $0x88] sm:$0xf]
        %v2430 = vld [vmem:[%s635 + $0x90] sm:$0xf]
        %v2431 = vld [vmem:[%s635 + $0x94] sm:$0xf]
        %v2432 = vld [vmem:[%s635 + $0x9c] sm:$0xf]
        %v2433 = vld [vmem:[%s635 + $0xa0] sm:$0xf]
        %v2434 = vld [vmem:[%s635 + $0xa8] sm:$0xf]
        %v2435 = vld [vmem:[%s635 + $0xac] sm:$0xf]
        %v2436 = vld [vmem:[%s635 + $0xb4] sm:$0xf]
        %v2437 = vld [vmem:[%s635 + $0xb8] sm:$0xf]
        %s2438 = scalar_lea.vmem %s3, 6
        %v2439 = vld [vmem:[%s2438] sm:$0x3]
        %v2472 = vunpack.c.l.b16 %v2406
        %v2473 = vunpack.c.l.b16 %v2407
        %v2474 = vunpack.c.l.b16 %v2408
        %v2475 = vunpack.c.l.b16 %v2409
        %v2476 = vunpack.c.l.b16 %v2410
        %v2477 = vunpack.c.l.b16 %v2411
        %v2478 = vunpack.c.l.b16 %v2412
        %v2479 = vunpack.c.l.b16 %v2413
        %v2480 = vunpack.c.l.b16 %v2414
        %v2481 = vunpack.c.l.b16 %v2415
        %v2482 = vunpack.c.l.b16 %v2416
        %v2483 = vunpack.c.l.b16 %v2417
        %v2484 = vunpack.c.l.b16 %v2418
        %v2485 = vunpack.c.l.b16 %v2419
        %v2486 = vunpack.c.l.b16 %v2420
        %v2487 = vunpack.c.l.b16 %v2421
        %v2488 = vunpack.c.l.b16 %v2422
        %v2489 = vunpack.c.l.b16 %v2423
        %v2490 = vunpack.c.l.b16 %v2424
        %v2491 = vunpack.c.l.b16 %v2425
        %v2492 = vunpack.c.l.b16 %v2426
        %v2493 = vunpack.c.l.b16 %v2427
        %v2494 = vunpack.c.l.b16 %v2428
        %v2495 = vunpack.c.l.b16 %v2429
        %v2496 = vunpack.c.l.b16 %v2430
        %v2497 = vunpack.c.l.b16 %v2431
        %v2498 = vunpack.c.l.b16 %v2432
        %v2499 = vunpack.c.l.b16 %v2433
        %v2500 = vunpack.c.l.b16 %v2434
        %v2501 = vunpack.c.l.b16 %v2435
        %v2502 = vunpack.c.l.b16 %v2436
        %v2503 = vunpack.c.l.b16 %v2437
        %v2504 = vpack.c.b16 %v2473, %v2472
        %v2505 = vpack.c.b16 %v2475, %v2474
        %v2506 = vpack.c.b16 %v2477, %v2476
        %v2507 = vpack.c.b16 %v2479, %v2478
        %v2508 = vpack.c.b16 %v2481, %v2480
        %v2509 = vpack.c.b16 %v2483, %v2482
        %v2510 = vpack.c.b16 %v2485, %v2484
        %v2511 = vpack.c.b16 %v2487, %v2486
        %v2512 = vpack.c.b16 %v2489, %v2488
        %v2513 = vpack.c.b16 %v2491, %v2490
        %v2514 = vpack.c.b16 %v2493, %v2492
        %v2515 = vpack.c.b16 %v2495, %v2494
        %v2516 = vpack.c.b16 %v2497, %v2496
        %v2517 = vpack.c.b16 %v2499, %v2498
        %v2518 = vpack.c.b16 %v2501, %v2500
        %v2519 = vpack.c.b16 %v2503, %v2502
        %v2521 = vsel %vm1659, %v2504, 0
        %v2524 = vsel %vm1659, %v2505, 0
        %v2527 = vsel %vm1659, %v2506, 0
        %v2530 = vsel %vm1659, %v2507, 0
        %v2533 = vsel %vm1659, %v2508, 0
        %v2536 = vsel %vm1659, %v2509, 0
        %v2539 = vsel %vm1659, %v2510, 0
        %v2542 = vsel %vm1659, %v2511, 0
        %v2545 = vsel %vm1659, %v2512, 0
        %v2548 = vsel %vm1659, %v2513, 0
        %v2551 = vsel %vm1659, %v2514, 0
        %v2554 = vsel %vm1659, %v2515, 0
        %v2557 = vsel %vm1659, %v2516, 0
        %v2560 = vsel %vm1659, %v2517, 0
        %v2563 = vsel %vm1659, %v2518, 0
        %v2566 = vsel %vm1659, %v2519, 0
        %v2569 = vsel %vm1708, %v2439, 0
        %2571 = vmatpush.bf16.msra.mxu0 0
        %2572 = vmatpush.bf16.msra.mxu0 0
        %2573 = vmatpush.bf16.msra.mxu0 0
        %2574 = vmatpush.bf16.msra.mxu0 0
        %2575 = vmatpush.bf16.msra.mxu0 0
        %2576 = vmatpush.bf16.msra.mxu0 0
        %2577 = vmatpush.bf16.msra.mxu0 0
        %2578 = vmatpush.bf16.msra.mxu0 %v2569
        %2579 = vmatmul.bf16.gmra.mxu0 %v2521
        %v2580 = vpop.f32.mrf.mxu0
        %v2581 = vadd.f32 0.0, %v2580
        %v2582 = vpop.f32.mrf.mxu0
        %v2583 = vadd.f32 0.0, %v2582
        %2584 = vmatmul.bf16.gmra.mxu0 %v2524
        %v2585 = vpop.f32.mrf.mxu0
        %v2586 = vadd.f32 0.0, %v2585
        %v2587 = vpop.f32.mrf.mxu0
        %v2588 = vadd.f32 0.0, %v2587
        %2589 = vmatmul.bf16.gmra.mxu0 %v2527
        %v2590 = vpop.f32.mrf.mxu0
        %v2591 = vadd.f32 0.0, %v2590
        %v2592 = vpop.f32.mrf.mxu0
        %v2593 = vadd.f32 0.0, %v2592
        %2594 = vmatmul.bf16.gmra.mxu0 %v2530
        %v2595 = vpop.f32.mrf.mxu0
        %v2596 = vadd.f32 0.0, %v2595
        %v2597 = vpop.f32.mrf.mxu0
        %v2598 = vadd.f32 0.0, %v2597
        %2599 = vmatmul.bf16.gmra.mxu0 %v2533
        %v2600 = vpop.f32.mrf.mxu0
        %v2601 = vadd.f32 0.0, %v2600
        %v2602 = vpop.f32.mrf.mxu0
        %v2603 = vadd.f32 0.0, %v2602
        %2604 = vmatmul.bf16.gmra.mxu0 %v2536
        %v2605 = vpop.f32.mrf.mxu0
        %v2606 = vadd.f32 0.0, %v2605
        %v2607 = vpop.f32.mrf.mxu0
        %v2608 = vadd.f32 0.0, %v2607
        %2609 = vmatmul.bf16.gmra.mxu0 %v2539
        %v2610 = vpop.f32.mrf.mxu0
        %v2611 = vadd.f32 0.0, %v2610
        %v2612 = vpop.f32.mrf.mxu0
        %v2613 = vadd.f32 0.0, %v2612
        %2614 = vmatmul.bf16.gmra.mxu0 %v2542
        %v2615 = vpop.f32.mrf.mxu0
        %v2616 = vadd.f32 0.0, %v2615
        %v2617 = vpop.f32.mrf.mxu0
        %v2618 = vadd.f32 0.0, %v2617
        %2619 = vmatmul.bf16.gmra.mxu0 %v2545
        %v2620 = vpop.f32.mrf.mxu0
        %v2621 = vadd.f32 0.0, %v2620
        %v2622 = vpop.f32.mrf.mxu0
        %v2623 = vadd.f32 0.0, %v2622
        %2624 = vmatmul.bf16.gmra.mxu0 %v2548
        %v2625 = vpop.f32.mrf.mxu0
        %v2626 = vadd.f32 0.0, %v2625
        %v2627 = vpop.f32.mrf.mxu0
        %v2628 = vadd.f32 0.0, %v2627
        %2629 = vmatmul.bf16.gmra.mxu0 %v2551
        %v2630 = vpop.f32.mrf.mxu0
        %v2631 = vadd.f32 0.0, %v2630
        %v2632 = vpop.f32.mrf.mxu0
        %v2633 = vadd.f32 0.0, %v2632
        %2634 = vmatmul.bf16.gmra.mxu0 %v2554
        %v2635 = vpop.f32.mrf.mxu0
        %v2636 = vadd.f32 0.0, %v2635
        %v2637 = vpop.f32.mrf.mxu0
        %v2638 = vadd.f32 0.0, %v2637
        %2639 = vmatmul.bf16.gmra.mxu0 %v2557
        %v2640 = vpop.f32.mrf.mxu0
        %v2641 = vadd.f32 0.0, %v2640
        %v2642 = vpop.f32.mrf.mxu0
        %v2643 = vadd.f32 0.0, %v2642
        %2644 = vmatmul.bf16.gmra.mxu0 %v2560
        %v2645 = vpop.f32.mrf.mxu0
        %v2646 = vadd.f32 0.0, %v2645
        %v2647 = vpop.f32.mrf.mxu0
        %v2648 = vadd.f32 0.0, %v2647
        %2649 = vmatmul.bf16.gmra.mxu0 %v2563
        %v2650 = vpop.f32.mrf.mxu0
        %v2651 = vadd.f32 0.0, %v2650
        %v2652 = vpop.f32.mrf.mxu0
        %v2653 = vadd.f32 0.0, %v2652
        %2654 = vmatmul.bf16.gmra.mxu0 %v2566
        %v2655 = vpop.f32.mrf.mxu0
        %v2656 = vadd.f32 0.0, %v2655
        %v2657 = vpop.f32.mrf.mxu0
        %v2658 = vadd.f32 0.0, %v2657
        %2659 = vdwg.mxu0
        %v2660 = vadd.f32 %v2374, %v2581
        %v2661 = vadd.f32 %v2375, %v2583
        %v2662 = vadd.f32 %v2376, %v2586
        %v2663 = vadd.f32 %v2377, %v2588
        %v2664 = vadd.f32 %v2378, %v2591
        %v2665 = vadd.f32 %v2379, %v2593
        %v2666 = vadd.f32 %v2380, %v2596
        %v2667 = vadd.f32 %v2381, %v2598
        %v2668 = vadd.f32 %v2382, %v2601
        %v2669 = vadd.f32 %v2383, %v2603
        %v2670 = vadd.f32 %v2384, %v2606
        %v2671 = vadd.f32 %v2385, %v2608
        %v2672 = vadd.f32 %v2386, %v2611
        %v2673 = vadd.f32 %v2387, %v2613
        %v2674 = vadd.f32 %v2388, %v2616
        %v2675 = vadd.f32 %v2389, %v2618
        %v2676 = vadd.f32 %v2390, %v2621
        %v2677 = vadd.f32 %v2391, %v2623
        %v2678 = vadd.f32 %v2392, %v2626
        %v2679 = vadd.f32 %v2393, %v2628
        %v2680 = vadd.f32 %v2394, %v2631
        %v2681 = vadd.f32 %v2395, %v2633
        %v2682 = vadd.f32 %v2396, %v2636
        %v2683 = vadd.f32 %v2397, %v2638
        %v2684 = vadd.f32 %v2398, %v2641
        %v2685 = vadd.f32 %v2399, %v2643
        %v2686 = vadd.f32 %v2400, %v2646
        %v2687 = vadd.f32 %v2401, %v2648
        %v2688 = vadd.f32 %v2402, %v2651
        %v2689 = vadd.f32 %v2403, %v2653
        %v2690 = vadd.f32 %v2404, %v2656
        %v2691 = vadd.f32 %v2405, %v2658
        %v2692 = vld [vmem:[%s635] sm:$0xf]
        %v2693 = vld [vmem:[%s635 + $0x4] sm:$0xf]
        %v2694 = vld [vmem:[%s635 + $0x8] sm:$0x1]
        %v2695 = vld [vmem:[%s635 + $0xc] sm:$0xf]
        %v2696 = vld [vmem:[%s635 + $0x10] sm:$0xf]
        %v2697 = vld [vmem:[%s635 + $0x14] sm:$0x1]
        %v2698 = vld [vmem:[%s635 + $0x18] sm:$0xf]
        %v2699 = vld [vmem:[%s635 + $0x1c] sm:$0xf]
        %v2700 = vld [vmem:[%s635 + $0x20] sm:$0x1]
        %v2701 = vld [vmem:[%s635 + $0x24] sm:$0xf]
        %v2702 = vld [vmem:[%s635 + $0x28] sm:$0xf]
        %v2703 = vld [vmem:[%s635 + $0x2c] sm:$0x1]
        %v2704 = vld [vmem:[%s635 + $0x30] sm:$0xf]
        %v2705 = vld [vmem:[%s635 + $0x34] sm:$0xf]
        %v2706 = vld [vmem:[%s635 + $0x38] sm:$0x1]
        %v2707 = vld [vmem:[%s635 + $0x3c] sm:$0xf]
        %v2708 = vld [vmem:[%s635 + $0x40] sm:$0xf]
        %v2709 = vld [vmem:[%s635 + $0x44] sm:$0x1]
        %v2710 = vld [vmem:[%s635 + $0x48] sm:$0xf]
        %v2711 = vld [vmem:[%s635 + $0x4c] sm:$0xf]
        %v2712 = vld [vmem:[%s635 + $0x50] sm:$0x1]
        %v2713 = vld [vmem:[%s635 + $0x54] sm:$0xf]
        %v2714 = vld [vmem:[%s635 + $0x58] sm:$0xf]
        %v2715 = vld [vmem:[%s635 + $0x5c] sm:$0x1]
        %v2716 = vld [vmem:[%s635 + $0x60] sm:$0xf]
        %v2717 = vld [vmem:[%s635 + $0x64] sm:$0xf]
        %v2718 = vld [vmem:[%s635 + $0x68] sm:$0x1]
        %v2719 = vld [vmem:[%s635 + $0x6c] sm:$0xf]
        %v2720 = vld [vmem:[%s635 + $0x70] sm:$0xf]
        %v2721 = vld [vmem:[%s635 + $0x74] sm:$0x1]
        %v2722 = vld [vmem:[%s635 + $0x78] sm:$0xf]
        %v2723 = vld [vmem:[%s635 + $0x7c] sm:$0xf]
        %v2724 = vld [vmem:[%s635 + $0x80] sm:$0x1]
        %v2725 = vld [vmem:[%s635 + $0x84] sm:$0xf]
        %v2726 = vld [vmem:[%s635 + $0x88] sm:$0xf]
        %v2727 = vld [vmem:[%s635 + $0x8c] sm:$0x1]
        %v2728 = vld [vmem:[%s635 + $0x90] sm:$0xf]
        %v2729 = vld [vmem:[%s635 + $0x94] sm:$0xf]
        %v2730 = vld [vmem:[%s635 + $0x98] sm:$0x1]
        %v2731 = vld [vmem:[%s635 + $0x9c] sm:$0xf]
        %v2732 = vld [vmem:[%s635 + $0xa0] sm:$0xf]
        %v2733 = vld [vmem:[%s635 + $0xa4] sm:$0x1]
        %v2734 = vld [vmem:[%s635 + $0xa8] sm:$0xf]
        %v2735 = vld [vmem:[%s635 + $0xac] sm:$0xf]
        %v2736 = vld [vmem:[%s635 + $0xb0] sm:$0x1]
        %v2737 = vld [vmem:[%s635 + $0xb4] sm:$0xf]
        %v2738 = vld [vmem:[%s635 + $0xb8] sm:$0xf]
        %v2739 = vld [vmem:[%s635 + $0xbc] sm:$0x1]
        %v2741 = vshrl.u32 %v2692, 16
        %v2743 = vrot.slane %v2741, 4
        %v2744 = vshll.u32 %v2692, 16
        %v2746 = vrot.slane %v2744, 5
        %v2747 = vor.u32 %v2743, %v2746
        %v2748 = vrot.slane %v2747, 4
        %v2750 = vshll.u32 %v2693, 16
        %v2752 = vrot.slane %v2750, 5
        %v2753 = vsel %vm1224, %v2748, %v2752
        %v2754 = vshrl.u32 %v2693, 16
        %v2756 = vrot.slane %v2754, 4
        %v2757 = vor.u32 %v2756, %v2752
        %v2758 = vrot.slane %v2757, 4
        %v2760 = vshll.u32 %v2694, 16
        %v2762 = vrot.slane %v2760, 5
        %v2763 = vsel %vm1224, %v2758, %v2762
        %v2765 = vshrl.u32 %v2695, 16
        %v2767 = vrot.slane %v2765, 4
        %v2768 = vshll.u32 %v2695, 16
        %v2770 = vrot.slane %v2768, 5
        %v2771 = vor.u32 %v2767, %v2770
        %v2772 = vrot.slane %v2771, 4
        %v2774 = vshll.u32 %v2696, 16
        %v2776 = vrot.slane %v2774, 5
        %v2777 = vsel %vm1224, %v2772, %v2776
        %v2778 = vshrl.u32 %v2696, 16
        %v2780 = vrot.slane %v2778, 4
        %v2781 = vor.u32 %v2780, %v2776
        %v2782 = vrot.slane %v2781, 4
        %v2784 = vshll.u32 %v2697, 16
        %v2786 = vrot.slane %v2784, 5
        %v2787 = vsel %vm1224, %v2782, %v2786
        %v2789 = vshrl.u32 %v2698, 16
        %v2791 = vrot.slane %v2789, 4
        %v2792 = vshll.u32 %v2698, 16
        %v2794 = vrot.slane %v2792, 5
        %v2795 = vor.u32 %v2791, %v2794
        %v2796 = vrot.slane %v2795, 4
        %v2798 = vshll.u32 %v2699, 16
        %v2800 = vrot.slane %v2798, 5
        %v2801 = vsel %vm1224, %v2796, %v2800
        %v2802 = vshrl.u32 %v2699, 16
        %v2804 = vrot.slane %v2802, 4
        %v2805 = vor.u32 %v2804, %v2800
        %v2806 = vrot.slane %v2805, 4
        %v2808 = vshll.u32 %v2700, 16
        %v2810 = vrot.slane %v2808, 5
        %v2811 = vsel %vm1224, %v2806, %v2810
        %v2813 = vshrl.u32 %v2701, 16
        %v2815 = vrot.slane %v2813, 4
        %v2816 = vshll.u32 %v2701, 16
        %v2818 = vrot.slane %v2816, 5
        %v2819 = vor.u32 %v2815, %v2818
        %v2820 = vrot.slane %v2819, 4
        %v2822 = vshll.u32 %v2702, 16
        %v2824 = vrot.slane %v2822, 5
        %v2825 = vsel %vm1224, %v2820, %v2824
        %v2826 = vshrl.u32 %v2702, 16
        %v2828 = vrot.slane %v2826, 4
        %v2829 = vor.u32 %v2828, %v2824
        %v2830 = vrot.slane %v2829, 4
        %v2832 = vshll.u32 %v2703, 16
        %v2834 = vrot.slane %v2832, 5
        %v2835 = vsel %vm1224, %v2830, %v2834
        %v2837 = vshrl.u32 %v2704, 16
        %v2839 = vrot.slane %v2837, 4
        %v2840 = vshll.u32 %v2704, 16
        %v2842 = vrot.slane %v2840, 5
        %v2843 = vor.u32 %v2839, %v2842
        %v2844 = vrot.slane %v2843, 4
        %v2846 = vshll.u32 %v2705, 16
        %v2848 = vrot.slane %v2846, 5
        %v2849 = vsel %vm1224, %v2844, %v2848
        %v2850 = vshrl.u32 %v2705, 16
        %v2852 = vrot.slane %v2850, 4
        %v2853 = vor.u32 %v2852, %v2848
        %v2854 = vrot.slane %v2853, 4
        %v2856 = vshll.u32 %v2706, 16
        %v2858 = vrot.slane %v2856, 5
        %v2859 = vsel %vm1224, %v2854, %v2858
        %v2861 = vshrl.u32 %v2707, 16
        %v2863 = vrot.slane %v2861, 4
        %v2864 = vshll.u32 %v2707, 16
        %v2866 = vrot.slane %v2864, 5
        %v2867 = vor.u32 %v2863, %v2866
        %v2868 = vrot.slane %v2867, 4
        %v2870 = vshll.u32 %v2708, 16
        %v2872 = vrot.slane %v2870, 5
        %v2873 = vsel %vm1224, %v2868, %v2872
        %v2874 = vshrl.u32 %v2708, 16
        %v2876 = vrot.slane %v2874, 4
        %v2877 = vor.u32 %v2876, %v2872
        %v2878 = vrot.slane %v2877, 4
        %v2880 = vshll.u32 %v2709, 16
        %v2882 = vrot.slane %v2880, 5
        %v2883 = vsel %vm1224, %v2878, %v2882
        %v2885 = vshrl.u32 %v2710, 16
        %v2887 = vrot.slane %v2885, 4
        %v2888 = vshll.u32 %v2710, 16
        %v2890 = vrot.slane %v2888, 5
        %v2891 = vor.u32 %v2887, %v2890
        %v2892 = vrot.slane %v2891, 4
        %v2894 = vshll.u32 %v2711, 16
        %v2896 = vrot.slane %v2894, 5
        %v2897 = vsel %vm1224, %v2892, %v2896
        %v2898 = vshrl.u32 %v2711, 16
        %v2900 = vrot.slane %v2898, 4
        %v2901 = vor.u32 %v2900, %v2896
        %v2902 = vrot.slane %v2901, 4
        %v2904 = vshll.u32 %v2712, 16
        %v2906 = vrot.slane %v2904, 5
        %v2907 = vsel %vm1224, %v2902, %v2906
        %v2909 = vshrl.u32 %v2713, 16
        %v2911 = vrot.slane %v2909, 4
        %v2912 = vshll.u32 %v2713, 16
        %v2914 = vrot.slane %v2912, 5
        %v2915 = vor.u32 %v2911, %v2914
        %v2916 = vrot.slane %v2915, 4
        %v2918 = vshll.u32 %v2714, 16
        %v2920 = vrot.slane %v2918, 5
        %v2921 = vsel %vm1224, %v2916, %v2920
        %v2922 = vshrl.u32 %v2714, 16
        %v2924 = vrot.slane %v2922, 4
        %v2925 = vor.u32 %v2924, %v2920
        %v2926 = vrot.slane %v2925, 4
        %v2928 = vshll.u32 %v2715, 16
        %v2930 = vrot.slane %v2928, 5
        %v2931 = vsel %vm1224, %v2926, %v2930
        %v2933 = vshrl.u32 %v2716, 16
        %v2935 = vrot.slane %v2933, 4
        %v2936 = vshll.u32 %v2716, 16
        %v2938 = vrot.slane %v2936, 5
        %v2939 = vor.u32 %v2935, %v2938
        %v2940 = vrot.slane %v2939, 4
        %v2942 = vshll.u32 %v2717, 16
        %v2944 = vrot.slane %v2942, 5
        %v2945 = vsel %vm1224, %v2940, %v2944
        %v2946 = vshrl.u32 %v2717, 16
        %v2948 = vrot.slane %v2946, 4
        %v2949 = vor.u32 %v2948, %v2944
        %v2950 = vrot.slane %v2949, 4
        %v2952 = vshll.u32 %v2718, 16
        %v2954 = vrot.slane %v2952, 5
        %v2955 = vsel %vm1224, %v2950, %v2954
        %v2957 = vshrl.u32 %v2719, 16
        %v2959 = vrot.slane %v2957, 4
        %v2960 = vshll.u32 %v2719, 16
        %v2962 = vrot.slane %v2960, 5
        %v2963 = vor.u32 %v2959, %v2962
        %v2964 = vrot.slane %v2963, 4
        %v2966 = vshll.u32 %v2720, 16
        %v2968 = vrot.slane %v2966, 5
        %v2969 = vsel %vm1224, %v2964, %v2968
        %v2970 = vshrl.u32 %v2720, 16
        %v2972 = vrot.slane %v2970, 4
        %v2973 = vor.u32 %v2972, %v2968
        %v2974 = vrot.slane %v2973, 4
        %v2976 = vshll.u32 %v2721, 16
        %v2978 = vrot.slane %v2976, 5
        %v2979 = vsel %vm1224, %v2974, %v2978
        %v2981 = vshrl.u32 %v2722, 16
        %v2983 = vrot.slane %v2981, 4
        %v2984 = vshll.u32 %v2722, 16
        %v2986 = vrot.slane %v2984, 5
        %v2987 = vor.u32 %v2983, %v2986
        %v2988 = vrot.slane %v2987, 4
        %v2990 = vshll.u32 %v2723, 16
        %v2992 = vrot.slane %v2990, 5
        %v2993 = vsel %vm1224, %v2988, %v2992
        %v2994 = vshrl.u32 %v2723, 16
        %v2996 = vrot.slane %v2994, 4
        %v2997 = vor.u32 %v2996, %v2992
        %v2998 = vrot.slane %v2997, 4
        %v3000 = vshll.u32 %v2724, 16
        %v3002 = vrot.slane %v3000, 5
        %v3003 = vsel %vm1224, %v2998, %v3002
        %v3005 = vshrl.u32 %v2725, 16
        %v3007 = vrot.slane %v3005, 4
        %v3008 = vshll.u32 %v2725, 16
        %v3010 = vrot.slane %v3008, 5
        %v3011 = vor.u32 %v3007, %v3010
        %v3012 = vrot.slane %v3011, 4
        %v3014 = vshll.u32 %v2726, 16
        %v3016 = vrot.slane %v3014, 5
        %v3017 = vsel %vm1224, %v3012, %v3016
        %v3018 = vshrl.u32 %v2726, 16
        %v3020 = vrot.slane %v3018, 4
        %v3021 = vor.u32 %v3020, %v3016
        %v3022 = vrot.slane %v3021, 4
        %v3024 = vshll.u32 %v2727, 16
        %v3026 = vrot.slane %v3024, 5
        %v3027 = vsel %vm1224, %v3022, %v3026
        %v3029 = vshrl.u32 %v2728, 16
        %v3031 = vrot.slane %v3029, 4
        %v3032 = vshll.u32 %v2728, 16
        %v3034 = vrot.slane %v3032, 5
        %v3035 = vor.u32 %v3031, %v3034
        %v3036 = vrot.slane %v3035, 4
        %v3038 = vshll.u32 %v2729, 16
        %v3040 = vrot.slane %v3038, 5
        %v3041 = vsel %vm1224, %v3036, %v3040
        %v3042 = vshrl.u32 %v2729, 16
        %v3044 = vrot.slane %v3042, 4
        %v3045 = vor.u32 %v3044, %v3040
        %v3046 = vrot.slane %v3045, 4
        %v3048 = vshll.u32 %v2730, 16
        %v3050 = vrot.slane %v3048, 5
        %v3051 = vsel %vm1224, %v3046, %v3050
        %v3053 = vshrl.u32 %v2731, 16
        %v3055 = vrot.slane %v3053, 4
        %v3056 = vshll.u32 %v2731, 16
        %v3058 = vrot.slane %v3056, 5
        %v3059 = vor.u32 %v3055, %v3058
        %v3060 = vrot.slane %v3059, 4
        %v3062 = vshll.u32 %v2732, 16
        %v3064 = vrot.slane %v3062, 5
        %v3065 = vsel %vm1224, %v3060, %v3064
        %v3066 = vshrl.u32 %v2732, 16
        %v3068 = vrot.slane %v3066, 4
        %v3069 = vor.u32 %v3068, %v3064
        %v3070 = vrot.slane %v3069, 4
        %v3072 = vshll.u32 %v2733, 16
        %v3074 = vrot.slane %v3072, 5
        %v3075 = vsel %vm1224, %v3070, %v3074
        %v3077 = vshrl.u32 %v2734, 16
        %v3079 = vrot.slane %v3077, 4
        %v3080 = vshll.u32 %v2734, 16
        %v3082 = vrot.slane %v3080, 5
        %v3083 = vor.u32 %v3079, %v3082
        %v3084 = vrot.slane %v3083, 4
        %v3086 = vshll.u32 %v2735, 16
        %v3088 = vrot.slane %v3086, 5
        %v3089 = vsel %vm1224, %v3084, %v3088
        %v3090 = vshrl.u32 %v2735, 16
        %v3092 = vrot.slane %v3090, 4
        %v3093 = vor.u32 %v3092, %v3088
        %v3094 = vrot.slane %v3093, 4
        %v3096 = vshll.u32 %v2736, 16
        %v3098 = vrot.slane %v3096, 5
        %v3099 = vsel %vm1224, %v3094, %v3098
        %v3101 = vshrl.u32 %v2737, 16
        %v3103 = vrot.slane %v3101, 4
        %v3104 = vshll.u32 %v2737, 16
        %v3106 = vrot.slane %v3104, 5
        %v3107 = vor.u32 %v3103, %v3106
        %v3108 = vrot.slane %v3107, 4
        %v3110 = vshll.u32 %v2738, 16
        %v3112 = vrot.slane %v3110, 5
        %v3113 = vsel %vm1224, %v3108, %v3112
        %v3114 = vshrl.u32 %v2738, 16
        %v3116 = vrot.slane %v3114, 4
        %v3117 = vor.u32 %v3116, %v3112
        %v3118 = vrot.slane %v3117, 4
        %v3120 = vshll.u32 %v2739, 16
        %v3122 = vrot.slane %v3120, 5
        %v3123 = vsel %vm1224, %v3118, %v3122
        %s3124 = scalar_lea.vmem %s3, 8
        %v3125 = vld [vmem:[%s3124] sm:$0x3]
        %v3126 = vunpack.c.l.b16 %v2753
        %v3127 = vunpack.c.l.b16 %v2763
        %v3128 = vunpack.c.l.b16 %v2777
        %v3129 = vunpack.c.l.b16 %v2787
        %v3130 = vunpack.c.l.b16 %v2801
        %v3131 = vunpack.c.l.b16 %v2811
        %v3132 = vunpack.c.l.b16 %v2825
        %v3133 = vunpack.c.l.b16 %v2835
        %v3134 = vunpack.c.l.b16 %v2849
        %v3135 = vunpack.c.l.b16 %v2859
        %v3136 = vunpack.c.l.b16 %v2873
        %v3137 = vunpack.c.l.b16 %v2883
        %v3138 = vunpack.c.l.b16 %v2897
        %v3139 = vunpack.c.l.b16 %v2907
        %v3140 = vunpack.c.l.b16 %v2921
        %v3141 = vunpack.c.l.b16 %v2931
        %v3142 = vunpack.c.l.b16 %v2945
        %v3143 = vunpack.c.l.b16 %v2955
        %v3144 = vunpack.c.l.b16 %v2969
        %v3145 = vunpack.c.l.b16 %v2979
        %v3146 = vunpack.c.l.b16 %v2993
        %v3147 = vunpack.c.l.b16 %v3003
        %v3148 = vunpack.c.l.b16 %v3017
        %v3149 = vunpack.c.l.b16 %v3027
        %v3150 = vunpack.c.l.b16 %v3041
        %v3151 = vunpack.c.l.b16 %v3051
        %v3152 = vunpack.c.l.b16 %v3065
        %v3153 = vunpack.c.l.b16 %v3075
        %v3154 = vunpack.c.l.b16 %v3089
        %v3155 = vunpack.c.l.b16 %v3099
        %v3156 = vunpack.c.l.b16 %v3113
        %v3157 = vunpack.c.l.b16 %v3123
        %v3158 = vpack.c.b16 %v3127, %v3126
        %v3159 = vpack.c.b16 %v3129, %v3128
        %v3160 = vpack.c.b16 %v3131, %v3130
        %v3161 = vpack.c.b16 %v3133, %v3132
        %v3162 = vpack.c.b16 %v3135, %v3134
        %v3163 = vpack.c.b16 %v3137, %v3136
        %v3164 = vpack.c.b16 %v3139, %v3138
        %v3165 = vpack.c.b16 %v3141, %v3140
        %v3166 = vpack.c.b16 %v3143, %v3142
        %v3167 = vpack.c.b16 %v3145, %v3144
        %v3168 = vpack.c.b16 %v3147, %v3146
        %v3169 = vpack.c.b16 %v3149, %v3148
        %v3170 = vpack.c.b16 %v3151, %v3150
        %v3171 = vpack.c.b16 %v3153, %v3152
        %v3172 = vpack.c.b16 %v3155, %v3154
        %v3173 = vpack.c.b16 %v3157, %v3156
        %v3175 = vsel %vm1659, %v3158, 0
        %v3178 = vsel %vm1659, %v3159, 0
        %v3181 = vsel %vm1659, %v3160, 0
        %v3184 = vsel %vm1659, %v3161, 0
        %v3187 = vsel %vm1659, %v3162, 0
        %v3190 = vsel %vm1659, %v3163, 0
        %v3193 = vsel %vm1659, %v3164, 0
        %v3196 = vsel %vm1659, %v3165, 0
        %v3199 = vsel %vm1659, %v3166, 0
        %v3202 = vsel %vm1659, %v3167, 0
        %v3205 = vsel %vm1659, %v3168, 0
        %v3208 = vsel %vm1659, %v3169, 0
        %v3211 = vsel %vm1659, %v3170, 0
        %v3214 = vsel %vm1659, %v3171, 0
        %v3217 = vsel %vm1659, %v3172, 0
        %v3220 = vsel %vm1659, %v3173, 0
        %v3223 = vsel %vm1708, %v3125, 0
        %3225 = vmatpush.bf16.msra.mxu0 0
        %3226 = vmatpush.bf16.msra.mxu0 0
        %3227 = vmatpush.bf16.msra.mxu0 0
        %3228 = vmatpush.bf16.msra.mxu0 0
        %3229 = vmatpush.bf16.msra.mxu0 0
        %3230 = vmatpush.bf16.msra.mxu0 0
        %3231 = vmatpush.bf16.msra.mxu0 0
        %3232 = vmatpush.bf16.msra.mxu0 %v3223
        %3233 = vmatmul.bf16.gmra.mxu0 %v3175
        %v3234 = vpop.f32.mrf.mxu0
        %v3235 = vadd.f32 0.0, %v3234
        %v3236 = vpop.f32.mrf.mxu0
        %v3237 = vadd.f32 0.0, %v3236
        %3238 = vmatmul.bf16.gmra.mxu0 %v3178
        %v3239 = vpop.f32.mrf.mxu0
        %v3240 = vadd.f32 0.0, %v3239
        %v3241 = vpop.f32.mrf.mxu0
        %v3242 = vadd.f32 0.0, %v3241
        %3243 = vmatmul.bf16.gmra.mxu0 %v3181
        %v3244 = vpop.f32.mrf.mxu0
        %v3245 = vadd.f32 0.0, %v3244
        %v3246 = vpop.f32.mrf.mxu0
        %v3247 = vadd.f32 0.0, %v3246
        %3248 = vmatmul.bf16.gmra.mxu0 %v3184
        %v3249 = vpop.f32.mrf.mxu0
        %v3250 = vadd.f32 0.0, %v3249
        %v3251 = vpop.f32.mrf.mxu0
        %v3252 = vadd.f32 0.0, %v3251
        %3253 = vmatmul.bf16.gmra.mxu0 %v3187
        %v3254 = vpop.f32.mrf.mxu0
        %v3255 = vadd.f32 0.0, %v3254
        %v3256 = vpop.f32.mrf.mxu0
        %v3257 = vadd.f32 0.0, %v3256
        %3258 = vmatmul.bf16.gmra.mxu0 %v3190
        %v3259 = vpop.f32.mrf.mxu0
        %v3260 = vadd.f32 0.0, %v3259
        %v3261 = vpop.f32.mrf.mxu0
        %v3262 = vadd.f32 0.0, %v3261
        %3263 = vmatmul.bf16.gmra.mxu0 %v3193
        %v3264 = vpop.f32.mrf.mxu0
        %v3265 = vadd.f32 0.0, %v3264
        %v3266 = vpop.f32.mrf.mxu0
        %v3267 = vadd.f32 0.0, %v3266
        %3268 = vmatmul.bf16.gmra.mxu0 %v3196
        %v3269 = vpop.f32.mrf.mxu0
        %v3270 = vadd.f32 0.0, %v3269
        %v3271 = vpop.f32.mrf.mxu0
        %v3272 = vadd.f32 0.0, %v3271
        %3273 = vmatmul.bf16.gmra.mxu0 %v3199
        %v3274 = vpop.f32.mrf.mxu0
        %v3275 = vadd.f32 0.0, %v3274
        %v3276 = vpop.f32.mrf.mxu0
        %v3277 = vadd.f32 0.0, %v3276
        %3278 = vmatmul.bf16.gmra.mxu0 %v3202
        %v3279 = vpop.f32.mrf.mxu0
        %v3280 = vadd.f32 0.0, %v3279
        %v3281 = vpop.f32.mrf.mxu0
        %v3282 = vadd.f32 0.0, %v3281
        %3283 = vmatmul.bf16.gmra.mxu0 %v3205
        %v3284 = vpop.f32.mrf.mxu0
        %v3285 = vadd.f32 0.0, %v3284
        %v3286 = vpop.f32.mrf.mxu0
        %v3287 = vadd.f32 0.0, %v3286
        %3288 = vmatmul.bf16.gmra.mxu0 %v3208
        %v3289 = vpop.f32.mrf.mxu0
        %v3290 = vadd.f32 0.0, %v3289
        %v3291 = vpop.f32.mrf.mxu0
        %v3292 = vadd.f32 0.0, %v3291
        %3293 = vmatmul.bf16.gmra.mxu0 %v3211
        %v3294 = vpop.f32.mrf.mxu0
        %v3295 = vadd.f32 0.0, %v3294
        %v3296 = vpop.f32.mrf.mxu0
        %v3297 = vadd.f32 0.0, %v3296
        %3298 = vmatmul.bf16.gmra.mxu0 %v3214
        %v3299 = vpop.f32.mrf.mxu0
        %v3300 = vadd.f32 0.0, %v3299
        %v3301 = vpop.f32.mrf.mxu0
        %v3302 = vadd.f32 0.0, %v3301
        %3303 = vmatmul.bf16.gmra.mxu0 %v3217
        %v3304 = vpop.f32.mrf.mxu0
        %v3305 = vadd.f32 0.0, %v3304
        %v3306 = vpop.f32.mrf.mxu0
        %v3307 = vadd.f32 0.0, %v3306
        %3308 = vmatmul.bf16.gmra.mxu0 %v3220
        %v3309 = vpop.f32.mrf.mxu0
        %v3310 = vadd.f32 0.0, %v3309
        %v3311 = vpop.f32.mrf.mxu0
        %v3312 = vadd.f32 0.0, %v3311
        %3313 = vdwg.mxu0
        %v3314 = vadd.f32 %v2660, %v3235
        %v3315 = vadd.f32 %v2661, %v3237
        %v3316 = vadd.f32 %v2662, %v3240
        %v3317 = vadd.f32 %v2663, %v3242
        %v3318 = vadd.f32 %v2664, %v3245
        %v3319 = vadd.f32 %v2665, %v3247
        %v3320 = vadd.f32 %v2666, %v3250
        %v3321 = vadd.f32 %v2667, %v3252
        %v3322 = vadd.f32 %v2668, %v3255
        %v3323 = vadd.f32 %v2669, %v3257
        %v3324 = vadd.f32 %v2670, %v3260
        %v3325 = vadd.f32 %v2671, %v3262
        %v3326 = vadd.f32 %v2672, %v3265
        %v3327 = vadd.f32 %v2673, %v3267
        %v3328 = vadd.f32 %v2674, %v3270
        %v3329 = vadd.f32 %v2675, %v3272
        %v3330 = vadd.f32 %v2676, %v3275
        %v3331 = vadd.f32 %v2677, %v3277
        %v3332 = vadd.f32 %v2678, %v3280
        %v3333 = vadd.f32 %v2679, %v3282
        %v3334 = vadd.f32 %v2680, %v3285
        %v3335 = vadd.f32 %v2681, %v3287
        %v3336 = vadd.f32 %v2682, %v3290
        %v3337 = vadd.f32 %v2683, %v3292
        %v3338 = vadd.f32 %v2684, %v3295
        %v3339 = vadd.f32 %v2685, %v3297
        %v3340 = vadd.f32 %v2686, %v3300
        %v3341 = vadd.f32 %v2687, %v3302
        %v3342 = vadd.f32 %v2688, %v3305
        %v3343 = vadd.f32 %v2689, %v3307
        %v3344 = vadd.f32 %v2690, %v3310
        %v3345 = vadd.f32 %v2691, %v3312
        %v3346 = vld [vmem:[%s635] sm:$0xe]
        %v3347 = vld [vmem:[%s635 + $0xc] sm:$0xe]
        %v3348 = vld [vmem:[%s635 + $0x18] sm:$0xe]
        %v3349 = vld [vmem:[%s635 + $0x24] sm:$0xe]
        %v3350 = vld [vmem:[%s635 + $0x30] sm:$0xe]
        %v3351 = vld [vmem:[%s635 + $0x3c] sm:$0xe]
        %v3352 = vld [vmem:[%s635 + $0x48] sm:$0xe]
        %v3353 = vld [vmem:[%s635 + $0x54] sm:$0xe]
        %v3354 = vld [vmem:[%s635 + $0x60] sm:$0xe]
        %v3355 = vld [vmem:[%s635 + $0x6c] sm:$0xe]
        %v3356 = vld [vmem:[%s635 + $0x78] sm:$0xe]
        %v3357 = vld [vmem:[%s635 + $0x84] sm:$0xe]
        %v3358 = vld [vmem:[%s635 + $0x90] sm:$0xe]
        %v3359 = vld [vmem:[%s635 + $0x9c] sm:$0xe]
        %v3360 = vld [vmem:[%s635 + $0xa8] sm:$0xe]
        %v3361 = vld [vmem:[%s635 + $0xb4] sm:$0xe]
        %v3410 = vrot.slane %v3346, 5
        %v3411 = vrot.slane %v3410, 4
        %v3412 = vrot.slane %v2693, 5
        %v3413 = vsel %vm2071, %v3411, %v3412
        %v3414 = vrot.slane %v3412, 4
        %v3415 = vrot.slane %v2694, 5
        %v3416 = vsel %vm2071, %v3414, %v3415
        %v3417 = vrot.slane %v3347, 5
        %v3418 = vrot.slane %v3417, 4
        %v3419 = vrot.slane %v2696, 5
        %v3420 = vsel %vm2071, %v3418, %v3419
        %v3421 = vrot.slane %v3419, 4
        %v3422 = vrot.slane %v2697, 5
        %v3423 = vsel %vm2071, %v3421, %v3422
        %v3424 = vrot.slane %v3348, 5
        %v3425 = vrot.slane %v3424, 4
        %v3426 = vrot.slane %v2699, 5
        %v3427 = vsel %vm2071, %v3425, %v3426
        %v3428 = vrot.slane %v3426, 4
        %v3429 = vrot.slane %v2700, 5
        %v3430 = vsel %vm2071, %v3428, %v3429
        %v3431 = vrot.slane %v3349, 5
        %v3432 = vrot.slane %v3431, 4
        %v3433 = vrot.slane %v2702, 5
        %v3434 = vsel %vm2071, %v3432, %v3433
        %v3435 = vrot.slane %v3433, 4
        %v3436 = vrot.slane %v2703, 5
        %v3437 = vsel %vm2071, %v3435, %v3436
        %v3438 = vrot.slane %v3350, 5
        %v3439 = vrot.slane %v3438, 4
        %v3440 = vrot.slane %v2705, 5
        %v3441 = vsel %vm2071, %v3439, %v3440
        %v3442 = vrot.slane %v3440, 4
        %v3443 = vrot.slane %v2706, 5
        %v3444 = vsel %vm2071, %v3442, %v3443
        %v3445 = vrot.slane %v3351, 5
        %v3446 = vrot.slane %v3445, 4
        %v3447 = vrot.slane %v2708, 5
        %v3448 = vsel %vm2071, %v3446, %v3447
        %v3449 = vrot.slane %v3447, 4
        %v3450 = vrot.slane %v2709, 5
        %v3451 = vsel %vm2071, %v3449, %v3450
        %v3452 = vrot.slane %v3352, 5
        %v3453 = vrot.slane %v3452, 4
        %v3454 = vrot.slane %v2711, 5
        %v3455 = vsel %vm2071, %v3453, %v3454
        %v3456 = vrot.slane %v3454, 4
        %v3457 = vrot.slane %v2712, 5
        %v3458 = vsel %vm2071, %v3456, %v3457
        %v3459 = vrot.slane %v3353, 5
        %v3460 = vrot.slane %v3459, 4
        %v3461 = vrot.slane %v2714, 5
        %v3462 = vsel %vm2071, %v3460, %v3461
        %v3463 = vrot.slane %v3461, 4
        %v3464 = vrot.slane %v2715, 5
        %v3465 = vsel %vm2071, %v3463, %v3464
        %v3466 = vrot.slane %v3354, 5
        %v3467 = vrot.slane %v3466, 4
        %v3468 = vrot.slane %v2717, 5
        %v3469 = vsel %vm2071, %v3467, %v3468
        %v3470 = vrot.slane %v3468, 4
        %v3471 = vrot.slane %v2718, 5
        %v3472 = vsel %vm2071, %v3470, %v3471
        %v3473 = vrot.slane %v3355, 5
        %v3474 = vrot.slane %v3473, 4
        %v3475 = vrot.slane %v2720, 5
        %v3476 = vsel %vm2071, %v3474, %v3475
        %v3477 = vrot.slane %v3475, 4
        %v3478 = vrot.slane %v2721, 5
        %v3479 = vsel %vm2071, %v3477, %v3478
        %v3480 = vrot.slane %v3356, 5
        %v3481 = vrot.slane %v3480, 4
        %v3482 = vrot.slane %v2723, 5
        %v3483 = vsel %vm2071, %v3481, %v3482
        %v3484 = vrot.slane %v3482, 4
        %v3485 = vrot.slane %v2724, 5
        %v3486 = vsel %vm2071, %v3484, %v3485
        %v3487 = vrot.slane %v3357, 5
        %v3488 = vrot.slane %v3487, 4
        %v3489 = vrot.slane %v2726, 5
        %v3490 = vsel %vm2071, %v3488, %v3489
        %v3491 = vrot.slane %v3489, 4
        %v3492 = vrot.slane %v2727, 5
        %v3493 = vsel %vm2071, %v3491, %v3492
        %v3494 = vrot.slane %v3358, 5
        %v3495 = vrot.slane %v3494, 4
        %v3496 = vrot.slane %v2729, 5
        %v3497 = vsel %vm2071, %v3495, %v3496
        %v3498 = vrot.slane %v3496, 4
        %v3499 = vrot.slane %v2730, 5
        %v3500 = vsel %vm2071, %v3498, %v3499
        %v3501 = vrot.slane %v3359, 5
        %v3502 = vrot.slane %v3501, 4
        %v3503 = vrot.slane %v2732, 5
        %v3504 = vsel %vm2071, %v3502, %v3503
        %v3505 = vrot.slane %v3503, 4
        %v3506 = vrot.slane %v2733, 5
        %v3507 = vsel %vm2071, %v3505, %v3506
        %v3508 = vrot.slane %v3360, 5
        %v3509 = vrot.slane %v3508, 4
        %v3510 = vrot.slane %v2735, 5
        %v3511 = vsel %vm2071, %v3509, %v3510
        %v3512 = vrot.slane %v3510, 4
        %v3513 = vrot.slane %v2736, 5
        %v3514 = vsel %vm2071, %v3512, %v3513
        %v3515 = vrot.slane %v3361, 5
        %v3516 = vrot.slane %v3515, 4
        %v3517 = vrot.slane %v2738, 5
        %v3518 = vsel %vm2071, %v3516, %v3517
        %v3519 = vrot.slane %v3517, 4
        %v3520 = vrot.slane %v2739, 5
        %v3521 = vsel %vm2071, %v3519, %v3520
        %s3522 = scalar_lea.vmem %s3, 10
        %v3523 = vld [vmem:[%s3522] sm:$0x3]
        %v3524 = vunpack.c.l.b16 %v3413
        %v3525 = vunpack.c.l.b16 %v3416
        %v3526 = vunpack.c.l.b16 %v3420
        %v3527 = vunpack.c.l.b16 %v3423
        %v3528 = vunpack.c.l.b16 %v3427
        %v3529 = vunpack.c.l.b16 %v3430
        %v3530 = vunpack.c.l.b16 %v3434
        %v3531 = vunpack.c.l.b16 %v3437
        %v3532 = vunpack.c.l.b16 %v3441
        %v3533 = vunpack.c.l.b16 %v3444
        %v3534 = vunpack.c.l.b16 %v3448
        %v3535 = vunpack.c.l.b16 %v3451
        %v3536 = vunpack.c.l.b16 %v3455
        %v3537 = vunpack.c.l.b16 %v3458
        %v3538 = vunpack.c.l.b16 %v3462
        %v3539 = vunpack.c.l.b16 %v3465
        %v3540 = vunpack.c.l.b16 %v3469
        %v3541 = vunpack.c.l.b16 %v3472
        %v3542 = vunpack.c.l.b16 %v3476
        %v3543 = vunpack.c.l.b16 %v3479
        %v3544 = vunpack.c.l.b16 %v3483
        %v3545 = vunpack.c.l.b16 %v3486
        %v3546 = vunpack.c.l.b16 %v3490
        %v3547 = vunpack.c.l.b16 %v3493
        %v3548 = vunpack.c.l.b16 %v3497
        %v3549 = vunpack.c.l.b16 %v3500
        %v3550 = vunpack.c.l.b16 %v3504
        %v3551 = vunpack.c.l.b16 %v3507
        %v3552 = vunpack.c.l.b16 %v3511
        %v3553 = vunpack.c.l.b16 %v3514
        %v3554 = vunpack.c.l.b16 %v3518
        %v3555 = vunpack.c.l.b16 %v3521
        %v3556 = vpack.c.b16 %v3525, %v3524
        %v3557 = vpack.c.b16 %v3527, %v3526
        %v3558 = vpack.c.b16 %v3529, %v3528
        %v3559 = vpack.c.b16 %v3531, %v3530
        %v3560 = vpack.c.b16 %v3533, %v3532
        %v3561 = vpack.c.b16 %v3535, %v3534
        %v3562 = vpack.c.b16 %v3537, %v3536
        %v3563 = vpack.c.b16 %v3539, %v3538
        %v3564 = vpack.c.b16 %v3541, %v3540
        %v3565 = vpack.c.b16 %v3543, %v3542
        %v3566 = vpack.c.b16 %v3545, %v3544
        %v3567 = vpack.c.b16 %v3547, %v3546
        %v3568 = vpack.c.b16 %v3549, %v3548
        %v3569 = vpack.c.b16 %v3551, %v3550
        %v3570 = vpack.c.b16 %v3553, %v3552
        %v3571 = vpack.c.b16 %v3555, %v3554
        %v3573 = vsel %vm1659, %v3556, 0
        %v3576 = vsel %vm1659, %v3557, 0
        %v3579 = vsel %vm1659, %v3558, 0
        %v3582 = vsel %vm1659, %v3559, 0
        %v3585 = vsel %vm1659, %v3560, 0
        %v3588 = vsel %vm1659, %v3561, 0
        %v3591 = vsel %vm1659, %v3562, 0
        %v3594 = vsel %vm1659, %v3563, 0
        %v3597 = vsel %vm1659, %v3564, 0
        %v3600 = vsel %vm1659, %v3565, 0
        %v3603 = vsel %vm1659, %v3566, 0
        %v3606 = vsel %vm1659, %v3567, 0
        %v3609 = vsel %vm1659, %v3568, 0
        %v3612 = vsel %vm1659, %v3569, 0
        %v3615 = vsel %vm1659, %v3570, 0
        %v3618 = vsel %vm1659, %v3571, 0
        %v3621 = vsel %vm1708, %v3523, 0
        %3623 = vmatpush.bf16.msra.mxu0 0
        %3624 = vmatpush.bf16.msra.mxu0 0
        %3625 = vmatpush.bf16.msra.mxu0 0
        %3626 = vmatpush.bf16.msra.mxu0 0
        %3627 = vmatpush.bf16.msra.mxu0 0
        %3628 = vmatpush.bf16.msra.mxu0 0
        %3629 = vmatpush.bf16.msra.mxu0 0
        %3630 = vmatpush.bf16.msra.mxu0 %v3621
        %3631 = vmatmul.bf16.gmra.mxu0 %v3573
        %v3632 = vpop.f32.mrf.mxu0
        %v3633 = vadd.f32 0.0, %v3632
        %v3634 = vpop.f32.mrf.mxu0
        %v3635 = vadd.f32 0.0, %v3634
        %3636 = vmatmul.bf16.gmra.mxu0 %v3576
        %v3637 = vpop.f32.mrf.mxu0
        %v3638 = vadd.f32 0.0, %v3637
        %v3639 = vpop.f32.mrf.mxu0
        %v3640 = vadd.f32 0.0, %v3639
        %3641 = vmatmul.bf16.gmra.mxu0 %v3579
        %v3642 = vpop.f32.mrf.mxu0
        %v3643 = vadd.f32 0.0, %v3642
        %v3644 = vpop.f32.mrf.mxu0
        %v3645 = vadd.f32 0.0, %v3644
        %3646 = vmatmul.bf16.gmra.mxu0 %v3582
        %v3647 = vpop.f32.mrf.mxu0
        %v3648 = vadd.f32 0.0, %v3647
        %v3649 = vpop.f32.mrf.mxu0
        %v3650 = vadd.f32 0.0, %v3649
        %3651 = vmatmul.bf16.gmra.mxu0 %v3585
        %v3652 = vpop.f32.mrf.mxu0
        %v3653 = vadd.f32 0.0, %v3652
        %v3654 = vpop.f32.mrf.mxu0
        %v3655 = vadd.f32 0.0, %v3654
        %3656 = vmatmul.bf16.gmra.mxu0 %v3588
        %v3657 = vpop.f32.mrf.mxu0
        %v3658 = vadd.f32 0.0, %v3657
        %v3659 = vpop.f32.mrf.mxu0
        %v3660 = vadd.f32 0.0, %v3659
        %3661 = vmatmul.bf16.gmra.mxu0 %v3591
        %v3662 = vpop.f32.mrf.mxu0
        %v3663 = vadd.f32 0.0, %v3662
        %v3664 = vpop.f32.mrf.mxu0
        %v3665 = vadd.f32 0.0, %v3664
        %3666 = vmatmul.bf16.gmra.mxu0 %v3594
        %v3667 = vpop.f32.mrf.mxu0
        %v3668 = vadd.f32 0.0, %v3667
        %v3669 = vpop.f32.mrf.mxu0
        %v3670 = vadd.f32 0.0, %v3669
        %3671 = vmatmul.bf16.gmra.mxu0 %v3597
        %v3672 = vpop.f32.mrf.mxu0
        %v3673 = vadd.f32 0.0, %v3672
        %v3674 = vpop.f32.mrf.mxu0
        %v3675 = vadd.f32 0.0, %v3674
        %3676 = vmatmul.bf16.gmra.mxu0 %v3600
        %v3677 = vpop.f32.mrf.mxu0
        %v3678 = vadd.f32 0.0, %v3677
        %v3679 = vpop.f32.mrf.mxu0
        %v3680 = vadd.f32 0.0, %v3679
        %3681 = vmatmul.bf16.gmra.mxu0 %v3603
        %v3682 = vpop.f32.mrf.mxu0
        %v3683 = vadd.f32 0.0, %v3682
        %v3684 = vpop.f32.mrf.mxu0
        %v3685 = vadd.f32 0.0, %v3684
        %3686 = vmatmul.bf16.gmra.mxu0 %v3606
        %v3687 = vpop.f32.mrf.mxu0
        %v3688 = vadd.f32 0.0, %v3687
        %v3689 = vpop.f32.mrf.mxu0
        %v3690 = vadd.f32 0.0, %v3689
        %3691 = vmatmul.bf16.gmra.mxu0 %v3609
        %v3692 = vpop.f32.mrf.mxu0
        %v3693 = vadd.f32 0.0, %v3692
        %v3694 = vpop.f32.mrf.mxu0
        %v3695 = vadd.f32 0.0, %v3694
        %3696 = vmatmul.bf16.gmra.mxu0 %v3612
        %v3697 = vpop.f32.mrf.mxu0
        %v3698 = vadd.f32 0.0, %v3697
        %v3699 = vpop.f32.mrf.mxu0
        %v3700 = vadd.f32 0.0, %v3699
        %3701 = vmatmul.bf16.gmra.mxu0 %v3615
        %v3702 = vpop.f32.mrf.mxu0
        %v3703 = vadd.f32 0.0, %v3702
        %v3704 = vpop.f32.mrf.mxu0
        %v3705 = vadd.f32 0.0, %v3704
        %3706 = vmatmul.bf16.gmra.mxu0 %v3618
        %v3707 = vpop.f32.mrf.mxu0
        %v3708 = vadd.f32 0.0, %v3707
        %v3709 = vpop.f32.mrf.mxu0
        %v3710 = vadd.f32 0.0, %v3709
        %3711 = vdwg.mxu0
        %v3712 = vadd.f32 %v3314, %v3633
        %v3713 = vadd.f32 %v3315, %v3635
        %v3714 = vadd.f32 %v3316, %v3638
        %v3715 = vadd.f32 %v3317, %v3640
        %v3716 = vadd.f32 %v3318, %v3643
        %v3717 = vadd.f32 %v3319, %v3645
        %v3718 = vadd.f32 %v3320, %v3648
        %v3719 = vadd.f32 %v3321, %v3650
        %v3720 = vadd.f32 %v3322, %v3653
        %v3721 = vadd.f32 %v3323, %v3655
        %v3722 = vadd.f32 %v3324, %v3658
        %v3723 = vadd.f32 %v3325, %v3660
        %v3724 = vadd.f32 %v3326, %v3663
        %v3725 = vadd.f32 %v3327, %v3665
        %v3726 = vadd.f32 %v3328, %v3668
        %v3727 = vadd.f32 %v3329, %v3670
        %v3728 = vadd.f32 %v3330, %v3673
        %v3729 = vadd.f32 %v3331, %v3675
        %v3730 = vadd.f32 %v3332, %v3678
        %v3731 = vadd.f32 %v3333, %v3680
        %v3732 = vadd.f32 %v3334, %v3683
        %v3733 = vadd.f32 %v3335, %v3685
        %v3734 = vadd.f32 %v3336, %v3688
        %v3735 = vadd.f32 %v3337, %v3690
        %v3736 = vadd.f32 %v3338, %v3693
        %v3737 = vadd.f32 %v3339, %v3695
        %v3738 = vadd.f32 %v3340, %v3698
        %v3739 = vadd.f32 %v3341, %v3700
        %v3740 = vadd.f32 %v3342, %v3703
        %v3741 = vadd.f32 %v3343, %v3705
        %v3742 = vadd.f32 %v3344, %v3708
        %v3743 = vadd.f32 %v3345, %v3710
        %s3744 = scalar_lea.vmem [#allocation2], 24
        %v3745 = vld [vmem:[%s3744] sm:$0xf]
        %v3746 = vld [vmem:[%s3744 + $0x4] sm:$0xf]
        %v3747 = vld [vmem:[%s3744 + $0xc] sm:$0xf]
        %v3748 = vld [vmem:[%s3744 + $0x10] sm:$0xf]
        %v3749 = vld [vmem:[%s3744 + $0x18] sm:$0xf]
        %v3750 = vld [vmem:[%s3744 + $0x1c] sm:$0xf]
        %v3751 = vld [vmem:[%s3744 + $0x24] sm:$0xf]
        %v3752 = vld [vmem:[%s3744 + $0x28] sm:$0xf]
        %v3753 = vld [vmem:[%s3744 + $0x30] sm:$0xf]
        %v3754 = vld [vmem:[%s3744 + $0x34] sm:$0xf]
        %v3755 = vld [vmem:[%s3744 + $0x3c] sm:$0xf]
        %v3756 = vld [vmem:[%s3744 + $0x40] sm:$0xf]
        %v3757 = vld [vmem:[%s3744 + $0x48] sm:$0xf]
        %v3758 = vld [vmem:[%s3744 + $0x4c] sm:$0xf]
        %v3759 = vld [vmem:[%s3744 + $0x54] sm:$0xf]
        %v3760 = vld [vmem:[%s3744 + $0x58] sm:$0xf]
        %v3761 = vld [vmem:[%s3744 + $0x60] sm:$0xf]
        %v3762 = vld [vmem:[%s3744 + $0x64] sm:$0xf]
        %v3763 = vld [vmem:[%s3744 + $0x6c] sm:$0xf]
        %v3764 = vld [vmem:[%s3744 + $0x70] sm:$0xf]
        %v3765 = vld [vmem:[%s3744 + $0x78] sm:$0xf]
        %v3766 = vld [vmem:[%s3744 + $0x7c] sm:$0xf]
        %v3767 = vld [vmem:[%s3744 + $0x84] sm:$0xf]
        %v3768 = vld [vmem:[%s3744 + $0x88] sm:$0xf]
        %v3769 = vld [vmem:[%s3744 + $0x90] sm:$0xf]
        %v3770 = vld [vmem:[%s3744 + $0x94] sm:$0xf]
        %v3771 = vld [vmem:[%s3744 + $0x9c] sm:$0xf]
        %v3772 = vld [vmem:[%s3744 + $0xa0] sm:$0xf]
        %v3773 = vld [vmem:[%s3744 + $0xa8] sm:$0xf]
        %v3774 = vld [vmem:[%s3744 + $0xac] sm:$0xf]
        %v3775 = vld [vmem:[%s3744 + $0xb4] sm:$0xf]
        %v3776 = vld [vmem:[%s3744 + $0xb8] sm:$0xf]
        %s3777 = scalar_lea.vmem %s3, 12
        %v3778 = vld [vmem:[%s3777] sm:$0x3]
        %v3811 = vunpack.c.l.b16 %v3745
        %v3812 = vunpack.c.l.b16 %v3746
        %v3813 = vunpack.c.l.b16 %v3747
        %v3814 = vunpack.c.l.b16 %v3748
        %v3815 = vunpack.c.l.b16 %v3749
        %v3816 = vunpack.c.l.b16 %v3750
        %v3817 = vunpack.c.l.b16 %v3751
        %v3818 = vunpack.c.l.b16 %v3752
        %v3819 = vunpack.c.l.b16 %v3753
        %v3820 = vunpack.c.l.b16 %v3754
        %v3821 = vunpack.c.l.b16 %v3755
        %v3822 = vunpack.c.l.b16 %v3756
        %v3823 = vunpack.c.l.b16 %v3757
        %v3824 = vunpack.c.l.b16 %v3758
        %v3825 = vunpack.c.l.b16 %v3759
        %v3826 = vunpack.c.l.b16 %v3760
        %v3827 = vunpack.c.l.b16 %v3761
        %v3828 = vunpack.c.l.b16 %v3762
        %v3829 = vunpack.c.l.b16 %v3763
        %v3830 = vunpack.c.l.b16 %v3764
        %v3831 = vunpack.c.l.b16 %v3765
        %v3832 = vunpack.c.l.b16 %v3766
        %v3833 = vunpack.c.l.b16 %v3767
        %v3834 = vunpack.c.l.b16 %v3768
        %v3835 = vunpack.c.l.b16 %v3769
        %v3836 = vunpack.c.l.b16 %v3770
        %v3837 = vunpack.c.l.b16 %v3771
        %v3838 = vunpack.c.l.b16 %v3772
        %v3839 = vunpack.c.l.b16 %v3773
        %v3840 = vunpack.c.l.b16 %v3774
        %v3841 = vunpack.c.l.b16 %v3775
        %v3842 = vunpack.c.l.b16 %v3776
        %v3843 = vpack.c.b16 %v3812, %v3811
        %v3844 = vpack.c.b16 %v3814, %v3813
        %v3845 = vpack.c.b16 %v3816, %v3815
        %v3846 = vpack.c.b16 %v3818, %v3817
        %v3847 = vpack.c.b16 %v3820, %v3819
        %v3848 = vpack.c.b16 %v3822, %v3821
        %v3849 = vpack.c.b16 %v3824, %v3823
        %v3850 = vpack.c.b16 %v3826, %v3825
        %v3851 = vpack.c.b16 %v3828, %v3827
        %v3852 = vpack.c.b16 %v3830, %v3829
        %v3853 = vpack.c.b16 %v3832, %v3831
        %v3854 = vpack.c.b16 %v3834, %v3833
        %v3855 = vpack.c.b16 %v3836, %v3835
        %v3856 = vpack.c.b16 %v3838, %v3837
        %v3857 = vpack.c.b16 %v3840, %v3839
        %v3858 = vpack.c.b16 %v3842, %v3841
        %v3860 = vsel %vm1659, %v3843, 0
        %v3863 = vsel %vm1659, %v3844, 0
        %v3866 = vsel %vm1659, %v3845, 0
        %v3869 = vsel %vm1659, %v3846, 0
        %v3872 = vsel %vm1659, %v3847, 0
        %v3875 = vsel %vm1659, %v3848, 0
        %v3878 = vsel %vm1659, %v3849, 0
        %v3881 = vsel %vm1659, %v3850, 0
        %v3884 = vsel %vm1659, %v3851, 0
        %v3887 = vsel %vm1659, %v3852, 0
        %v3890 = vsel %vm1659, %v3853, 0
        %v3893 = vsel %vm1659, %v3854, 0
        %v3896 = vsel %vm1659, %v3855, 0
        %v3899 = vsel %vm1659, %v3856, 0
        %v3902 = vsel %vm1659, %v3857, 0
        %v3905 = vsel %vm1659, %v3858, 0
        %v3908 = vsel %vm1708, %v3778, 0
        %3910 = vmatpush.bf16.msra.mxu0 0
        %3911 = vmatpush.bf16.msra.mxu0 0
        %3912 = vmatpush.bf16.msra.mxu0 0
        %3913 = vmatpush.bf16.msra.mxu0 0
        %3914 = vmatpush.bf16.msra.mxu0 0
        %3915 = vmatpush.bf16.msra.mxu0 0
        %3916 = vmatpush.bf16.msra.mxu0 0
        %3917 = vmatpush.bf16.msra.mxu0 %v3908
        %3918 = vmatmul.bf16.gmra.mxu0 %v3860
        %v3919 = vpop.f32.mrf.mxu0
        %v3920 = vadd.f32 0.0, %v3919
        %v3921 = vpop.f32.mrf.mxu0
        %v3922 = vadd.f32 0.0, %v3921
        %3923 = vmatmul.bf16.gmra.mxu0 %v3863
        %v3924 = vpop.f32.mrf.mxu0
        %v3925 = vadd.f32 0.0, %v3924
        %v3926 = vpop.f32.mrf.mxu0
        %v3927 = vadd.f32 0.0, %v3926
        %3928 = vmatmul.bf16.gmra.mxu0 %v3866
        %v3929 = vpop.f32.mrf.mxu0
        %v3930 = vadd.f32 0.0, %v3929
        %v3931 = vpop.f32.mrf.mxu0
        %v3932 = vadd.f32 0.0, %v3931
        %3933 = vmatmul.bf16.gmra.mxu0 %v3869
        %v3934 = vpop.f32.mrf.mxu0
        %v3935 = vadd.f32 0.0, %v3934
        %v3936 = vpop.f32.mrf.mxu0
        %v3937 = vadd.f32 0.0, %v3936
        %3938 = vmatmul.bf16.gmra.mxu0 %v3872
        %v3939 = vpop.f32.mrf.mxu0
        %v3940 = vadd.f32 0.0, %v3939
        %v3941 = vpop.f32.mrf.mxu0
        %v3942 = vadd.f32 0.0, %v3941
        %3943 = vmatmul.bf16.gmra.mxu0 %v3875
        %v3944 = vpop.f32.mrf.mxu0
        %v3945 = vadd.f32 0.0, %v3944
        %v3946 = vpop.f32.mrf.mxu0
        %v3947 = vadd.f32 0.0, %v3946
        %3948 = vmatmul.bf16.gmra.mxu0 %v3878
        %v3949 = vpop.f32.mrf.mxu0
        %v3950 = vadd.f32 0.0, %v3949
        %v3951 = vpop.f32.mrf.mxu0
        %v3952 = vadd.f32 0.0, %v3951
        %3953 = vmatmul.bf16.gmra.mxu0 %v3881
        %v3954 = vpop.f32.mrf.mxu0
        %v3955 = vadd.f32 0.0, %v3954
        %v3956 = vpop.f32.mrf.mxu0
        %v3957 = vadd.f32 0.0, %v3956
        %3958 = vmatmul.bf16.gmra.mxu0 %v3884
        %v3959 = vpop.f32.mrf.mxu0
        %v3960 = vadd.f32 0.0, %v3959
        %v3961 = vpop.f32.mrf.mxu0
        %v3962 = vadd.f32 0.0, %v3961
        %3963 = vmatmul.bf16.gmra.mxu0 %v3887
        %v3964 = vpop.f32.mrf.mxu0
        %v3965 = vadd.f32 0.0, %v3964
        %v3966 = vpop.f32.mrf.mxu0
        %v3967 = vadd.f32 0.0, %v3966
        %3968 = vmatmul.bf16.gmra.mxu0 %v3890
        %v3969 = vpop.f32.mrf.mxu0
        %v3970 = vadd.f32 0.0, %v3969
        %v3971 = vpop.f32.mrf.mxu0
        %v3972 = vadd.f32 0.0, %v3971
        %3973 = vmatmul.bf16.gmra.mxu0 %v3893
        %v3974 = vpop.f32.mrf.mxu0
        %v3975 = vadd.f32 0.0, %v3974
        %v3976 = vpop.f32.mrf.mxu0
        %v3977 = vadd.f32 0.0, %v3976
        %3978 = vmatmul.bf16.gmra.mxu0 %v3896
        %v3979 = vpop.f32.mrf.mxu0
        %v3980 = vadd.f32 0.0, %v3979
        %v3981 = vpop.f32.mrf.mxu0
        %v3982 = vadd.f32 0.0, %v3981
        %3983 = vmatmul.bf16.gmra.mxu0 %v3899
        %v3984 = vpop.f32.mrf.mxu0
        %v3985 = vadd.f32 0.0, %v3984
        %v3986 = vpop.f32.mrf.mxu0
        %v3987 = vadd.f32 0.0, %v3986
        %3988 = vmatmul.bf16.gmra.mxu0 %v3902
        %v3989 = vpop.f32.mrf.mxu0
        %v3990 = vadd.f32 0.0, %v3989
        %v3991 = vpop.f32.mrf.mxu0
        %v3992 = vadd.f32 0.0, %v3991
        %3993 = vmatmul.bf16.gmra.mxu0 %v3905
        %v3994 = vpop.f32.mrf.mxu0
        %v3995 = vadd.f32 0.0, %v3994
        %v3996 = vpop.f32.mrf.mxu0
        %v3997 = vadd.f32 0.0, %v3996
        %3998 = vdwg.mxu0
        %v3999 = vadd.f32 %v3712, %v3920
        %v4000 = vadd.f32 %v3713, %v3922
        %v4001 = vadd.f32 %v3714, %v3925
        %v4002 = vadd.f32 %v3715, %v3927
        %v4003 = vadd.f32 %v3716, %v3930
        %v4004 = vadd.f32 %v3717, %v3932
        %v4005 = vadd.f32 %v3718, %v3935
        %v4006 = vadd.f32 %v3719, %v3937
        %v4007 = vadd.f32 %v3720, %v3940
        %v4008 = vadd.f32 %v3721, %v3942
        %v4009 = vadd.f32 %v3722, %v3945
        %v4010 = vadd.f32 %v3723, %v3947
        %v4011 = vadd.f32 %v3724, %v3950
        %v4012 = vadd.f32 %v3725, %v3952
        %v4013 = vadd.f32 %v3726, %v3955
        %v4014 = vadd.f32 %v3727, %v3957
        %v4015 = vadd.f32 %v3728, %v3960
        %v4016 = vadd.f32 %v3729, %v3962
        %v4017 = vadd.f32 %v3730, %v3965
        %v4018 = vadd.f32 %v3731, %v3967
        %v4019 = vadd.f32 %v3732, %v3970
        %v4020 = vadd.f32 %v3733, %v3972
        %v4021 = vadd.f32 %v3734, %v3975
        %v4022 = vadd.f32 %v3735, %v3977
        %v4023 = vadd.f32 %v3736, %v3980
        %v4024 = vadd.f32 %v3737, %v3982
        %v4025 = vadd.f32 %v3738, %v3985
        %v4026 = vadd.f32 %v3739, %v3987
        %v4027 = vadd.f32 %v3740, %v3990
        %v4028 = vadd.f32 %v3741, %v3992
        %v4029 = vadd.f32 %v3742, %v3995
        %v4030 = vadd.f32 %v3743, %v3997
        %v4031 = vld [vmem:[%s3744] sm:$0xf]
        %v4032 = vld [vmem:[%s3744 + $0x4] sm:$0xf]
        %v4033 = vld [vmem:[%s3744 + $0x8] sm:$0x1]
        %v4034 = vld [vmem:[%s3744 + $0xc] sm:$0xf]
        %v4035 = vld [vmem:[%s3744 + $0x10] sm:$0xf]
        %v4036 = vld [vmem:[%s3744 + $0x14] sm:$0x1]
        %v4037 = vld [vmem:[%s3744 + $0x18] sm:$0xf]
        %v4038 = vld [vmem:[%s3744 + $0x1c] sm:$0xf]
        %v4039 = vld [vmem:[%s3744 + $0x20] sm:$0x1]
        %v4040 = vld [vmem:[%s3744 + $0x24] sm:$0xf]
        %v4041 = vld [vmem:[%s3744 + $0x28] sm:$0xf]
        %v4042 = vld [vmem:[%s3744 + $0x2c] sm:$0x1]
        %v4043 = vld [vmem:[%s3744 + $0x30] sm:$0xf]
        %v4044 = vld [vmem:[%s3744 + $0x34] sm:$0xf]
        %v4045 = vld [vmem:[%s3744 + $0x38] sm:$0x1]
        %v4046 = vld [vmem:[%s3744 + $0x3c] sm:$0xf]
        %v4047 = vld [vmem:[%s3744 + $0x40] sm:$0xf]
        %v4048 = vld [vmem:[%s3744 + $0x44] sm:$0x1]
        %v4049 = vld [vmem:[%s3744 + $0x48] sm:$0xf]
        %v4050 = vld [vmem:[%s3744 + $0x4c] sm:$0xf]
        %v4051 = vld [vmem:[%s3744 + $0x50] sm:$0x1]
        %v4052 = vld [vmem:[%s3744 + $0x54] sm:$0xf]
        %v4053 = vld [vmem:[%s3744 + $0x58] sm:$0xf]
        %v4054 = vld [vmem:[%s3744 + $0x5c] sm:$0x1]
        %v4055 = vld [vmem:[%s3744 + $0x60] sm:$0xf]
        %v4056 = vld [vmem:[%s3744 + $0x64] sm:$0xf]
        %v4057 = vld [vmem:[%s3744 + $0x68] sm:$0x1]
        %v4058 = vld [vmem:[%s3744 + $0x6c] sm:$0xf]
        %v4059 = vld [vmem:[%s3744 + $0x70] sm:$0xf]
        %v4060 = vld [vmem:[%s3744 + $0x74] sm:$0x1]
        %v4061 = vld [vmem:[%s3744 + $0x78] sm:$0xf]
        %v4062 = vld [vmem:[%s3744 + $0x7c] sm:$0xf]
        %v4063 = vld [vmem:[%s3744 + $0x80] sm:$0x1]
        %v4064 = vld [vmem:[%s3744 + $0x84] sm:$0xf]
        %v4065 = vld [vmem:[%s3744 + $0x88] sm:$0xf]
        %v4066 = vld [vmem:[%s3744 + $0x8c] sm:$0x1]
        %v4067 = vld [vmem:[%s3744 + $0x90] sm:$0xf]
        %v4068 = vld [vmem:[%s3744 + $0x94] sm:$0xf]
        %v4069 = vld [vmem:[%s3744 + $0x98] sm:$0x1]
        %v4070 = vld [vmem:[%s3744 + $0x9c] sm:$0xf]
        %v4071 = vld [vmem:[%s3744 + $0xa0] sm:$0xf]
        %v4072 = vld [vmem:[%s3744 + $0xa4] sm:$0x1]
        %v4073 = vld [vmem:[%s3744 + $0xa8] sm:$0xf]
        %v4074 = vld [vmem:[%s3744 + $0xac] sm:$0xf]
        %v4075 = vld [vmem:[%s3744 + $0xb0] sm:$0x1]
        %v4076 = vld [vmem:[%s3744 + $0xb4] sm:$0xf]
        %v4077 = vld [vmem:[%s3744 + $0xb8] sm:$0xf]
        %v4078 = vld [vmem:[%s3744 + $0xbc] sm:$0x1]
        %v4080 = vshrl.u32 %v4031, 16
        %v4082 = vrot.slane %v4080, 4
        %v4083 = vshll.u32 %v4031, 16
        %v4085 = vrot.slane %v4083, 5
        %v4086 = vor.u32 %v4082, %v4085
        %v4087 = vrot.slane %v4086, 4
        %v4089 = vshll.u32 %v4032, 16
        %v4091 = vrot.slane %v4089, 5
        %v4092 = vsel %vm1224, %v4087, %v4091
        %v4093 = vshrl.u32 %v4032, 16
        %v4095 = vrot.slane %v4093, 4
        %v4096 = vor.u32 %v4095, %v4091
        %v4097 = vrot.slane %v4096, 4
        %v4099 = vshll.u32 %v4033, 16
        %v4101 = vrot.slane %v4099, 5
        %v4102 = vsel %vm1224, %v4097, %v4101
        %v4104 = vshrl.u32 %v4034, 16
        %v4106 = vrot.slane %v4104, 4
        %v4107 = vshll.u32 %v4034, 16
        %v4109 = vrot.slane %v4107, 5
        %v4110 = vor.u32 %v4106, %v4109
        %v4111 = vrot.slane %v4110, 4
        %v4113 = vshll.u32 %v4035, 16
        %v4115 = vrot.slane %v4113, 5
        %v4116 = vsel %vm1224, %v4111, %v4115
        %v4117 = vshrl.u32 %v4035, 16
        %v4119 = vrot.slane %v4117, 4
        %v4120 = vor.u32 %v4119, %v4115
        %v4121 = vrot.slane %v4120, 4
        %v4123 = vshll.u32 %v4036, 16
        %v4125 = vrot.slane %v4123, 5
        %v4126 = vsel %vm1224, %v4121, %v4125
        %v4128 = vshrl.u32 %v4037, 16
        %v4130 = vrot.slane %v4128, 4
        %v4131 = vshll.u32 %v4037, 16
        %v4133 = vrot.slane %v4131, 5
        %v4134 = vor.u32 %v4130, %v4133
        %v4135 = vrot.slane %v4134, 4
        %v4137 = vshll.u32 %v4038, 16
        %v4139 = vrot.slane %v4137, 5
        %v4140 = vsel %vm1224, %v4135, %v4139
        %v4141 = vshrl.u32 %v4038, 16
        %v4143 = vrot.slane %v4141, 4
        %v4144 = vor.u32 %v4143, %v4139
        %v4145 = vrot.slane %v4144, 4
        %v4147 = vshll.u32 %v4039, 16
        %v4149 = vrot.slane %v4147, 5
        %v4150 = vsel %vm1224, %v4145, %v4149
        %v4152 = vshrl.u32 %v4040, 16
        %v4154 = vrot.slane %v4152, 4
        %v4155 = vshll.u32 %v4040, 16
        %v4157 = vrot.slane %v4155, 5
        %v4158 = vor.u32 %v4154, %v4157
        %v4159 = vrot.slane %v4158, 4
        %v4161 = vshll.u32 %v4041, 16
        %v4163 = vrot.slane %v4161, 5
        %v4164 = vsel %vm1224, %v4159, %v4163
        %v4165 = vshrl.u32 %v4041, 16
        %v4167 = vrot.slane %v4165, 4
        %v4168 = vor.u32 %v4167, %v4163
        %v4169 = vrot.slane %v4168, 4
        %v4171 = vshll.u32 %v4042, 16
        %v4173 = vrot.slane %v4171, 5
        %v4174 = vsel %vm1224, %v4169, %v4173
        %v4176 = vshrl.u32 %v4043, 16
        %v4178 = vrot.slane %v4176, 4
        %v4179 = vshll.u32 %v4043, 16
        %v4181 = vrot.slane %v4179, 5
        %v4182 = vor.u32 %v4178, %v4181
        %v4183 = vrot.slane %v4182, 4
        %v4185 = vshll.u32 %v4044, 16
        %v4187 = vrot.slane %v4185, 5
        %v4188 = vsel %vm1224, %v4183, %v4187
        %v4189 = vshrl.u32 %v4044, 16
        %v4191 = vrot.slane %v4189, 4
        %v4192 = vor.u32 %v4191, %v4187
        %v4193 = vrot.slane %v4192, 4
        %v4195 = vshll.u32 %v4045, 16
        %v4197 = vrot.slane %v4195, 5
        %v4198 = vsel %vm1224, %v4193, %v4197
        %v4200 = vshrl.u32 %v4046, 16
        %v4202 = vrot.slane %v4200, 4
        %v4203 = vshll.u32 %v4046, 16
        %v4205 = vrot.slane %v4203, 5
        %v4206 = vor.u32 %v4202, %v4205
        %v4207 = vrot.slane %v4206, 4
        %v4209 = vshll.u32 %v4047, 16
        %v4211 = vrot.slane %v4209, 5
        %v4212 = vsel %vm1224, %v4207, %v4211
        %v4213 = vshrl.u32 %v4047, 16
        %v4215 = vrot.slane %v4213, 4
        %v4216 = vor.u32 %v4215, %v4211
        %v4217 = vrot.slane %v4216, 4
        %v4219 = vshll.u32 %v4048, 16
        %v4221 = vrot.slane %v4219, 5
        %v4222 = vsel %vm1224, %v4217, %v4221
        %v4224 = vshrl.u32 %v4049, 16
        %v4226 = vrot.slane %v4224, 4
        %v4227 = vshll.u32 %v4049, 16
        %v4229 = vrot.slane %v4227, 5
        %v4230 = vor.u32 %v4226, %v4229
        %v4231 = vrot.slane %v4230, 4
        %v4233 = vshll.u32 %v4050, 16
        %v4235 = vrot.slane %v4233, 5
        %v4236 = vsel %vm1224, %v4231, %v4235
        %v4237 = vshrl.u32 %v4050, 16
        %v4239 = vrot.slane %v4237, 4
        %v4240 = vor.u32 %v4239, %v4235
        %v4241 = vrot.slane %v4240, 4
        %v4243 = vshll.u32 %v4051, 16
        %v4245 = vrot.slane %v4243, 5
        %v4246 = vsel %vm1224, %v4241, %v4245
        %v4248 = vshrl.u32 %v4052, 16
        %v4250 = vrot.slane %v4248, 4
        %v4251 = vshll.u32 %v4052, 16
        %v4253 = vrot.slane %v4251, 5
        %v4254 = vor.u32 %v4250, %v4253
        %v4255 = vrot.slane %v4254, 4
        %v4257 = vshll.u32 %v4053, 16
        %v4259 = vrot.slane %v4257, 5
        %v4260 = vsel %vm1224, %v4255, %v4259
        %v4261 = vshrl.u32 %v4053, 16
        %v4263 = vrot.slane %v4261, 4
        %v4264 = vor.u32 %v4263, %v4259
        %v4265 = vrot.slane %v4264, 4
        %v4267 = vshll.u32 %v4054, 16
        %v4269 = vrot.slane %v4267, 5
        %v4270 = vsel %vm1224, %v4265, %v4269
        %v4272 = vshrl.u32 %v4055, 16
        %v4274 = vrot.slane %v4272, 4
        %v4275 = vshll.u32 %v4055, 16
        %v4277 = vrot.slane %v4275, 5
        %v4278 = vor.u32 %v4274, %v4277
        %v4279 = vrot.slane %v4278, 4
        %v4281 = vshll.u32 %v4056, 16
        %v4283 = vrot.slane %v4281, 5
        %v4284 = vsel %vm1224, %v4279, %v4283
        %v4285 = vshrl.u32 %v4056, 16
        %v4287 = vrot.slane %v4285, 4
        %v4288 = vor.u32 %v4287, %v4283
        %v4289 = vrot.slane %v4288, 4
        %v4291 = vshll.u32 %v4057, 16
        %v4293 = vrot.slane %v4291, 5
        %v4294 = vsel %vm1224, %v4289, %v4293
        %v4296 = vshrl.u32 %v4058, 16
        %v4298 = vrot.slane %v4296, 4
        %v4299 = vshll.u32 %v4058, 16
        %v4301 = vrot.slane %v4299, 5
        %v4302 = vor.u32 %v4298, %v4301
        %v4303 = vrot.slane %v4302, 4
        %v4305 = vshll.u32 %v4059, 16
        %v4307 = vrot.slane %v4305, 5
        %v4308 = vsel %vm1224, %v4303, %v4307
        %v4309 = vshrl.u32 %v4059, 16
        %v4311 = vrot.slane %v4309, 4
        %v4312 = vor.u32 %v4311, %v4307
        %v4313 = vrot.slane %v4312, 4
        %v4315 = vshll.u32 %v4060, 16
        %v4317 = vrot.slane %v4315, 5
        %v4318 = vsel %vm1224, %v4313, %v4317
        %v4320 = vshrl.u32 %v4061, 16
        %v4322 = vrot.slane %v4320, 4
        %v4323 = vshll.u32 %v4061, 16
        %v4325 = vrot.slane %v4323, 5
        %v4326 = vor.u32 %v4322, %v4325
        %v4327 = vrot.slane %v4326, 4
        %v4329 = vshll.u32 %v4062, 16
        %v4331 = vrot.slane %v4329, 5
        %v4332 = vsel %vm1224, %v4327, %v4331
        %v4333 = vshrl.u32 %v4062, 16
        %v4335 = vrot.slane %v4333, 4
        %v4336 = vor.u32 %v4335, %v4331
        %v4337 = vrot.slane %v4336, 4
        %v4339 = vshll.u32 %v4063, 16
        %v4341 = vrot.slane %v4339, 5
        %v4342 = vsel %vm1224, %v4337, %v4341
        %v4344 = vshrl.u32 %v4064, 16
        %v4346 = vrot.slane %v4344, 4
        %v4347 = vshll.u32 %v4064, 16
        %v4349 = vrot.slane %v4347, 5
        %v4350 = vor.u32 %v4346, %v4349
        %v4351 = vrot.slane %v4350, 4
        %v4353 = vshll.u32 %v4065, 16
        %v4355 = vrot.slane %v4353, 5
        %v4356 = vsel %vm1224, %v4351, %v4355
        %v4357 = vshrl.u32 %v4065, 16
        %v4359 = vrot.slane %v4357, 4
        %v4360 = vor.u32 %v4359, %v4355
        %v4361 = vrot.slane %v4360, 4
        %v4363 = vshll.u32 %v4066, 16
        %v4365 = vrot.slane %v4363, 5
        %v4366 = vsel %vm1224, %v4361, %v4365
        %v4368 = vshrl.u32 %v4067, 16
        %v4370 = vrot.slane %v4368, 4
        %v4371 = vshll.u32 %v4067, 16
        %v4373 = vrot.slane %v4371, 5
        %v4374 = vor.u32 %v4370, %v4373
        %v4375 = vrot.slane %v4374, 4
        %v4377 = vshll.u32 %v4068, 16
        %v4379 = vrot.slane %v4377, 5
        %v4380 = vsel %vm1224, %v4375, %v4379
        %v4381 = vshrl.u32 %v4068, 16
        %v4383 = vrot.slane %v4381, 4
        %v4384 = vor.u32 %v4383, %v4379
        %v4385 = vrot.slane %v4384, 4
        %v4387 = vshll.u32 %v4069, 16
        %v4389 = vrot.slane %v4387, 5
        %v4390 = vsel %vm1224, %v4385, %v4389
        %v4392 = vshrl.u32 %v4070, 16
        %v4394 = vrot.slane %v4392, 4
        %v4395 = vshll.u32 %v4070, 16
        %v4397 = vrot.slane %v4395, 5
        %v4398 = vor.u32 %v4394, %v4397
        %v4399 = vrot.slane %v4398, 4
        %v4401 = vshll.u32 %v4071, 16
        %v4403 = vrot.slane %v4401, 5
        %v4404 = vsel %vm1224, %v4399, %v4403
        %v4405 = vshrl.u32 %v4071, 16
        %v4407 = vrot.slane %v4405, 4
        %v4408 = vor.u32 %v4407, %v4403
        %v4409 = vrot.slane %v4408, 4
        %v4411 = vshll.u32 %v4072, 16
        %v4413 = vrot.slane %v4411, 5
        %v4414 = vsel %vm1224, %v4409, %v4413
        %v4416 = vshrl.u32 %v4073, 16
        %v4418 = vrot.slane %v4416, 4
        %v4419 = vshll.u32 %v4073, 16
        %v4421 = vrot.slane %v4419, 5
        %v4422 = vor.u32 %v4418, %v4421
        %v4423 = vrot.slane %v4422, 4
        %v4425 = vshll.u32 %v4074, 16
        %v4427 = vrot.slane %v4425, 5
        %v4428 = vsel %vm1224, %v4423, %v4427
        %v4429 = vshrl.u32 %v4074, 16
        %v4431 = vrot.slane %v4429, 4
        %v4432 = vor.u32 %v4431, %v4427
        %v4433 = vrot.slane %v4432, 4
        %v4435 = vshll.u32 %v4075, 16
        %v4437 = vrot.slane %v4435, 5
        %v4438 = vsel %vm1224, %v4433, %v4437
        %v4440 = vshrl.u32 %v4076, 16
        %v4442 = vrot.slane %v4440, 4
        %v4443 = vshll.u32 %v4076, 16
        %v4445 = vrot.slane %v4443, 5
        %v4446 = vor.u32 %v4442, %v4445
        %v4447 = vrot.slane %v4446, 4
        %v4449 = vshll.u32 %v4077, 16
        %v4451 = vrot.slane %v4449, 5
        %v4452 = vsel %vm1224, %v4447, %v4451
        %v4453 = vshrl.u32 %v4077, 16
        %v4455 = vrot.slane %v4453, 4
        %v4456 = vor.u32 %v4455, %v4451
        %v4457 = vrot.slane %v4456, 4
        %v4459 = vshll.u32 %v4078, 16
        %v4461 = vrot.slane %v4459, 5
        %v4462 = vsel %vm1224, %v4457, %v4461
        %s4463 = scalar_lea.vmem %s3, 14
        %v4464 = vld [vmem:[%s4463] sm:$0x3]
        %v4465 = vunpack.c.l.b16 %v4092
        %v4466 = vunpack.c.l.b16 %v4102
        %v4467 = vunpack.c.l.b16 %v4116
        %v4468 = vunpack.c.l.b16 %v4126
        %v4469 = vunpack.c.l.b16 %v4140
        %v4470 = vunpack.c.l.b16 %v4150
        %v4471 = vunpack.c.l.b16 %v4164
        %v4472 = vunpack.c.l.b16 %v4174
        %v4473 = vunpack.c.l.b16 %v4188
        %v4474 = vunpack.c.l.b16 %v4198
        %v4475 = vunpack.c.l.b16 %v4212
        %v4476 = vunpack.c.l.b16 %v4222
        %v4477 = vunpack.c.l.b16 %v4236
        %v4478 = vunpack.c.l.b16 %v4246
        %v4479 = vunpack.c.l.b16 %v4260
        %v4480 = vunpack.c.l.b16 %v4270
        %v4481 = vunpack.c.l.b16 %v4284
        %v4482 = vunpack.c.l.b16 %v4294
        %v4483 = vunpack.c.l.b16 %v4308
        %v4484 = vunpack.c.l.b16 %v4318
        %v4485 = vunpack.c.l.b16 %v4332
        %v4486 = vunpack.c.l.b16 %v4342
        %v4487 = vunpack.c.l.b16 %v4356
        %v4488 = vunpack.c.l.b16 %v4366
        %v4489 = vunpack.c.l.b16 %v4380
        %v4490 = vunpack.c.l.b16 %v4390
        %v4491 = vunpack.c.l.b16 %v4404
        %v4492 = vunpack.c.l.b16 %v4414
        %v4493 = vunpack.c.l.b16 %v4428
        %v4494 = vunpack.c.l.b16 %v4438
        %v4495 = vunpack.c.l.b16 %v4452
        %v4496 = vunpack.c.l.b16 %v4462
        %v4497 = vpack.c.b16 %v4466, %v4465
        %v4498 = vpack.c.b16 %v4468, %v4467
        %v4499 = vpack.c.b16 %v4470, %v4469
        %v4500 = vpack.c.b16 %v4472, %v4471
        %v4501 = vpack.c.b16 %v4474, %v4473
        %v4502 = vpack.c.b16 %v4476, %v4475
        %v4503 = vpack.c.b16 %v4478, %v4477
        %v4504 = vpack.c.b16 %v4480, %v4479
        %v4505 = vpack.c.b16 %v4482, %v4481
        %v4506 = vpack.c.b16 %v4484, %v4483
        %v4507 = vpack.c.b16 %v4486, %v4485
        %v4508 = vpack.c.b16 %v4488, %v4487
        %v4509 = vpack.c.b16 %v4490, %v4489
        %v4510 = vpack.c.b16 %v4492, %v4491
        %v4511 = vpack.c.b16 %v4494, %v4493
        %v4512 = vpack.c.b16 %v4496, %v4495
        %v4514 = vsel %vm1659, %v4497, 0
        %v4517 = vsel %vm1659, %v4498, 0
        %v4520 = vsel %vm1659, %v4499, 0
        %v4523 = vsel %vm1659, %v4500, 0
        %v4526 = vsel %vm1659, %v4501, 0
        %v4529 = vsel %vm1659, %v4502, 0
        %v4532 = vsel %vm1659, %v4503, 0
        %v4535 = vsel %vm1659, %v4504, 0
        %v4538 = vsel %vm1659, %v4505, 0
        %v4541 = vsel %vm1659, %v4506, 0
        %v4544 = vsel %vm1659, %v4507, 0
        %v4547 = vsel %vm1659, %v4508, 0
        %v4550 = vsel %vm1659, %v4509, 0
        %v4553 = vsel %vm1659, %v4510, 0
        %v4556 = vsel %vm1659, %v4511, 0
        %v4559 = vsel %vm1659, %v4512, 0
        %v4562 = vsel %vm1708, %v4464, 0
        %4564 = vmatpush.bf16.msra.mxu0 0
        %4565 = vmatpush.bf16.msra.mxu0 0
        %4566 = vmatpush.bf16.msra.mxu0 0
        %4567 = vmatpush.bf16.msra.mxu0 0
        %4568 = vmatpush.bf16.msra.mxu0 0
        %4569 = vmatpush.bf16.msra.mxu0 0
        %4570 = vmatpush.bf16.msra.mxu0 0
        %4571 = vmatpush.bf16.msra.mxu0 %v4562
        %4572 = vmatmul.bf16.gmra.mxu0 %v4514
        %v4573 = vpop.f32.mrf.mxu0
        %v4574 = vadd.f32 0.0, %v4573
        %v4575 = vpop.f32.mrf.mxu0
        %v4576 = vadd.f32 0.0, %v4575
        %4577 = vmatmul.bf16.gmra.mxu0 %v4517
        %v4578 = vpop.f32.mrf.mxu0
        %v4579 = vadd.f32 0.0, %v4578
        %v4580 = vpop.f32.mrf.mxu0
        %v4581 = vadd.f32 0.0, %v4580
        %4582 = vmatmul.bf16.gmra.mxu0 %v4520
        %v4583 = vpop.f32.mrf.mxu0
        %v4584 = vadd.f32 0.0, %v4583
        %v4585 = vpop.f32.mrf.mxu0
        %v4586 = vadd.f32 0.0, %v4585
        %4587 = vmatmul.bf16.gmra.mxu0 %v4523
        %v4588 = vpop.f32.mrf.mxu0
        %v4589 = vadd.f32 0.0, %v4588
        %v4590 = vpop.f32.mrf.mxu0
        %v4591 = vadd.f32 0.0, %v4590
        %4592 = vmatmul.bf16.gmra.mxu0 %v4526
        %v4593 = vpop.f32.mrf.mxu0
        %v4594 = vadd.f32 0.0, %v4593
        %v4595 = vpop.f32.mrf.mxu0
        %v4596 = vadd.f32 0.0, %v4595
        %4597 = vmatmul.bf16.gmra.mxu0 %v4529
        %v4598 = vpop.f32.mrf.mxu0
        %v4599 = vadd.f32 0.0, %v4598
        %v4600 = vpop.f32.mrf.mxu0
        %v4601 = vadd.f32 0.0, %v4600
        %4602 = vmatmul.bf16.gmra.mxu0 %v4532
        %v4603 = vpop.f32.mrf.mxu0
        %v4604 = vadd.f32 0.0, %v4603
        %v4605 = vpop.f32.mrf.mxu0
        %v4606 = vadd.f32 0.0, %v4605
        %4607 = vmatmul.bf16.gmra.mxu0 %v4535
        %v4608 = vpop.f32.mrf.mxu0
        %v4609 = vadd.f32 0.0, %v4608
        %v4610 = vpop.f32.mrf.mxu0
        %v4611 = vadd.f32 0.0, %v4610
        %4612 = vmatmul.bf16.gmra.mxu0 %v4538
        %v4613 = vpop.f32.mrf.mxu0
        %v4614 = vadd.f32 0.0, %v4613
        %v4615 = vpop.f32.mrf.mxu0
        %v4616 = vadd.f32 0.0, %v4615
        %4617 = vmatmul.bf16.gmra.mxu0 %v4541
        %v4618 = vpop.f32.mrf.mxu0
        %v4619 = vadd.f32 0.0, %v4618
        %v4620 = vpop.f32.mrf.mxu0
        %v4621 = vadd.f32 0.0, %v4620
        %4622 = vmatmul.bf16.gmra.mxu0 %v4544
        %v4623 = vpop.f32.mrf.mxu0
        %v4624 = vadd.f32 0.0, %v4623
        %v4625 = vpop.f32.mrf.mxu0
        %v4626 = vadd.f32 0.0, %v4625
        %4627 = vmatmul.bf16.gmra.mxu0 %v4547
        %v4628 = vpop.f32.mrf.mxu0
        %v4629 = vadd.f32 0.0, %v4628
        %v4630 = vpop.f32.mrf.mxu0
        %v4631 = vadd.f32 0.0, %v4630
        %4632 = vmatmul.bf16.gmra.mxu0 %v4550
        %v4633 = vpop.f32.mrf.mxu0
        %v4634 = vadd.f32 0.0, %v4633
        %v4635 = vpop.f32.mrf.mxu0
        %v4636 = vadd.f32 0.0, %v4635
        %4637 = vmatmul.bf16.gmra.mxu0 %v4553
        %v4638 = vpop.f32.mrf.mxu0
        %v4639 = vadd.f32 0.0, %v4638
        %v4640 = vpop.f32.mrf.mxu0
        %v4641 = vadd.f32 0.0, %v4640
        %4642 = vmatmul.bf16.gmra.mxu0 %v4556
        %v4643 = vpop.f32.mrf.mxu0
        %v4644 = vadd.f32 0.0, %v4643
        %v4645 = vpop.f32.mrf.mxu0
        %v4646 = vadd.f32 0.0, %v4645
        %4647 = vmatmul.bf16.gmra.mxu0 %v4559
        %v4648 = vpop.f32.mrf.mxu0
        %v4649 = vadd.f32 0.0, %v4648
        %v4650 = vpop.f32.mrf.mxu0
        %v4651 = vadd.f32 0.0, %v4650
        %4652 = vdwg.mxu0
        %v4653 = vadd.f32 %v3999, %v4574
        %v4654 = vadd.f32 %v4000, %v4576
        %v4655 = vadd.f32 %v4001, %v4579
        %v4656 = vadd.f32 %v4002, %v4581
        %v4657 = vadd.f32 %v4003, %v4584
        %v4658 = vadd.f32 %v4004, %v4586
        %v4659 = vadd.f32 %v4005, %v4589
        %v4660 = vadd.f32 %v4006, %v4591
        %v4661 = vadd.f32 %v4007, %v4594
        %v4662 = vadd.f32 %v4008, %v4596
        %v4663 = vadd.f32 %v4009, %v4599
        %v4664 = vadd.f32 %v4010, %v4601
        %v4665 = vadd.f32 %v4011, %v4604
        %v4666 = vadd.f32 %v4012, %v4606
        %v4667 = vadd.f32 %v4013, %v4609
        %v4668 = vadd.f32 %v4014, %v4611
        %v4669 = vadd.f32 %v4015, %v4614
        %v4670 = vadd.f32 %v4016, %v4616
        %v4671 = vadd.f32 %v4017, %v4619
        %v4672 = vadd.f32 %v4018, %v4621
        %v4673 = vadd.f32 %v4019, %v4624
        %v4674 = vadd.f32 %v4020, %v4626
        %v4675 = vadd.f32 %v4021, %v4629
        %v4676 = vadd.f32 %v4022, %v4631
        %v4677 = vadd.f32 %v4023, %v4634
        %v4678 = vadd.f32 %v4024, %v4636
        %v4679 = vadd.f32 %v4025, %v4639
        %v4680 = vadd.f32 %v4026, %v4641
        %v4681 = vadd.f32 %v4027, %v4644
        %v4682 = vadd.f32 %v4028, %v4646
        %v4683 = vadd.f32 %v4029, %v4649
        %v4684 = vadd.f32 %v4030, %v4651
        %v4685 = vld [vmem:[%s3744] sm:$0xe]
        %v4686 = vld [vmem:[%s3744 + $0xc] sm:$0xe]
        %v4687 = vld [vmem:[%s3744 + $0x18] sm:$0xe]
        %v4688 = vld [vmem:[%s3744 + $0x24] sm:$0xe]
        %v4689 = vld [vmem:[%s3744 + $0x30] sm:$0xe]
        %v4690 = vld [vmem:[%s3744 + $0x3c] sm:$0xe]
        %v4691 = vld [vmem:[%s3744 + $0x48] sm:$0xe]
        %v4692 = vld [vmem:[%s3744 + $0x54] sm:$0xe]
        %v4693 = vld [vmem:[%s3744 + $0x60] sm:$0xe]
        %v4694 = vld [vmem:[%s3744 + $0x6c] sm:$0xe]
        %v4695 = vld [vmem:[%s3744 + $0x78] sm:$0xe]
        %v4696 = vld [vmem:[%s3744 + $0x84] sm:$0xe]
        %v4697 = vld [vmem:[%s3744 + $0x90] sm:$0xe]
        %v4698 = vld [vmem:[%s3744 + $0x9c] sm:$0xe]
        %v4699 = vld [vmem:[%s3744 + $0xa8] sm:$0xe]
        %v4700 = vld [vmem:[%s3744 + $0xb4] sm:$0xe]
        %v4749 = vrot.slane %v4685, 5
        %v4750 = vrot.slane %v4749, 4
        %v4751 = vrot.slane %v4032, 5
        %v4752 = vsel %vm2071, %v4750, %v4751
        %v4753 = vrot.slane %v4751, 4
        %v4754 = vrot.slane %v4033, 5
        %v4755 = vsel %vm2071, %v4753, %v4754
        %v4756 = vrot.slane %v4686, 5
        %v4757 = vrot.slane %v4756, 4
        %v4758 = vrot.slane %v4035, 5
        %v4759 = vsel %vm2071, %v4757, %v4758
        %v4760 = vrot.slane %v4758, 4
        %v4761 = vrot.slane %v4036, 5
        %v4762 = vsel %vm2071, %v4760, %v4761
        %v4763 = vrot.slane %v4687, 5
        %v4764 = vrot.slane %v4763, 4
        %v4765 = vrot.slane %v4038, 5
        %v4766 = vsel %vm2071, %v4764, %v4765
        %v4767 = vrot.slane %v4765, 4
        %v4768 = vrot.slane %v4039, 5
        %v4769 = vsel %vm2071, %v4767, %v4768
        %v4770 = vrot.slane %v4688, 5
        %v4771 = vrot.slane %v4770, 4
        %v4772 = vrot.slane %v4041, 5
        %v4773 = vsel %vm2071, %v4771, %v4772
        %v4774 = vrot.slane %v4772, 4
        %v4775 = vrot.slane %v4042, 5
        %v4776 = vsel %vm2071, %v4774, %v4775
        %v4777 = vrot.slane %v4689, 5
        %v4778 = vrot.slane %v4777, 4
        %v4779 = vrot.slane %v4044, 5
        %v4780 = vsel %vm2071, %v4778, %v4779
        %v4781 = vrot.slane %v4779, 4
        %v4782 = vrot.slane %v4045, 5
        %v4783 = vsel %vm2071, %v4781, %v4782
        %v4784 = vrot.slane %v4690, 5
        %v4785 = vrot.slane %v4784, 4
        %v4786 = vrot.slane %v4047, 5
        %v4787 = vsel %vm2071, %v4785, %v4786
        %v4788 = vrot.slane %v4786, 4
        %v4789 = vrot.slane %v4048, 5
        %v4790 = vsel %vm2071, %v4788, %v4789
        %v4791 = vrot.slane %v4691, 5
        %v4792 = vrot.slane %v4791, 4
        %v4793 = vrot.slane %v4050, 5
        %v4794 = vsel %vm2071, %v4792, %v4793
        %v4795 = vrot.slane %v4793, 4
        %v4796 = vrot.slane %v4051, 5
        %v4797 = vsel %vm2071, %v4795, %v4796
        %v4798 = vrot.slane %v4692, 5
        %v4799 = vrot.slane %v4798, 4
        %v4800 = vrot.slane %v4053, 5
        %v4801 = vsel %vm2071, %v4799, %v4800
        %v4802 = vrot.slane %v4800, 4
        %v4803 = vrot.slane %v4054, 5
        %v4804 = vsel %vm2071, %v4802, %v4803
        %v4805 = vrot.slane %v4693, 5
        %v4806 = vrot.slane %v4805, 4
        %v4807 = vrot.slane %v4056, 5
        %v4808 = vsel %vm2071, %v4806, %v4807
        %v4809 = vrot.slane %v4807, 4
        %v4810 = vrot.slane %v4057, 5
        %v4811 = vsel %vm2071, %v4809, %v4810
        %v4812 = vrot.slane %v4694, 5
        %v4813 = vrot.slane %v4812, 4
        %v4814 = vrot.slane %v4059, 5
        %v4815 = vsel %vm2071, %v4813, %v4814
        %v4816 = vrot.slane %v4814, 4
        %v4817 = vrot.slane %v4060, 5
        %v4818 = vsel %vm2071, %v4816, %v4817
        %v4819 = vrot.slane %v4695, 5
        %v4820 = vrot.slane %v4819, 4
        %v4821 = vrot.slane %v4062, 5
        %v4822 = vsel %vm2071, %v4820, %v4821
        %v4823 = vrot.slane %v4821, 4
        %v4824 = vrot.slane %v4063, 5
        %v4825 = vsel %vm2071, %v4823, %v4824
        %v4826 = vrot.slane %v4696, 5
        %v4827 = vrot.slane %v4826, 4
        %v4828 = vrot.slane %v4065, 5
        %v4829 = vsel %vm2071, %v4827, %v4828
        %v4830 = vrot.slane %v4828, 4
        %v4831 = vrot.slane %v4066, 5
        %v4832 = vsel %vm2071, %v4830, %v4831
        %v4833 = vrot.slane %v4697, 5
        %v4834 = vrot.slane %v4833, 4
        %v4835 = vrot.slane %v4068, 5
        %v4836 = vsel %vm2071, %v4834, %v4835
        %v4837 = vrot.slane %v4835, 4
        %v4838 = vrot.slane %v4069, 5
        %v4839 = vsel %vm2071, %v4837, %v4838
        %v4840 = vrot.slane %v4698, 5
        %v4841 = vrot.slane %v4840, 4
        %v4842 = vrot.slane %v4071, 5
        %v4843 = vsel %vm2071, %v4841, %v4842
        %v4844 = vrot.slane %v4842, 4
        %v4845 = vrot.slane %v4072, 5
        %v4846 = vsel %vm2071, %v4844, %v4845
        %v4847 = vrot.slane %v4699, 5
        %v4848 = vrot.slane %v4847, 4
        %v4849 = vrot.slane %v4074, 5
        %v4850 = vsel %vm2071, %v4848, %v4849
        %v4851 = vrot.slane %v4849, 4
        %v4852 = vrot.slane %v4075, 5
        %v4853 = vsel %vm2071, %v4851, %v4852
        %v4854 = vrot.slane %v4700, 5
        %v4855 = vrot.slane %v4854, 4
        %v4856 = vrot.slane %v4077, 5
        %v4857 = vsel %vm2071, %v4855, %v4856
        %v4858 = vrot.slane %v4856, 4
        %v4859 = vrot.slane %v4078, 5
        %v4860 = vsel %vm2071, %v4858, %v4859
        %s4861 = scalar_lea.vmem %s3, 16
        %v4862 = vld [vmem:[%s4861] sm:$0x3]
        %v4863 = vunpack.c.l.b16 %v4752
        %v4864 = vunpack.c.l.b16 %v4755
        %v4865 = vunpack.c.l.b16 %v4759
        %v4866 = vunpack.c.l.b16 %v4762
        %v4867 = vunpack.c.l.b16 %v4766
        %v4868 = vunpack.c.l.b16 %v4769
        %v4869 = vunpack.c.l.b16 %v4773
        %v4870 = vunpack.c.l.b16 %v4776
        %v4871 = vunpack.c.l.b16 %v4780
        %v4872 = vunpack.c.l.b16 %v4783
        %v4873 = vunpack.c.l.b16 %v4787
        %v4874 = vunpack.c.l.b16 %v4790
        %v4875 = vunpack.c.l.b16 %v4794
        %v4876 = vunpack.c.l.b16 %v4797
        %v4877 = vunpack.c.l.b16 %v4801
        %v4878 = vunpack.c.l.b16 %v4804
        %v4879 = vunpack.c.l.b16 %v4808
        %v4880 = vunpack.c.l.b16 %v4811
        %v4881 = vunpack.c.l.b16 %v4815
        %v4882 = vunpack.c.l.b16 %v4818
        %v4883 = vunpack.c.l.b16 %v4822
        %v4884 = vunpack.c.l.b16 %v4825
        %v4885 = vunpack.c.l.b16 %v4829
        %v4886 = vunpack.c.l.b16 %v4832
        %v4887 = vunpack.c.l.b16 %v4836
        %v4888 = vunpack.c.l.b16 %v4839
        %v4889 = vunpack.c.l.b16 %v4843
        %v4890 = vunpack.c.l.b16 %v4846
        %v4891 = vunpack.c.l.b16 %v4850
        %v4892 = vunpack.c.l.b16 %v4853
        %v4893 = vunpack.c.l.b16 %v4857
        %v4894 = vunpack.c.l.b16 %v4860
        %v4895 = vpack.c.b16 %v4864, %v4863
        %v4896 = vpack.c.b16 %v4866, %v4865
        %v4897 = vpack.c.b16 %v4868, %v4867
        %v4898 = vpack.c.b16 %v4870, %v4869
        %v4899 = vpack.c.b16 %v4872, %v4871
        %v4900 = vpack.c.b16 %v4874, %v4873
        %v4901 = vpack.c.b16 %v4876, %v4875
        %v4902 = vpack.c.b16 %v4878, %v4877
        %v4903 = vpack.c.b16 %v4880, %v4879
        %v4904 = vpack.c.b16 %v4882, %v4881
        %v4905 = vpack.c.b16 %v4884, %v4883
        %v4906 = vpack.c.b16 %v4886, %v4885
        %v4907 = vpack.c.b16 %v4888, %v4887
        %v4908 = vpack.c.b16 %v4890, %v4889
        %v4909 = vpack.c.b16 %v4892, %v4891
        %v4910 = vpack.c.b16 %v4894, %v4893
        %v4912 = vsel %vm1659, %v4895, 0
        %v4915 = vsel %vm1659, %v4896, 0
        %v4918 = vsel %vm1659, %v4897, 0
        %v4921 = vsel %vm1659, %v4898, 0
        %v4924 = vsel %vm1659, %v4899, 0
        %v4927 = vsel %vm1659, %v4900, 0
        %v4930 = vsel %vm1659, %v4901, 0
        %v4933 = vsel %vm1659, %v4902, 0
        %v4936 = vsel %vm1659, %v4903, 0
        %v4939 = vsel %vm1659, %v4904, 0
        %v4942 = vsel %vm1659, %v4905, 0
        %v4945 = vsel %vm1659, %v4906, 0
        %v4948 = vsel %vm1659, %v4907, 0
        %v4951 = vsel %vm1659, %v4908, 0
        %v4954 = vsel %vm1659, %v4909, 0
        %v4957 = vsel %vm1659, %v4910, 0
        %v4960 = vsel %vm1708, %v4862, 0
        %4962 = vmatpush.bf16.msra.mxu0 0
        %4963 = vmatpush.bf16.msra.mxu0 0
        %4964 = vmatpush.bf16.msra.mxu0 0
        %4965 = vmatpush.bf16.msra.mxu0 0
        %4966 = vmatpush.bf16.msra.mxu0 0
        %4967 = vmatpush.bf16.msra.mxu0 0
        %4968 = vmatpush.bf16.msra.mxu0 0
        %4969 = vmatpush.bf16.msra.mxu0 %v4960
        %4970 = vmatmul.bf16.gmra.mxu0 %v4912
        %v4971 = vpop.f32.mrf.mxu0
        %v4972 = vadd.f32 0.0, %v4971
        %v4973 = vpop.f32.mrf.mxu0
        %v4974 = vadd.f32 0.0, %v4973
        %4975 = vmatmul.bf16.gmra.mxu0 %v4915
        %v4976 = vpop.f32.mrf.mxu0
        %v4977 = vadd.f32 0.0, %v4976
        %v4978 = vpop.f32.mrf.mxu0
        %v4979 = vadd.f32 0.0, %v4978
        %4980 = vmatmul.bf16.gmra.mxu0 %v4918
        %v4981 = vpop.f32.mrf.mxu0
        %v4982 = vadd.f32 0.0, %v4981
        %v4983 = vpop.f32.mrf.mxu0
        %v4984 = vadd.f32 0.0, %v4983
        %4985 = vmatmul.bf16.gmra.mxu0 %v4921
        %v4986 = vpop.f32.mrf.mxu0
        %v4987 = vadd.f32 0.0, %v4986
        %v4988 = vpop.f32.mrf.mxu0
        %v4989 = vadd.f32 0.0, %v4988
        %4990 = vmatmul.bf16.gmra.mxu0 %v4924
        %v4991 = vpop.f32.mrf.mxu0
        %v4992 = vadd.f32 0.0, %v4991
        %v4993 = vpop.f32.mrf.mxu0
        %v4994 = vadd.f32 0.0, %v4993
        %4995 = vmatmul.bf16.gmra.mxu0 %v4927
        %v4996 = vpop.f32.mrf.mxu0
        %v4997 = vadd.f32 0.0, %v4996
        %v4998 = vpop.f32.mrf.mxu0
        %v4999 = vadd.f32 0.0, %v4998
        %5000 = vmatmul.bf16.gmra.mxu0 %v4930
        %v5001 = vpop.f32.mrf.mxu0
        %v5002 = vadd.f32 0.0, %v5001
        %v5003 = vpop.f32.mrf.mxu0
        %v5004 = vadd.f32 0.0, %v5003
        %5005 = vmatmul.bf16.gmra.mxu0 %v4933
        %v5006 = vpop.f32.mrf.mxu0
        %v5007 = vadd.f32 0.0, %v5006
        %v5008 = vpop.f32.mrf.mxu0
        %v5009 = vadd.f32 0.0, %v5008
        %5010 = vmatmul.bf16.gmra.mxu0 %v4936
        %v5011 = vpop.f32.mrf.mxu0
        %v5012 = vadd.f32 0.0, %v5011
        %v5013 = vpop.f32.mrf.mxu0
        %v5014 = vadd.f32 0.0, %v5013
        %5015 = vmatmul.bf16.gmra.mxu0 %v4939
        %v5016 = vpop.f32.mrf.mxu0
        %v5017 = vadd.f32 0.0, %v5016
        %v5018 = vpop.f32.mrf.mxu0
        %v5019 = vadd.f32 0.0, %v5018
        %5020 = vmatmul.bf16.gmra.mxu0 %v4942
        %v5021 = vpop.f32.mrf.mxu0
        %v5022 = vadd.f32 0.0, %v5021
        %v5023 = vpop.f32.mrf.mxu0
        %v5024 = vadd.f32 0.0, %v5023
        %5025 = vmatmul.bf16.gmra.mxu0 %v4945
        %v5026 = vpop.f32.mrf.mxu0
        %v5027 = vadd.f32 0.0, %v5026
        %v5028 = vpop.f32.mrf.mxu0
        %v5029 = vadd.f32 0.0, %v5028
        %5030 = vmatmul.bf16.gmra.mxu0 %v4948
        %v5031 = vpop.f32.mrf.mxu0
        %v5032 = vadd.f32 0.0, %v5031
        %v5033 = vpop.f32.mrf.mxu0
        %v5034 = vadd.f32 0.0, %v5033
        %5035 = vmatmul.bf16.gmra.mxu0 %v4951
        %v5036 = vpop.f32.mrf.mxu0
        %v5037 = vadd.f32 0.0, %v5036
        %v5038 = vpop.f32.mrf.mxu0
        %v5039 = vadd.f32 0.0, %v5038
        %5040 = vmatmul.bf16.gmra.mxu0 %v4954
        %v5041 = vpop.f32.mrf.mxu0
        %v5042 = vadd.f32 0.0, %v5041
        %v5043 = vpop.f32.mrf.mxu0
        %v5044 = vadd.f32 0.0, %v5043
        %5045 = vmatmul.bf16.gmra.mxu0 %v4957
        %v5046 = vpop.f32.mrf.mxu0
        %v5047 = vadd.f32 0.0, %v5046
        %v5048 = vpop.f32.mrf.mxu0
        %v5049 = vadd.f32 0.0, %v5048
        %5050 = vdwg.mxu0
        %v5051 = vadd.f32 %v4653, %v4972
        %v5052 = vadd.f32 %v4654, %v4974
        %v5053 = vadd.f32 %v4655, %v4977
        %v5054 = vadd.f32 %v4656, %v4979
        %v5055 = vadd.f32 %v4657, %v4982
        %v5056 = vadd.f32 %v4658, %v4984
        %v5057 = vadd.f32 %v4659, %v4987
        %v5058 = vadd.f32 %v4660, %v4989
        %v5059 = vadd.f32 %v4661, %v4992
        %v5060 = vadd.f32 %v4662, %v4994
        %v5061 = vadd.f32 %v4663, %v4997
        %v5062 = vadd.f32 %v4664, %v4999
        %v5063 = vadd.f32 %v4665, %v5002
        %v5064 = vadd.f32 %v4666, %v5004
        %v5065 = vadd.f32 %v4667, %v5007
        %v5066 = vadd.f32 %v4668, %v5009
        %v5067 = vadd.f32 %v4669, %v5012
        %v5068 = vadd.f32 %v4670, %v5014
        %v5069 = vadd.f32 %v4671, %v5017
        %v5070 = vadd.f32 %v4672, %v5019
        %v5071 = vadd.f32 %v4673, %v5022
        %v5072 = vadd.f32 %v4674, %v5024
        %v5073 = vadd.f32 %v4675, %v5027
        %v5074 = vadd.f32 %v4676, %v5029
        %v5075 = vadd.f32 %v4677, %v5032
        %v5076 = vadd.f32 %v4678, %v5034
        %v5077 = vadd.f32 %v4679, %v5037
        %v5078 = vadd.f32 %v4680, %v5039
        %v5079 = vadd.f32 %v4681, %v5042
        %v5080 = vadd.f32 %v4682, %v5044
        %v5081 = vadd.f32 %v4683, %v5047
        %v5082 = vadd.f32 %v4684, %v5049
        %v5083 = vld [vmem:[%s4] sm:$0x1]
        %v5085 = vperm.slane %v5083, 0
        %v5087 = vadd.f32 %v5051, %v5085
        %v5088 = vadd.f32 %v5052, %v5085
        %v5089 = vadd.f32 %v5053, %v5085
        %v5090 = vadd.f32 %v5054, %v5085
        %v5091 = vadd.f32 %v5055, %v5085
        %v5092 = vadd.f32 %v5056, %v5085
        %v5093 = vadd.f32 %v5057, %v5085
        %v5094 = vadd.f32 %v5058, %v5085
        %v5095 = vadd.f32 %v5059, %v5085
        %v5096 = vadd.f32 %v5060, %v5085
        %v5097 = vadd.f32 %v5061, %v5085
        %v5098 = vadd.f32 %v5062, %v5085
        %v5099 = vadd.f32 %v5063, %v5085
        %v5100 = vadd.f32 %v5064, %v5085
        %v5101 = vadd.f32 %v5065, %v5085
        %v5102 = vadd.f32 %v5066, %v5085
        %v5103 = vadd.f32 %v5067, %v5085
        %v5104 = vadd.f32 %v5068, %v5085
        %v5105 = vadd.f32 %v5069, %v5085
        %v5106 = vadd.f32 %v5070, %v5085
        %v5107 = vadd.f32 %v5071, %v5085
        %v5108 = vadd.f32 %v5072, %v5085
        %v5109 = vadd.f32 %v5073, %v5085
        %v5110 = vadd.f32 %v5074, %v5085
        %v5111 = vadd.f32 %v5075, %v5085
        %v5112 = vadd.f32 %v5076, %v5085
        %v5113 = vadd.f32 %v5077, %v5085
        %v5114 = vadd.f32 %v5078, %v5085
        %v5115 = vadd.f32 %v5079, %v5085
        %v5116 = vadd.f32 %v5080, %v5085
        %v5117 = vadd.f32 %v5081, %v5085
        %v5118 = vadd.f32 %v5082, %v5085
        %v5119 = vmax.f32 %v5087, 0.0
        %v5120 = vmax.f32 %v5088, 0.0
        %v5121 = vmax.f32 %v5089, 0.0
        %v5122 = vmax.f32 %v5090, 0.0
        %v5123 = vmax.f32 %v5091, 0.0
        %v5124 = vmax.f32 %v5092, 0.0
        %v5125 = vmax.f32 %v5093, 0.0
        %v5126 = vmax.f32 %v5094, 0.0
        %v5127 = vmax.f32 %v5095, 0.0
        %v5128 = vmax.f32 %v5096, 0.0
        %v5129 = vmax.f32 %v5097, 0.0
        %v5130 = vmax.f32 %v5098, 0.0
        %v5131 = vmax.f32 %v5099, 0.0
        %v5132 = vmax.f32 %v5100, 0.0
        %v5133 = vmax.f32 %v5101, 0.0
        %v5134 = vmax.f32 %v5102, 0.0
        %v5135 = vmax.f32 %v5103, 0.0
        %v5136 = vmax.f32 %v5104, 0.0
        %v5137 = vmax.f32 %v5105, 0.0
        %v5138 = vmax.f32 %v5106, 0.0
        %v5139 = vmax.f32 %v5107, 0.0
        %v5140 = vmax.f32 %v5108, 0.0
        %v5141 = vmax.f32 %v5109, 0.0
        %v5142 = vmax.f32 %v5110, 0.0
        %v5143 = vmax.f32 %v5111, 0.0
        %v5144 = vmax.f32 %v5112, 0.0
        %v5145 = vmax.f32 %v5113, 0.0
        %v5146 = vmax.f32 %v5114, 0.0
        %v5147 = vmax.f32 %v5115, 0.0
        %v5148 = vmax.f32 %v5116, 0.0
        %v5149 = vmax.f32 %v5117, 0.0
        %v5150 = vmax.f32 %v5118, 0.0
        %v5151 = vpack.c.bf16 %v5120, %v5119
        %v5152 = vpack.c.bf16 %v5122, %v5121
        %v5153 = vpack.c.bf16 %v5124, %v5123
        %v5154 = vpack.c.bf16 %v5126, %v5125
        %v5155 = vpack.c.bf16 %v5128, %v5127
        %v5156 = vpack.c.bf16 %v5130, %v5129
        %v5157 = vpack.c.bf16 %v5132, %v5131
        %v5158 = vpack.c.bf16 %v5134, %v5133
        %v5159 = vpack.c.bf16 %v5136, %v5135
        %v5160 = vpack.c.bf16 %v5138, %v5137
        %v5161 = vpack.c.bf16 %v5140, %v5139
        %v5162 = vpack.c.bf16 %v5142, %v5141
        %v5163 = vpack.c.bf16 %v5144, %v5143
        %v5164 = vpack.c.bf16 %v5146, %v5145
        %v5165 = vpack.c.bf16 %v5148, %v5147
        %v5166 = vpack.c.bf16 %v5150, %v5149
        %v5167 = vld [vmem:[%s5] sm:$0x3]
        %v5168 = vld [vmem:[%s6] sm:$0x1]
        %v5170 = vperm.slane %v5168, 0
        %v5173 = vsel %vm1659, %v5151, 0
        %v5176 = vsel %vm1659, %v5152, 0
        %v5179 = vsel %vm1659, %v5153, 0
        %v5182 = vsel %vm1659, %v5154, 0
        %v5185 = vsel %vm1659, %v5155, 0
        %v5188 = vsel %vm1659, %v5156, 0
        %v5191 = vsel %vm1659, %v5157, 0
        %v5194 = vsel %vm1659, %v5158, 0
        %v5197 = vsel %vm1659, %v5159, 0
        %v5200 = vsel %vm1659, %v5160, 0
        %v5203 = vsel %vm1659, %v5161, 0
        %v5206 = vsel %vm1659, %v5162, 0
        %v5209 = vsel %vm1659, %v5163, 0
        %v5212 = vsel %vm1659, %v5164, 0
        %v5215 = vsel %vm1659, %v5165, 0
        %v5218 = vsel %vm1659, %v5166, 0
        %v5221 = vsel %vm1708, %v5167, 0
        %5223 = vmatpush.bf16.msra.mxu0 0
        %5224 = vmatpush.bf16.msra.mxu0 0
        %5225 = vmatpush.bf16.msra.mxu0 0
        %5226 = vmatpush.bf16.msra.mxu0 0
        %5227 = vmatpush.bf16.msra.mxu0 0
        %5228 = vmatpush.bf16.msra.mxu0 0
        %5229 = vmatpush.bf16.msra.mxu0 0
        %5230 = vmatpush.bf16.msra.mxu0 %v5221
        %5231 = vmatmul.bf16.gmra.mxu0 %v5173
        %v5232 = vpop.f32.mrf.mxu0
        %v5233 = vadd.f32 %v5170, %v5232
        %v5234 = vpop.f32.mrf.mxu0
        %v5235 = vadd.f32 %v5170, %v5234
        %5236 = vmatmul.bf16.gmra.mxu0 %v5176
        %v5237 = vpop.f32.mrf.mxu0
        %v5238 = vadd.f32 %v5170, %v5237
        %v5239 = vpop.f32.mrf.mxu0
        %v5240 = vadd.f32 %v5170, %v5239
        %5241 = vmatmul.bf16.gmra.mxu0 %v5179
        %v5242 = vpop.f32.mrf.mxu0
        %v5243 = vadd.f32 %v5170, %v5242
        %v5244 = vpop.f32.mrf.mxu0
        %v5245 = vadd.f32 %v5170, %v5244
        %5246 = vmatmul.bf16.gmra.mxu0 %v5182
        %v5247 = vpop.f32.mrf.mxu0
        %v5248 = vadd.f32 %v5170, %v5247
        %v5249 = vpop.f32.mrf.mxu0
        %v5250 = vadd.f32 %v5170, %v5249
        %5251 = vmatmul.bf16.gmra.mxu0 %v5185
        %v5252 = vpop.f32.mrf.mxu0
        %v5253 = vadd.f32 %v5170, %v5252
        %v5254 = vpop.f32.mrf.mxu0
        %v5255 = vadd.f32 %v5170, %v5254
        %5256 = vmatmul.bf16.gmra.mxu0 %v5188
        %v5257 = vpop.f32.mrf.mxu0
        %v5258 = vadd.f32 %v5170, %v5257
        %v5259 = vpop.f32.mrf.mxu0
        %v5260 = vadd.f32 %v5170, %v5259
        %5261 = vmatmul.bf16.gmra.mxu0 %v5191
        %v5262 = vpop.f32.mrf.mxu0
        %v5263 = vadd.f32 %v5170, %v5262
        %v5264 = vpop.f32.mrf.mxu0
        %v5265 = vadd.f32 %v5170, %v5264
        %5266 = vmatmul.bf16.gmra.mxu0 %v5194
        %v5267 = vpop.f32.mrf.mxu0
        %v5268 = vadd.f32 %v5170, %v5267
        %v5269 = vpop.f32.mrf.mxu0
        %v5270 = vadd.f32 %v5170, %v5269
        %5271 = vmatmul.bf16.gmra.mxu0 %v5197
        %v5272 = vpop.f32.mrf.mxu0
        %v5273 = vadd.f32 %v5170, %v5272
        %v5274 = vpop.f32.mrf.mxu0
        %v5275 = vadd.f32 %v5170, %v5274
        %5276 = vmatmul.bf16.gmra.mxu0 %v5200
        %v5277 = vpop.f32.mrf.mxu0
        %v5278 = vadd.f32 %v5170, %v5277
        %v5279 = vpop.f32.mrf.mxu0
        %v5280 = vadd.f32 %v5170, %v5279
        %5281 = vmatmul.bf16.gmra.mxu0 %v5203
        %v5282 = vpop.f32.mrf.mxu0
        %v5283 = vadd.f32 %v5170, %v5282
        %v5284 = vpop.f32.mrf.mxu0
        %v5285 = vadd.f32 %v5170, %v5284
        %5286 = vmatmul.bf16.gmra.mxu0 %v5206
        %v5287 = vpop.f32.mrf.mxu0
        %v5288 = vadd.f32 %v5170, %v5287
        %v5289 = vpop.f32.mrf.mxu0
        %v5290 = vadd.f32 %v5170, %v5289
        %5291 = vmatmul.bf16.gmra.mxu0 %v5209
        %v5292 = vpop.f32.mrf.mxu0
        %v5293 = vadd.f32 %v5170, %v5292
        %v5294 = vpop.f32.mrf.mxu0
        %v5295 = vadd.f32 %v5170, %v5294
        %5296 = vmatmul.bf16.gmra.mxu0 %v5212
        %v5297 = vpop.f32.mrf.mxu0
        %v5298 = vadd.f32 %v5170, %v5297
        %v5299 = vpop.f32.mrf.mxu0
        %v5300 = vadd.f32 %v5170, %v5299
        %5301 = vmatmul.bf16.gmra.mxu0 %v5215
        %v5302 = vpop.f32.mrf.mxu0
        %v5303 = vadd.f32 %v5170, %v5302
        %v5304 = vpop.f32.mrf.mxu0
        %v5305 = vadd.f32 %v5170, %v5304
        %5306 = vmatmul.bf16.gmra.mxu0 %v5218
        %v5307 = vpop.f32.mrf.mxu0
        %v5308 = vadd.f32 %v5170, %v5307
        %v5309 = vpop.f32.mrf.mxu0
        %v5310 = vadd.f32 %v5170, %v5309
        %5311 = vdwg.mxu0
        %v5312 = vld [vmem:[%s267] sm:$0xf]
        %v5313 = vld [vmem:[%s267 + $0x4] sm:$0xf]
        %v5314 = vld [vmem:[%s267 + $0x8] sm:$0xf]
        %v5315 = vld [vmem:[%s267 + $0xc] sm:$0xf]
        %v5316 = vld [vmem:[%s267 + $0x10] sm:$0xf]
        %v5317 = vld [vmem:[%s267 + $0x14] sm:$0xf]
        %v5318 = vld [vmem:[%s267 + $0x18] sm:$0xf]
        %v5319 = vld [vmem:[%s267 + $0x1c] sm:$0xf]
        %v5320 = vld [vmem:[%s267 + $0x20] sm:$0xf]
        %v5321 = vld [vmem:[%s267 + $0x24] sm:$0xf]
        %v5322 = vld [vmem:[%s267 + $0x28] sm:$0xf]
        %v5323 = vld [vmem:[%s267 + $0x2c] sm:$0xf]
        %v5324 = vld [vmem:[%s267 + $0x30] sm:$0xf]
        %v5325 = vld [vmem:[%s267 + $0x34] sm:$0xf]
        %v5326 = vld [vmem:[%s267 + $0x38] sm:$0xf]
        %v5327 = vld [vmem:[%s267 + $0x3c] sm:$0xf]
        %v5328 = vld [vmem:[%s267 + $0x40] sm:$0xf]
        %v5329 = vld [vmem:[%s267 + $0x44] sm:$0xf]
        %v5330 = vld [vmem:[%s267 + $0x48] sm:$0xf]
        %v5331 = vld [vmem:[%s267 + $0x4c] sm:$0xf]
        %v5332 = vld [vmem:[%s267 + $0x50] sm:$0xf]
        %v5333 = vld [vmem:[%s267 + $0x54] sm:$0xf]
        %v5334 = vld [vmem:[%s267 + $0x58] sm:$0xf]
        %v5335 = vld [vmem:[%s267 + $0x5c] sm:$0xf]
        %v5336 = vld [vmem:[%s267 + $0x60] sm:$0xf]
        %v5337 = vld [vmem:[%s267 + $0x64] sm:$0xf]
        %v5338 = vld [vmem:[%s267 + $0x68] sm:$0xf]
        %v5339 = vld [vmem:[%s267 + $0x6c] sm:$0xf]
        %v5340 = vld [vmem:[%s267 + $0x70] sm:$0xf]
        %v5341 = vld [vmem:[%s267 + $0x74] sm:$0xf]
        %v5342 = vld [vmem:[%s267 + $0x78] sm:$0xf]
        %v5343 = vld [vmem:[%s267 + $0x7c] sm:$0xf]
        %v5344 = vunpack.c.l.bf16 %v5312
        %v5345 = vunpack.c.l.bf16 %v5313
        %v5346 = vunpack.c.l.bf16 %v5314
        %v5347 = vunpack.c.l.bf16 %v5315
        %v5348 = vunpack.c.l.bf16 %v5316
        %v5349 = vunpack.c.l.bf16 %v5317
        %v5350 = vunpack.c.l.bf16 %v5318
        %v5351 = vunpack.c.l.bf16 %v5319
        %v5352 = vunpack.c.l.bf16 %v5320
        %v5353 = vunpack.c.l.bf16 %v5321
        %v5354 = vunpack.c.l.bf16 %v5322
        %v5355 = vunpack.c.l.bf16 %v5323
        %v5356 = vunpack.c.l.bf16 %v5324
        %v5357 = vunpack.c.l.bf16 %v5325
        %v5358 = vunpack.c.l.bf16 %v5326
        %v5359 = vunpack.c.l.bf16 %v5327
        %v5360 = vunpack.c.l.bf16 %v5328
        %v5361 = vunpack.c.l.bf16 %v5329
        %v5362 = vunpack.c.l.bf16 %v5330
        %v5363 = vunpack.c.l.bf16 %v5331
        %v5364 = vunpack.c.l.bf16 %v5332
        %v5365 = vunpack.c.l.bf16 %v5333
        %v5366 = vunpack.c.l.bf16 %v5334
        %v5367 = vunpack.c.l.bf16 %v5335
        %v5368 = vunpack.c.l.bf16 %v5336
        %v5369 = vunpack.c.l.bf16 %v5337
        %v5370 = vunpack.c.l.bf16 %v5338
        %v5371 = vunpack.c.l.bf16 %v5339
        %v5372 = vunpack.c.l.bf16 %v5340
        %v5373 = vunpack.c.l.bf16 %v5341
        %v5374 = vunpack.c.l.bf16 %v5342
        %v5375 = vunpack.c.l.bf16 %v5343
        %v5376 = vadd.f32 %v5233, %v5344
        %v5377 = vadd.f32 %v5235, %v5345
        %v5378 = vadd.f32 %v5238, %v5346
        %v5379 = vadd.f32 %v5240, %v5347
        %v5380 = vadd.f32 %v5243, %v5348
        %v5381 = vadd.f32 %v5245, %v5349
        %v5382 = vadd.f32 %v5248, %v5350
        %v5383 = vadd.f32 %v5250, %v5351
        %v5384 = vadd.f32 %v5253, %v5352
        %v5385 = vadd.f32 %v5255, %v5353
        %v5386 = vadd.f32 %v5258, %v5354
        %v5387 = vadd.f32 %v5260, %v5355
        %v5388 = vadd.f32 %v5263, %v5356
        %v5389 = vadd.f32 %v5265, %v5357
        %v5390 = vadd.f32 %v5268, %v5358
        %v5391 = vadd.f32 %v5270, %v5359
        %v5392 = vadd.f32 %v5273, %v5360
        %v5393 = vadd.f32 %v5275, %v5361
        %v5394 = vadd.f32 %v5278, %v5362
        %v5395 = vadd.f32 %v5280, %v5363
        %v5396 = vadd.f32 %v5283, %v5364
        %v5397 = vadd.f32 %v5285, %v5365
        %v5398 = vadd.f32 %v5288, %v5366
        %v5399 = vadd.f32 %v5290, %v5367
        %v5400 = vadd.f32 %v5293, %v5368
        %v5401 = vadd.f32 %v5295, %v5369
        %v5402 = vadd.f32 %v5298, %v5370
        %v5403 = vadd.f32 %v5300, %v5371
        %v5404 = vadd.f32 %v5303, %v5372
        %v5405 = vadd.f32 %v5305, %v5373
        %v5406 = vadd.f32 %v5308, %v5374
        %v5407 = vadd.f32 %v5310, %v5375
        %v5408 = vmax.f32 %v5376, 0.0
        %v5409 = vmax.f32 %v5377, 0.0
        %v5410 = vmax.f32 %v5378, 0.0
        %v5411 = vmax.f32 %v5379, 0.0
        %v5412 = vmax.f32 %v5380, 0.0
        %v5413 = vmax.f32 %v5381, 0.0
        %v5414 = vmax.f32 %v5382, 0.0
        %v5415 = vmax.f32 %v5383, 0.0
        %v5416 = vmax.f32 %v5384, 0.0
        %v5417 = vmax.f32 %v5385, 0.0
        %v5418 = vmax.f32 %v5386, 0.0
        %v5419 = vmax.f32 %v5387, 0.0
        %v5420 = vmax.f32 %v5388, 0.0
        %v5421 = vmax.f32 %v5389, 0.0
        %v5422 = vmax.f32 %v5390, 0.0
        %v5423 = vmax.f32 %v5391, 0.0
        %v5424 = vmax.f32 %v5392, 0.0
        %v5425 = vmax.f32 %v5393, 0.0
        %v5426 = vmax.f32 %v5394, 0.0
        %v5427 = vmax.f32 %v5395, 0.0
        %v5428 = vmax.f32 %v5396, 0.0
        %v5429 = vmax.f32 %v5397, 0.0
        %v5430 = vmax.f32 %v5398, 0.0
        %v5431 = vmax.f32 %v5399, 0.0
        %v5432 = vmax.f32 %v5400, 0.0
        %v5433 = vmax.f32 %v5401, 0.0
        %v5434 = vmax.f32 %v5402, 0.0
        %v5435 = vmax.f32 %v5403, 0.0
        %v5436 = vmax.f32 %v5404, 0.0
        %v5437 = vmax.f32 %v5405, 0.0
        %v5438 = vmax.f32 %v5406, 0.0
        %v5439 = vmax.f32 %v5407, 0.0
        %v5440 = vpack.c.bf16 %v5408, %v5408
        %v5441 = vpack.c.bf16 %v5409, %v5409
        %v5442 = vpack.c.bf16 %v5410, %v5410
        %v5443 = vpack.c.bf16 %v5411, %v5411
        %v5444 = vpack.c.bf16 %v5412, %v5412
        %v5445 = vpack.c.bf16 %v5413, %v5413
        %v5446 = vpack.c.bf16 %v5414, %v5414
        %v5447 = vpack.c.bf16 %v5415, %v5415
        %v5448 = vpack.c.bf16 %v5416, %v5416
        %v5449 = vpack.c.bf16 %v5417, %v5417
        %v5450 = vpack.c.bf16 %v5418, %v5418
        %v5451 = vpack.c.bf16 %v5419, %v5419
        %v5452 = vpack.c.bf16 %v5420, %v5420
        %v5453 = vpack.c.bf16 %v5421, %v5421
        %v5454 = vpack.c.bf16 %v5422, %v5422
        %v5455 = vpack.c.bf16 %v5423, %v5423
        %v5456 = vpack.c.bf16 %v5424, %v5424
        %v5457 = vpack.c.bf16 %v5425, %v5425
        %v5458 = vpack.c.bf16 %v5426, %v5426
        %v5459 = vpack.c.bf16 %v5427, %v5427
        %v5460 = vpack.c.bf16 %v5428, %v5428
        %v5461 = vpack.c.bf16 %v5429, %v5429
        %v5462 = vpack.c.bf16 %v5430, %v5430
        %v5463 = vpack.c.bf16 %v5431, %v5431
        %v5464 = vpack.c.bf16 %v5432, %v5432
        %v5465 = vpack.c.bf16 %v5433, %v5433
        %v5466 = vpack.c.bf16 %v5434, %v5434
        %v5467 = vpack.c.bf16 %v5435, %v5435
        %v5468 = vpack.c.bf16 %v5436, %v5436
        %v5469 = vpack.c.bf16 %v5437, %v5437
        %v5470 = vpack.c.bf16 %v5438, %v5438
        %v5471 = vpack.c.bf16 %v5439, %v5439
        %vm5472 = vcmask 125952
        %5473 = vst.msk [vmem:[%s298] sm:$0xf] %vm5472, %v5440
        %5474 = vst.msk [vmem:[%s298 + $0x4] sm:$0xf] %vm5472, %v5441
        %5475 = vst.msk [vmem:[%s298 + $0x8] sm:$0xf] %vm5472, %v5442
        %5476 = vst.msk [vmem:[%s298 + $0xc] sm:$0xf] %vm5472, %v5443
        %5477 = vst.msk [vmem:[%s298 + $0x10] sm:$0xf] %vm5472, %v5444
        %5478 = vst.msk [vmem:[%s298 + $0x14] sm:$0xf] %vm5472, %v5445
        %5479 = vst.msk [vmem:[%s298 + $0x18] sm:$0xf] %vm5472, %v5446
        %5480 = vst.msk [vmem:[%s298 + $0x1c] sm:$0xf] %vm5472, %v5447
        %5481 = vst.msk [vmem:[%s298 + $0x20] sm:$0xf] %vm5472, %v5448
        %5482 = vst.msk [vmem:[%s298 + $0x24] sm:$0xf] %vm5472, %v5449
        %5483 = vst.msk [vmem:[%s298 + $0x28] sm:$0xf] %vm5472, %v5450
        %5484 = vst.msk [vmem:[%s298 + $0x2c] sm:$0xf] %vm5472, %v5451
        %5485 = vst.msk [vmem:[%s298 + $0x30] sm:$0xf] %vm5472, %v5452
        %5486 = vst.msk [vmem:[%s298 + $0x34] sm:$0xf] %vm5472, %v5453
        %5487 = vst.msk [vmem:[%s298 + $0x38] sm:$0xf] %vm5472, %v5454
        %5488 = vst.msk [vmem:[%s298 + $0x3c] sm:$0xf] %vm5472, %v5455
        %5489 = vst.msk [vmem:[%s298 + $0x40] sm:$0xf] %vm5472, %v5456
        %5490 = vst.msk [vmem:[%s298 + $0x44] sm:$0xf] %vm5472, %v5457
        %5491 = vst.msk [vmem:[%s298 + $0x48] sm:$0xf] %vm5472, %v5458
        %5492 = vst.msk [vmem:[%s298 + $0x4c] sm:$0xf] %vm5472, %v5459
        %5493 = vst.msk [vmem:[%s298 + $0x50] sm:$0xf] %vm5472, %v5460
        %5494 = vst.msk [vmem:[%s298 + $0x54] sm:$0xf] %vm5472, %v5461
        %5495 = vst.msk [vmem:[%s298 + $0x58] sm:$0xf] %vm5472, %v5462
        %5496 = vst.msk [vmem:[%s298 + $0x5c] sm:$0xf] %vm5472, %v5463
        %5497 = vst.msk [vmem:[%s298 + $0x60] sm:$0xf] %vm5472, %v5464
        %5498 = vst.msk [vmem:[%s298 + $0x64] sm:$0xf] %vm5472, %v5465
        %5499 = vst.msk [vmem:[%s298 + $0x68] sm:$0xf] %vm5472, %v5466
        %5500 = vst.msk [vmem:[%s298 + $0x6c] sm:$0xf] %vm5472, %v5467
        %5501 = vst.msk [vmem:[%s298 + $0x70] sm:$0xf] %vm5472, %v5468
        %5502 = vst.msk [vmem:[%s298 + $0x74] sm:$0xf] %vm5472, %v5469
        %5503 = vst.msk [vmem:[%s298 + $0x78] sm:$0xf] %vm5472, %v5470
        %5504 = vst.msk [vmem:[%s298 + $0x7c] sm:$0xf] %vm5472, %v5471
        %s5505 = sand.u32 %s184, 1
        %s5506 = scalar_lea.sflag [#allocation5], %s5505
        %s5507 = sand.u32 %s184, 1
        %s5508 = smul.addr %s5507, 128
        %s5509 = scalar_lea.vmem [#allocation6], %s5508
        // Predicated region
        $region53: #{tpu_custom_call.1} parent=47 // pred_check
          %p5510 = pneg %p194
        $region54: #{tpu_custom_call.1} parent=47 // pred_check_branch
          %5512 = sbr.rel (%p5510) target = $region56
        $region55: #{tpu_custom_call.1} parent=47 // pred_region
          %5514 = vsyncadd %s5506, 0
          %s5515 = smul.addr %s24, 32
          %s5516 = smul.addr %s5515, 4
          %s5517 = scalar_lea.hbm %s7, %s5516
          %s5518 = sshll.u32 %s5509, 4
          %s5519 = int_to_ptr.vmem [resolvable:$true] %s5518
          %s5520 = sshll.u32 %s5517, 4
          %s5521 = int_to_ptr.hbm [resolvable:$true] %s5520
          %5526 = dma.vmem_to_hbm [thread:$0]  %s5519, 2048, %s5521, %s5506, 64, 64, 4
        $region56: #{tpu_custom_call.1} parent=47 // pred_fallthru
          _
      $region48: #{tpu_custom_call.1} parent=5 // pred_fallthru
        _
      %p5527 = scmp.le.s32.totalorder 2, %s19
      // Predicated region
      $region57: #{tpu_custom_call.1} parent=5 // pred_check
        %p5528 = pneg %p5527
      $region58: #{tpu_custom_call.1} parent=5 // pred_check_branch
        %5530 = sbr.rel (%p5528) target = $region60
      $region59: #{tpu_custom_call.1} parent=5 // pred_region
        %s5531 = ssub.s32 %s19, 2
        // Predicated region
        $region61: #{tpu_custom_call.1} parent=59 // pred_check
          %p5532 = pneg %p200
        $region62: #{tpu_custom_call.1} parent=59 // pred_check_branch
          %5534 = sbr.rel (%p5532) target = $region64
        $region63: #{tpu_custom_call.1} parent=59 // pred_region
          %s5535 = sand.u32 %s185, 1
          %s5536 = scalar_lea.sflag [#allocation5], %s5535
          %s5537 = sand.u32 %s185, 1
          %s5538 = smul.addr %s5537, 128
          %s5539 = scalar_lea.vmem [#allocation6], %s5538
          %5541 = dma.done %s5536, 2048
        $region64: #{tpu_custom_call.1} parent=59 // pred_fallthru
          _
      $region60: #{tpu_custom_call.1} parent=5 // pred_fallthru
        _
    $region6: #{tpu_custom_call.1} parent=1 // loop_footer
      %s23 = sadd.s32 1, %s19
    $region7: #{tpu_custom_call.1} parent=1 // loop_footer_branch
      %18 = sbr.rel target = $region3
    $region8: #{tpu_custom_call.1} parent=1 // loop_exit
      _
    %5542 = vsyncpa [#allocation4], 1
    %s5543 = scalar_lea.sflag [#allocation4], 1
    %5544 = vsyncpa %s5543, 1
    %5545 = vsyncpa [#allocation5], 1
    %s5546 = scalar_lea.sflag [#allocation5], 1
    %5547 = vsyncpa %s5546, 1

// kernel: tpu_custom_call.1
$region0: #{tpu_custom_call.1}
  #allocation0 [shape = 'u32[]', space=smem, size = 0x4, offset = 0x4, fixed_abs, tag = 'smem constant byte address 0x4 - core index']
  #allocation1 [shape = 'u32[72,128]{1,0:T(1,128)}', space=vmem, size = 0x9000, scoped, tag = 'internal scratch']
  #allocation2 [shape = 'bf16[18,18,4]{2,1,0:T(8,128)(2,1)}', space=vmem, size = 0x1b000, scoped, tag = 'scratch operand']
  %s0 = inlined_call_operand.hbm [shape: bf16[2,16,16,16], index: 0, kind: input, shape index: {}]
  %s1 = inlined_call_operand.vmem [shape: bf16[16,4], index: 1, kind: input, shape index: {}]
  %s2 = inlined_call_operand.vmem [shape: f32[1,4], index: 2, kind: input, shape index: {}]
  %s3 = inlined_call_operand.vmem [shape: bf16[9,4,4], index: 3, kind: input, shape index: {}]
  %s4 = inlined_call_operand.vmem [shape: f32[1,4], index: 4, kind: input, shape index: {}]
  %s5 = inlined_call_operand.vmem [shape: bf16[4,16], index: 5, kind: input, shape index: {}]
  %s6 = inlined_call_operand.vmem [shape: f32[1,16], index: 6, kind: input, shape index: {}]
  %s7 = inlined_call_operand.hbm [shape: bf16[2,16,16,16], index: 7, kind: output, shape index: {}]
  %s8 = sld [smem:[#allocation0]]
  $region65: #{tpu_custom_call.1} parent=0
    _
  %s10 = ssub.s32 1, %s8
  %s11 = scalar_select 0, %s10, %s8
  $region1: #{tpu_custom_call.1} parent=0
    #allocation3 [shape = 'u8[131072]{0}', space=vmem, size = 0x20000, scoped, tag = 'input window, operand 0']
    #allocation4 [shape = 's32[2]{0}', space=sflag, size = 0x8, scoped, tag = 'scoped memory for tpu_custom_call.1']
    #allocation5 [shape = 's32[2]{0}', space=sflag, size = 0x8, scoped, tag = 'scoped memory for tpu_custom_call.1']
    #allocation6 [shape = 'u8[131072]{0}', space=vmem, size = 0x20000, scoped, tag = 'output window, operand 0']
    %12 = vsyncpa [#allocation4], 0
    %s13 = scalar_lea.sflag [#allocation4], 1
    %14 = vsyncpa %s13, 0
    %15 = vsyncpa [#allocation5], 0
    %s16 = scalar_lea.sflag [#allocation5], 1
    %17 = vsyncpa %s16, 0
    loop: start=0, step=1, limit=4
    $region2: #{tpu_custom_call.1} parent=1 // loop_pre_header
      _
    $region3: #{tpu_custom_call.1} parent=1 // loop_header
      %s19 = sphi 0, %s23
      %p20 = scmp.ge.s32.totalorder %s19, 4
      %s29 = sphi 0, %s31
      %s32 = sphi 0, %s29
      %s33 = sphi 0, %s32
      %s49 = sphi 0, %s33
      %s53 = sphi 0, %s53
      %s55 = sphi 0, %s53
      %s56 = sphi 0, %s55
      %s70 = sphi 0, %s56
      %s74 = sphi 0, %s74
      %s76 = sphi 0, %s74
      %s77 = sphi 0, %s76
      %s91 = sphi 0, %s77
      %s95 = sphi 0, %s95
      %s97 = sphi 0, %s95
      %s98 = sphi 0, %s97
      %s112 = sphi 0, %s98
      %s116 = sphi 0, %s116
      %s118 = sphi 0, %s116
      %s119 = sphi 0, %s118
      %s133 = sphi 0, %s119
      %s137 = sphi 0, %s137
      %s139 = sphi 0, %s137
      %s140 = sphi 0, %s139
      %s154 = sphi 0, %s140
      %s158 = sphi 0, %s158
      %s160 = sphi 0, %s158
      %s161 = sphi 0, %s160
      %s175 = sphi 0, %s161
      %s181 = sphi 0, %s183
      %s184 = sphi 0, %s181
      %s185 = sphi 0, %s184
      %s201 = sphi 0, %s185
    $region4: #{tpu_custom_call.1} parent=1 // loop_header_branch
      %22 = sbr.rel (%p20) target = $region8
    $region5: #{tpu_custom_call.1} parent=1 // loop_body
      %s24 = ssub.s32 %s19, 1
      %s25 = ssub.s32 %s19, 2
      %s26 = sadd.s32 %s19, 1
      %s27 = ssub.s32 %s19, %s26
      %p28 = scmp.eq.s32.totalorder %s27, 0
      %s30 = sadd.s32 %s29, 1
      %s31 = scalar_select %p28, %s29, %s30
      %p34 = pneg %p28
      %p35 = scmp.eq.s32.totalorder %s19, 1
      %p36 = por %p34, %p35
      %p37 = scmp.ne.s32.totalorder %s29, %s32
      %p38 = scmp.eq.s32.totalorder %s19, 0
      %p39 = por %p37, %p38
      %p40 = scmp.ne.s32.totalorder %s29, %s32
      %p41 = scmp.eq.s32.totalorder %s24, 1
      %p42 = por %p40, %p41
      %p43 = scmp.ne.s32.totalorder %s32, %s33
      %p44 = scmp.eq.s32.totalorder %s24, 0
      %p45 = por %p43, %p44
      %p46 = scmp.ne.s32.totalorder %s32, %s33
      %p47 = scmp.eq.s32.totalorder %s25, 1
      %p48 = por %p46, %p47
      %p50 = scmp.ne.s32.totalorder %s33, %s49
      %p51 = scmp.eq.s32.totalorder %s25, 0
      %p52 = por %p50, %p51
      %s54 = sadd.s32 %s53, 1
      %p57 = scmp.eq.s32.totalorder %s19, 1
      %p58 = scmp.ne.s32.totalorder %s53, %s55
      %p59 = scmp.eq.s32.totalorder %s19, 0
      %p60 = por %p58, %p59
      %p61 = scmp.ne.s32.totalorder %s53, %s55
      %p62 = scmp.eq.s32.totalorder %s24, 1
      %p63 = por %p61, %p62
      %p64 = scmp.ne.s32.totalorder %s55, %s56
      %p65 = scmp.eq.s32.totalorder %s24, 0
      %p66 = por %p64, %p65
      %p67 = scmp.ne.s32.totalorder %s55, %s56
      %p68 = scmp.eq.s32.totalorder %s25, 1
      %p69 = por %p67, %p68
      %p71 = scmp.ne.s32.totalorder %s56, %s70
      %p72 = scmp.eq.s32.totalorder %s25, 0
      %p73 = por %p71, %p72
      %s75 = sadd.s32 %s74, 1
      %p78 = scmp.eq.s32.totalorder %s19, 1
      %p79 = scmp.ne.s32.totalorder %s74, %s76
      %p80 = scmp.eq.s32.totalorder %s19, 0
      %p81 = por %p79, %p80
      %p82 = scmp.ne.s32.totalorder %s74, %s76
      %p83 = scmp.eq.s32.totalorder %s24, 1
      %p84 = por %p82, %p83
      %p85 = scmp.ne.s32.totalorder %s76, %s77
      %p86 = scmp.eq.s32.totalorder %s24, 0
      %p87 = por %p85, %p86
      %p88 = scmp.ne.s32.totalorder %s76, %s77
      %p89 = scmp.eq.s32.totalorder %s25, 1
      %p90 = por %p88, %p89
      %p92 = scmp.ne.s32.totalorder %s77, %s91
      %p93 = scmp.eq.s32.totalorder %s25, 0
      %p94 = por %p92, %p93
      %s96 = sadd.s32 %s95, 1
      %p99 = scmp.eq.s32.totalorder %s19, 1
      %p100 = scmp.ne.s32.totalorder %s95, %s97
      %p101 = scmp.eq.s32.totalorder %s19, 0
      %p102 = por %p100, %p101
      %p103 = scmp.ne.s32.totalorder %s95, %s97
      %p104 = scmp.eq.s32.totalorder %s24, 1
      %p105 = por %p103, %p104
      %p106 = scmp.ne.s32.totalorder %s97, %s98
      %p107 = scmp.eq.s32.totalorder %s24, 0
      %p108 = por %p106, %p107
      %p109 = scmp.ne.s32.totalorder %s97, %s98
      %p110 = scmp.eq.s32.totalorder %s25, 1
      %p111 = por %p109, %p110
      %p113 = scmp.ne.s32.totalorder %s98, %s112
      %p114 = scmp.eq.s32.totalorder %s25, 0
      %p115 = por %p113, %p114
      %s117 = sadd.s32 %s116, 1
      %p120 = scmp.eq.s32.totalorder %s19, 1
      %p121 = scmp.ne.s32.totalorder %s116, %s118
      %p122 = scmp.eq.s32.totalorder %s19, 0
      %p123 = por %p121, %p122
      %p124 = scmp.ne.s32.totalorder %s116, %s118
      %p125 = scmp.eq.s32.totalorder %s24, 1
      %p126 = por %p124, %p125
      %p127 = scmp.ne.s32.totalorder %s118, %s119
      %p128 = scmp.eq.s32.totalorder %s24, 0
      %p129 = por %p127, %p128
      %p130 = scmp.ne.s32.totalorder %s118, %s119
      %p131 = scmp.eq.s32.totalorder %s25, 1
      %p132 = por %p130, %p131
      %p134 = scmp.ne.s32.totalorder %s119, %s133
      %p135 = scmp.eq.s32.totalorder %s25, 0
      %p136 = por %p134, %p135
      %s138 = sadd.s32 %s137, 1
      %p141 = scmp.eq.s32.totalorder %s19, 1
      %p142 = scmp.ne.s32.totalorder %s137, %s139
      %p143 = scmp.eq.s32.totalorder %s19, 0
      %p144 = por %p142, %p143
      %p145 = scmp.ne.s32.totalorder %s137, %s139
      %p146 = scmp.eq.s32.totalorder %s24, 1
      %p147 = por %p145, %p146
      %p148 = scmp.ne.s32.totalorder %s139, %s140
      %p149 = scmp.eq.s32.totalorder %s24, 0
      %p150 = por %p148, %p149
      %p151 = scmp.ne.s32.totalorder %s139, %s140
      %p152 = scmp.eq.s32.totalorder %s25, 1
      %p153 = por %p151, %p152
      %p155 = scmp.ne.s32.totalorder %s140, %s154
      %p156 = scmp.eq.s32.totalorder %s25, 0
      %p157 = por %p155, %p156
      %s159 = sadd.s32 %s158, 1
      %p162 = scmp.eq.s32.totalorder %s19, 1
      %p163 = scmp.ne.s32.totalorder %s158, %s160
      %p164 = scmp.eq.s32.totalorder %s19, 0
      %p165 = por %p163, %p164
      %p166 = scmp.ne.s32.totalorder %s158, %s160
      %p167 = scmp.eq.s32.totalorder %s24, 1
      %p168 = por %p166, %p167
      %p169 = scmp.ne.s32.totalorder %s160, %s161
      %p170 = scmp.eq.s32.totalorder %s24, 0
      %p171 = por %p169, %p170
      %p172 = scmp.ne.s32.totalorder %s160, %s161
      %p173 = scmp.eq.s32.totalorder %s25, 1
      %p174 = por %p172, %p173
      %p176 = scmp.ne.s32.totalorder %s161, %s175
      %p177 = scmp.eq.s32.totalorder %s25, 0
      %p178 = por %p176, %p177
      %s179 = ssub.s32 %s19, %s26
      %p180 = scmp.eq.s32.totalorder %s179, 0
      %s182 = sadd.s32 %s181, 1
      %s183 = scalar_select %p180, %s181, %s182
      %p186 = pneg %p180
      %p187 = scmp.eq.s32.totalorder %s19, 1
      %p188 = por %p186, %p187
      %p189 = scmp.ne.s32.totalorder %s181, %s184
      %p190 = scmp.eq.s32.totalorder %s19, 0
      %p191 = por %p189, %p190
      %p192 = scmp.ne.s32.totalorder %s181, %s184
      %p193 = scmp.eq.s32.totalorder %s24, 1
      %p194 = por %p192, %p193
      %p195 = scmp.ne.s32.totalorder %s184, %s185
      %p196 = scmp.eq.s32.totalorder %s24, 0
      %p197 = por %p195, %p196
      %p198 = scmp.ne.s32.totalorder %s184, %s185
      %p199 = scmp.eq.s32.totalorder %s25, 1
      %p200 = por %p198, %p199
      %p202 = scmp.ne.s32.totalorder %s185, %s201
      %p203 = scmp.eq.s32.totalorder %s25, 0
      %p204 = por %p202, %p203
      %p205 = scmp.le.s32.totalorder 1, %s19
      %p206 = scmp.lt.s32.totalorder %s19, 3
      %p207 = pnand %p205, %p206
      %p208 = pneg %p207
      // Predicated region
      $region9: #{tpu_custom_call.1} parent=5 // pred_check
        _
      $region10: #{tpu_custom_call.1} parent=5 // pred_check_branch
        %210 = sbr.rel (%p207) target = $region12
      $region11: #{tpu_custom_call.1} parent=5 // pred_region
        %s211 = ssub.s32 %s19, 1
        // Predicated region
        $region13: #{tpu_custom_call.1} parent=11 // pred_check
          %p212 = pneg %p66
        $region14: #{tpu_custom_call.1} parent=11 // pred_check_branch
          %214 = sbr.rel (%p212) target = $region16
        $region15: #{tpu_custom_call.1} parent=11 // pred_region
          _
        $region16: #{tpu_custom_call.1} parent=11 // pred_fallthru
          _
        // Predicated region
        $region17: #{tpu_custom_call.1} parent=11 // pred_check
          %p215 = pneg %p87
        $region18: #{tpu_custom_call.1} parent=11 // pred_check_branch
          %217 = sbr.rel (%p215) target = $region20
        $region19: #{tpu_custom_call.1} parent=11 // pred_region
          _
        $region20: #{tpu_custom_call.1} parent=11 // pred_fallthru
          _
        // Predicated region
        $region21: #{tpu_custom_call.1} parent=11 // pred_check
          %p218 = pneg %p108
        $region22: #{tpu_custom_call.1} parent=11 // pred_check_branch
          %220 = sbr.rel (%p218) target = $region24
        $region23: #{tpu_custom_call.1} parent=11 // pred_region
          _
        $region24: #{tpu_custom_call.1} parent=11 // pred_fallthru
          _
        // Predicated region
        $region25: #{tpu_custom_call.1} parent=11 // pred_check
          %p221 = pneg %p129
        $region26: #{tpu_custom_call.1} parent=11 // pred_check_branch
          %223 = sbr.rel (%p221) target = $region28
        $region27: #{tpu_custom_call.1} parent=11 // pred_region
          _
        $region28: #{tpu_custom_call.1} parent=11 // pred_fallthru
          _
        // Predicated region
        $region29: #{tpu_custom_call.1} parent=11 // pred_check
          %p224 = pneg %p150
        $region30: #{tpu_custom_call.1} parent=11 // pred_check_branch
          %226 = sbr.rel (%p224) target = $region32
        $region31: #{tpu_custom_call.1} parent=11 // pred_region
          _
        $region32: #{tpu_custom_call.1} parent=11 // pred_fallthru
          _
        // Predicated region
        $region33: #{tpu_custom_call.1} parent=11 // pred_check
          %p227 = pneg %p171
        $region34: #{tpu_custom_call.1} parent=11 // pred_check_branch
          %229 = sbr.rel (%p227) target = $region36
        $region35: #{tpu_custom_call.1} parent=11 // pred_region
          _
        $region36: #{tpu_custom_call.1} parent=11 // pred_fallthru
          _
      $region12: #{tpu_custom_call.1} parent=5 // pred_fallthru
        _
      %p230 = scmp.lt.s32.totalorder %s19, 2
      // Predicated region
      $region37: #{tpu_custom_call.1} parent=5 // pred_check
        %p231 = pneg %p230
      $region38: #{tpu_custom_call.1} parent=5 // pred_check_branch
        %233 = sbr.rel (%p231) target = $region40
      $region39: #{tpu_custom_call.1} parent=5 // pred_region
        // Predicated region
        $region41: #{tpu_custom_call.1} parent=39 // pred_check
          %p234 = pneg %p39
        $region42: #{tpu_custom_call.1} parent=39 // pred_check_branch
          %236 = sbr.rel (%p234) target = $region44
        $region43: #{tpu_custom_call.1} parent=39 // pred_region
          %s237 = sand.u32 %s29, 1
          %s238 = scalar_lea.sflag [#allocation4], %s237
          %s239 = sand.u32 %s29, 1
          %s240 = smul.addr %s239, 128
          %s241 = scalar_lea.vmem [#allocation3], %s240
          %243 = vsyncadd %s238, 0
          %s244 = smul.addr %s19, 32
          %s245 = smul.addr %s244, 4
          %s246 = scalar_lea.hbm %s0, %s245
          %s247 = sshll.u32 %s246, 4
          %s248 = int_to_ptr.hbm [resolvable:$true] %s247
          %s249 = sshll.u32 %s241, 4
          %s250 = int_to_ptr.vmem [resolvable:$true] %s249
          %255 = dma.hbm_to_vmem [thread:$0]  %s248, 2048, %s250, %s238, 64, 64, 4
        $region44: #{tpu_custom_call.1} parent=39 // pred_fallthru
          _
      $region40: #{tpu_custom_call.1} parent=5 // pred_fallthru
        _
      %p256 = scmp.le.s32.totalorder 1, %s19
      %p257 = scmp.lt.s32.totalorder %s19, 3
      %p258 = pnand %p256, %p257
      %p259 = pneg %p258
      // Predicated region
      $region45: #{tpu_custom_call.1} parent=5 // pred_check
        _
      $region46: #{tpu_custom_call.1} parent=5 // pred_check_branch
        %261 = sbr.rel (%p258) target = $region48
      $region47: #{tpu_custom_call.1} parent=5 // pred_region
        %s262 = ssub.s32 %s19, 1
        %s263 = sand.u32 %s32, 1
        %s264 = scalar_lea.sflag [#allocation4], %s263
        %s265 = sand.u32 %s32, 1
        %s266 = smul.addr %s265, 128
        %s267 = scalar_lea.vmem [#allocation3], %s266
        // Predicated region
        $region49: #{tpu_custom_call.1} parent=47 // pred_check
          %p268 = pneg %p45
        $region50: #{tpu_custom_call.1} parent=47 // pred_check_branch
          %270 = sbr.rel (%p268) target = $region52
        $region51: #{tpu_custom_call.1} parent=47 // pred_region
          %272 = dma.done %s264, 2048
        $region52: #{tpu_custom_call.1} parent=47 // pred_fallthru
          _
        %s273 = sand.u32 %s32, 1
        %s274 = scalar_lea.sflag [#allocation4], %s273
        %s275 = sand.u32 %s32, 1
        %s276 = smul.addr %s275, 128
        %s277 = scalar_lea.vmem [#allocation3], %s276
        %p278 = pneg %p45
        %p279 = pneg %p42
        %p280 = pneg %p66
        %p281 = pneg %p63
        %p282 = pneg %p87
        %p283 = pneg %p84
        %p284 = pneg %p108
        %p285 = pneg %p105
        %p286 = pneg %p129
        %p287 = pneg %p126
        %p288 = pneg %p150
        %p289 = pneg %p147
        %p290 = pneg %p171
        %p291 = pneg %p168
        %p292 = pneg %p197
        %p293 = pneg %p194
        %s294 = sand.u32 %s184, 1
        %s295 = scalar_lea.sflag [#allocation5], %s294
        %s296 = sand.u32 %s184, 1
        %s297 = smul.addr %s296, 128
        %s298 = scalar_lea.vmem [#allocation6], %s297
        %v300 = vld [vmem:[%s267] sm:$0xf]
        %v301 = vld [vmem:[%s267 + $0x4] sm:$0xf]
        %v302 = vld [vmem:[%s267 + $0x8] sm:$0xf]
        %v303 = vld [vmem:[%s267 + $0xc] sm:$0xf]
        %v304 = vld [vmem:[%s267 + $0x10] sm:$0xf]
        %v305 = vld [vmem:[%s267 + $0x14] sm:$0xf]
        %v306 = vld [vmem:[%s267 + $0x18] sm:$0xf]
        %v307 = vld [vmem:[%s267 + $0x1c] sm:$0xf]
        %v308 = vld [vmem:[%s267 + $0x20] sm:$0xf]
        %v309 = vld [vmem:[%s267 + $0x24] sm:$0xf]
        %v310 = vld [vmem:[%s267 + $0x28] sm:$0xf]
        %v311 = vld [vmem:[%s267 + $0x2c] sm:$0xf]
        %v312 = vld [vmem:[%s267 + $0x30] sm:$0xf]
        %v313 = vld [vmem:[%s267 + $0x34] sm:$0xf]
        %v314 = vld [vmem:[%s267 + $0x38] sm:$0xf]
        %v315 = vld [vmem:[%s267 + $0x3c] sm:$0xf]
        %v316 = vld [vmem:[%s267 + $0x40] sm:$0xf]
        %v317 = vld [vmem:[%s267 + $0x44] sm:$0xf]
        %v318 = vld [vmem:[%s267 + $0x48] sm:$0xf]
        %v319 = vld [vmem:[%s267 + $0x4c] sm:$0xf]
        %v320 = vld [vmem:[%s267 + $0x50] sm:$0xf]
        %v321 = vld [vmem:[%s267 + $0x54] sm:$0xf]
        %v322 = vld [vmem:[%s267 + $0x58] sm:$0xf]
        %v323 = vld [vmem:[%s267 + $0x5c] sm:$0xf]
        %v324 = vld [vmem:[%s267 + $0x60] sm:$0xf]
        %v325 = vld [vmem:[%s267 + $0x64] sm:$0xf]
        %v326 = vld [vmem:[%s267 + $0x68] sm:$0xf]
        %v327 = vld [vmem:[%s267 + $0x6c] sm:$0xf]
        %v328 = vld [vmem:[%s267 + $0x70] sm:$0xf]
        %v329 = vld [vmem:[%s267 + $0x74] sm:$0xf]
        %v330 = vld [vmem:[%s267 + $0x78] sm:$0xf]
        %v331 = vld [vmem:[%s267 + $0x7c] sm:$0xf]
        %v332 = vld [vmem:[%s1] sm:$0xf]
        %v333 = vld [vmem:[%s1 + $0x4] sm:$0xf]
        %v334 = vld [vmem:[%s2] sm:$0x1]
        %v336 = vperm.slane %v334, 0
        %v370 = vunpack.c.l.b16 %v300
        %v371 = vunpack.c.l.b16 %v301
        %v372 = vunpack.c.l.b16 %v302
        %v373 = vunpack.c.l.b16 %v303
        %v374 = vunpack.c.l.b16 %v304
        %v375 = vunpack.c.l.b16 %v305
        %v376 = vunpack.c.l.b16 %v306
        %v377 = vunpack.c.l.b16 %v307
        %v378 = vunpack.c.l.b16 %v308
        %v379 = vunpack.c.l.b16 %v309
        %v380 = vunpack.c.l.b16 %v310
        %v381 = vunpack.c.l.b16 %v311
        %v382 = vunpack.c.l.b16 %v312
        %v383 = vunpack.c.l.b16 %v313
        %v384 = vunpack.c.l.b16 %v314
        %v385 = vunpack.c.l.b16 %v315
        %v386 = vunpack.c.l.b16 %v316
        %v387 = vunpack.c.l.b16 %v317
        %v388 = vunpack.c.l.b16 %v318
        %v389 = vunpack.c.l.b16 %v319
        %v390 = vunpack.c.l.b16 %v320
        %v391 = vunpack.c.l.b16 %v321
        %v392 = vunpack.c.l.b16 %v322
        %v393 = vunpack.c.l.b16 %v323
        %v394 = vunpack.c.l.b16 %v324
        %v395 = vunpack.c.l.b16 %v325
        %v396 = vunpack.c.l.b16 %v326
        %v397 = vunpack.c.l.b16 %v327
        %v398 = vunpack.c.l.b16 %v328
        %v399 = vunpack.c.l.b16 %v329
        %v400 = vunpack.c.l.b16 %v330
        %v401 = vunpack.c.l.b16 %v331
        %v402 = vpack.c.b16 %v371, %v370
        %v403 = vpack.c.b16 %v373, %v372
        %v404 = vpack.c.b16 %v375, %v374
        %v405 = vpack.c.b16 %v377, %v376
        %v406 = vpack.c.b16 %v379, %v378
        %v407 = vpack.c.b16 %v381, %v380
        %v408 = vpack.c.b16 %v383, %v382
        %v409 = vpack.c.b16 %v385, %v384
        %v410 = vpack.c.b16 %v387, %v386
        %v411 = vpack.c.b16 %v389, %v388
        %v412 = vpack.c.b16 %v391, %v390
        %v413 = vpack.c.b16 %v393, %v392
        %v414 = vpack.c.b16 %v395, %v394
        %v415 = vpack.c.b16 %v397, %v396
        %v416 = vpack.c.b16 %v399, %v398
        %v417 = vpack.c.b16 %v401, %v400
        %v420 = vunpack.c.l.b16 %v332
        %v421 = vunpack.c.l.b16 %v333
        %v422 = vpack.c.b16 %v421, %v420
        %vm424 = vcmask 130048
        %v426 = vsel %vm424, %v402, 0
        %v429 = vsel %vm424, %v403, 0
        %v432 = vsel %vm424, %v404, 0
        %v435 = vsel %vm424, %v405, 0
        %v438 = vsel %vm424, %v406, 0
        %v441 = vsel %vm424, %v407, 0
        %v444 = vsel %vm424, %v408, 0
        %v447 = vsel %vm424, %v409, 0
        %v450 = vsel %vm424, %v410, 0
        %v453 = vsel %vm424, %v411, 0
        %v456 = vsel %vm424, %v412, 0
        %v459 = vsel %vm424, %v413, 0
        %v462 = vsel %vm424, %v414, 0
        %v465 = vsel %vm424, %v415, 0
        %v468 = vsel %vm424, %v416, 0
        %v471 = vsel %vm424, %v417, 0
        %473 = vmatpush.bf16.msra.mxu0 0
        %474 = vmatpush.bf16.msra.mxu0 0
        %475 = vmatpush.bf16.msra.mxu0 0
        %476 = vmatpush.bf16.msra.mxu0 0
        %477 = vmatpush.bf16.msra.mxu0 0
        %478 = vmatpush.bf16.msra.mxu0 0
        %479 = vmatpush.bf16.msra.mxu0 0
        %480 = vmatpush.bf16.msra.mxu0 %v422
        %481 = vmatmul.bf16.gmra.mxu0 %v426
        %v482 = vpop.f32.mrf.mxu0
        %v483 = vadd.f32 %v336, %v482
        %v484 = vpop.f32.mrf.mxu0
        %v485 = vadd.f32 %v336, %v484
        %486 = vmatmul.bf16.gmra.mxu0 %v429
        %v487 = vpop.f32.mrf.mxu0
        %v488 = vadd.f32 %v336, %v487
        %v489 = vpop.f32.mrf.mxu0
        %v490 = vadd.f32 %v336, %v489
        %491 = vmatmul.bf16.gmra.mxu0 %v432
        %v492 = vpop.f32.mrf.mxu0
        %v493 = vadd.f32 %v336, %v492
        %v494 = vpop.f32.mrf.mxu0
        %v495 = vadd.f32 %v336, %v494
        %496 = vmatmul.bf16.gmra.mxu0 %v435
        %v497 = vpop.f32.mrf.mxu0
        %v498 = vadd.f32 %v336, %v497
        %v499 = vpop.f32.mrf.mxu0
        %v500 = vadd.f32 %v336, %v499
        %501 = vmatmul.bf16.gmra.mxu0 %v438
        %v502 = vpop.f32.mrf.mxu0
        %v503 = vadd.f32 %v336, %v502
        %v504 = vpop.f32.mrf.mxu0
        %v505 = vadd.f32 %v336, %v504
        %506 = vmatmul.bf16.gmra.mxu0 %v441
        %v507 = vpop.f32.mrf.mxu0
        %v508 = vadd.f32 %v336, %v507
        %v509 = vpop.f32.mrf.mxu0
        %v510 = vadd.f32 %v336, %v509
        %511 = vmatmul.bf16.gmra.mxu0 %v444
        %v512 = vpop.f32.mrf.mxu0
        %v513 = vadd.f32 %v336, %v512
        %v514 = vpop.f32.mrf.mxu0
        %v515 = vadd.f32 %v336, %v514
        %516 = vmatmul.bf16.gmra.mxu0 %v447
        %v517 = vpop.f32.mrf.mxu0
        %v518 = vadd.f32 %v336, %v517
        %v519 = vpop.f32.mrf.mxu0
        %v520 = vadd.f32 %v336, %v519
        %521 = vmatmul.bf16.gmra.mxu0 %v450
        %v522 = vpop.f32.mrf.mxu0
        %v523 = vadd.f32 %v336, %v522
        %v524 = vpop.f32.mrf.mxu0
        %v525 = vadd.f32 %v336, %v524
        %526 = vmatmul.bf16.gmra.mxu0 %v453
        %v527 = vpop.f32.mrf.mxu0
        %v528 = vadd.f32 %v336, %v527
        %v529 = vpop.f32.mrf.mxu0
        %v530 = vadd.f32 %v336, %v529
        %531 = vmatmul.bf16.gmra.mxu0 %v456
        %v532 = vpop.f32.mrf.mxu0
        %v533 = vadd.f32 %v336, %v532
        %v534 = vpop.f32.mrf.mxu0
        %v535 = vadd.f32 %v336, %v534
        %536 = vmatmul.bf16.gmra.mxu0 %v459
        %v537 = vpop.f32.mrf.mxu0
        %v538 = vadd.f32 %v336, %v537
        %v539 = vpop.f32.mrf.mxu0
        %v540 = vadd.f32 %v336, %v539
        %541 = vmatmul.bf16.gmra.mxu0 %v462
        %v542 = vpop.f32.mrf.mxu0
        %v543 = vadd.f32 %v336, %v542
        %v544 = vpop.f32.mrf.mxu0
        %v545 = vadd.f32 %v336, %v544
        %546 = vmatmul.bf16.gmra.mxu0 %v465
        %v547 = vpop.f32.mrf.mxu0
        %v548 = vadd.f32 %v336, %v547
        %v549 = vpop.f32.mrf.mxu0
        %v550 = vadd.f32 %v336, %v549
        %551 = vmatmul.bf16.gmra.mxu0 %v468
        %v552 = vpop.f32.mrf.mxu0
        %v553 = vadd.f32 %v336, %v552
        %v554 = vpop.f32.mrf.mxu0
        %v555 = vadd.f32 %v336, %v554
        %556 = vmatmul.bf16.gmra.mxu0 %v471
        %v557 = vpop.f32.mrf.mxu0
        %v558 = vadd.f32 %v336, %v557
        %v559 = vpop.f32.mrf.mxu0
        %v560 = vadd.f32 %v336, %v559
        %561 = vdwg.mxu0
        %v562 = vmax.f32 %v483, 0.0
        %v563 = vmax.f32 %v485, 0.0
        %v564 = vmax.f32 %v488, 0.0
        %v565 = vmax.f32 %v490, 0.0
        %v566 = vmax.f32 %v493, 0.0
        %v567 = vmax.f32 %v495, 0.0
        %v568 = vmax.f32 %v498, 0.0
        %v569 = vmax.f32 %v500, 0.0
        %v570 = vmax.f32 %v503, 0.0
        %v571 = vmax.f32 %v505, 0.0
        %v572 = vmax.f32 %v508, 0.0
        %v573 = vmax.f32 %v510, 0.0
        %v574 = vmax.f32 %v513, 0.0
        %v575 = vmax.f32 %v515, 0.0
        %v576 = vmax.f32 %v518, 0.0
        %v577 = vmax.f32 %v520, 0.0
        %v578 = vmax.f32 %v523, 0.0
        %v579 = vmax.f32 %v525, 0.0
        %v580 = vmax.f32 %v528, 0.0
        %v581 = vmax.f32 %v530, 0.0
        %v582 = vmax.f32 %v533, 0.0
        %v583 = vmax.f32 %v535, 0.0
        %v584 = vmax.f32 %v538, 0.0
        %v585 = vmax.f32 %v540, 0.0
        %v586 = vmax.f32 %v543, 0.0
        %v587 = vmax.f32 %v545, 0.0
        %v588 = vmax.f32 %v548, 0.0
        %v589 = vmax.f32 %v550, 0.0
        %v590 = vmax.f32 %v553, 0.0
        %v591 = vmax.f32 %v555, 0.0
        %v592 = vmax.f32 %v558, 0.0
        %v593 = vmax.f32 %v560, 0.0
        %v594 = vpack.c.bf16 %v562, %v562
        %v595 = vpack.c.bf16 %v563, %v563
        %v596 = vpack.c.bf16 %v564, %v564
        %v597 = vpack.c.bf16 %v565, %v565
        %v598 = vpack.c.bf16 %v566, %v566
        %v599 = vpack.c.bf16 %v567, %v567
        %v600 = vpack.c.bf16 %v568, %v568
        %v601 = vpack.c.bf16 %v569, %v569
        %v602 = vpack.c.bf16 %v570, %v570
        %v603 = vpack.c.bf16 %v571, %v571
        %v604 = vpack.c.bf16 %v572, %v572
        %v605 = vpack.c.bf16 %v573, %v573
        %v606 = vpack.c.bf16 %v574, %v574
        %v607 = vpack.c.bf16 %v575, %v575
        %v608 = vpack.c.bf16 %v576, %v576
        %v609 = vpack.c.bf16 %v577, %v577
        %v610 = vpack.c.bf16 %v578, %v578
        %v611 = vpack.c.bf16 %v579, %v579
        %v612 = vpack.c.bf16 %v580, %v580
        %v613 = vpack.c.bf16 %v581, %v581
        %v614 = vpack.c.bf16 %v582, %v582
        %v615 = vpack.c.bf16 %v583, %v583
        %v616 = vpack.c.bf16 %v584, %v584
        %v617 = vpack.c.bf16 %v585, %v585
        %v618 = vpack.c.bf16 %v586, %v586
        %v619 = vpack.c.bf16 %v587, %v587
        %v620 = vpack.c.bf16 %v588, %v588
        %v621 = vpack.c.bf16 %v589, %v589
        %v622 = vpack.c.bf16 %v590, %v590
        %v623 = vpack.c.bf16 %v591, %v591
        %v624 = vpack.c.bf16 %v592, %v592
        %v625 = vpack.c.bf16 %v593, %v593
        %vm626 = vcmask 27648
        %627 = vst.msk [vmem:[#allocation2] sm:$0xf] %vm626, 0
        %628 = vst.msk [vmem:[#allocation2 + $0x4] sm:$0xf] %vm626, 0
        %vm629 = vcmask 24576
        %630 = vst.msk [vmem:[#allocation2 + $0x8] sm:$0x1] %vm629, 0
        %s631 = scalar_lea.vmem [#allocation2], 204
        %632 = vst.msk [vmem:[%s631] sm:$0xf] %vm626, 0
        %633 = vst.msk [vmem:[%s631 + $0x4] sm:$0xf] %vm626, 0
        %634 = vst.msk [vmem:[%s631 + $0x8] sm:$0x1] %vm629, 0
        %s635 = scalar_lea.vmem [#allocation2], 12
        %vm636 = vcmask 24576
        %vm637 = vsmask.f32 256
        %vm638 = vmand %vm636, %vm637
        %v639 = vld [vmem:[%s635] sm:$0x1]
        %v640 = vsel %vm638, 0, %v639
        %641 = vst [vmem:[%s635] sm:$0x1] %v640
        %v642 = vld [vmem:[%s635 + $0xc] sm:$0x1]
        %v643 = vsel %vm638, 0, %v642
        %644 = vst [vmem:[%s635 + $0xc] sm:$0x1] %v643
        %v645 = vld [vmem:[%s635 + $0x18] sm:$0x1]
        %v646 = vsel %vm638, 0, %v645
        %647 = vst [vmem:[%s635 + $0x18] sm:$0x1] %v646
        %v648 = vld [vmem:[%s635 + $0x24] sm:$0x1]
        %v649 = vsel %vm638, 0, %v648
        %650 = vst [vmem:[%s635 + $0x24] sm:$0x1] %v649
        %v651 = vld [vmem:[%s635 + $0x30] sm:$0x1]
        %v652 = vsel %vm638, 0, %v651
        %653 = vst [vmem:[%s635 + $0x30] sm:$0x1] %v652
        %v654 = vld [vmem:[%s635 + $0x3c] sm:$0x1]
        %v655 = vsel %vm638, 0, %v654
        %656 = vst [vmem:[%s635 + $0x3c] sm:$0x1] %v655
        %v657 = vld [vmem:[%s635 + $0x48] sm:$0x1]
        %v658 = vsel %vm638, 0, %v657
        %659 = vst [vmem:[%s635 + $0x48] sm:$0x1] %v658
        %v660 = vld [vmem:[%s635 + $0x54] sm:$0x1]
        %v661 = vsel %vm638, 0, %v660
        %662 = vst [vmem:[%s635 + $0x54] sm:$0x1] %v661
        %v663 = vld [vmem:[%s635 + $0x60] sm:$0x1]
        %v664 = vsel %vm638, 0, %v663
        %665 = vst [vmem:[%s635 + $0x60] sm:$0x1] %v664
        %v666 = vld [vmem:[%s635 + $0x6c] sm:$0x1]
        %v667 = vsel %vm638, 0, %v666
        %668 = vst [vmem:[%s635 + $0x6c] sm:$0x1] %v667
        %v669 = vld [vmem:[%s635 + $0x78] sm:$0x1]
        %v670 = vsel %vm638, 0, %v669
        %671 = vst [vmem:[%s635 + $0x78] sm:$0x1] %v670
        %v672 = vld [vmem:[%s635 + $0x84] sm:$0x1]
        %v673 = vsel %vm638, 0, %v672
        %674 = vst [vmem:[%s635 + $0x84] sm:$0x1] %v673
        %v675 = vld [vmem:[%s635 + $0x90] sm:$0x1]
        %v676 = vsel %vm638, 0, %v675
        %677 = vst [vmem:[%s635 + $0x90] sm:$0x1] %v676
        %v678 = vld [vmem:[%s635 + $0x9c] sm:$0x1]
        %v679 = vsel %vm638, 0, %v678
        %680 = vst [vmem:[%s635 + $0x9c] sm:$0x1] %v679
        %v681 = vld [vmem:[%s635 + $0xa8] sm:$0x1]
        %v682 = vsel %vm638, 0, %v681
        %683 = vst [vmem:[%s635 + $0xa8] sm:$0x1] %v682
        %v684 = vld [vmem:[%s635 + $0xb4] sm:$0x1]
        %v685 = vsel %vm638, 0, %v684
        %686 = vst [vmem:[%s635 + $0xb4] sm:$0x1] %v685
        %vm687 = vsmask.f32 7938
        %vm688 = vmand %vm636, %vm687
        %v689 = vld [vmem:[%s635 + $0x8] sm:$0x1]
        %v690 = vsel %vm688, 0, %v689
        %691 = vst [vmem:[%s635 + $0x8] sm:$0x1] %v690
        %v692 = vld [vmem:[%s635 + $0x14] sm:$0x1]
        %v693 = vsel %vm688, 0, %v692
        %694 = vst [vmem:[%s635 + $0x14] sm:$0x1] %v693
        %v695 = vld [vmem:[%s635 + $0x20] sm:$0x1]
        %v696 = vsel %vm688, 0, %v695
        %697 = vst [vmem:[%s635 + $0x20] sm:$0x1] %v696
        %v698 = vld [vmem:[%s635 + $0x2c] sm:$0x1]
        %v699 = vsel %vm688, 0, %v698
        %700 = vst [vmem:[%s635 + $0x2c] sm:$0x1] %v699
        %v701 = vld [vmem:[%s635 + $0x38] sm:$0x1]
        %v702 = vsel %vm688, 0, %v701
        %703 = vst [vmem:[%s635 + $0x38] sm:$0x1] %v702
        %v704 = vld [vmem:[%s635 + $0x44] sm:$0x1]
        %v705 = vsel %vm688, 0, %v704
        %706 = vst [vmem:[%s635 + $0x44] sm:$0x1] %v705
        %v707 = vld [vmem:[%s635 + $0x50] sm:$0x1]
        %v708 = vsel %vm688, 0, %v707
        %709 = vst [vmem:[%s635 + $0x50] sm:$0x1] %v708
        %v710 = vld [vmem:[%s635 + $0x5c] sm:$0x1]
        %v711 = vsel %vm688, 0, %v710
        %712 = vst [vmem:[%s635 + $0x5c] sm:$0x1] %v711
        %v713 = vld [vmem:[%s635 + $0x68] sm:$0x1]
        %v714 = vsel %vm688, 0, %v713
        %715 = vst [vmem:[%s635 + $0x68] sm:$0x1] %v714
        %v716 = vld [vmem:[%s635 + $0x74] sm:$0x1]
        %v717 = vsel %vm688, 0, %v716
        %718 = vst [vmem:[%s635 + $0x74] sm:$0x1] %v717
        %v719 = vld [vmem:[%s635 + $0x80] sm:$0x1]
        %v720 = vsel %vm688, 0, %v719
        %721 = vst [vmem:[%s635 + $0x80] sm:$0x1] %v720
        %v722 = vld [vmem:[%s635 + $0x8c] sm:$0x1]
        %v723 = vsel %vm688, 0, %v722
        %724 = vst [vmem:[%s635 + $0x8c] sm:$0x1] %v723
        %v725 = vld [vmem:[%s635 + $0x98] sm:$0x1]
        %v726 = vsel %vm688, 0, %v725
        %727 = vst [vmem:[%s635 + $0x98] sm:$0x1] %v726
        %v728 = vld [vmem:[%s635 + $0xa4] sm:$0x1]
        %v729 = vsel %vm688, 0, %v728
        %730 = vst [vmem:[%s635 + $0xa4] sm:$0x1] %v729
        %v731 = vld [vmem:[%s635 + $0xb0] sm:$0x1]
        %v732 = vsel %vm688, 0, %v731
        %733 = vst [vmem:[%s635 + $0xb0] sm:$0x1] %v732
        %v734 = vld [vmem:[%s635 + $0xbc] sm:$0x1]
        %v735 = vsel %vm688, 0, %v734
        %736 = vst [vmem:[%s635 + $0xbc] sm:$0x1] %v735
        %vm737 = vsmask.f32 4368
        %vm738 = vmor %vm637, %vm737
        %v740 = vshrl.u32 %v594, 16
        %v742 = vrot.slane %v740, 7
        %v743 = vshll.u32 %v594, 16
        %v745 = vor.u32 %v742, %v743
        %v746 = vrot.slane %v742, 4
        %v748 = vshrl.u32 %v595, 16
        %v750 = vrot.slane %v748, 7
        %v751 = vshll.u32 %v595, 16
        %v753 = vor.u32 %v750, %v751
        %v754 = vsel %vm738, %v746, %v753
        %v755 = vrot.slane %v750, 4
        %v757 = vshrl.u32 %v596, 16
        %v759 = vrot.slane %v757, 7
        %v760 = vshll.u32 %v596, 16
        %v762 = vor.u32 %v759, %v760
        %v763 = vrot.slane %v759, 4
        %v765 = vshrl.u32 %v597, 16
        %v767 = vrot.slane %v765, 7
        %v768 = vshll.u32 %v597, 16
        %v770 = vor.u32 %v767, %v768
        %v771 = vsel %vm738, %v763, %v770
        %v772 = vrot.slane %v767, 4
        %v774 = vshrl.u32 %v598, 16
        %v776 = vrot.slane %v774, 7
        %v777 = vshll.u32 %v598, 16
        %v779 = vor.u32 %v776, %v777
        %v780 = vrot.slane %v776, 4
        %v782 = vshrl.u32 %v599, 16
        %v784 = vrot.slane %v782, 7
        %v785 = vshll.u32 %v599, 16
        %v787 = vor.u32 %v784, %v785
        %v788 = vsel %vm738, %v780, %v787
        %v789 = vrot.slane %v784, 4
        %v791 = vshrl.u32 %v600, 16
        %v793 = vrot.slane %v791, 7
        %v794 = vshll.u32 %v600, 16
        %v796 = vor.u32 %v793, %v794
        %v797 = vrot.slane %v793, 4
        %v799 = vshrl.u32 %v601, 16
        %v801 = vrot.slane %v799, 7
        %v802 = vshll.u32 %v601, 16
        %v804 = vor.u32 %v801, %v802
        %v805 = vsel %vm738, %v797, %v804
        %v806 = vrot.slane %v801, 4
        %v808 = vshrl.u32 %v602, 16
        %v810 = vrot.slane %v808, 7
        %v811 = vshll.u32 %v602, 16
        %v813 = vor.u32 %v810, %v811
        %v814 = vrot.slane %v810, 4
        %v816 = vshrl.u32 %v603, 16
        %v818 = vrot.slane %v816, 7
        %v819 = vshll.u32 %v603, 16
        %v821 = vor.u32 %v818, %v819
        %v822 = vsel %vm738, %v814, %v821
        %v823 = vrot.slane %v818, 4
        %v825 = vshrl.u32 %v604, 16
        %v827 = vrot.slane %v825, 7
        %v828 = vshll.u32 %v604, 16
        %v830 = vor.u32 %v827, %v828
        %v831 = vrot.slane %v827, 4
        %v833 = vshrl.u32 %v605, 16
        %v835 = vrot.slane %v833, 7
        %v836 = vshll.u32 %v605, 16
        %v838 = vor.u32 %v835, %v836
        %v839 = vsel %vm738, %v831, %v838
        %v840 = vrot.slane %v835, 4
        %v842 = vshrl.u32 %v606, 16
        %v844 = vrot.slane %v842, 7
        %v845 = vshll.u32 %v606, 16
        %v847 = vor.u32 %v844, %v845
        %v848 = vrot.slane %v844, 4
        %v850 = vshrl.u32 %v607, 16
        %v852 = vrot.slane %v850, 7
        %v853 = vshll.u32 %v607, 16
        %v855 = vor.u32 %v852, %v853
        %v856 = vsel %vm738, %v848, %v855
        %v857 = vrot.slane %v852, 4
        %v859 = vshrl.u32 %v608, 16
        %v861 = vrot.slane %v859, 7
        %v862 = vshll.u32 %v608, 16
        %v864 = vor.u32 %v861, %v862
        %v865 = vrot.slane %v861, 4
        %v867 = vshrl.u32 %v609, 16
        %v869 = vrot.slane %v867, 7
        %v870 = vshll.u32 %v609, 16
        %v872 = vor.u32 %v869, %v870
        %v873 = vsel %vm738, %v865, %v872
        %v874 = vrot.slane %v869, 4
        %v876 = vshrl.u32 %v610, 16
        %v878 = vrot.slane %v876, 7
        %v879 = vshll.u32 %v610, 16
        %v881 = vor.u32 %v878, %v879
        %v882 = vrot.slane %v878, 4
        %v884 = vshrl.u32 %v611, 16
        %v886 = vrot.slane %v884, 7
        %v887 = vshll.u32 %v611, 16
        %v889 = vor.u32 %v886, %v887
        %v890 = vsel %vm738, %v882, %v889
        %v891 = vrot.slane %v886, 4
        %v893 = vshrl.u32 %v612, 16
        %v895 = vrot.slane %v893, 7
        %v896 = vshll.u32 %v612, 16
        %v898 = vor.u32 %v895, %v896
        %v899 = vrot.slane %v895, 4
        %v901 = vshrl.u32 %v613, 16
        %v903 = vrot.slane %v901, 7
        %v904 = vshll.u32 %v613, 16
        %v906 = vor.u32 %v903, %v904
        %v907 = vsel %vm738, %v899, %v906
        %v908 = vrot.slane %v903, 4
        %v910 = vshrl.u32 %v614, 16
        %v912 = vrot.slane %v910, 7
        %v913 = vshll.u32 %v614, 16
        %v915 = vor.u32 %v912, %v913
        %v916 = vrot.slane %v912, 4
        %v918 = vshrl.u32 %v615, 16
        %v920 = vrot.slane %v918, 7
        %v921 = vshll.u32 %v615, 16
        %v923 = vor.u32 %v920, %v921
        %v924 = vsel %vm738, %v916, %v923
        %v925 = vrot.slane %v920, 4
        %v927 = vshrl.u32 %v616, 16
        %v929 = vrot.slane %v927, 7
        %v930 = vshll.u32 %v616, 16
        %v932 = vor.u32 %v929, %v930
        %v933 = vrot.slane %v929, 4
        %v935 = vshrl.u32 %v617, 16
        %v937 = vrot.slane %v935, 7
        %v938 = vshll.u32 %v617, 16
        %v940 = vor.u32 %v937, %v938
        %v941 = vsel %vm738, %v933, %v940
        %v942 = vrot.slane %v937, 4
        %v944 = vshrl.u32 %v618, 16
        %v946 = vrot.slane %v944, 7
        %v947 = vshll.u32 %v618, 16
        %v949 = vor.u32 %v946, %v947
        %v950 = vrot.slane %v946, 4
        %v952 = vshrl.u32 %v619, 16
        %v954 = vrot.slane %v952, 7
        %v955 = vshll.u32 %v619, 16
        %v957 = vor.u32 %v954, %v955
        %v958 = vsel %vm738, %v950, %v957
        %v959 = vrot.slane %v954, 4
        %v961 = vshrl.u32 %v620, 16
        %v963 = vrot.slane %v961, 7
        %v964 = vshll.u32 %v620, 16
        %v966 = vor.u32 %v963, %v964
        %v967 = vrot.slane %v963, 4
        %v969 = vshrl.u32 %v621, 16
        %v971 = vrot.slane %v969, 7
        %v972 = vshll.u32 %v621, 16
        %v974 = vor.u32 %v971, %v972
        %v975 = vsel %vm738, %v967, %v974
        %v976 = vrot.slane %v971, 4
        %v978 = vshrl.u32 %v622, 16
        %v980 = vrot.slane %v978, 7
        %v981 = vshll.u32 %v622, 16
        %v983 = vor.u32 %v980, %v981
        %v984 = vrot.slane %v980, 4
        %v986 = vshrl.u32 %v623, 16
        %v988 = vrot.slane %v986, 7
        %v989 = vshll.u32 %v623, 16
        %v991 = vor.u32 %v988, %v989
        %v992 = vsel %vm738, %v984, %v991
        %v993 = vrot.slane %v988, 4
        %v995 = vshrl.u32 %v624, 16
        %v997 = vrot.slane %v995, 7
        %v998 = vshll.u32 %v624, 16
        %v1000 = vor.u32 %v997, %v998
        %v1001 = vrot.slane %v997, 4
        %v1003 = vshrl.u32 %v625, 16
        %v1005 = vrot.slane %v1003, 7
        %v1006 = vshll.u32 %v625, 16
        %v1008 = vor.u32 %v1005, %v1006
        %v1009 = vsel %vm738, %v1001, %v1008
        %v1010 = vrot.slane %v1005, 4
        %vm1059 = vcmask 27648
        %vm1060 = vmand %vm1059, %vm687
        %v1061 = vld [vmem:[%s635] sm:$0xf]
        %v1062 = vsel %vm1060, %v745, %v1061
        %1063 = vst [vmem:[%s635] sm:$0xf] %v1062
        %1064 = vst.msk [vmem:[%s635 + $0x4] sm:$0xf] %vm626, %v754
        %v1065 = vld [vmem:[%s635 + $0x8] sm:$0x1]
        %v1066 = vsel %vm638, %v755, %v1065
        %1067 = vst [vmem:[%s635 + $0x8] sm:$0x1] %v1066
        %v1068 = vld [vmem:[%s635 + $0xc] sm:$0xf]
        %v1069 = vsel %vm1060, %v762, %v1068
        %1070 = vst [vmem:[%s635 + $0xc] sm:$0xf] %v1069
        %1071 = vst.msk [vmem:[%s635 + $0x10] sm:$0xf] %vm626, %v771
        %v1072 = vld [vmem:[%s635 + $0x14] sm:$0x1]
        %v1073 = vsel %vm638, %v772, %v1072
        %1074 = vst [vmem:[%s635 + $0x14] sm:$0x1] %v1073
        %v1075 = vld [vmem:[%s635 + $0x18] sm:$0xf]
        %v1076 = vsel %vm1060, %v779, %v1075
        %1077 = vst [vmem:[%s635 + $0x18] sm:$0xf] %v1076
        %1078 = vst.msk [vmem:[%s635 + $0x1c] sm:$0xf] %vm626, %v788
        %v1079 = vld [vmem:[%s635 + $0x20] sm:$0x1]
        %v1080 = vsel %vm638, %v789, %v1079
        %1081 = vst [vmem:[%s635 + $0x20] sm:$0x1] %v1080
        %v1082 = vld [vmem:[%s635 + $0x24] sm:$0xf]
        %v1083 = vsel %vm1060, %v796, %v1082
        %1084 = vst [vmem:[%s635 + $0x24] sm:$0xf] %v1083
        %1085 = vst.msk [vmem:[%s635 + $0x28] sm:$0xf] %vm626, %v805
        %v1086 = vld [vmem:[%s635 + $0x2c] sm:$0x1]
        %v1087 = vsel %vm638, %v806, %v1086
        %1088 = vst [vmem:[%s635 + $0x2c] sm:$0x1] %v1087
        %v1089 = vld [vmem:[%s635 + $0x30] sm:$0xf]
        %v1090 = vsel %vm1060, %v813, %v1089
        %1091 = vst [vmem:[%s635 + $0x30] sm:$0xf] %v1090
        %1092 = vst.msk [vmem:[%s635 + $0x34] sm:$0xf] %vm626, %v822
        %v1093 = vld [vmem:[%s635 + $0x38] sm:$0x1]
        %v1094 = vsel %vm638, %v823, %v1093
        %1095 = vst [vmem:[%s635 + $0x38] sm:$0x1] %v1094
        %v1096 = vld [vmem:[%s635 + $0x3c] sm:$0xf]
        %v1097 = vsel %vm1060, %v830, %v1096
        %1098 = vst [vmem:[%s635 + $0x3c] sm:$0xf] %v1097
        %1099 = vst.msk [vmem:[%s635 + $0x40] sm:$0xf] %vm626, %v839
        %v1100 = vld [vmem:[%s635 + $0x44] sm:$0x1]
        %v1101 = vsel %vm638, %v840, %v1100
        %1102 = vst [vmem:[%s635 + $0x44] sm:$0x1] %v1101
        %v1103 = vld [vmem:[%s635 + $0x48] sm:$0xf]
        %v1104 = vsel %vm1060, %v847, %v1103
        %1105 = vst [vmem:[%s635 + $0x48] sm:$0xf] %v1104
        %1106 = vst.msk [vmem:[%s635 + $0x4c] sm:$0xf] %vm626, %v856
        %v1107 = vld [vmem:[%s635 + $0x50] sm:$0x1]
        %v1108 = vsel %vm638, %v857, %v1107
        %1109 = vst [vmem:[%s635 + $0x50] sm:$0x1] %v1108
        %v1110 = vld [vmem:[%s635 + $0x54] sm:$0xf]
        %v1111 = vsel %vm1060, %v864, %v1110
        %1112 = vst [vmem:[%s635 + $0x54] sm:$0xf] %v1111
        %1113 = vst.msk [vmem:[%s635 + $0x58] sm:$0xf] %vm626, %v873
        %v1114 = vld [vmem:[%s635 + $0x5c] sm:$0x1]
        %v1115 = vsel %vm638, %v874, %v1114
        %1116 = vst [vmem:[%s635 + $0x5c] sm:$0x1] %v1115
        %v1117 = vld [vmem:[%s635 + $0x60] sm:$0xf]
        %v1118 = vsel %vm1060, %v881, %v1117
        %1119 = vst [vmem:[%s635 + $0x60] sm:$0xf] %v1118
        %1120 = vst.msk [vmem:[%s635 + $0x64] sm:$0xf] %vm626, %v890
        %v1121 = vld [vmem:[%s635 + $0x68] sm:$0x1]
        %v1122 = vsel %vm638, %v891, %v1121
        %1123 = vst [vmem:[%s635 + $0x68] sm:$0x1] %v1122
        %v1124 = vld [vmem:[%s635 + $0x6c] sm:$0xf]
        %v1125 = vsel %vm1060, %v898, %v1124
        %1126 = vst [vmem:[%s635 + $0x6c] sm:$0xf] %v1125
        %1127 = vst.msk [vmem:[%s635 + $0x70] sm:$0xf] %vm626, %v907
        %v1128 = vld [vmem:[%s635 + $0x74] sm:$0x1]
        %v1129 = vsel %vm638, %v908, %v1128
        %1130 = vst [vmem:[%s635 + $0x74] sm:$0x1] %v1129
        %v1131 = vld [vmem:[%s635 + $0x78] sm:$0xf]
        %v1132 = vsel %vm1060, %v915, %v1131
        %1133 = vst [vmem:[%s635 + $0x78] sm:$0xf] %v1132
        %1134 = vst.msk [vmem:[%s635 + $0x7c] sm:$0xf] %vm626, %v924
        %v1135 = vld [vmem:[%s635 + $0x80] sm:$0x1]
        %v1136 = vsel %vm638, %v925, %v1135
        %1137 = vst [vmem:[%s635 + $0x80] sm:$0x1] %v1136
        %v1138 = vld [vmem:[%s635 + $0x84] sm:$0xf]
        %v1139 = vsel %vm1060, %v932, %v1138
        %1140 = vst [vmem:[%s635 + $0x84] sm:$0xf] %v1139
        %1141 = vst.msk [vmem:[%s635 + $0x88] sm:$0xf] %vm626, %v941
        %v1142 = vld [vmem:[%s635 + $0x8c] sm:$0x1]
        %v1143 = vsel %vm638, %v942, %v1142
        %1144 = vst [vmem:[%s635 + $0x8c] sm:$0x1] %v1143
        %v1145 = vld [vmem:[%s635 + $0x90] sm:$0xf]
        %v1146 = vsel %vm1060, %v949, %v1145
        %1147 = vst [vmem:[%s635 + $0x90] sm:$0xf] %v1146
        %1148 = vst.msk [vmem:[%s635 + $0x94] sm:$0xf] %vm626, %v958
        %v1149 = vld [vmem:[%s635 + $0x98] sm:$0x1]
        %v1150 = vsel %vm638, %v959, %v1149
        %1151 = vst [vmem:[%s635 + $0x98] sm:$0x1] %v1150
        %v1152 = vld [vmem:[%s635 + $0x9c] sm:$0xf]
        %v1153 = vsel %vm1060, %v966, %v1152
        %1154 = vst [vmem:[%s635 + $0x9c] sm:$0xf] %v1153
        %1155 = vst.msk [vmem:[%s635 + $0xa0] sm:$0xf] %vm626, %v975
        %v1156 = vld [vmem:[%s635 + $0xa4] sm:$0x1]
        %v1157 = vsel %vm638, %v976, %v1156
        %1158 = vst [vmem:[%s635 + $0xa4] sm:$0x1] %v1157
        %v1159 = vld [vmem:[%s635 + $0xa8] sm:$0xf]
        %v1160 = vsel %vm1060, %v983, %v1159
        %1161 = vst [vmem:[%s635 + $0xa8] sm:$0xf] %v1160
        %1162 = vst.msk [vmem:[%s635 + $0xac] sm:$0xf] %vm626, %v992
        %v1163 = vld [vmem:[%s635 + $0xb0] sm:$0x1]
        %v1164 = vsel %vm638, %v993, %v1163
        %1165 = vst [vmem:[%s635 + $0xb0] sm:$0x1] %v1164
        %v1166 = vld [vmem:[%s635 + $0xb4] sm:$0xf]
        %v1167 = vsel %vm1060, %v1000, %v1166
        %1168 = vst [vmem:[%s635 + $0xb4] sm:$0xf] %v1167
        %1169 = vst.msk [vmem:[%s635 + $0xb8] sm:$0xf] %vm626, %v1009
        %v1170 = vld [vmem:[%s635 + $0xbc] sm:$0x1]
        %v1171 = vsel %vm638, %v1010, %v1170
        %1172 = vst [vmem:[%s635 + $0xbc] sm:$0x1] %v1171
        %v1173 = vld [vmem:[#allocation2] sm:$0xf]
        %v1174 = vld [vmem:[#allocation2 + $0x4] sm:$0xf]
        %v1175 = vld [vmem:[#allocation2 + $0xc] sm:$0xf]
        %v1176 = vld [vmem:[#allocation2 + $0x10] sm:$0xf]
        %v1177 = vld [vmem:[#allocation2 + $0x18] sm:$0xf]
        %v1178 = vld [vmem:[#allocation2 + $0x1c] sm:$0xf]
        %v1179 = vld [vmem:[#allocation2 + $0x24] sm:$0xf]
        %v1180 = vld [vmem:[#allocation2 + $0x28] sm:$0xf]
        %v1181 = vld [vmem:[#allocation2 + $0x30] sm:$0xf]
        %v1182 = vld [vmem:[#allocation2 + $0x34] sm:$0xf]
        %v1183 = vld [vmem:[#allocation2 + $0x3c] sm:$0xf]
        %v1184 = vld [vmem:[#allocation2 + $0x40] sm:$0xf]
        %v1185 = vld [vmem:[#allocation2 + $0x48] sm:$0xf]
        %v1186 = vld [vmem:[#allocation2 + $0x4c] sm:$0xf]
        %v1187 = vld [vmem:[#allocation2 + $0x54] sm:$0xf]
        %v1188 = vld [vmem:[#allocation2 + $0x58] sm:$0xf]
        %v1189 = vld [vmem:[#allocation2 + $0x60] sm:$0xf]
        %v1190 = vld [vmem:[#allocation2 + $0x64] sm:$0xf]
        %v1191 = vld [vmem:[#allocation2 + $0x6c] sm:$0xf]
        %v1192 = vld [vmem:[#allocation2 + $0x70] sm:$0xf]
        %v1193 = vld [vmem:[#allocation2 + $0x78] sm:$0xf]
        %v1194 = vld [vmem:[#allocation2 + $0x7c] sm:$0xf]
        %v1195 = vld [vmem:[#allocation2 + $0x84] sm:$0xf]
        %v1196 = vld [vmem:[#allocation2 + $0x88] sm:$0xf]
        %v1197 = vld [vmem:[#allocation2 + $0x90] sm:$0xf]
        %v1198 = vld [vmem:[#allocation2 + $0x94] sm:$0xf]
        %v1199 = vld [vmem:[#allocation2 + $0x9c] sm:$0xf]
        %v1200 = vld [vmem:[#allocation2 + $0xa0] sm:$0xf]
        %v1201 = vld [vmem:[#allocation2 + $0xa8] sm:$0xf]
        %v1202 = vld [vmem:[#allocation2 + $0xac] sm:$0xf]
        %v1203 = vld [vmem:[#allocation2 + $0xb4] sm:$0xf]
        %v1204 = vld [vmem:[#allocation2 + $0xb8] sm:$0xf]
        %v1205 = vld [vmem:[%s3] sm:$0x3]
        %v1206 = vld [vmem:[#allocation2 + $0x8] sm:$0x1]
        %v1207 = vld [vmem:[#allocation2 + $0x14] sm:$0x1]
        %v1208 = vld [vmem:[#allocation2 + $0x20] sm:$0x1]
        %v1209 = vld [vmem:[#allocation2 + $0x2c] sm:$0x1]
        %v1210 = vld [vmem:[#allocation2 + $0x38] sm:$0x1]
        %v1211 = vld [vmem:[#allocation2 + $0x44] sm:$0x1]
        %v1212 = vld [vmem:[#allocation2 + $0x50] sm:$0x1]
        %v1213 = vld [vmem:[#allocation2 + $0x5c] sm:$0x1]
        %v1214 = vld [vmem:[#allocation2 + $0x68] sm:$0x1]
        %v1215 = vld [vmem:[#allocation2 + $0x74] sm:$0x1]
        %v1216 = vld [vmem:[#allocation2 + $0x80] sm:$0x1]
        %v1217 = vld [vmem:[#allocation2 + $0x8c] sm:$0x1]
        %v1218 = vld [vmem:[#allocation2 + $0x98] sm:$0x1]
        %v1219 = vld [vmem:[#allocation2 + $0xa4] sm:$0x1]
        %v1220 = vld [vmem:[#allocation2 + $0xb0] sm:$0x1]
        %v1221 = vld [vmem:[#allocation2 + $0xbc] sm:$0x1]
        %vm1222 = vsmask.f32 3328
        %vm1223 = vsmask.f32 7440
        %vm1224 = vmor %vm1222, %vm1223
        %v1226 = vshrl.u32 %v1173, 16
        %v1228 = vrot.slane %v1226, 4
        %v1229 = vshll.u32 %v1173, 16
        %v1231 = vrot.slane %v1229, 5
        %v1232 = vor.u32 %v1228, %v1231
        %v1233 = vrot.slane %v1232, 4
        %v1235 = vshll.u32 %v1174, 16
        %v1237 = vrot.slane %v1235, 5
        %v1238 = vsel %vm1224, %v1233, %v1237
        %v1239 = vshrl.u32 %v1174, 16
        %v1241 = vrot.slane %v1239, 4
        %v1242 = vor.u32 %v1241, %v1237
        %v1243 = vrot.slane %v1242, 4
        %v1245 = vshll.u32 %v1206, 16
        %v1247 = vrot.slane %v1245, 5
        %v1248 = vsel %vm1224, %v1243, %v1247
        %v1250 = vshrl.u32 %v1175, 16
        %v1252 = vrot.slane %v1250, 4
        %v1253 = vshll.u32 %v1175, 16
        %v1255 = vrot.slane %v1253, 5
        %v1256 = vor.u32 %v1252, %v1255
        %v1257 = vrot.slane %v1256, 4
        %v1259 = vshll.u32 %v1176, 16
        %v1261 = vrot.slane %v1259, 5
        %v1262 = vsel %vm1224, %v1257, %v1261
        %v1263 = vshrl.u32 %v1176, 16
        %v1265 = vrot.slane %v1263, 4
        %v1266 = vor.u32 %v1265, %v1261
        %v1267 = vrot.slane %v1266, 4
        %v1269 = vshll.u32 %v1207, 16
        %v1271 = vrot.slane %v1269, 5
        %v1272 = vsel %vm1224, %v1267, %v1271
        %v1274 = vshrl.u32 %v1177, 16
        %v1276 = vrot.slane %v1274, 4
        %v1277 = vshll.u32 %v1177, 16
        %v1279 = vrot.slane %v1277, 5
        %v1280 = vor.u32 %v1276, %v1279
        %v1281 = vrot.slane %v1280, 4
        %v1283 = vshll.u32 %v1178, 16
        %v1285 = vrot.slane %v1283, 5
        %v1286 = vsel %vm1224, %v1281, %v1285
        %v1287 = vshrl.u32 %v1178, 16
        %v1289 = vrot.slane %v1287, 4
        %v1290 = vor.u32 %v1289, %v1285
        %v1291 = vrot.slane %v1290, 4
        %v1293 = vshll.u32 %v1208, 16
        %v1295 = vrot.slane %v1293, 5
        %v1296 = vsel %vm1224, %v1291, %v1295
        %v1298 = vshrl.u32 %v1179, 16
        %v1300 = vrot.slane %v1298, 4
        %v1301 = vshll.u32 %v1179, 16
        %v1303 = vrot.slane %v1301, 5
        %v1304 = vor.u32 %v1300, %v1303
        %v1305 = vrot.slane %v1304, 4
        %v1307 = vshll.u32 %v1180, 16
        %v1309 = vrot.slane %v1307, 5
        %v1310 = vsel %vm1224, %v1305, %v1309
        %v1311 = vshrl.u32 %v1180, 16
        %v1313 = vrot.slane %v1311, 4
        %v1314 = vor.u32 %v1313, %v1309
        %v1315 = vrot.slane %v1314, 4
        %v1317 = vshll.u32 %v1209, 16
        %v1319 = vrot.slane %v1317, 5
        %v1320 = vsel %vm1224, %v1315, %v1319
        %v1322 = vshrl.u32 %v1181, 16
        %v1324 = vrot.slane %v1322, 4
        %v1325 = vshll.u32 %v1181, 16
        %v1327 = vrot.slane %v1325, 5
        %v1328 = vor.u32 %v1324, %v1327
        %v1329 = vrot.slane %v1328, 4
        %v1331 = vshll.u32 %v1182, 16
        %v1333 = vrot.slane %v1331, 5
        %v1334 = vsel %vm1224, %v1329, %v1333
        %v1335 = vshrl.u32 %v1182, 16
        %v1337 = vrot.slane %v1335, 4
        %v1338 = vor.u32 %v1337, %v1333
        %v1339 = vrot.slane %v1338, 4
        %v1341 = vshll.u32 %v1210, 16
        %v1343 = vrot.slane %v1341, 5
        %v1344 = vsel %vm1224, %v1339, %v1343
        %v1346 = vshrl.u32 %v1183, 16
        %v1348 = vrot.slane %v1346, 4
        %v1349 = vshll.u32 %v1183, 16
        %v1351 = vrot.slane %v1349, 5
        %v1352 = vor.u32 %v1348, %v1351
        %v1353 = vrot.slane %v1352, 4
        %v1355 = vshll.u32 %v1184, 16
        %v1357 = vrot.slane %v1355, 5
        %v1358 = vsel %vm1224, %v1353, %v1357
        %v1359 = vshrl.u32 %v1184, 16
        %v1361 = vrot.slane %v1359, 4
        %v1362 = vor.u32 %v1361, %v1357
        %v1363 = vrot.slane %v1362, 4
        %v1365 = vshll.u32 %v1211, 16
        %v1367 = vrot.slane %v1365, 5
        %v1368 = vsel %vm1224, %v1363, %v1367
        %v1370 = vshrl.u32 %v1185, 16
        %v1372 = vrot.slane %v1370, 4
        %v1373 = vshll.u32 %v1185, 16
        %v1375 = vrot.slane %v1373, 5
        %v1376 = vor.u32 %v1372, %v1375
        %v1377 = vrot.slane %v1376, 4
        %v1379 = vshll.u32 %v1186, 16
        %v1381 = vrot.slane %v1379, 5
        %v1382 = vsel %vm1224, %v1377, %v1381
        %v1383 = vshrl.u32 %v1186, 16
        %v1385 = vrot.slane %v1383, 4
        %v1386 = vor.u32 %v1385, %v1381
        %v1387 = vrot.slane %v1386, 4
        %v1389 = vshll.u32 %v1212, 16
        %v1391 = vrot.slane %v1389, 5
        %v1392 = vsel %vm1224, %v1387, %v1391
        %v1394 = vshrl.u32 %v1187, 16
        %v1396 = vrot.slane %v1394, 4
        %v1397 = vshll.u32 %v1187, 16
        %v1399 = vrot.slane %v1397, 5
        %v1400 = vor.u32 %v1396, %v1399
        %v1401 = vrot.slane %v1400, 4
        %v1403 = vshll.u32 %v1188, 16
        %v1405 = vrot.slane %v1403, 5
        %v1406 = vsel %vm1224, %v1401, %v1405
        %v1407 = vshrl.u32 %v1188, 16
        %v1409 = vrot.slane %v1407, 4
        %v1410 = vor.u32 %v1409, %v1405
        %v1411 = vrot.slane %v1410, 4
        %v1413 = vshll.u32 %v1213, 16
        %v1415 = vrot.slane %v1413, 5
        %v1416 = vsel %vm1224, %v1411, %v1415
        %v1418 = vshrl.u32 %v1189, 16
        %v1420 = vrot.slane %v1418, 4
        %v1421 = vshll.u32 %v1189, 16
        %v1423 = vrot.slane %v1421, 5
        %v1424 = vor.u32 %v1420, %v1423
        %v1425 = vrot.slane %v1424, 4
        %v1427 = vshll.u32 %v1190, 16
        %v1429 = vrot.slane %v1427, 5
        %v1430 = vsel %vm1224, %v1425, %v1429
        %v1431 = vshrl.u32 %v1190, 16
        %v1433 = vrot.slane %v1431, 4
        %v1434 = vor.u32 %v1433, %v1429
        %v1435 = vrot.slane %v1434, 4
        %v1437 = vshll.u32 %v1214, 16
        %v1439 = vrot.slane %v1437, 5
        %v1440 = vsel %vm1224, %v1435, %v1439
        %v1442 = vshrl.u32 %v1191, 16
        %v1444 = vrot.slane %v1442, 4
        %v1445 = vshll.u32 %v1191, 16
        %v1447 = vrot.slane %v1445, 5
        %v1448 = vor.u32 %v1444, %v1447
        %v1449 = vrot.slane %v1448, 4
        %v1451 = vshll.u32 %v1192, 16
        %v1453 = vrot.slane %v1451, 5
        %v1454 = vsel %vm1224, %v1449, %v1453
        %v1455 = vshrl.u32 %v1192, 16
        %v1457 = vrot.slane %v1455, 4
        %v1458 = vor.u32 %v1457, %v1453
        %v1459 = vrot.slane %v1458, 4
        %v1461 = vshll.u32 %v1215, 16
        %v1463 = vrot.slane %v1461, 5
        %v1464 = vsel %vm1224, %v1459, %v1463
        %v1466 = vshrl.u32 %v1193, 16
        %v1468 = vrot.slane %v1466, 4
        %v1469 = vshll.u32 %v1193, 16
        %v1471 = vrot.slane %v1469, 5
        %v1472 = vor.u32 %v1468, %v1471
        %v1473 = vrot.slane %v1472, 4
        %v1475 = vshll.u32 %v1194, 16
        %v1477 = vrot.slane %v1475, 5
        %v1478 = vsel %vm1224, %v1473, %v1477
        %v1479 = vshrl.u32 %v1194, 16
        %v1481 = vrot.slane %v1479, 4
        %v1482 = vor.u32 %v1481, %v1477
        %v1483 = vrot.slane %v1482, 4
        %v1485 = vshll.u32 %v1216, 16
        %v1487 = vrot.slane %v1485, 5
        %v1488 = vsel %vm1224, %v1483, %v1487
        %v1490 = vshrl.u32 %v1195, 16
        %v1492 = vrot.slane %v1490, 4
        %v1493 = vshll.u32 %v1195, 16
        %v1495 = vrot.slane %v1493, 5
        %v1496 = vor.u32 %v1492, %v1495
        %v1497 = vrot.slane %v1496, 4
        %v1499 = vshll.u32 %v1196, 16
        %v1501 = vrot.slane %v1499, 5
        %v1502 = vsel %vm1224, %v1497, %v1501
        %v1503 = vshrl.u32 %v1196, 16
        %v1505 = vrot.slane %v1503, 4
        %v1506 = vor.u32 %v1505, %v1501
        %v1507 = vrot.slane %v1506, 4
        %v1509 = vshll.u32 %v1217, 16
        %v1511 = vrot.slane %v1509, 5
        %v1512 = vsel %vm1224, %v1507, %v1511
        %v1514 = vshrl.u32 %v1197, 16
        %v1516 = vrot.slane %v1514, 4
        %v1517 = vshll.u32 %v1197, 16
        %v1519 = vrot.slane %v1517, 5
        %v1520 = vor.u32 %v1516, %v1519
        %v1521 = vrot.slane %v1520, 4
        %v1523 = vshll.u32 %v1198, 16
        %v1525 = vrot.slane %v1523, 5
        %v1526 = vsel %vm1224, %v1521, %v1525
        %v1527 = vshrl.u32 %v1198, 16
        %v1529 = vrot.slane %v1527, 4
        %v1530 = vor.u32 %v1529, %v1525
        %v1531 = vrot.slane %v1530, 4
        %v1533 = vshll.u32 %v1218, 16
        %v1535 = vrot.slane %v1533, 5
        %v1536 = vsel %vm1224, %v1531, %v1535
        %v1538 = vshrl.u32 %v1199, 16
        %v1540 = vrot.slane %v1538, 4
        %v1541 = vshll.u32 %v1199, 16
        %v1543 = vrot.slane %v1541, 5
        %v1544 = vor.u32 %v1540, %v1543
        %v1545 = vrot.slane %v1544, 4
        %v1547 = vshll.u32 %v1200, 16
        %v1549 = vrot.slane %v1547, 5
        %v1550 = vsel %vm1224, %v1545, %v1549
        %v1551 = vshrl.u32 %v1200, 16
        %v1553 = vrot.slane %v1551, 4
        %v1554 = vor.u32 %v1553, %v1549
        %v1555 = vrot.slane %v1554, 4
        %v1557 = vshll.u32 %v1219, 16
        %v1559 = vrot.slane %v1557, 5
        %v1560 = vsel %vm1224, %v1555, %v1559
        %v1562 = vshrl.u32 %v1201, 16
        %v1564 = vrot.slane %v1562, 4
        %v1565 = vshll.u32 %v1201, 16
        %v1567 = vrot.slane %v1565, 5
        %v1568 = vor.u32 %v1564, %v1567
        %v1569 = vrot.slane %v1568, 4
        %v1571 = vshll.u32 %v1202, 16
        %v1573 = vrot.slane %v1571, 5
        %v1574 = vsel %vm1224, %v1569, %v1573
        %v1575 = vshrl.u32 %v1202, 16
        %v1577 = vrot.slane %v1575, 4
        %v1578 = vor.u32 %v1577, %v1573
        %v1579 = vrot.slane %v1578, 4
        %v1581 = vshll.u32 %v1220, 16
        %v1583 = vrot.slane %v1581, 5
        %v1584 = vsel %vm1224, %v1579, %v1583
        %v1586 = vshrl.u32 %v1203, 16
        %v1588 = vrot.slane %v1586, 4
        %v1589 = vshll.u32 %v1203, 16
        %v1591 = vrot.slane %v1589, 5
        %v1592 = vor.u32 %v1588, %v1591
        %v1593 = vrot.slane %v1592, 4
        %v1595 = vshll.u32 %v1204, 16
        %v1597 = vrot.slane %v1595, 5
        %v1598 = vsel %vm1224, %v1593, %v1597
        %v1599 = vshrl.u32 %v1204, 16
        %v1601 = vrot.slane %v1599, 4
        %v1602 = vor.u32 %v1601, %v1597
        %v1603 = vrot.slane %v1602, 4
        %v1605 = vshll.u32 %v1221, 16
        %v1607 = vrot.slane %v1605, 5
        %v1608 = vsel %vm1224, %v1603, %v1607
        %s1609 = scalar_lea.vmem %s3, 2
        %v1610 = vld [vmem:[%s1609] sm:$0x3]
        %v1611 = vunpack.c.l.b16 %v1238
        %v1612 = vunpack.c.l.b16 %v1248
        %v1613 = vunpack.c.l.b16 %v1262
        %v1614 = vunpack.c.l.b16 %v1272
        %v1615 = vunpack.c.l.b16 %v1286
        %v1616 = vunpack.c.l.b16 %v1296
        %v1617 = vunpack.c.l.b16 %v1310
        %v1618 = vunpack.c.l.b16 %v1320
        %v1619 = vunpack.c.l.b16 %v1334
        %v1620 = vunpack.c.l.b16 %v1344
        %v1621 = vunpack.c.l.b16 %v1358
        %v1622 = vunpack.c.l.b16 %v1368
        %v1623 = vunpack.c.l.b16 %v1382
        %v1624 = vunpack.c.l.b16 %v1392
        %v1625 = vunpack.c.l.b16 %v1406
        %v1626 = vunpack.c.l.b16 %v1416
        %v1627 = vunpack.c.l.b16 %v1430
        %v1628 = vunpack.c.l.b16 %v1440
        %v1629 = vunpack.c.l.b16 %v1454
        %v1630 = vunpack.c.l.b16 %v1464
        %v1631 = vunpack.c.l.b16 %v1478
        %v1632 = vunpack.c.l.b16 %v1488
        %v1633 = vunpack.c.l.b16 %v1502
        %v1634 = vunpack.c.l.b16 %v1512
        %v1635 = vunpack.c.l.b16 %v1526
        %v1636 = vunpack.c.l.b16 %v1536
        %v1637 = vunpack.c.l.b16 %v1550
        %v1638 = vunpack.c.l.b16 %v1560
        %v1639 = vunpack.c.l.b16 %v1574
        %v1640 = vunpack.c.l.b16 %v1584
        %v1641 = vunpack.c.l.b16 %v1598
        %v1642 = vunpack.c.l.b16 %v1608
        %v1643 = vpack.c.b16 %v1612, %v1611
        %v1644 = vpack.c.b16 %v1614, %v1613
        %v1645 = vpack.c.b16 %v1616, %v1615
        %v1646 = vpack.c.b16 %v1618, %v1617
        %v1647 = vpack.c.b16 %v1620, %v1619
        %v1648 = vpack.c.b16 %v1622, %v1621
        %v1649 = vpack.c.b16 %v1624, %v1623
        %v1650 = vpack.c.b16 %v1626, %v1625
        %v1651 = vpack.c.b16 %v1628, %v1627
        %v1652 = vpack.c.b16 %v1630, %v1629
        %v1653 = vpack.c.b16 %v1632, %v1631
        %v1654 = vpack.c.b16 %v1634, %v1633
        %v1655 = vpack.c.b16 %v1636, %v1635
        %v1656 = vpack.c.b16 %v1638, %v1637
        %v1657 = vpack.c.b16 %v1640, %v1639
        %v1658 = vpack.c.b16 %v1642, %v1641
        %vm1659 = vcmask 31744
        %v1661 = vsel %vm1659, %v1643, 0
        %v1664 = vsel %vm1659, %v1644, 0
        %v1667 = vsel %vm1659, %v1645, 0
        %v1670 = vsel %vm1659, %v1646, 0
        %v1673 = vsel %vm1659, %v1647, 0
        %v1676 = vsel %vm1659, %v1648, 0
        %v1679 = vsel %vm1659, %v1649, 0
        %v1682 = vsel %vm1659, %v1650, 0
        %v1685 = vsel %vm1659, %v1651, 0
        %v1688 = vsel %vm1659, %v1652, 0
        %v1691 = vsel %vm1659, %v1653, 0
        %v1694 = vsel %vm1659, %v1654, 0
        %v1697 = vsel %vm1659, %v1655, 0
        %v1700 = vsel %vm1659, %v1656, 0
        %v1703 = vsel %vm1659, %v1657, 0
        %v1706 = vsel %vm1659, %v1658, 0
        %vm1708 = vcmask 1041408
        %v1710 = vsel %vm1708, %v1610, 0
        %1712 = vmatpush.bf16.msra.mxu0 0
        %1713 = vmatpush.bf16.msra.mxu0 0
        %1714 = vmatpush.bf16.msra.mxu0 0
        %1715 = vmatpush.bf16.msra.mxu0 0
        %1716 = vmatpush.bf16.msra.mxu0 0
        %1717 = vmatpush.bf16.msra.mxu0 0
        %1718 = vmatpush.bf16.msra.mxu0 0
        %1719 = vmatpush.bf16.msra.mxu0 %v1710
        %1720 = vmatmul.bf16.gmra.mxu0 %v1661
        %v1721 = vpop.f32.mrf.mxu0
        %v1722 = vadd.f32 0.0, %v1721
        %v1723 = vpop.f32.mrf.mxu0
        %v1724 = vadd.f32 0.0, %v1723
        %1725 = vmatmul.bf16.gmra.mxu0 %v1664
        %v1726 = vpop.f32.mrf.mxu0
        %v1727 = vadd.f32 0.0, %v1726
        %v1728 = vpop.f32.mrf.mxu0
        %v1729 = vadd.f32 0.0, %v1728
        %1730 = vmatmul.bf16.gmra.mxu0 %v1667
        %v1731 = vpop.f32.mrf.mxu0
        %v1732 = vadd.f32 0.0, %v1731
        %v1733 = vpop.f32.mrf.mxu0
        %v1734 = vadd.f32 0.0, %v1733
        %1735 = vmatmul.bf16.gmra.mxu0 %v1670
        %v1736 = vpop.f32.mrf.mxu0
        %v1737 = vadd.f32 0.0, %v1736
        %v1738 = vpop.f32.mrf.mxu0
        %v1739 = vadd.f32 0.0, %v1738
        %1740 = vmatmul.bf16.gmra.mxu0 %v1673
        %v1741 = vpop.f32.mrf.mxu0
        %v1742 = vadd.f32 0.0, %v1741
        %v1743 = vpop.f32.mrf.mxu0
        %v1744 = vadd.f32 0.0, %v1743
        %1745 = vmatmul.bf16.gmra.mxu0 %v1676
        %v1746 = vpop.f32.mrf.mxu0
        %v1747 = vadd.f32 0.0, %v1746
        %v1748 = vpop.f32.mrf.mxu0
        %v1749 = vadd.f32 0.0, %v1748
        %1750 = vmatmul.bf16.gmra.mxu0 %v1679
        %v1751 = vpop.f32.mrf.mxu0
        %v1752 = vadd.f32 0.0, %v1751
        %v1753 = vpop.f32.mrf.mxu0
        %v1754 = vadd.f32 0.0, %v1753
        %1755 = vmatmul.bf16.gmra.mxu0 %v1682
        %v1756 = vpop.f32.mrf.mxu0
        %v1757 = vadd.f32 0.0, %v1756
        %v1758 = vpop.f32.mrf.mxu0
        %v1759 = vadd.f32 0.0, %v1758
        %1760 = vmatmul.bf16.gmra.mxu0 %v1685
        %v1761 = vpop.f32.mrf.mxu0
        %v1762 = vadd.f32 0.0, %v1761
        %v1763 = vpop.f32.mrf.mxu0
        %v1764 = vadd.f32 0.0, %v1763
        %1765 = vmatmul.bf16.gmra.mxu0 %v1688
        %v1766 = vpop.f32.mrf.mxu0
        %v1767 = vadd.f32 0.0, %v1766
        %v1768 = vpop.f32.mrf.mxu0
        %v1769 = vadd.f32 0.0, %v1768
        %1770 = vmatmul.bf16.gmra.mxu0 %v1691
        %v1771 = vpop.f32.mrf.mxu0
        %v1772 = vadd.f32 0.0, %v1771
        %v1773 = vpop.f32.mrf.mxu0
        %v1774 = vadd.f32 0.0, %v1773
        %1775 = vmatmul.bf16.gmra.mxu0 %v1694
        %v1776 = vpop.f32.mrf.mxu0
        %v1777 = vadd.f32 0.0, %v1776
        %v1778 = vpop.f32.mrf.mxu0
        %v1779 = vadd.f32 0.0, %v1778
        %1780 = vmatmul.bf16.gmra.mxu0 %v1697
        %v1781 = vpop.f32.mrf.mxu0
        %v1782 = vadd.f32 0.0, %v1781
        %v1783 = vpop.f32.mrf.mxu0
        %v1784 = vadd.f32 0.0, %v1783
        %1785 = vmatmul.bf16.gmra.mxu0 %v1700
        %v1786 = vpop.f32.mrf.mxu0
        %v1787 = vadd.f32 0.0, %v1786
        %v1788 = vpop.f32.mrf.mxu0
        %v1789 = vadd.f32 0.0, %v1788
        %1790 = vmatmul.bf16.gmra.mxu0 %v1703
        %v1791 = vpop.f32.mrf.mxu0
        %v1792 = vadd.f32 0.0, %v1791
        %v1793 = vpop.f32.mrf.mxu0
        %v1794 = vadd.f32 0.0, %v1793
        %1795 = vmatmul.bf16.gmra.mxu0 %v1706
        %v1796 = vpop.f32.mrf.mxu0
        %v1797 = vadd.f32 0.0, %v1796
        %v1798 = vpop.f32.mrf.mxu0
        %v1799 = vadd.f32 0.0, %v1798
        %1800 = vdwg.mxu0
        %v1833 = vunpack.c.l.b16 %v1173
        %v1834 = vunpack.c.l.b16 %v1174
        %v1835 = vunpack.c.l.b16 %v1175
        %v1836 = vunpack.c.l.b16 %v1176
        %v1837 = vunpack.c.l.b16 %v1177
        %v1838 = vunpack.c.l.b16 %v1178
        %v1839 = vunpack.c.l.b16 %v1179
        %v1840 = vunpack.c.l.b16 %v1180
        %v1841 = vunpack.c.l.b16 %v1181
        %v1842 = vunpack.c.l.b16 %v1182
        %v1843 = vunpack.c.l.b16 %v1183
        %v1844 = vunpack.c.l.b16 %v1184
        %v1845 = vunpack.c.l.b16 %v1185
        %v1846 = vunpack.c.l.b16 %v1186
        %v1847 = vunpack.c.l.b16 %v1187
        %v1848 = vunpack.c.l.b16 %v1188
        %v1849 = vunpack.c.l.b16 %v1189
        %v1850 = vunpack.c.l.b16 %v1190
        %v1851 = vunpack.c.l.b16 %v1191
        %v1852 = vunpack.c.l.b16 %v1192
        %v1853 = vunpack.c.l.b16 %v1193
        %v1854 = vunpack.c.l.b16 %v1194
        %v1855 = vunpack.c.l.b16 %v1195
        %v1856 = vunpack.c.l.b16 %v1196
        %v1857 = vunpack.c.l.b16 %v1197
        %v1858 = vunpack.c.l.b16 %v1198
        %v1859 = vunpack.c.l.b16 %v1199
        %v1860 = vunpack.c.l.b16 %v1200
        %v1861 = vunpack.c.l.b16 %v1201
        %v1862 = vunpack.c.l.b16 %v1202
        %v1863 = vunpack.c.l.b16 %v1203
        %v1864 = vunpack.c.l.b16 %v1204
        %v1865 = vpack.c.b16 %v1834, %v1833
        %v1866 = vpack.c.b16 %v1836, %v1835
        %v1867 = vpack.c.b16 %v1838, %v1837
        %v1868 = vpack.c.b16 %v1840, %v1839
        %v1869 = vpack.c.b16 %v1842, %v1841
        %v1870 = vpack.c.b16 %v1844, %v1843
        %v1871 = vpack.c.b16 %v1846, %v1845
        %v1872 = vpack.c.b16 %v1848, %v1847
        %v1873 = vpack.c.b16 %v1850, %v1849
        %v1874 = vpack.c.b16 %v1852, %v1851
        %v1875 = vpack.c.b16 %v1854, %v1853
        %v1876 = vpack.c.b16 %v1856, %v1855
        %v1877 = vpack.c.b16 %v1858, %v1857
        %v1878 = vpack.c.b16 %v1860, %v1859
        %v1879 = vpack.c.b16 %v1862, %v1861
        %v1880 = vpack.c.b16 %v1864, %v1863
        %v1882 = vsel %vm1659, %v1865, 0
        %v1885 = vsel %vm1659, %v1866, 0
        %v1888 = vsel %vm1659, %v1867, 0
        %v1891 = vsel %vm1659, %v1868, 0
        %v1894 = vsel %vm1659, %v1869, 0
        %v1897 = vsel %vm1659, %v1870, 0
        %v1900 = vsel %vm1659, %v1871, 0
        %v1903 = vsel %vm1659, %v1872, 0
        %v1906 = vsel %vm1659, %v1873, 0
        %v1909 = vsel %vm1659, %v1874, 0
        %v1912 = vsel %vm1659, %v1875, 0
        %v1915 = vsel %vm1659, %v1876, 0
        %v1918 = vsel %vm1659, %v1877, 0
        %v1921 = vsel %vm1659, %v1878, 0
        %v1924 = vsel %vm1659, %v1879, 0
        %v1927 = vsel %vm1659, %v1880, 0
        %v1930 = vsel %vm1708, %v1205, 0
        %1932 = vmatpush.bf16.msra.mxu0 0
        %1933 = vmatpush.bf16.msra.mxu0 0
        %1934 = vmatpush.bf16.msra.mxu0 0
        %1935 = vmatpush.bf16.msra.mxu0 0
        %1936 = vmatpush.bf16.msra.mxu0 0
        %1937 = vmatpush.bf16.msra.mxu0 0
        %1938 = vmatpush.bf16.msra.mxu0 0
        %1939 = vmatpush.bf16.msra.mxu0 %v1930
        %1940 = vmatmul.bf16.gmra.mxu0 %v1882
        %v1941 = vpop.f32.mrf.mxu0
        %v1942 = vadd.f32 %v1722, %v1941
        %v1943 = vpop.f32.mrf.mxu0
        %v1944 = vadd.f32 %v1724, %v1943
        %1945 = vmatmul.bf16.gmra.mxu0 %v1885
        %v1946 = vpop.f32.mrf.mxu0
        %v1947 = vadd.f32 %v1727, %v1946
        %v1948 = vpop.f32.mrf.mxu0
        %v1949 = vadd.f32 %v1729, %v1948
        %1950 = vmatmul.bf16.gmra.mxu0 %v1888
        %v1951 = vpop.f32.mrf.mxu0
        %v1952 = vadd.f32 %v1732, %v1951
        %v1953 = vpop.f32.mrf.mxu0
        %v1954 = vadd.f32 %v1734, %v1953
        %1955 = vmatmul.bf16.gmra.mxu0 %v1891
        %v1956 = vpop.f32.mrf.mxu0
        %v1957 = vadd.f32 %v1737, %v1956
        %v1958 = vpop.f32.mrf.mxu0
        %v1959 = vadd.f32 %v1739, %v1958
        %1960 = vmatmul.bf16.gmra.mxu0 %v1894
        %v1961 = vpop.f32.mrf.mxu0
        %v1962 = vadd.f32 %v1742, %v1961
        %v1963 = vpop.f32.mrf.mxu0
        %v1964 = vadd.f32 %v1744, %v1963
        %1965 = vmatmul.bf16.gmra.mxu0 %v1897
        %v1966 = vpop.f32.mrf.mxu0
        %v1967 = vadd.f32 %v1747, %v1966
        %v1968 = vpop.f32.mrf.mxu0
        %v1969 = vadd.f32 %v1749, %v1968
        %1970 = vmatmul.bf16.gmra.mxu0 %v1900
        %v1971 = vpop.f32.mrf.mxu0
        %v1972 = vadd.f32 %v1752, %v1971
        %v1973 = vpop.f32.mrf.mxu0
        %v1974 = vadd.f32 %v1754, %v1973
        %1975 = vmatmul.bf16.gmra.mxu0 %v1903
        %v1976 = vpop.f32.mrf.mxu0
        %v1977 = vadd.f32 %v1757, %v1976
        %v1978 = vpop.f32.mrf.mxu0
        %v1979 = vadd.f32 %v1759, %v1978
        %1980 = vmatmul.bf16.gmra.mxu0 %v1906
        %v1981 = vpop.f32.mrf.mxu0
        %v1982 = vadd.f32 %v1762, %v1981
        %v1983 = vpop.f32.mrf.mxu0
        %v1984 = vadd.f32 %v1764, %v1983
        %1985 = vmatmul.bf16.gmra.mxu0 %v1909
        %v1986 = vpop.f32.mrf.mxu0
        %v1987 = vadd.f32 %v1767, %v1986
        %v1988 = vpop.f32.mrf.mxu0
        %v1989 = vadd.f32 %v1769, %v1988
        %1990 = vmatmul.bf16.gmra.mxu0 %v1912
        %v1991 = vpop.f32.mrf.mxu0
        %v1992 = vadd.f32 %v1772, %v1991
        %v1993 = vpop.f32.mrf.mxu0
        %v1994 = vadd.f32 %v1774, %v1993
        %1995 = vmatmul.bf16.gmra.mxu0 %v1915
        %v1996 = vpop.f32.mrf.mxu0
        %v1997 = vadd.f32 %v1777, %v1996
        %v1998 = vpop.f32.mrf.mxu0
        %v1999 = vadd.f32 %v1779, %v1998
        %2000 = vmatmul.bf16.gmra.mxu0 %v1918
        %v2001 = vpop.f32.mrf.mxu0
        %v2002 = vadd.f32 %v1782, %v2001
        %v2003 = vpop.f32.mrf.mxu0
        %v2004 = vadd.f32 %v1784, %v2003
        %2005 = vmatmul.bf16.gmra.mxu0 %v1921
        %v2006 = vpop.f32.mrf.mxu0
        %v2007 = vadd.f32 %v1787, %v2006
        %v2008 = vpop.f32.mrf.mxu0
        %v2009 = vadd.f32 %v1789, %v2008
        %2010 = vmatmul.bf16.gmra.mxu0 %v1924
        %v2011 = vpop.f32.mrf.mxu0
        %v2012 = vadd.f32 %v1792, %v2011
        %v2013 = vpop.f32.mrf.mxu0
        %v2014 = vadd.f32 %v1794, %v2013
        %2015 = vmatmul.bf16.gmra.mxu0 %v1927
        %v2016 = vpop.f32.mrf.mxu0
        %v2017 = vadd.f32 %v1797, %v2016
        %v2018 = vpop.f32.mrf.mxu0
        %v2019 = vadd.f32 %v1799, %v2018
        %2020 = vdwg.mxu0
        %v2021 = vld [vmem:[#allocation2] sm:$0xe]
        %v2022 = vld [vmem:[#allocation2 + $0xc] sm:$0xe]
        %v2023 = vld [vmem:[#allocation2 + $0x18] sm:$0xe]
        %v2024 = vld [vmem:[#allocation2 + $0x24] sm:$0xe]
        %v2025 = vld [vmem:[#allocation2 + $0x30] sm:$0xe]
        %v2026 = vld [vmem:[#allocation2 + $0x3c] sm:$0xe]
        %v2027 = vld [vmem:[#allocation2 + $0x48] sm:$0xe]
        %v2028 = vld [vmem:[#allocation2 + $0x54] sm:$0xe]
        %v2029 = vld [vmem:[#allocation2 + $0x60] sm:$0xe]
        %v2030 = vld [vmem:[#allocation2 + $0x6c] sm:$0xe]
        %v2031 = vld [vmem:[#allocation2 + $0x78] sm:$0xe]
        %v2032 = vld [vmem:[#allocation2 + $0x84] sm:$0xe]
        %v2033 = vld [vmem:[#allocation2 + $0x90] sm:$0xe]
        %v2034 = vld [vmem:[#allocation2 + $0x9c] sm:$0xe]
        %v2035 = vld [vmem:[#allocation2 + $0xa8] sm:$0xe]
        %v2036 = vld [vmem:[#allocation2 + $0xb4] sm:$0xe]
        %vm2069 = vcmask 1042432
        %vm2070 = vcmask 1046532
        %vm2071 = vmor %vm2069, %vm2070
        %v2072 = vrot.slane %v2021, 5
        %v2073 = vrot.slane %v2072, 4
        %v2074 = vrot.slane %v1174, 5
        %v2075 = vsel %vm2071, %v2073, %v2074
        %v2076 = vrot.slane %v2074, 4
        %v2077 = vrot.slane %v1206, 5
        %v2078 = vsel %vm2071, %v2076, %v2077
        %v2079 = vrot.slane %v2022, 5
        %v2080 = vrot.slane %v2079, 4
        %v2081 = vrot.slane %v1176, 5
        %v2082 = vsel %vm2071, %v2080, %v2081
        %v2083 = vrot.slane %v2081, 4
        %v2084 = vrot.slane %v1207, 5
        %v2085 = vsel %vm2071, %v2083, %v2084
        %v2086 = vrot.slane %v2023, 5
        %v2087 = vrot.slane %v2086, 4
        %v2088 = vrot.slane %v1178, 5
        %v2089 = vsel %vm2071, %v2087, %v2088
        %v2090 = vrot.slane %v2088, 4
        %v2091 = vrot.slane %v1208, 5
        %v2092 = vsel %vm2071, %v2090, %v2091
        %v2093 = vrot.slane %v2024, 5
        %v2094 = vrot.slane %v2093, 4
        %v2095 = vrot.slane %v1180, 5
        %v2096 = vsel %vm2071, %v2094, %v2095
        %v2097 = vrot.slane %v2095, 4
        %v2098 = vrot.slane %v1209, 5
        %v2099 = vsel %vm2071, %v2097, %v2098
        %v2100 = vrot.slane %v2025, 5
        %v2101 = vrot.slane %v2100, 4
        %v2102 = vrot.slane %v1182, 5
        %v2103 = vsel %vm2071, %v2101, %v2102
        %v2104 = vrot.slane %v2102, 4
        %v2105 = vrot.slane %v1210, 5
        %v2106 = vsel %vm2071, %v2104, %v2105
        %v2107 = vrot.slane %v2026, 5
        %v2108 = vrot.slane %v2107, 4
        %v2109 = vrot.slane %v1184, 5
        %v2110 = vsel %vm2071, %v2108, %v2109
        %v2111 = vrot.slane %v2109, 4
        %v2112 = vrot.slane %v1211, 5
        %v2113 = vsel %vm2071, %v2111, %v2112
        %v2114 = vrot.slane %v2027, 5
        %v2115 = vrot.slane %v2114, 4
        %v2116 = vrot.slane %v1186, 5
        %v2117 = vsel %vm2071, %v2115, %v2116
        %v2118 = vrot.slane %v2116, 4
        %v2119 = vrot.slane %v1212, 5
        %v2120 = vsel %vm2071, %v2118, %v2119
        %v2121 = vrot.slane %v2028, 5
        %v2122 = vrot.slane %v2121, 4
        %v2123 = vrot.slane %v1188, 5
        %v2124 = vsel %vm2071, %v2122, %v2123
        %v2125 = vrot.slane %v2123, 4
        %v2126 = vrot.slane %v1213, 5
        %v2127 = vsel %vm2071, %v2125, %v2126
        %v2128 = vrot.slane %v2029, 5
        %v2129 = vrot.slane %v2128, 4
        %v2130 = vrot.slane %v1190, 5
        %v2131 = vsel %vm2071, %v2129, %v2130
        %v2132 = vrot.slane %v2130, 4
        %v2133 = vrot.slane %v1214, 5
        %v2134 = vsel %vm2071, %v2132, %v2133
        %v2135 = vrot.slane %v2030, 5
        %v2136 = vrot.slane %v2135, 4
        %v2137 = vrot.slane %v1192, 5
        %v2138 = vsel %vm2071, %v2136, %v2137
        %v2139 = vrot.slane %v2137, 4
        %v2140 = vrot.slane %v1215, 5
        %v2141 = vsel %vm2071, %v2139, %v2140
        %v2142 = vrot.slane %v2031, 5
        %v2143 = vrot.slane %v2142, 4
        %v2144 = vrot.slane %v1194, 5
        %v2145 = vsel %vm2071, %v2143, %v2144
        %v2146 = vrot.slane %v2144, 4
        %v2147 = vrot.slane %v1216, 5
        %v2148 = vsel %vm2071, %v2146, %v2147
        %v2149 = vrot.slane %v2032, 5
        %v2150 = vrot.slane %v2149, 4
        %v2151 = vrot.slane %v1196, 5
        %v2152 = vsel %vm2071, %v2150, %v2151
        %v2153 = vrot.slane %v2151, 4
        %v2154 = vrot.slane %v1217, 5
        %v2155 = vsel %vm2071, %v2153, %v2154
        %v2156 = vrot.slane %v2033, 5
        %v2157 = vrot.slane %v2156, 4
        %v2158 = vrot.slane %v1198, 5
        %v2159 = vsel %vm2071, %v2157, %v2158
        %v2160 = vrot.slane %v2158, 4
        %v2161 = vrot.slane %v1218, 5
        %v2162 = vsel %vm2071, %v2160, %v2161
        %v2163 = vrot.slane %v2034, 5
        %v2164 = vrot.slane %v2163, 4
        %v2165 = vrot.slane %v1200, 5
        %v2166 = vsel %vm2071, %v2164, %v2165
        %v2167 = vrot.slane %v2165, 4
        %v2168 = vrot.slane %v1219, 5
        %v2169 = vsel %vm2071, %v2167, %v2168
        %v2170 = vrot.slane %v2035, 5
        %v2171 = vrot.slane %v2170, 4
        %v2172 = vrot.slane %v1202, 5
        %v2173 = vsel %vm2071, %v2171, %v2172
        %v2174 = vrot.slane %v2172, 4
        %v2175 = vrot.slane %v1220, 5
        %v2176 = vsel %vm2071, %v2174, %v2175
        %v2177 = vrot.slane %v2036, 5
        %v2178 = vrot.slane %v2177, 4
        %v2179 = vrot.slane %v1204, 5
        %v2180 = vsel %vm2071, %v2178, %v2179
        %v2181 = vrot.slane %v2179, 4
        %v2182 = vrot.slane %v1221, 5
        %v2183 = vsel %vm2071, %v2181, %v2182
        %s2184 = scalar_lea.vmem %s3, 4
        %v2185 = vld [vmem:[%s2184] sm:$0x3]
        %v2186 = vunpack.c.l.b16 %v2075
        %v2187 = vunpack.c.l.b16 %v2078
        %v2188 = vunpack.c.l.b16 %v2082
        %v2189 = vunpack.c.l.b16 %v2085
        %v2190 = vunpack.c.l.b16 %v2089
        %v2191 = vunpack.c.l.b16 %v2092
        %v2192 = vunpack.c.l.b16 %v2096
        %v2193 = vunpack.c.l.b16 %v2099
        %v2194 = vunpack.c.l.b16 %v2103
        %v2195 = vunpack.c.l.b16 %v2106
        %v2196 = vunpack.c.l.b16 %v2110
        %v2197 = vunpack.c.l.b16 %v2113
        %v2198 = vunpack.c.l.b16 %v2117
        %v2199 = vunpack.c.l.b16 %v2120
        %v2200 = vunpack.c.l.b16 %v2124
        %v2201 = vunpack.c.l.b16 %v2127
        %v2202 = vunpack.c.l.b16 %v2131
        %v2203 = vunpack.c.l.b16 %v2134
        %v2204 = vunpack.c.l.b16 %v2138
        %v2205 = vunpack.c.l.b16 %v2141
        %v2206 = vunpack.c.l.b16 %v2145
        %v2207 = vunpack.c.l.b16 %v2148
        %v2208 = vunpack.c.l.b16 %v2152
        %v2209 = vunpack.c.l.b16 %v2155
        %v2210 = vunpack.c.l.b16 %v2159
        %v2211 = vunpack.c.l.b16 %v2162
        %v2212 = vunpack.c.l.b16 %v2166
        %v2213 = vunpack.c.l.b16 %v2169
        %v2214 = vunpack.c.l.b16 %v2173
        %v2215 = vunpack.c.l.b16 %v2176
        %v2216 = vunpack.c.l.b16 %v2180
        %v2217 = vunpack.c.l.b16 %v2183
        %v2218 = vpack.c.b16 %v2187, %v2186
        %v2219 = vpack.c.b16 %v2189, %v2188
        %v2220 = vpack.c.b16 %v2191, %v2190
        %v2221 = vpack.c.b16 %v2193, %v2192
        %v2222 = vpack.c.b16 %v2195, %v2194
        %v2223 = vpack.c.b16 %v2197, %v2196
        %v2224 = vpack.c.b16 %v2199, %v2198
        %v2225 = vpack.c.b16 %v2201, %v2200
        %v2226 = vpack.c.b16 %v2203, %v2202
        %v2227 = vpack.c.b16 %v2205, %v2204
        %v2228 = vpack.c.b16 %v2207, %v2206
        %v2229 = vpack.c.b16 %v2209, %v2208
        %v2230 = vpack.c.b16 %v2211, %v2210
        %v2231 = vpack.c.b16 %v2213, %v2212
        %v2232 = vpack.c.b16 %v2215, %v2214
        %v2233 = vpack.c.b16 %v2217, %v2216
        %v2235 = vsel %vm1659, %v2218, 0
        %v2238 = vsel %vm1659, %v2219, 0
        %v2241 = vsel %vm1659, %v2220, 0
        %v2244 = vsel %vm1659, %v2221, 0
        %v2247 = vsel %vm1659, %v2222, 0
        %v2250 = vsel %vm1659, %v2223, 0
        %v2253 = vsel %vm1659, %v2224, 0
        %v2256 = vsel %vm1659, %v2225, 0
        %v2259 = vsel %vm1659, %v2226, 0
        %v2262 = vsel %vm1659, %v2227, 0
        %v2265 = vsel %vm1659, %v2228, 0
        %v2268 = vsel %vm1659, %v2229, 0
        %v2271 = vsel %vm1659, %v2230, 0
        %v2274 = vsel %vm1659, %v2231, 0
        %v2277 = vsel %vm1659, %v2232, 0
        %v2280 = vsel %vm1659, %v2233, 0
        %v2283 = vsel %vm1708, %v2185, 0
        %2285 = vmatpush.bf16.msra.mxu0 0
        %2286 = vmatpush.bf16.msra.mxu0 0
        %2287 = vmatpush.bf16.msra.mxu0 0
        %2288 = vmatpush.bf16.msra.mxu0 0
        %2289 = vmatpush.bf16.msra.mxu0 0
        %2290 = vmatpush.bf16.msra.mxu0 0
        %2291 = vmatpush.bf16.msra.mxu0 0
        %2292 = vmatpush.bf16.msra.mxu0 %v2283
        %2293 = vmatmul.bf16.gmra.mxu0 %v2235
        %v2294 = vpop.f32.mrf.mxu0
        %v2295 = vadd.f32 0.0, %v2294
        %v2296 = vpop.f32.mrf.mxu0
        %v2297 = vadd.f32 0.0, %v2296
        %2298 = vmatmul.bf16.gmra.mxu0 %v2238
        %v2299 = vpop.f32.mrf.mxu0
        %v2300 = vadd.f32 0.0, %v2299
        %v2301 = vpop.f32.mrf.mxu0
        %v2302 = vadd.f32 0.0, %v2301
        %2303 = vmatmul.bf16.gmra.mxu0 %v2241
        %v2304 = vpop.f32.mrf.mxu0
        %v2305 = vadd.f32 0.0, %v2304
        %v2306 = vpop.f32.mrf.mxu0
        %v2307 = vadd.f32 0.0, %v2306
        %2308 = vmatmul.bf16.gmra.mxu0 %v2244
        %v2309 = vpop.f32.mrf.mxu0
        %v2310 = vadd.f32 0.0, %v2309
        %v2311 = vpop.f32.mrf.mxu0
        %v2312 = vadd.f32 0.0, %v2311
        %2313 = vmatmul.bf16.gmra.mxu0 %v2247
        %v2314 = vpop.f32.mrf.mxu0
        %v2315 = vadd.f32 0.0, %v2314
        %v2316 = vpop.f32.mrf.mxu0
        %v2317 = vadd.f32 0.0, %v2316
        %2318 = vmatmul.bf16.gmra.mxu0 %v2250
        %v2319 = vpop.f32.mrf.mxu0
        %v2320 = vadd.f32 0.0, %v2319
        %v2321 = vpop.f32.mrf.mxu0
        %v2322 = vadd.f32 0.0, %v2321
        %2323 = vmatmul.bf16.gmra.mxu0 %v2253
        %v2324 = vpop.f32.mrf.mxu0
        %v2325 = vadd.f32 0.0, %v2324
        %v2326 = vpop.f32.mrf.mxu0
        %v2327 = vadd.f32 0.0, %v2326
        %2328 = vmatmul.bf16.gmra.mxu0 %v2256
        %v2329 = vpop.f32.mrf.mxu0
        %v2330 = vadd.f32 0.0, %v2329
        %v2331 = vpop.f32.mrf.mxu0
        %v2332 = vadd.f32 0.0, %v2331
        %2333 = vmatmul.bf16.gmra.mxu0 %v2259
        %v2334 = vpop.f32.mrf.mxu0
        %v2335 = vadd.f32 0.0, %v2334
        %v2336 = vpop.f32.mrf.mxu0
        %v2337 = vadd.f32 0.0, %v2336
        %2338 = vmatmul.bf16.gmra.mxu0 %v2262
        %v2339 = vpop.f32.mrf.mxu0
        %v2340 = vadd.f32 0.0, %v2339
        %v2341 = vpop.f32.mrf.mxu0
        %v2342 = vadd.f32 0.0, %v2341
        %2343 = vmatmul.bf16.gmra.mxu0 %v2265
        %v2344 = vpop.f32.mrf.mxu0
        %v2345 = vadd.f32 0.0, %v2344
        %v2346 = vpop.f32.mrf.mxu0
        %v2347 = vadd.f32 0.0, %v2346
        %2348 = vmatmul.bf16.gmra.mxu0 %v2268
        %v2349 = vpop.f32.mrf.mxu0
        %v2350 = vadd.f32 0.0, %v2349
        %v2351 = vpop.f32.mrf.mxu0
        %v2352 = vadd.f32 0.0, %v2351
        %2353 = vmatmul.bf16.gmra.mxu0 %v2271
        %v2354 = vpop.f32.mrf.mxu0
        %v2355 = vadd.f32 0.0, %v2354
        %v2356 = vpop.f32.mrf.mxu0
        %v2357 = vadd.f32 0.0, %v2356
        %2358 = vmatmul.bf16.gmra.mxu0 %v2274
        %v2359 = vpop.f32.mrf.mxu0
        %v2360 = vadd.f32 0.0, %v2359
        %v2361 = vpop.f32.mrf.mxu0
        %v2362 = vadd.f32 0.0, %v2361
        %2363 = vmatmul.bf16.gmra.mxu0 %v2277
        %v2364 = vpop.f32.mrf.mxu0
        %v2365 = vadd.f32 0.0, %v2364
        %v2366 = vpop.f32.mrf.mxu0
        %v2367 = vadd.f32 0.0, %v2366
        %2368 = vmatmul.bf16.gmra.mxu0 %v2280
        %v2369 = vpop.f32.mrf.mxu0
        %v2370 = vadd.f32 0.0, %v2369
        %v2371 = vpop.f32.mrf.mxu0
        %v2372 = vadd.f32 0.0, %v2371
        %2373 = vdwg.mxu0
        %v2374 = vadd.f32 %v1942, %v2295
        %v2375 = vadd.f32 %v1944, %v2297
        %v2376 = vadd.f32 %v1947, %v2300
        %v2377 = vadd.f32 %v1949, %v2302
        %v2378 = vadd.f32 %v1952, %v2305
        %v2379 = vadd.f32 %v1954, %v2307
        %v2380 = vadd.f32 %v1957, %v2310
        %v2381 = vadd.f32 %v1959, %v2312
        %v2382 = vadd.f32 %v1962, %v2315
        %v2383 = vadd.f32 %v1964, %v2317
        %v2384 = vadd.f32 %v1967, %v2320
        %v2385 = vadd.f32 %v1969, %v2322
        %v2386 = vadd.f32 %v1972, %v2325
        %v2387 = vadd.f32 %v1974, %v2327
        %v2388 = vadd.f32 %v1977, %v2330
        %v2389 = vadd.f32 %v1979, %v2332
        %v2390 = vadd.f32 %v1982, %v2335
        %v2391 = vadd.f32 %v1984, %v2337
        %v2392 = vadd.f32 %v1987, %v2340
        %v2393 = vadd.f32 %v1989, %v2342
        %v2394 = vadd.f32 %v1992, %v2345
        %v2395 = vadd.f32 %v1994, %v2347
        %v2396 = vadd.f32 %v1997, %v2350
        %v2397 = vadd.f32 %v1999, %v2352
        %v2398 = vadd.f32 %v2002, %v2355
        %v2399 = vadd.f32 %v2004, %v2357
        %v2400 = vadd.f32 %v2007, %v2360
        %v2401 = vadd.f32 %v2009, %v2362
        %v2402 = vadd.f32 %v2012, %v2365
        %v2403 = vadd.f32 %v2014, %v2367
        %v2404 = vadd.f32 %v2017, %v2370
        %v2405 = vadd.f32 %v2019, %v2372
        %v2406 = vld [vmem:[%s635] sm:$0xf]
        %v2407 = vld [vmem:[%s635 + $0x4] sm:$0xf]
        %v2408 = vld [vmem:[%s635 + $0xc] sm:$0xf]
        %v2409 = vld [vmem:[%s635 + $0x10] sm:$0xf]
        %v2410 = vld [vmem:[%s635 + $0x18] sm:$0xf]
        %v2411 = vld [vmem:[%s635 + $0x1c] sm:$0xf]
        %v2412 = vld [vmem:[%s635 + $0x24] sm:$0xf]
        %v2413 = vld [vmem:[%s635 + $0x28] sm:$0xf]
        %v2414 = vld [vmem:[%s635 + $0x30] sm:$0xf]
        %v2415 = vld [vmem:[%s635 + $0x34] sm:$0xf]
        %v2416 = vld [vmem:[%s635 + $0x3c] sm:$0xf]
        %v2417 = vld [vmem:[%s635 + $0x40] sm:$0xf]
        %v2418 = vld [vmem:[%s635 + $0x48] sm:$0xf]
        %v2419 = vld [vmem:[%s635 + $0x4c] sm:$0xf]
        %v2420 = vld [vmem:[%s635 + $0x54] sm:$0xf]
        %v2421 = vld [vmem:[%s635 + $0x58] sm:$0xf]
        %v2422 = vld [vmem:[%s635 + $0x60] sm:$0xf]
        %v2423 = vld [vmem:[%s635 + $0x64] sm:$0xf]
        %v2424 = vld [vmem:[%s635 + $0x6c] sm:$0xf]
        %v2425 = vld [vmem:[%s635 + $0x70] sm:$0xf]
        %v2426 = vld [vmem:[%s635 + $0x78] sm:$0xf]
        %v2427 = vld [vmem:[%s635 + $0x7c] sm:$0xf]
        %v2428 = vld [vmem:[%s635 + $0x84] sm:$0xf]
        %v2429 = vld [vmem:[%s635 + $0x88] sm:$0xf]
        %v2430 = vld [vmem:[%s635 + $0x90] sm:$0xf]
        %v2431 = vld [vmem:[%s635 + $0x94] sm:$0xf]
        %v2432 = vld [vmem:[%s635 + $0x9c] sm:$0xf]
        %v2433 = vld [vmem:[%s635 + $0xa0] sm:$0xf]
        %v2434 = vld [vmem:[%s635 + $0xa8] sm:$0xf]
        %v2435 = vld [vmem:[%s635 + $0xac] sm:$0xf]
        %v2436 = vld [vmem:[%s635 + $0xb4] sm:$0xf]
        %v2437 = vld [vmem:[%s635 + $0xb8] sm:$0xf]
        %s2438 = scalar_lea.vmem %s3, 6
        %v2439 = vld [vmem:[%s2438] sm:$0x3]
        %v2472 = vunpack.c.l.b16 %v2406
        %v2473 = vunpack.c.l.b16 %v2407
        %v2474 = vunpack.c.l.b16 %v2408
        %v2475 = vunpack.c.l.b16 %v2409
        %v2476 = vunpack.c.l.b16 %v2410
        %v2477 = vunpack.c.l.b16 %v2411
        %v2478 = vunpack.c.l.b16 %v2412
        %v2479 = vunpack.c.l.b16 %v2413
        %v2480 = vunpack.c.l.b16 %v2414
        %v2481 = vunpack.c.l.b16 %v2415
        %v2482 = vunpack.c.l.b16 %v2416
        %v2483 = vunpack.c.l.b16 %v2417
        %v2484 = vunpack.c.l.b16 %v2418
        %v2485 = vunpack.c.l.b16 %v2419
        %v2486 = vunpack.c.l.b16 %v2420
        %v2487 = vunpack.c.l.b16 %v2421
        %v2488 = vunpack.c.l.b16 %v2422
        %v2489 = vunpack.c.l.b16 %v2423
        %v2490 = vunpack.c.l.b16 %v2424
        %v2491 = vunpack.c.l.b16 %v2425
        %v2492 = vunpack.c.l.b16 %v2426
        %v2493 = vunpack.c.l.b16 %v2427
        %v2494 = vunpack.c.l.b16 %v2428
        %v2495 = vunpack.c.l.b16 %v2429
        %v2496 = vunpack.c.l.b16 %v2430
        %v2497 = vunpack.c.l.b16 %v2431
        %v2498 = vunpack.c.l.b16 %v2432
        %v2499 = vunpack.c.l.b16 %v2433
        %v2500 = vunpack.c.l.b16 %v2434
        %v2501 = vunpack.c.l.b16 %v2435
        %v2502 = vunpack.c.l.b16 %v2436
        %v2503 = vunpack.c.l.b16 %v2437
        %v2504 = vpack.c.b16 %v2473, %v2472
        %v2505 = vpack.c.b16 %v2475, %v2474
        %v2506 = vpack.c.b16 %v2477, %v2476
        %v2507 = vpack.c.b16 %v2479, %v2478
        %v2508 = vpack.c.b16 %v2481, %v2480
        %v2509 = vpack.c.b16 %v2483, %v2482
        %v2510 = vpack.c.b16 %v2485, %v2484
        %v2511 = vpack.c.b16 %v2487, %v2486
        %v2512 = vpack.c.b16 %v2489, %v2488
        %v2513 = vpack.c.b16 %v2491, %v2490
        %v2514 = vpack.c.b16 %v2493, %v2492
        %v2515 = vpack.c.b16 %v2495, %v2494
        %v2516 = vpack.c.b16 %v2497, %v2496
        %v2517 = vpack.c.b16 %v2499, %v2498
        %v2518 = vpack.c.b16 %v2501, %v2500
        %v2519 = vpack.c.b16 %v2503, %v2502
        %v2521 = vsel %vm1659, %v2504, 0
        %v2524 = vsel %vm1659, %v2505, 0
        %v2527 = vsel %vm1659, %v2506, 0
        %v2530 = vsel %vm1659, %v2507, 0
        %v2533 = vsel %vm1659, %v2508, 0
        %v2536 = vsel %vm1659, %v2509, 0
        %v2539 = vsel %vm1659, %v2510, 0
        %v2542 = vsel %vm1659, %v2511, 0
        %v2545 = vsel %vm1659, %v2512, 0
        %v2548 = vsel %vm1659, %v2513, 0
        %v2551 = vsel %vm1659, %v2514, 0
        %v2554 = vsel %vm1659, %v2515, 0
        %v2557 = vsel %vm1659, %v2516, 0
        %v2560 = vsel %vm1659, %v2517, 0
        %v2563 = vsel %vm1659, %v2518, 0
        %v2566 = vsel %vm1659, %v2519, 0
        %v2569 = vsel %vm1708, %v2439, 0
        %2571 = vmatpush.bf16.msra.mxu0 0
        %2572 = vmatpush.bf16.msra.mxu0 0
        %2573 = vmatpush.bf16.msra.mxu0 0
        %2574 = vmatpush.bf16.msra.mxu0 0
        %2575 = vmatpush.bf16.msra.mxu0 0
        %2576 = vmatpush.bf16.msra.mxu0 0
        %2577 = vmatpush.bf16.msra.mxu0 0
        %2578 = vmatpush.bf16.msra.mxu0 %v2569
        %2579 = vmatmul.bf16.gmra.mxu0 %v2521
        %v2580 = vpop.f32.mrf.mxu0
        %v2581 = vadd.f32 0.0, %v2580
        %v2582 = vpop.f32.mrf.mxu0
        %v2583 = vadd.f32 0.0, %v2582
        %2584 = vmatmul.bf16.gmra.mxu0 %v2524
        %v2585 = vpop.f32.mrf.mxu0
        %v2586 = vadd.f32 0.0, %v2585
        %v2587 = vpop.f32.mrf.mxu0
        %v2588 = vadd.f32 0.0, %v2587
        %2589 = vmatmul.bf16.gmra.mxu0 %v2527
        %v2590 = vpop.f32.mrf.mxu0
        %v2591 = vadd.f32 0.0, %v2590
        %v2592 = vpop.f32.mrf.mxu0
        %v2593 = vadd.f32 0.0, %v2592
        %2594 = vmatmul.bf16.gmra.mxu0 %v2530
        %v2595 = vpop.f32.mrf.mxu0
        %v2596 = vadd.f32 0.0, %v2595
        %v2597 = vpop.f32.mrf.mxu0
        %v2598 = vadd.f32 0.0, %v2597
        %2599 = vmatmul.bf16.gmra.mxu0 %v2533
        %v2600 = vpop.f32.mrf.mxu0
        %v2601 = vadd.f32 0.0, %v2600
        %v2602 = vpop.f32.mrf.mxu0
        %v2603 = vadd.f32 0.0, %v2602
        %2604 = vmatmul.bf16.gmra.mxu0 %v2536
        %v2605 = vpop.f32.mrf.mxu0
        %v2606 = vadd.f32 0.0, %v2605
        %v2607 = vpop.f32.mrf.mxu0
        %v2608 = vadd.f32 0.0, %v2607
        %2609 = vmatmul.bf16.gmra.mxu0 %v2539
        %v2610 = vpop.f32.mrf.mxu0
        %v2611 = vadd.f32 0.0, %v2610
        %v2612 = vpop.f32.mrf.mxu0
        %v2613 = vadd.f32 0.0, %v2612
        %2614 = vmatmul.bf16.gmra.mxu0 %v2542
        %v2615 = vpop.f32.mrf.mxu0
        %v2616 = vadd.f32 0.0, %v2615
        %v2617 = vpop.f32.mrf.mxu0
        %v2618 = vadd.f32 0.0, %v2617
        %2619 = vmatmul.bf16.gmra.mxu0 %v2545
        %v2620 = vpop.f32.mrf.mxu0
        %v2621 = vadd.f32 0.0, %v2620
        %v2622 = vpop.f32.mrf.mxu0
        %v2623 = vadd.f32 0.0, %v2622
        %2624 = vmatmul.bf16.gmra.mxu0 %v2548
        %v2625 = vpop.f32.mrf.mxu0
        %v2626 = vadd.f32 0.0, %v2625
        %v2627 = vpop.f32.mrf.mxu0
        %v2628 = vadd.f32 0.0, %v2627
        %2629 = vmatmul.bf16.gmra.mxu0 %v2551
        %v2630 = vpop.f32.mrf.mxu0
        %v2631 = vadd.f32 0.0, %v2630
        %v2632 = vpop.f32.mrf.mxu0
        %v2633 = vadd.f32 0.0, %v2632
        %2634 = vmatmul.bf16.gmra.mxu0 %v2554
        %v2635 = vpop.f32.mrf.mxu0
        %v2636 = vadd.f32 0.0, %v2635
        %v2637 = vpop.f32.mrf.mxu0
        %v2638 = vadd.f32 0.0, %v2637
        %2639 = vmatmul.bf16.gmra.mxu0 %v2557
        %v2640 = vpop.f32.mrf.mxu0
        %v2641 = vadd.f32 0.0, %v2640
        %v2642 = vpop.f32.mrf.mxu0
        %v2643 = vadd.f32 0.0, %v2642
        %2644 = vmatmul.bf16.gmra.mxu0 %v2560
        %v2645 = vpop.f32.mrf.mxu0
        %v2646 = vadd.f32 0.0, %v2645
        %v2647 = vpop.f32.mrf.mxu0
        %v2648 = vadd.f32 0.0, %v2647
        %2649 = vmatmul.bf16.gmra.mxu0 %v2563
        %v2650 = vpop.f32.mrf.mxu0
        %v2651 = vadd.f32 0.0, %v2650
        %v2652 = vpop.f32.mrf.mxu0
        %v2653 = vadd.f32 0.0, %v2652
        %2654 = vmatmul.bf16.gmra.mxu0 %v2566
        %v2655 = vpop.f32.mrf.mxu0
        %v2656 = vadd.f32 0.0, %v2655
        %v2657 = vpop.f32.mrf.mxu0
        %v2658 = vadd.f32 0.0, %v2657
        %2659 = vdwg.mxu0
        %v2660 = vadd.f32 %v2374, %v2581
        %v2661 = vadd.f32 %v2375, %v2583
        %v2662 = vadd.f32 %v2376, %v2586
        %v2663 = vadd.f32 %v2377, %v2588
        %v2664 = vadd.f32 %v2378, %v2591
        %v2665 = vadd.f32 %v2379, %v2593
        %v2666 = vadd.f32 %v2380, %v2596
        %v2667 = vadd.f32 %v2381, %v2598
        %v2668 = vadd.f32 %v2382, %v2601
        %v2669 = vadd.f32 %v2383, %v2603
        %v2670 = vadd.f32 %v2384, %v2606
        %v2671 = vadd.f32 %v2385, %v2608
        %v2672 = vadd.f32 %v2386, %v2611
        %v2673 = vadd.f32 %v2387, %v2613
        %v2674 = vadd.f32 %v2388, %v2616
        %v2675 = vadd.f32 %v2389, %v2618
        %v2676 = vadd.f32 %v2390, %v2621
        %v2677 = vadd.f32 %v2391, %v2623
        %v2678 = vadd.f32 %v2392, %v2626
        %v2679 = vadd.f32 %v2393, %v2628
        %v2680 = vadd.f32 %v2394, %v2631
        %v2681 = vadd.f32 %v2395, %v2633
        %v2682 = vadd.f32 %v2396, %v2636
        %v2683 = vadd.f32 %v2397, %v2638
        %v2684 = vadd.f32 %v2398, %v2641
        %v2685 = vadd.f32 %v2399, %v2643
        %v2686 = vadd.f32 %v2400, %v2646
        %v2687 = vadd.f32 %v2401, %v2648
        %v2688 = vadd.f32 %v2402, %v2651
        %v2689 = vadd.f32 %v2403, %v2653
        %v2690 = vadd.f32 %v2404, %v2656
        %v2691 = vadd.f32 %v2405, %v2658
        %v2692 = vld [vmem:[%s635] sm:$0xf]
        %v2693 = vld [vmem:[%s635 + $0x4] sm:$0xf]
        %v2694 = vld [vmem:[%s635 + $0x8] sm:$0x1]
        %v2695 = vld [vmem:[%s635 + $0xc] sm:$0xf]
        %v2696 = vld [vmem:[%s635 + $0x10] sm:$0xf]
        %v2697 = vld [vmem:[%s635 + $0x14] sm:$0x1]
        %v2698 = vld [vmem:[%s635 + $0x18] sm:$0xf]
        %v2699 = vld [vmem:[%s635 + $0x1c] sm:$0xf]
        %v2700 = vld [vmem:[%s635 + $0x20] sm:$0x1]
        %v2701 = vld [vmem:[%s635 + $0x24] sm:$0xf]
        %v2702 = vld [vmem:[%s635 + $0x28] sm:$0xf]
        %v2703 = vld [vmem:[%s635 + $0x2c] sm:$0x1]
        %v2704 = vld [vmem:[%s635 + $0x30] sm:$0xf]
        %v2705 = vld [vmem:[%s635 + $0x34] sm:$0xf]
        %v2706 = vld [vmem:[%s635 + $0x38] sm:$0x1]
        %v2707 = vld [vmem:[%s635 + $0x3c] sm:$0xf]
        %v2708 = vld [vmem:[%s635 + $0x40] sm:$0xf]
        %v2709 = vld [vmem:[%s635 + $0x44] sm:$0x1]
        %v2710 = vld [vmem:[%s635 + $0x48] sm:$0xf]
        %v2711 = vld [vmem:[%s635 + $0x4c] sm:$0xf]
        %v2712 = vld [vmem:[%s635 + $0x50] sm:$0x1]
        %v2713 = vld [vmem:[%s635 + $0x54] sm:$0xf]
        %v2714 = vld [vmem:[%s635 + $0x58] sm:$0xf]
        %v2715 = vld [vmem:[%s635 + $0x5c] sm:$0x1]
        %v2716 = vld [vmem:[%s635 + $0x60] sm:$0xf]
        %v2717 = vld [vmem:[%s635 + $0x64] sm:$0xf]
        %v2718 = vld [vmem:[%s635 + $0x68] sm:$0x1]
        %v2719 = vld [vmem:[%s635 + $0x6c] sm:$0xf]
        %v2720 = vld [vmem:[%s635 + $0x70] sm:$0xf]
        %v2721 = vld [vmem:[%s635 + $0x74] sm:$0x1]
        %v2722 = vld [vmem:[%s635 + $0x78] sm:$0xf]
        %v2723 = vld [vmem:[%s635 + $0x7c] sm:$0xf]
        %v2724 = vld [vmem:[%s635 + $0x80] sm:$0x1]
        %v2725 = vld [vmem:[%s635 + $0x84] sm:$0xf]
        %v2726 = vld [vmem:[%s635 + $0x88] sm:$0xf]
        %v2727 = vld [vmem:[%s635 + $0x8c] sm:$0x1]
        %v2728 = vld [vmem:[%s635 + $0x90] sm:$0xf]
        %v2729 = vld [vmem:[%s635 + $0x94] sm:$0xf]
        %v2730 = vld [vmem:[%s635 + $0x98] sm:$0x1]
        %v2731 = vld [vmem:[%s635 + $0x9c] sm:$0xf]
        %v2732 = vld [vmem:[%s635 + $0xa0] sm:$0xf]
        %v2733 = vld [vmem:[%s635 + $0xa4] sm:$0x1]
        %v2734 = vld [vmem:[%s635 + $0xa8] sm:$0xf]
        %v2735 = vld [vmem:[%s635 + $0xac] sm:$0xf]
        %v2736 = vld [vmem:[%s635 + $0xb0] sm:$0x1]
        %v2737 = vld [vmem:[%s635 + $0xb4] sm:$0xf]
        %v2738 = vld [vmem:[%s635 + $0xb8] sm:$0xf]
        %v2739 = vld [vmem:[%s635 + $0xbc] sm:$0x1]
        %v2741 = vshrl.u32 %v2692, 16
        %v2743 = vrot.slane %v2741, 4
        %v2744 = vshll.u32 %v2692, 16
        %v2746 = vrot.slane %v2744, 5
        %v2747 = vor.u32 %v2743, %v2746
        %v2748 = vrot.slane %v2747, 4
        %v2750 = vshll.u32 %v2693, 16
        %v2752 = vrot.slane %v2750, 5
        %v2753 = vsel %vm1224, %v2748, %v2752
        %v2754 = vshrl.u32 %v2693, 16
        %v2756 = vrot.slane %v2754, 4
        %v2757 = vor.u32 %v2756, %v2752
        %v2758 = vrot.slane %v2757, 4
        %v2760 = vshll.u32 %v2694, 16
        %v2762 = vrot.slane %v2760, 5
        %v2763 = vsel %vm1224, %v2758, %v2762
        %v2765 = vshrl.u32 %v2695, 16
        %v2767 = vrot.slane %v2765, 4
        %v2768 = vshll.u32 %v2695, 16
        %v2770 = vrot.slane %v2768, 5
        %v2771 = vor.u32 %v2767, %v2770
        %v2772 = vrot.slane %v2771, 4
        %v2774 = vshll.u32 %v2696, 16
        %v2776 = vrot.slane %v2774, 5
        %v2777 = vsel %vm1224, %v2772, %v2776
        %v2778 = vshrl.u32 %v2696, 16
        %v2780 = vrot.slane %v2778, 4
        %v2781 = vor.u32 %v2780, %v2776
        %v2782 = vrot.slane %v2781, 4
        %v2784 = vshll.u32 %v2697, 16
        %v2786 = vrot.slane %v2784, 5
        %v2787 = vsel %vm1224, %v2782, %v2786
        %v2789 = vshrl.u32 %v2698, 16
        %v2791 = vrot.slane %v2789, 4
        %v2792 = vshll.u32 %v2698, 16
        %v2794 = vrot.slane %v2792, 5
        %v2795 = vor.u32 %v2791, %v2794
        %v2796 = vrot.slane %v2795, 4
        %v2798 = vshll.u32 %v2699, 16
        %v2800 = vrot.slane %v2798, 5
        %v2801 = vsel %vm1224, %v2796, %v2800
        %v2802 = vshrl.u32 %v2699, 16
        %v2804 = vrot.slane %v2802, 4
        %v2805 = vor.u32 %v2804, %v2800
        %v2806 = vrot.slane %v2805, 4
        %v2808 = vshll.u32 %v2700, 16
        %v2810 = vrot.slane %v2808, 5
        %v2811 = vsel %vm1224, %v2806, %v2810
        %v2813 = vshrl.u32 %v2701, 16
        %v2815 = vrot.slane %v2813, 4
        %v2816 = vshll.u32 %v2701, 16
        %v2818 = vrot.slane %v2816, 5
        %v2819 = vor.u32 %v2815, %v2818
        %v2820 = vrot.slane %v2819, 4
        %v2822 = vshll.u32 %v2702, 16
        %v2824 = vrot.slane %v2822, 5
        %v2825 = vsel %vm1224, %v2820, %v2824
        %v2826 = vshrl.u32 %v2702, 16
        %v2828 = vrot.slane %v2826, 4
        %v2829 = vor.u32 %v2828, %v2824
        %v2830 = vrot.slane %v2829, 4
        %v2832 = vshll.u32 %v2703, 16
        %v2834 = vrot.slane %v2832, 5
        %v2835 = vsel %vm1224, %v2830, %v2834
        %v2837 = vshrl.u32 %v2704, 16
        %v2839 = vrot.slane %v2837, 4
        %v2840 = vshll.u32 %v2704, 16
        %v2842 = vrot.slane %v2840, 5
        %v2843 = vor.u32 %v2839, %v2842
        %v2844 = vrot.slane %v2843, 4
        %v2846 = vshll.u32 %v2705, 16
        %v2848 = vrot.slane %v2846, 5
        %v2849 = vsel %vm1224, %v2844, %v2848
        %v2850 = vshrl.u32 %v2705, 16
        %v2852 = vrot.slane %v2850, 4
        %v2853 = vor.u32 %v2852, %v2848
        %v2854 = vrot.slane %v2853, 4
        %v2856 = vshll.u32 %v2706, 16
        %v2858 = vrot.slane %v2856, 5
        %v2859 = vsel %vm1224, %v2854, %v2858
        %v2861 = vshrl.u32 %v2707, 16
        %v2863 = vrot.slane %v2861, 4
        %v2864 = vshll.u32 %v2707, 16
        %v2866 = vrot.slane %v2864, 5
        %v2867 = vor.u32 %v2863, %v2866
        %v2868 = vrot.slane %v2867, 4
        %v2870 = vshll.u32 %v2708, 16
        %v2872 = vrot.slane %v2870, 5
        %v2873 = vsel %vm1224, %v2868, %v2872
        %v2874 = vshrl.u32 %v2708, 16
        %v2876 = vrot.slane %v2874, 4
        %v2877 = vor.u32 %v2876, %v2872
        %v2878 = vrot.slane %v2877, 4
        %v2880 = vshll.u32 %v2709, 16
        %v2882 = vrot.slane %v2880, 5
        %v2883 = vsel %vm1224, %v2878, %v2882
        %v2885 = vshrl.u32 %v2710, 16
        %v2887 = vrot.slane %v2885, 4
        %v2888 = vshll.u32 %v2710, 16
        %v2890 = vrot.slane %v2888, 5
        %v2891 = vor.u32 %v2887, %v2890
        %v2892 = vrot.slane %v2891, 4
        %v2894 = vshll.u32 %v2711, 16
        %v2896 = vrot.slane %v2894, 5
        %v2897 = vsel %vm1224, %v2892, %v2896
        %v2898 = vshrl.u32 %v2711, 16
        %v2900 = vrot.slane %v2898, 4
        %v2901 = vor.u32 %v2900, %v2896
        %v2902 = vrot.slane %v2901, 4
        %v2904 = vshll.u32 %v2712, 16
        %v2906 = vrot.slane %v2904, 5
        %v2907 = vsel %vm1224, %v2902, %v2906
        %v2909 = vshrl.u32 %v2713, 16
        %v2911 = vrot.slane %v2909, 4
        %v2912 = vshll.u32 %v2713, 16
        %v2914 = vrot.slane %v2912, 5
        %v2915 = vor.u32 %v2911, %v2914
        %v2916 = vrot.slane %v2915, 4
        %v2918 = vshll.u32 %v2714, 16
        %v2920 = vrot.slane %v2918, 5
        %v2921 = vsel %vm1224, %v2916, %v2920
        %v2922 = vshrl.u32 %v2714, 16
        %v2924 = vrot.slane %v2922, 4
        %v2925 = vor.u32 %v2924, %v2920
        %v2926 = vrot.slane %v2925, 4
        %v2928 = vshll.u32 %v2715, 16
        %v2930 = vrot.slane %v2928, 5
        %v2931 = vsel %vm1224, %v2926, %v2930
        %v2933 = vshrl.u32 %v2716, 16
        %v2935 = vrot.slane %v2933, 4
        %v2936 = vshll.u32 %v2716, 16
        %v2938 = vrot.slane %v2936, 5
        %v2939 = vor.u32 %v2935, %v2938
        %v2940 = vrot.slane %v2939, 4
        %v2942 = vshll.u32 %v2717, 16
        %v2944 = vrot.slane %v2942, 5
        %v2945 = vsel %vm1224, %v2940, %v2944
        %v2946 = vshrl.u32 %v2717, 16
        %v2948 = vrot.slane %v2946, 4
        %v2949 = vor.u32 %v2948, %v2944
        %v2950 = vrot.slane %v2949, 4
        %v2952 = vshll.u32 %v2718, 16
        %v2954 = vrot.slane %v2952, 5
        %v2955 = vsel %vm1224, %v2950, %v2954
        %v2957 = vshrl.u32 %v2719, 16
        %v2959 = vrot.slane %v2957, 4
        %v2960 = vshll.u32 %v2719, 16
        %v2962 = vrot.slane %v2960, 5
        %v2963 = vor.u32 %v2959, %v2962
        %v2964 = vrot.slane %v2963, 4
        %v2966 = vshll.u32 %v2720, 16
        %v2968 = vrot.slane %v2966, 5
        %v2969 = vsel %vm1224, %v2964, %v2968
        %v2970 = vshrl.u32 %v2720, 16
        %v2972 = vrot.slane %v2970, 4
        %v2973 = vor.u32 %v2972, %v2968
        %v2974 = vrot.slane %v2973, 4
        %v2976 = vshll.u32 %v2721, 16
        %v2978 = vrot.slane %v2976, 5
        %v2979 = vsel %vm1224, %v2974, %v2978
        %v2981 = vshrl.u32 %v2722, 16
        %v2983 = vrot.slane %v2981, 4
        %v2984 = vshll.u32 %v2722, 16
        %v2986 = vrot.slane %v2984, 5
        %v2987 = vor.u32 %v2983, %v2986
        %v2988 = vrot.slane %v2987, 4
        %v2990 = vshll.u32 %v2723, 16
        %v2992 = vrot.slane %v2990, 5
        %v2993 = vsel %vm1224, %v2988, %v2992
        %v2994 = vshrl.u32 %v2723, 16
        %v2996 = vrot.slane %v2994, 4
        %v2997 = vor.u32 %v2996, %v2992
        %v2998 = vrot.slane %v2997, 4
        %v3000 = vshll.u32 %v2724, 16
        %v3002 = vrot.slane %v3000, 5
        %v3003 = vsel %vm1224, %v2998, %v3002
        %v3005 = vshrl.u32 %v2725, 16
        %v3007 = vrot.slane %v3005, 4
        %v3008 = vshll.u32 %v2725, 16
        %v3010 = vrot.slane %v3008, 5
        %v3011 = vor.u32 %v3007, %v3010
        %v3012 = vrot.slane %v3011, 4
        %v3014 = vshll.u32 %v2726, 16
        %v3016 = vrot.slane %v3014, 5
        %v3017 = vsel %vm1224, %v3012, %v3016
        %v3018 = vshrl.u32 %v2726, 16
        %v3020 = vrot.slane %v3018, 4
        %v3021 = vor.u32 %v3020, %v3016
        %v3022 = vrot.slane %v3021, 4
        %v3024 = vshll.u32 %v2727, 16
        %v3026 = vrot.slane %v3024, 5
        %v3027 = vsel %vm1224, %v3022, %v3026
        %v3029 = vshrl.u32 %v2728, 16
        %v3031 = vrot.slane %v3029, 4
        %v3032 = vshll.u32 %v2728, 16
        %v3034 = vrot.slane %v3032, 5
        %v3035 = vor.u32 %v3031, %v3034
        %v3036 = vrot.slane %v3035, 4
        %v3038 = vshll.u32 %v2729, 16
        %v3040 = vrot.slane %v3038, 5
        %v3041 = vsel %vm1224, %v3036, %v3040
        %v3042 = vshrl.u32 %v2729, 16
        %v3044 = vrot.slane %v3042, 4
        %v3045 = vor.u32 %v3044, %v3040
        %v3046 = vrot.slane %v3045, 4
        %v3048 = vshll.u32 %v2730, 16
        %v3050 = vrot.slane %v3048, 5
        %v3051 = vsel %vm1224, %v3046, %v3050
        %v3053 = vshrl.u32 %v2731, 16
        %v3055 = vrot.slane %v3053, 4
        %v3056 = vshll.u32 %v2731, 16
        %v3058 = vrot.slane %v3056, 5
        %v3059 = vor.u32 %v3055, %v3058
        %v3060 = vrot.slane %v3059, 4
        %v3062 = vshll.u32 %v2732, 16
        %v3064 = vrot.slane %v3062, 5
        %v3065 = vsel %vm1224, %v3060, %v3064
        %v3066 = vshrl.u32 %v2732, 16
        %v3068 = vrot.slane %v3066, 4
        %v3069 = vor.u32 %v3068, %v3064
        %v3070 = vrot.slane %v3069, 4
        %v3072 = vshll.u32 %v2733, 16
        %v3074 = vrot.slane %v3072, 5
        %v3075 = vsel %vm1224, %v3070, %v3074
        %v3077 = vshrl.u32 %v2734, 16
        %v3079 = vrot.slane %v3077, 4
        %v3080 = vshll.u32 %v2734, 16
        %v3082 = vrot.slane %v3080, 5
        %v3083 = vor.u32 %v3079, %v3082
        %v3084 = vrot.slane %v3083, 4
        %v3086 = vshll.u32 %v2735, 16
        %v3088 = vrot.slane %v3086, 5
        %v3089 = vsel %vm1224, %v3084, %v3088
        %v3090 = vshrl.u32 %v2735, 16
        %v3092 = vrot.slane %v3090, 4
        %v3093 = vor.u32 %v3092, %v3088
        %v3094 = vrot.slane %v3093, 4
        %v3096 = vshll.u32 %v2736, 16
        %v3098 = vrot.slane %v3096, 5
        %v3099 = vsel %vm1224, %v3094, %v3098
        %v3101 = vshrl.u32 %v2737, 16
        %v3103 = vrot.slane %v3101, 4
        %v3104 = vshll.u32 %v2737, 16
        %v3106 = vrot.slane %v3104, 5
        %v3107 = vor.u32 %v3103, %v3106
        %v3108 = vrot.slane %v3107, 4
        %v3110 = vshll.u32 %v2738, 16
        %v3112 = vrot.slane %v3110, 5
        %v3113 = vsel %vm1224, %v3108, %v3112
        %v3114 = vshrl.u32 %v2738, 16
        %v3116 = vrot.slane %v3114, 4
        %v3117 = vor.u32 %v3116, %v3112
        %v3118 = vrot.slane %v3117, 4
        %v3120 = vshll.u32 %v2739, 16
        %v3122 = vrot.slane %v3120, 5
        %v3123 = vsel %vm1224, %v3118, %v3122
        %s3124 = scalar_lea.vmem %s3, 8
        %v3125 = vld [vmem:[%s3124] sm:$0x3]
        %v3126 = vunpack.c.l.b16 %v2753
        %v3127 = vunpack.c.l.b16 %v2763
        %v3128 = vunpack.c.l.b16 %v2777
        %v3129 = vunpack.c.l.b16 %v2787
        %v3130 = vunpack.c.l.b16 %v2801
        %v3131 = vunpack.c.l.b16 %v2811
        %v3132 = vunpack.c.l.b16 %v2825
        %v3133 = vunpack.c.l.b16 %v2835
        %v3134 = vunpack.c.l.b16 %v2849
        %v3135 = vunpack.c.l.b16 %v2859
        %v3136 = vunpack.c.l.b16 %v2873
        %v3137 = vunpack.c.l.b16 %v2883
        %v3138 = vunpack.c.l.b16 %v2897
        %v3139 = vunpack.c.l.b16 %v2907
        %v3140 = vunpack.c.l.b16 %v2921
        %v3141 = vunpack.c.l.b16 %v2931
        %v3142 = vunpack.c.l.b16 %v2945
        %v3143 = vunpack.c.l.b16 %v2955
        %v3144 = vunpack.c.l.b16 %v2969
        %v3145 = vunpack.c.l.b16 %v2979
        %v3146 = vunpack.c.l.b16 %v2993
        %v3147 = vunpack.c.l.b16 %v3003
        %v3148 = vunpack.c.l.b16 %v3017
        %v3149 = vunpack.c.l.b16 %v3027
        %v3150 = vunpack.c.l.b16 %v3041
        %v3151 = vunpack.c.l.b16 %v3051
        %v3152 = vunpack.c.l.b16 %v3065
        %v3153 = vunpack.c.l.b16 %v3075
        %v3154 = vunpack.c.l.b16 %v3089
        %v3155 = vunpack.c.l.b16 %v3099
        %v3156 = vunpack.c.l.b16 %v3113
        %v3157 = vunpack.c.l.b16 %v3123
        %v3158 = vpack.c.b16 %v3127, %v3126
        %v3159 = vpack.c.b16 %v3129, %v3128
        %v3160 = vpack.c.b16 %v3131, %v3130
        %v3161 = vpack.c.b16 %v3133, %v3132
        %v3162 = vpack.c.b16 %v3135, %v3134
        %v3163 = vpack.c.b16 %v3137, %v3136
        %v3164 = vpack.c.b16 %v3139, %v3138
        %v3165 = vpack.c.b16 %v3141, %v3140
        %v3166 = vpack.c.b16 %v3143, %v3142
        %v3167 = vpack.c.b16 %v3145, %v3144
        %v3168 = vpack.c.b16 %v3147, %v3146
        %v3169 = vpack.c.b16 %v3149, %v3148
        %v3170 = vpack.c.b16 %v3151, %v3150
        %v3171 = vpack.c.b16 %v3153, %v3152
        %v3172 = vpack.c.b16 %v3155, %v3154
        %v3173 = vpack.c.b16 %v3157, %v3156
        %v3175 = vsel %vm1659, %v3158, 0
        %v3178 = vsel %vm1659, %v3159, 0
        %v3181 = vsel %vm1659, %v3160, 0
        %v3184 = vsel %vm1659, %v3161, 0
        %v3187 = vsel %vm1659, %v3162, 0
        %v3190 = vsel %vm1659, %v3163, 0
        %v3193 = vsel %vm1659, %v3164, 0
        %v3196 = vsel %vm1659, %v3165, 0
        %v3199 = vsel %vm1659, %v3166, 0
        %v3202 = vsel %vm1659, %v3167, 0
        %v3205 = vsel %vm1659, %v3168, 0
        %v3208 = vsel %vm1659, %v3169, 0
        %v3211 = vsel %vm1659, %v3170, 0
        %v3214 = vsel %vm1659, %v3171, 0
        %v3217 = vsel %vm1659, %v3172, 0
        %v3220 = vsel %vm1659, %v3173, 0
        %v3223 = vsel %vm1708, %v3125, 0
        %3225 = vmatpush.bf16.msra.mxu0 0
        %3226 = vmatpush.bf16.msra.mxu0 0
        %3227 = vmatpush.bf16.msra.mxu0 0
        %3228 = vmatpush.bf16.msra.mxu0 0
        %3229 = vmatpush.bf16.msra.mxu0 0
        %3230 = vmatpush.bf16.msra.mxu0 0
        %3231 = vmatpush.bf16.msra.mxu0 0
        %3232 = vmatpush.bf16.msra.mxu0 %v3223
        %3233 = vmatmul.bf16.gmra.mxu0 %v3175
        %v3234 = vpop.f32.mrf.mxu0
        %v3235 = vadd.f32 0.0, %v3234
        %v3236 = vpop.f32.mrf.mxu0
        %v3237 = vadd.f32 0.0, %v3236
        %3238 = vmatmul.bf16.gmra.mxu0 %v3178
        %v3239 = vpop.f32.mrf.mxu0
        %v3240 = vadd.f32 0.0, %v3239
        %v3241 = vpop.f32.mrf.mxu0
        %v3242 = vadd.f32 0.0, %v3241
        %3243 = vmatmul.bf16.gmra.mxu0 %v3181
        %v3244 = vpop.f32.mrf.mxu0
        %v3245 = vadd.f32 0.0, %v3244
        %v3246 = vpop.f32.mrf.mxu0
        %v3247 = vadd.f32 0.0, %v3246
        %3248 = vmatmul.bf16.gmra.mxu0 %v3184
        %v3249 = vpop.f32.mrf.mxu0
        %v3250 = vadd.f32 0.0, %v3249
        %v3251 = vpop.f32.mrf.mxu0
        %v3252 = vadd.f32 0.0, %v3251
        %3253 = vmatmul.bf16.gmra.mxu0 %v3187
        %v3254 = vpop.f32.mrf.mxu0
        %v3255 = vadd.f32 0.0, %v3254
        %v3256 = vpop.f32.mrf.mxu0
        %v3257 = vadd.f32 0.0, %v3256
        %3258 = vmatmul.bf16.gmra.mxu0 %v3190
        %v3259 = vpop.f32.mrf.mxu0
        %v3260 = vadd.f32 0.0, %v3259
        %v3261 = vpop.f32.mrf.mxu0
        %v3262 = vadd.f32 0.0, %v3261
        %3263 = vmatmul.bf16.gmra.mxu0 %v3193
        %v3264 = vpop.f32.mrf.mxu0
        %v3265 = vadd.f32 0.0, %v3264
        %v3266 = vpop.f32.mrf.mxu0
        %v3267 = vadd.f32 0.0, %v3266
        %3268 = vmatmul.bf16.gmra.mxu0 %v3196
        %v3269 = vpop.f32.mrf.mxu0
        %v3270 = vadd.f32 0.0, %v3269
        %v3271 = vpop.f32.mrf.mxu0
        %v3272 = vadd.f32 0.0, %v3271
        %3273 = vmatmul.bf16.gmra.mxu0 %v3199
        %v3274 = vpop.f32.mrf.mxu0
        %v3275 = vadd.f32 0.0, %v3274
        %v3276 = vpop.f32.mrf.mxu0
        %v3277 = vadd.f32 0.0, %v3276
        %3278 = vmatmul.bf16.gmra.mxu0 %v3202
        %v3279 = vpop.f32.mrf.mxu0
        %v3280 = vadd.f32 0.0, %v3279
        %v3281 = vpop.f32.mrf.mxu0
        %v3282 = vadd.f32 0.0, %v3281
        %3283 = vmatmul.bf16.gmra.mxu0 %v3205
        %v3284 = vpop.f32.mrf.mxu0
        %v3285 = vadd.f32 0.0, %v3284
        %v3286 = vpop.f32.mrf.mxu0
        %v3287 = vadd.f32 0.0, %v3286
        %3288 = vmatmul.bf16.gmra.mxu0 %v3208
        %v3289 = vpop.f32.mrf.mxu0
        %v3290 = vadd.f32 0.0, %v3289
        %v3291 = vpop.f32.mrf.mxu0
        %v3292 = vadd.f32 0.0, %v3291
        %3293 = vmatmul.bf16.gmra.mxu0 %v3211
        %v3294 = vpop.f32.mrf.mxu0
        %v3295 = vadd.f32 0.0, %v3294
        %v3296 = vpop.f32.mrf.mxu0
        %v3297 = vadd.f32 0.0, %v3296
        %3298 = vmatmul.bf16.gmra.mxu0 %v3214
        %v3299 = vpop.f32.mrf.mxu0
        %v3300 = vadd.f32 0.0, %v3299
        %v3301 = vpop.f32.mrf.mxu0
        %v3302 = vadd.f32 0.0, %v3301
        %3303 = vmatmul.bf16.gmra.mxu0 %v3217
        %v3304 = vpop.f32.mrf.mxu0
        %v3305 = vadd.f32 0.0, %v3304
        %v3306 = vpop.f32.mrf.mxu0
        %v3307 = vadd.f32 0.0, %v3306
        %3308 = vmatmul.bf16.gmra.mxu0 %v3220
        %v3309 = vpop.f32.mrf.mxu0
        %v3310 = vadd.f32 0.0, %v3309
        %v3311 = vpop.f32.mrf.mxu0
        %v3312 = vadd.f32 0.0, %v3311
        %3313 = vdwg.mxu0
        %v3314 = vadd.f32 %v2660, %v3235
        %v3315 = vadd.f32 %v2661, %v3237
        %v3316 = vadd.f32 %v2662, %v3240
        %v3317 = vadd.f32 %v2663, %v3242
        %v3318 = vadd.f32 %v2664, %v3245
        %v3319 = vadd.f32 %v2665, %v3247
        %v3320 = vadd.f32 %v2666, %v3250
        %v3321 = vadd.f32 %v2667, %v3252
        %v3322 = vadd.f32 %v2668, %v3255
        %v3323 = vadd.f32 %v2669, %v3257
        %v3324 = vadd.f32 %v2670, %v3260
        %v3325 = vadd.f32 %v2671, %v3262
        %v3326 = vadd.f32 %v2672, %v3265
        %v3327 = vadd.f32 %v2673, %v3267
        %v3328 = vadd.f32 %v2674, %v3270
        %v3329 = vadd.f32 %v2675, %v3272
        %v3330 = vadd.f32 %v2676, %v3275
        %v3331 = vadd.f32 %v2677, %v3277
        %v3332 = vadd.f32 %v2678, %v3280
        %v3333 = vadd.f32 %v2679, %v3282
        %v3334 = vadd.f32 %v2680, %v3285
        %v3335 = vadd.f32 %v2681, %v3287
        %v3336 = vadd.f32 %v2682, %v3290
        %v3337 = vadd.f32 %v2683, %v3292
        %v3338 = vadd.f32 %v2684, %v3295
        %v3339 = vadd.f32 %v2685, %v3297
        %v3340 = vadd.f32 %v2686, %v3300
        %v3341 = vadd.f32 %v2687, %v3302
        %v3342 = vadd.f32 %v2688, %v3305
        %v3343 = vadd.f32 %v2689, %v3307
        %v3344 = vadd.f32 %v2690, %v3310
        %v3345 = vadd.f32 %v2691, %v3312
        %v3346 = vld [vmem:[%s635] sm:$0xe]
        %v3347 = vld [vmem:[%s635 + $0xc] sm:$0xe]
        %v3348 = vld [vmem:[%s635 + $0x18] sm:$0xe]
        %v3349 = vld [vmem:[%s635 + $0x24] sm:$0xe]
        %v3350 = vld [vmem:[%s635 + $0x30] sm:$0xe]
        %v3351 = vld [vmem:[%s635 + $0x3c] sm:$0xe]
        %v3352 = vld [vmem:[%s635 + $0x48] sm:$0xe]
        %v3353 = vld [vmem:[%s635 + $0x54] sm:$0xe]
        %v3354 = vld [vmem:[%s635 + $0x60] sm:$0xe]
        %v3355 = vld [vmem:[%s635 + $0x6c] sm:$0xe]
        %v3356 = vld [vmem:[%s635 + $0x78] sm:$0xe]
        %v3357 = vld [vmem:[%s635 + $0x84] sm:$0xe]
        %v3358 = vld [vmem:[%s635 + $0x90] sm:$0xe]
        %v3359 = vld [vmem:[%s635 + $0x9c] sm:$0xe]
        %v3360 = vld [vmem:[%s635 + $0xa8] sm:$0xe]
        %v3361 = vld [vmem:[%s635 + $0xb4] sm:$0xe]
        %v3410 = vrot.slane %v3346, 5
        %v3411 = vrot.slane %v3410, 4
        %v3412 = vrot.slane %v2693, 5
        %v3413 = vsel %vm2071, %v3411, %v3412
        %v3414 = vrot.slane %v3412, 4
        %v3415 = vrot.slane %v2694, 5
        %v3416 = vsel %vm2071, %v3414, %v3415
        %v3417 = vrot.slane %v3347, 5
        %v3418 = vrot.slane %v3417, 4
        %v3419 = vrot.slane %v2696, 5
        %v3420 = vsel %vm2071, %v3418, %v3419
        %v3421 = vrot.slane %v3419, 4
        %v3422 = vrot.slane %v2697, 5
        %v3423 = vsel %vm2071, %v3421, %v3422
        %v3424 = vrot.slane %v3348, 5
        %v3425 = vrot.slane %v3424, 4
        %v3426 = vrot.slane %v2699, 5
        %v3427 = vsel %vm2071, %v3425, %v3426
        %v3428 = vrot.slane %v3426, 4
        %v3429 = vrot.slane %v2700, 5
        %v3430 = vsel %vm2071, %v3428, %v3429
        %v3431 = vrot.slane %v3349, 5
        %v3432 = vrot.slane %v3431, 4
        %v3433 = vrot.slane %v2702, 5
        %v3434 = vsel %vm2071, %v3432, %v3433
        %v3435 = vrot.slane %v3433, 4
        %v3436 = vrot.slane %v2703, 5
        %v3437 = vsel %vm2071, %v3435, %v3436
        %v3438 = vrot.slane %v3350, 5
        %v3439 = vrot.slane %v3438, 4
        %v3440 = vrot.slane %v2705, 5
        %v3441 = vsel %vm2071, %v3439, %v3440
        %v3442 = vrot.slane %v3440, 4
        %v3443 = vrot.slane %v2706, 5
        %v3444 = vsel %vm2071, %v3442, %v3443
        %v3445 = vrot.slane %v3351, 5
        %v3446 = vrot.slane %v3445, 4
        %v3447 = vrot.slane %v2708, 5
        %v3448 = vsel %vm2071, %v3446, %v3447
        %v3449 = vrot.slane %v3447, 4
        %v3450 = vrot.slane %v2709, 5
        %v3451 = vsel %vm2071, %v3449, %v3450
        %v3452 = vrot.slane %v3352, 5
        %v3453 = vrot.slane %v3452, 4
        %v3454 = vrot.slane %v2711, 5
        %v3455 = vsel %vm2071, %v3453, %v3454
        %v3456 = vrot.slane %v3454, 4
        %v3457 = vrot.slane %v2712, 5
        %v3458 = vsel %vm2071, %v3456, %v3457
        %v3459 = vrot.slane %v3353, 5
        %v3460 = vrot.slane %v3459, 4
        %v3461 = vrot.slane %v2714, 5
        %v3462 = vsel %vm2071, %v3460, %v3461
        %v3463 = vrot.slane %v3461, 4
        %v3464 = vrot.slane %v2715, 5
        %v3465 = vsel %vm2071, %v3463, %v3464
        %v3466 = vrot.slane %v3354, 5
        %v3467 = vrot.slane %v3466, 4
        %v3468 = vrot.slane %v2717, 5
        %v3469 = vsel %vm2071, %v3467, %v3468
        %v3470 = vrot.slane %v3468, 4
        %v3471 = vrot.slane %v2718, 5
        %v3472 = vsel %vm2071, %v3470, %v3471
        %v3473 = vrot.slane %v3355, 5
        %v3474 = vrot.slane %v3473, 4
        %v3475 = vrot.slane %v2720, 5
        %v3476 = vsel %vm2071, %v3474, %v3475
        %v3477 = vrot.slane %v3475, 4
        %v3478 = vrot.slane %v2721, 5
        %v3479 = vsel %vm2071, %v3477, %v3478
        %v3480 = vrot.slane %v3356, 5
        %v3481 = vrot.slane %v3480, 4
        %v3482 = vrot.slane %v2723, 5
        %v3483 = vsel %vm2071, %v3481, %v3482
        %v3484 = vrot.slane %v3482, 4
        %v3485 = vrot.slane %v2724, 5
        %v3486 = vsel %vm2071, %v3484, %v3485
        %v3487 = vrot.slane %v3357, 5
        %v3488 = vrot.slane %v3487, 4
        %v3489 = vrot.slane %v2726, 5
        %v3490 = vsel %vm2071, %v3488, %v3489
        %v3491 = vrot.slane %v3489, 4
        %v3492 = vrot.slane %v2727, 5
        %v3493 = vsel %vm2071, %v3491, %v3492
        %v3494 = vrot.slane %v3358, 5
        %v3495 = vrot.slane %v3494, 4
        %v3496 = vrot.slane %v2729, 5
        %v3497 = vsel %vm2071, %v3495, %v3496
        %v3498 = vrot.slane %v3496, 4
        %v3499 = vrot.slane %v2730, 5
        %v3500 = vsel %vm2071, %v3498, %v3499
        %v3501 = vrot.slane %v3359, 5
        %v3502 = vrot.slane %v3501, 4
        %v3503 = vrot.slane %v2732, 5
        %v3504 = vsel %vm2071, %v3502, %v3503
        %v3505 = vrot.slane %v3503, 4
        %v3506 = vrot.slane %v2733, 5
        %v3507 = vsel %vm2071, %v3505, %v3506
        %v3508 = vrot.slane %v3360, 5
        %v3509 = vrot.slane %v3508, 4
        %v3510 = vrot.slane %v2735, 5
        %v3511 = vsel %vm2071, %v3509, %v3510
        %v3512 = vrot.slane %v3510, 4
        %v3513 = vrot.slane %v2736, 5
        %v3514 = vsel %vm2071, %v3512, %v3513
        %v3515 = vrot.slane %v3361, 5
        %v3516 = vrot.slane %v3515, 4
        %v3517 = vrot.slane %v2738, 5
        %v3518 = vsel %vm2071, %v3516, %v3517
        %v3519 = vrot.slane %v3517, 4
        %v3520 = vrot.slane %v2739, 5
        %v3521 = vsel %vm2071, %v3519, %v3520
        %s3522 = scalar_lea.vmem %s3, 10
        %v3523 = vld [vmem:[%s3522] sm:$0x3]
        %v3524 = vunpack.c.l.b16 %v3413
        %v3525 = vunpack.c.l.b16 %v3416
        %v3526 = vunpack.c.l.b16 %v3420
        %v3527 = vunpack.c.l.b16 %v3423
        %v3528 = vunpack.c.l.b16 %v3427
        %v3529 = vunpack.c.l.b16 %v3430
        %v3530 = vunpack.c.l.b16 %v3434
        %v3531 = vunpack.c.l.b16 %v3437
        %v3532 = vunpack.c.l.b16 %v3441
        %v3533 = vunpack.c.l.b16 %v3444
        %v3534 = vunpack.c.l.b16 %v3448
        %v3535 = vunpack.c.l.b16 %v3451
        %v3536 = vunpack.c.l.b16 %v3455
        %v3537 = vunpack.c.l.b16 %v3458
        %v3538 = vunpack.c.l.b16 %v3462
        %v3539 = vunpack.c.l.b16 %v3465
        %v3540 = vunpack.c.l.b16 %v3469
        %v3541 = vunpack.c.l.b16 %v3472
        %v3542 = vunpack.c.l.b16 %v3476
        %v3543 = vunpack.c.l.b16 %v3479
        %v3544 = vunpack.c.l.b16 %v3483
        %v3545 = vunpack.c.l.b16 %v3486
        %v3546 = vunpack.c.l.b16 %v3490
        %v3547 = vunpack.c.l.b16 %v3493
        %v3548 = vunpack.c.l.b16 %v3497
        %v3549 = vunpack.c.l.b16 %v3500
        %v3550 = vunpack.c.l.b16 %v3504
        %v3551 = vunpack.c.l.b16 %v3507
        %v3552 = vunpack.c.l.b16 %v3511
        %v3553 = vunpack.c.l.b16 %v3514
        %v3554 = vunpack.c.l.b16 %v3518
        %v3555 = vunpack.c.l.b16 %v3521
        %v3556 = vpack.c.b16 %v3525, %v3524
        %v3557 = vpack.c.b16 %v3527, %v3526
        %v3558 = vpack.c.b16 %v3529, %v3528
        %v3559 = vpack.c.b16 %v3531, %v3530
        %v3560 = vpack.c.b16 %v3533, %v3532
        %v3561 = vpack.c.b16 %v3535, %v3534
        %v3562 = vpack.c.b16 %v3537, %v3536
        %v3563 = vpack.c.b16 %v3539, %v3538
        %v3564 = vpack.c.b16 %v3541, %v3540
        %v3565 = vpack.c.b16 %v3543, %v3542
        %v3566 = vpack.c.b16 %v3545, %v3544
        %v3567 = vpack.c.b16 %v3547, %v3546
        %v3568 = vpack.c.b16 %v3549, %v3548
        %v3569 = vpack.c.b16 %v3551, %v3550
        %v3570 = vpack.c.b16 %v3553, %v3552
        %v3571 = vpack.c.b16 %v3555, %v3554
        %v3573 = vsel %vm1659, %v3556, 0
        %v3576 = vsel %vm1659, %v3557, 0
        %v3579 = vsel %vm1659, %v3558, 0
        %v3582 = vsel %vm1659, %v3559, 0
        %v3585 = vsel %vm1659, %v3560, 0
        %v3588 = vsel %vm1659, %v3561, 0
        %v3591 = vsel %vm1659, %v3562, 0
        %v3594 = vsel %vm1659, %v3563, 0
        %v3597 = vsel %vm1659, %v3564, 0
        %v3600 = vsel %vm1659, %v3565, 0
        %v3603 = vsel %vm1659, %v3566, 0
        %v3606 = vsel %vm1659, %v3567, 0
        %v3609 = vsel %vm1659, %v3568, 0
        %v3612 = vsel %vm1659, %v3569, 0
        %v3615 = vsel %vm1659, %v3570, 0
        %v3618 = vsel %vm1659, %v3571, 0
        %v3621 = vsel %vm1708, %v3523, 0
        %3623 = vmatpush.bf16.msra.mxu0 0
        %3624 = vmatpush.bf16.msra.mxu0 0
        %3625 = vmatpush.bf16.msra.mxu0 0
        %3626 = vmatpush.bf16.msra.mxu0 0
        %3627 = vmatpush.bf16.msra.mxu0 0
        %3628 = vmatpush.bf16.msra.mxu0 0
        %3629 = vmatpush.bf16.msra.mxu0 0
        %3630 = vmatpush.bf16.msra.mxu0 %v3621
        %3631 = vmatmul.bf16.gmra.mxu0 %v3573
        %v3632 = vpop.f32.mrf.mxu0
        %v3633 = vadd.f32 0.0, %v3632
        %v3634 = vpop.f32.mrf.mxu0
        %v3635 = vadd.f32 0.0, %v3634
        %3636 = vmatmul.bf16.gmra.mxu0 %v3576
        %v3637 = vpop.f32.mrf.mxu0
        %v3638 = vadd.f32 0.0, %v3637
        %v3639 = vpop.f32.mrf.mxu0
        %v3640 = vadd.f32 0.0, %v3639
        %3641 = vmatmul.bf16.gmra.mxu0 %v3579
        %v3642 = vpop.f32.mrf.mxu0
        %v3643 = vadd.f32 0.0, %v3642
        %v3644 = vpop.f32.mrf.mxu0
        %v3645 = vadd.f32 0.0, %v3644
        %3646 = vmatmul.bf16.gmra.mxu0 %v3582
        %v3647 = vpop.f32.mrf.mxu0
        %v3648 = vadd.f32 0.0, %v3647
        %v3649 = vpop.f32.mrf.mxu0
        %v3650 = vadd.f32 0.0, %v3649
        %3651 = vmatmul.bf16.gmra.mxu0 %v3585
        %v3652 = vpop.f32.mrf.mxu0
        %v3653 = vadd.f32 0.0, %v3652
        %v3654 = vpop.f32.mrf.mxu0
        %v3655 = vadd.f32 0.0, %v3654
        %3656 = vmatmul.bf16.gmra.mxu0 %v3588
        %v3657 = vpop.f32.mrf.mxu0
        %v3658 = vadd.f32 0.0, %v3657
        %v3659 = vpop.f32.mrf.mxu0
        %v3660 = vadd.f32 0.0, %v3659
        %3661 = vmatmul.bf16.gmra.mxu0 %v3591
        %v3662 = vpop.f32.mrf.mxu0
        %v3663 = vadd.f32 0.0, %v3662
        %v3664 = vpop.f32.mrf.mxu0
        %v3665 = vadd.f32 0.0, %v3664
        %3666 = vmatmul.bf16.gmra.mxu0 %v3594
        %v3667 = vpop.f32.mrf.mxu0
        %v3668 = vadd.f32 0.0, %v3667
        %v3669 = vpop.f32.mrf.mxu0
        %v3670 = vadd.f32 0.0, %v3669
        %3671 = vmatmul.bf16.gmra.mxu0 %v3597
        %v3672 = vpop.f32.mrf.mxu0
        %v3673 = vadd.f32 0.0, %v3672
        %v3674 = vpop.f32.mrf.mxu0
        %v3675 = vadd.f32 0.0, %v3674
        %3676 = vmatmul.bf16.gmra.mxu0 %v3600
        %v3677 = vpop.f32.mrf.mxu0
        %v3678 = vadd.f32 0.0, %v3677
        %v3679 = vpop.f32.mrf.mxu0
        %v3680 = vadd.f32 0.0, %v3679
        %3681 = vmatmul.bf16.gmra.mxu0 %v3603
        %v3682 = vpop.f32.mrf.mxu0
        %v3683 = vadd.f32 0.0, %v3682
        %v3684 = vpop.f32.mrf.mxu0
        %v3685 = vadd.f32 0.0, %v3684
        %3686 = vmatmul.bf16.gmra.mxu0 %v3606
        %v3687 = vpop.f32.mrf.mxu0
        %v3688 = vadd.f32 0.0, %v3687
        %v3689 = vpop.f32.mrf.mxu0
        %v3690 = vadd.f32 0.0, %v3689
        %3691 = vmatmul.bf16.gmra.mxu0 %v3609
        %v3692 = vpop.f32.mrf.mxu0
        %v3693 = vadd.f32 0.0, %v3692
        %v3694 = vpop.f32.mrf.mxu0
        %v3695 = vadd.f32 0.0, %v3694
        %3696 = vmatmul.bf16.gmra.mxu0 %v3612
        %v3697 = vpop.f32.mrf.mxu0
        %v3698 = vadd.f32 0.0, %v3697
        %v3699 = vpop.f32.mrf.mxu0
        %v3700 = vadd.f32 0.0, %v3699
        %3701 = vmatmul.bf16.gmra.mxu0 %v3615
        %v3702 = vpop.f32.mrf.mxu0
        %v3703 = vadd.f32 0.0, %v3702
        %v3704 = vpop.f32.mrf.mxu0
        %v3705 = vadd.f32 0.0, %v3704
        %3706 = vmatmul.bf16.gmra.mxu0 %v3618
        %v3707 = vpop.f32.mrf.mxu0
        %v3708 = vadd.f32 0.0, %v3707
        %v3709 = vpop.f32.mrf.mxu0
        %v3710 = vadd.f32 0.0, %v3709
        %3711 = vdwg.mxu0
        %v3712 = vadd.f32 %v3314, %v3633
        %v3713 = vadd.f32 %v3315, %v3635
        %v3714 = vadd.f32 %v3316, %v3638
        %v3715 = vadd.f32 %v3317, %v3640
        %v3716 = vadd.f32 %v3318, %v3643
        %v3717 = vadd.f32 %v3319, %v3645
        %v3718 = vadd.f32 %v3320, %v3648
        %v3719 = vadd.f32 %v3321, %v3650
        %v3720 = vadd.f32 %v3322, %v3653
        %v3721 = vadd.f32 %v3323, %v3655
        %v3722 = vadd.f32 %v3324, %v3658
        %v3723 = vadd.f32 %v3325, %v3660
        %v3724 = vadd.f32 %v3326, %v3663
        %v3725 = vadd.f32 %v3327, %v3665
        %v3726 = vadd.f32 %v3328, %v3668
        %v3727 = vadd.f32 %v3329, %v3670
        %v3728 = vadd.f32 %v3330, %v3673
        %v3729 = vadd.f32 %v3331, %v3675
        %v3730 = vadd.f32 %v3332, %v3678
        %v3731 = vadd.f32 %v3333, %v3680
        %v3732 = vadd.f32 %v3334, %v3683
        %v3733 = vadd.f32 %v3335, %v3685
        %v3734 = vadd.f32 %v3336, %v3688
        %v3735 = vadd.f32 %v3337, %v3690
        %v3736 = vadd.f32 %v3338, %v3693
        %v3737 = vadd.f32 %v3339, %v3695
        %v3738 = vadd.f32 %v3340, %v3698
        %v3739 = vadd.f32 %v3341, %v3700
        %v3740 = vadd.f32 %v3342, %v3703
        %v3741 = vadd.f32 %v3343, %v3705
        %v3742 = vadd.f32 %v3344, %v3708
        %v3743 = vadd.f32 %v3345, %v3710
        %s3744 = scalar_lea.vmem [#allocation2], 24
        %v3745 = vld [vmem:[%s3744] sm:$0xf]
        %v3746 = vld [vmem:[%s3744 + $0x4] sm:$0xf]
        %v3747 = vld [vmem:[%s3744 + $0xc] sm:$0xf]
        %v3748 = vld [vmem:[%s3744 + $0x10] sm:$0xf]
        %v3749 = vld [vmem:[%s3744 + $0x18] sm:$0xf]
        %v3750 = vld [vmem:[%s3744 + $0x1c] sm:$0xf]
        %v3751 = vld [vmem:[%s3744 + $0x24] sm:$0xf]
        %v3752 = vld [vmem:[%s3744 + $0x28] sm:$0xf]
        %v3753 = vld [vmem:[%s3744 + $0x30] sm:$0xf]
        %v3754 = vld [vmem:[%s3744 + $0x34] sm:$0xf]
        %v3755 = vld [vmem:[%s3744 + $0x3c] sm:$0xf]
        %v3756 = vld [vmem:[%s3744 + $0x40] sm:$0xf]
        %v3757 = vld [vmem:[%s3744 + $0x48] sm:$0xf]
        %v3758 = vld [vmem:[%s3744 + $0x4c] sm:$0xf]
        %v3759 = vld [vmem:[%s3744 + $0x54] sm:$0xf]
        %v3760 = vld [vmem:[%s3744 + $0x58] sm:$0xf]
        %v3761 = vld [vmem:[%s3744 + $0x60] sm:$0xf]
        %v3762 = vld [vmem:[%s3744 + $0x64] sm:$0xf]
        %v3763 = vld [vmem:[%s3744 + $0x6c] sm:$0xf]
        %v3764 = vld [vmem:[%s3744 + $0x70] sm:$0xf]
        %v3765 = vld [vmem:[%s3744 + $0x78] sm:$0xf]
        %v3766 = vld [vmem:[%s3744 + $0x7c] sm:$0xf]
        %v3767 = vld [vmem:[%s3744 + $0x84] sm:$0xf]
        %v3768 = vld [vmem:[%s3744 + $0x88] sm:$0xf]
        %v3769 = vld [vmem:[%s3744 + $0x90] sm:$0xf]
        %v3770 = vld [vmem:[%s3744 + $0x94] sm:$0xf]
        %v3771 = vld [vmem:[%s3744 + $0x9c] sm:$0xf]
        %v3772 = vld [vmem:[%s3744 + $0xa0] sm:$0xf]
        %v3773 = vld [vmem:[%s3744 + $0xa8] sm:$0xf]
        %v3774 = vld [vmem:[%s3744 + $0xac] sm:$0xf]
        %v3775 = vld [vmem:[%s3744 + $0xb4] sm:$0xf]
        %v3776 = vld [vmem:[%s3744 + $0xb8] sm:$0xf]
        %s3777 = scalar_lea.vmem %s3, 12
        %v3778 = vld [vmem:[%s3777] sm:$0x3]
        %v3811 = vunpack.c.l.b16 %v3745
        %v3812 = vunpack.c.l.b16 %v3746
        %v3813 = vunpack.c.l.b16 %v3747
        %v3814 = vunpack.c.l.b16 %v3748
        %v3815 = vunpack.c.l.b16 %v3749
        %v3816 = vunpack.c.l.b16 %v3750
        %v3817 = vunpack.c.l.b16 %v3751
        %v3818 = vunpack.c.l.b16 %v3752
        %v3819 = vunpack.c.l.b16 %v3753
        %v3820 = vunpack.c.l.b16 %v3754
        %v3821 = vunpack.c.l.b16 %v3755
        %v3822 = vunpack.c.l.b16 %v3756
        %v3823 = vunpack.c.l.b16 %v3757
        %v3824 = vunpack.c.l.b16 %v3758
        %v3825 = vunpack.c.l.b16 %v3759
        %v3826 = vunpack.c.l.b16 %v3760
        %v3827 = vunpack.c.l.b16 %v3761
        %v3828 = vunpack.c.l.b16 %v3762
        %v3829 = vunpack.c.l.b16 %v3763
        %v3830 = vunpack.c.l.b16 %v3764
        %v3831 = vunpack.c.l.b16 %v3765
        %v3832 = vunpack.c.l.b16 %v3766
        %v3833 = vunpack.c.l.b16 %v3767
        %v3834 = vunpack.c.l.b16 %v3768
        %v3835 = vunpack.c.l.b16 %v3769
        %v3836 = vunpack.c.l.b16 %v3770
        %v3837 = vunpack.c.l.b16 %v3771
        %v3838 = vunpack.c.l.b16 %v3772
        %v3839 = vunpack.c.l.b16 %v3773
        %v3840 = vunpack.c.l.b16 %v3774
        %v3841 = vunpack.c.l.b16 %v3775
        %v3842 = vunpack.c.l.b16 %v3776
        %v3843 = vpack.c.b16 %v3812, %v3811
        %v3844 = vpack.c.b16 %v3814, %v3813
        %v3845 = vpack.c.b16 %v3816, %v3815
        %v3846 = vpack.c.b16 %v3818, %v3817
        %v3847 = vpack.c.b16 %v3820, %v3819
        %v3848 = vpack.c.b16 %v3822, %v3821
        %v3849 = vpack.c.b16 %v3824, %v3823
        %v3850 = vpack.c.b16 %v3826, %v3825
        %v3851 = vpack.c.b16 %v3828, %v3827
        %v3852 = vpack.c.b16 %v3830, %v3829
        %v3853 = vpack.c.b16 %v3832, %v3831
        %v3854 = vpack.c.b16 %v3834, %v3833
        %v3855 = vpack.c.b16 %v3836, %v3835
        %v3856 = vpack.c.b16 %v3838, %v3837
        %v3857 = vpack.c.b16 %v3840, %v3839
        %v3858 = vpack.c.b16 %v3842, %v3841
        %v3860 = vsel %vm1659, %v3843, 0
        %v3863 = vsel %vm1659, %v3844, 0
        %v3866 = vsel %vm1659, %v3845, 0
        %v3869 = vsel %vm1659, %v3846, 0
        %v3872 = vsel %vm1659, %v3847, 0
        %v3875 = vsel %vm1659, %v3848, 0
        %v3878 = vsel %vm1659, %v3849, 0
        %v3881 = vsel %vm1659, %v3850, 0
        %v3884 = vsel %vm1659, %v3851, 0
        %v3887 = vsel %vm1659, %v3852, 0
        %v3890 = vsel %vm1659, %v3853, 0
        %v3893 = vsel %vm1659, %v3854, 0
        %v3896 = vsel %vm1659, %v3855, 0
        %v3899 = vsel %vm1659, %v3856, 0
        %v3902 = vsel %vm1659, %v3857, 0
        %v3905 = vsel %vm1659, %v3858, 0
        %v3908 = vsel %vm1708, %v3778, 0
        %3910 = vmatpush.bf16.msra.mxu0 0
        %3911 = vmatpush.bf16.msra.mxu0 0
        %3912 = vmatpush.bf16.msra.mxu0 0
        %3913 = vmatpush.bf16.msra.mxu0 0
        %3914 = vmatpush.bf16.msra.mxu0 0
        %3915 = vmatpush.bf16.msra.mxu0 0
        %3916 = vmatpush.bf16.msra.mxu0 0
        %3917 = vmatpush.bf16.msra.mxu0 %v3908
        %3918 = vmatmul.bf16.gmra.mxu0 %v3860
        %v3919 = vpop.f32.mrf.mxu0
        %v3920 = vadd.f32 0.0, %v3919
        %v3921 = vpop.f32.mrf.mxu0
        %v3922 = vadd.f32 0.0, %v3921
        %3923 = vmatmul.bf16.gmra.mxu0 %v3863
        %v3924 = vpop.f32.mrf.mxu0
        %v3925 = vadd.f32 0.0, %v3924
        %v3926 = vpop.f32.mrf.mxu0
        %v3927 = vadd.f32 0.0, %v3926
        %3928 = vmatmul.bf16.gmra.mxu0 %v3866
        %v3929 = vpop.f32.mrf.mxu0
        %v3930 = vadd.f32 0.0, %v3929
        %v3931 = vpop.f32.mrf.mxu0
        %v3932 = vadd.f32 0.0, %v3931
        %3933 = vmatmul.bf16.gmra.mxu0 %v3869
        %v3934 = vpop.f32.mrf.mxu0
        %v3935 = vadd.f32 0.0, %v3934
        %v3936 = vpop.f32.mrf.mxu0
        %v3937 = vadd.f32 0.0, %v3936
        %3938 = vmatmul.bf16.gmra.mxu0 %v3872
        %v3939 = vpop.f32.mrf.mxu0
        %v3940 = vadd.f32 0.0, %v3939
        %v3941 = vpop.f32.mrf.mxu0
        %v3942 = vadd.f32 0.0, %v3941
        %3943 = vmatmul.bf16.gmra.mxu0 %v3875
        %v3944 = vpop.f32.mrf.mxu0
        %v3945 = vadd.f32 0.0, %v3944
        %v3946 = vpop.f32.mrf.mxu0
        %v3947 = vadd.f32 0.0, %v3946
        %3948 = vmatmul.bf16.gmra.mxu0 %v3878
        %v3949 = vpop.f32.mrf.mxu0
        %v3950 = vadd.f32 0.0, %v3949
        %v3951 = vpop.f32.mrf.mxu0
        %v3952 = vadd.f32 0.0, %v3951
        %3953 = vmatmul.bf16.gmra.mxu0 %v3881
        %v3954 = vpop.f32.mrf.mxu0
        %v3955 = vadd.f32 0.0, %v3954
        %v3956 = vpop.f32.mrf.mxu0
        %v3957 = vadd.f32 0.0, %v3956
        %3958 = vmatmul.bf16.gmra.mxu0 %v3884
        %v3959 = vpop.f32.mrf.mxu0
        %v3960 = vadd.f32 0.0, %v3959
        %v3961 = vpop.f32.mrf.mxu0
        %v3962 = vadd.f32 0.0, %v3961
        %3963 = vmatmul.bf16.gmra.mxu0 %v3887
        %v3964 = vpop.f32.mrf.mxu0
        %v3965 = vadd.f32 0.0, %v3964
        %v3966 = vpop.f32.mrf.mxu0
        %v3967 = vadd.f32 0.0, %v3966
        %3968 = vmatmul.bf16.gmra.mxu0 %v3890
        %v3969 = vpop.f32.mrf.mxu0
        %v3970 = vadd.f32 0.0, %v3969
        %v3971 = vpop.f32.mrf.mxu0
        %v3972 = vadd.f32 0.0, %v3971
        %3973 = vmatmul.bf16.gmra.mxu0 %v3893
        %v3974 = vpop.f32.mrf.mxu0
        %v3975 = vadd.f32 0.0, %v3974
        %v3976 = vpop.f32.mrf.mxu0
        %v3977 = vadd.f32 0.0, %v3976
        %3978 = vmatmul.bf16.gmra.mxu0 %v3896
        %v3979 = vpop.f32.mrf.mxu0
        %v3980 = vadd.f32 0.0, %v3979
        %v3981 = vpop.f32.mrf.mxu0
        %v3982 = vadd.f32 0.0, %v3981
        %3983 = vmatmul.bf16.gmra.mxu0 %v3899
        %v3984 = vpop.f32.mrf.mxu0
        %v3985 = vadd.f32 0.0, %v3984
        %v3986 = vpop.f32.mrf.mxu0
        %v3987 = vadd.f32 0.0, %v3986
        %3988 = vmatmul.bf16.gmra.mxu0 %v3902
        %v3989 = vpop.f32.mrf.mxu0
        %v3990 = vadd.f32 0.0, %v3989
        %v3991 = vpop.f32.mrf.mxu0
        %v3992 = vadd.f32 0.0, %v3991
        %3993 = vmatmul.bf16.gmra.mxu0 %v3905
        %v3994 = vpop.f32.mrf.mxu0
        %v3995 = vadd.f32 0.0, %v3994
        %v3996 = vpop.f32.mrf.mxu0
        %v3997 = vadd.f32 0.0, %v3996
        %3998 = vdwg.mxu0
        %v3999 = vadd.f32 %v3712, %v3920
        %v4000 = vadd.f32 %v3713, %v3922
        %v4001 = vadd.f32 %v3714, %v3925
        %v4002 = vadd.f32 %v3715, %v3927
        %v4003 = vadd.f32 %v3716, %v3930
        %v4004 = vadd.f32 %v3717, %v3932
        %v4005 = vadd.f32 %v3718, %v3935
        %v4006 = vadd.f32 %v3719, %v3937
        %v4007 = vadd.f32 %v3720, %v3940
        %v4008 = vadd.f32 %v3721, %v3942
        %v4009 = vadd.f32 %v3722, %v3945
        %v4010 = vadd.f32 %v3723, %v3947
        %v4011 = vadd.f32 %v3724, %v3950
        %v4012 = vadd.f32 %v3725, %v3952
        %v4013 = vadd.f32 %v3726, %v3955
        %v4014 = vadd.f32 %v3727, %v3957
        %v4015 = vadd.f32 %v3728, %v3960
        %v4016 = vadd.f32 %v3729, %v3962
        %v4017 = vadd.f32 %v3730, %v3965
        %v4018 = vadd.f32 %v3731, %v3967
        %v4019 = vadd.f32 %v3732, %v3970
        %v4020 = vadd.f32 %v3733, %v3972
        %v4021 = vadd.f32 %v3734, %v3975
        %v4022 = vadd.f32 %v3735, %v3977
        %v4023 = vadd.f32 %v3736, %v3980
        %v4024 = vadd.f32 %v3737, %v3982
        %v4025 = vadd.f32 %v3738, %v3985
        %v4026 = vadd.f32 %v3739, %v3987
        %v4027 = vadd.f32 %v3740, %v3990
        %v4028 = vadd.f32 %v3741, %v3992
        %v4029 = vadd.f32 %v3742, %v3995
        %v4030 = vadd.f32 %v3743, %v3997
        %v4031 = vld [vmem:[%s3744] sm:$0xf]
        %v4032 = vld [vmem:[%s3744 + $0x4] sm:$0xf]
        %v4033 = vld [vmem:[%s3744 + $0x8] sm:$0x1]
        %v4034 = vld [vmem:[%s3744 + $0xc] sm:$0xf]
        %v4035 = vld [vmem:[%s3744 + $0x10] sm:$0xf]
        %v4036 = vld [vmem:[%s3744 + $0x14] sm:$0x1]
        %v4037 = vld [vmem:[%s3744 + $0x18] sm:$0xf]
        %v4038 = vld [vmem:[%s3744 + $0x1c] sm:$0xf]
        %v4039 = vld [vmem:[%s3744 + $0x20] sm:$0x1]
        %v4040 = vld [vmem:[%s3744 + $0x24] sm:$0xf]
        %v4041 = vld [vmem:[%s3744 + $0x28] sm:$0xf]
        %v4042 = vld [vmem:[%s3744 + $0x2c] sm:$0x1]
        %v4043 = vld [vmem:[%s3744 + $0x30] sm:$0xf]
        %v4044 = vld [vmem:[%s3744 + $0x34] sm:$0xf]
        %v4045 = vld [vmem:[%s3744 + $0x38] sm:$0x1]
        %v4046 = vld [vmem:[%s3744 + $0x3c] sm:$0xf]
        %v4047 = vld [vmem:[%s3744 + $0x40] sm:$0xf]
        %v4048 = vld [vmem:[%s3744 + $0x44] sm:$0x1]
        %v4049 = vld [vmem:[%s3744 + $0x48] sm:$0xf]
        %v4050 = vld [vmem:[%s3744 + $0x4c] sm:$0xf]
        %v4051 = vld [vmem:[%s3744 + $0x50] sm:$0x1]
        %v4052 = vld [vmem:[%s3744 + $0x54] sm:$0xf]
        %v4053 = vld [vmem:[%s3744 + $0x58] sm:$0xf]
        %v4054 = vld [vmem:[%s3744 + $0x5c] sm:$0x1]
        %v4055 = vld [vmem:[%s3744 + $0x60] sm:$0xf]
        %v4056 = vld [vmem:[%s3744 + $0x64] sm:$0xf]
        %v4057 = vld [vmem:[%s3744 + $0x68] sm:$0x1]
        %v4058 = vld [vmem:[%s3744 + $0x6c] sm:$0xf]
        %v4059 = vld [vmem:[%s3744 + $0x70] sm:$0xf]
        %v4060 = vld [vmem:[%s3744 + $0x74] sm:$0x1]
        %v4061 = vld [vmem:[%s3744 + $0x78] sm:$0xf]
        %v4062 = vld [vmem:[%s3744 + $0x7c] sm:$0xf]
        %v4063 = vld [vmem:[%s3744 + $0x80] sm:$0x1]
        %v4064 = vld [vmem:[%s3744 + $0x84] sm:$0xf]
        %v4065 = vld [vmem:[%s3744 + $0x88] sm:$0xf]
        %v4066 = vld [vmem:[%s3744 + $0x8c] sm:$0x1]
        %v4067 = vld [vmem:[%s3744 + $0x90] sm:$0xf]
        %v4068 = vld [vmem:[%s3744 + $0x94] sm:$0xf]
        %v4069 = vld [vmem:[%s3744 + $0x98] sm:$0x1]
        %v4070 = vld [vmem:[%s3744 + $0x9c] sm:$0xf]
        %v4071 = vld [vmem:[%s3744 + $0xa0] sm:$0xf]
        %v4072 = vld [vmem:[%s3744 + $0xa4] sm:$0x1]
        %v4073 = vld [vmem:[%s3744 + $0xa8] sm:$0xf]
        %v4074 = vld [vmem:[%s3744 + $0xac] sm:$0xf]
        %v4075 = vld [vmem:[%s3744 + $0xb0] sm:$0x1]
        %v4076 = vld [vmem:[%s3744 + $0xb4] sm:$0xf]
        %v4077 = vld [vmem:[%s3744 + $0xb8] sm:$0xf]
        %v4078 = vld [vmem:[%s3744 + $0xbc] sm:$0x1]
        %v4080 = vshrl.u32 %v4031, 16
        %v4082 = vrot.slane %v4080, 4
        %v4083 = vshll.u32 %v4031, 16
        %v4085 = vrot.slane %v4083, 5
        %v4086 = vor.u32 %v4082, %v4085
        %v4087 = vrot.slane %v4086, 4
        %v4089 = vshll.u32 %v4032, 16
        %v4091 = vrot.slane %v4089, 5
        %v4092 = vsel %vm1224, %v4087, %v4091
        %v4093 = vshrl.u32 %v4032, 16
        %v4095 = vrot.slane %v4093, 4
        %v4096 = vor.u32 %v4095, %v4091
        %v4097 = vrot.slane %v4096, 4
        %v4099 = vshll.u32 %v4033, 16
        %v4101 = vrot.slane %v4099, 5
        %v4102 = vsel %vm1224, %v4097, %v4101
        %v4104 = vshrl.u32 %v4034, 16
        %v4106 = vrot.slane %v4104, 4
        %v4107 = vshll.u32 %v4034, 16
        %v4109 = vrot.slane %v4107, 5
        %v4110 = vor.u32 %v4106, %v4109
        %v4111 = vrot.slane %v4110, 4
        %v4113 = vshll.u32 %v4035, 16
        %v4115 = vrot.slane %v4113, 5
        %v4116 = vsel %vm1224, %v4111, %v4115
        %v4117 = vshrl.u32 %v4035, 16
        %v4119 = vrot.slane %v4117, 4
        %v4120 = vor.u32 %v4119, %v4115
        %v4121 = vrot.slane %v4120, 4
        %v4123 = vshll.u32 %v4036, 16
        %v4125 = vrot.slane %v4123, 5
        %v4126 = vsel %vm1224, %v4121, %v4125
        %v4128 = vshrl.u32 %v4037, 16
        %v4130 = vrot.slane %v4128, 4
        %v4131 = vshll.u32 %v4037, 16
        %v4133 = vrot.slane %v4131, 5
        %v4134 = vor.u32 %v4130, %v4133
        %v4135 = vrot.slane %v4134, 4
        %v4137 = vshll.u32 %v4038, 16
        %v4139 = vrot.slane %v4137, 5
        %v4140 = vsel %vm1224, %v4135, %v4139
        %v4141 = vshrl.u32 %v4038, 16
        %v4143 = vrot.slane %v4141, 4
        %v4144 = vor.u32 %v4143, %v4139
        %v4145 = vrot.slane %v4144, 4
        %v4147 = vshll.u32 %v4039, 16
        %v4149 = vrot.slane %v4147, 5
        %v4150 = vsel %vm1224, %v4145, %v4149
        %v4152 = vshrl.u32 %v4040, 16
        %v4154 = vrot.slane %v4152, 4
        %v4155 = vshll.u32 %v4040, 16
        %v4157 = vrot.slane %v4155, 5
        %v4158 = vor.u32 %v4154, %v4157
        %v4159 = vrot.slane %v4158, 4
        %v4161 = vshll.u32 %v4041, 16
        %v4163 = vrot.slane %v4161, 5
        %v4164 = vsel %vm1224, %v4159, %v4163
        %v4165 = vshrl.u32 %v4041, 16
        %v4167 = vrot.slane %v4165, 4
        %v4168 = vor.u32 %v4167, %v4163
        %v4169 = vrot.slane %v4168, 4
        %v4171 = vshll.u32 %v4042, 16
        %v4173 = vrot.slane %v4171, 5
        %v4174 = vsel %vm1224, %v4169, %v4173
        %v4176 = vshrl.u32 %v4043, 16
        %v4178 = vrot.slane %v4176, 4
        %v4179 = vshll.u32 %v4043, 16
        %v4181 = vrot.slane %v4179, 5
        %v4182 = vor.u32 %v4178, %v4181
        %v4183 = vrot.slane %v4182, 4
        %v4185 = vshll.u32 %v4044, 16
        %v4187 = vrot.slane %v4185, 5
        %v4188 = vsel %vm1224, %v4183, %v4187
        %v4189 = vshrl.u32 %v4044, 16
        %v4191 = vrot.slane %v4189, 4
        %v4192 = vor.u32 %v4191, %v4187
        %v4193 = vrot.slane %v4192, 4
        %v4195 = vshll.u32 %v4045, 16
        %v4197 = vrot.slane %v4195, 5
        %v4198 = vsel %vm1224, %v4193, %v4197
        %v4200 = vshrl.u32 %v4046, 16
        %v4202 = vrot.slane %v4200, 4
        %v4203 = vshll.u32 %v4046, 16
        %v4205 = vrot.slane %v4203, 5
        %v4206 = vor.u32 %v4202, %v4205
        %v4207 = vrot.slane %v4206, 4
        %v4209 = vshll.u32 %v4047, 16
        %v4211 = vrot.slane %v4209, 5
        %v4212 = vsel %vm1224, %v4207, %v4211
        %v4213 = vshrl.u32 %v4047, 16
        %v4215 = vrot.slane %v4213, 4
        %v4216 = vor.u32 %v4215, %v4211
        %v4217 = vrot.slane %v4216, 4
        %v4219 = vshll.u32 %v4048, 16
        %v4221 = vrot.slane %v4219, 5
        %v4222 = vsel %vm1224, %v4217, %v4221
        %v4224 = vshrl.u32 %v4049, 16
        %v4226 = vrot.slane %v4224, 4
        %v4227 = vshll.u32 %v4049, 16
        %v4229 = vrot.slane %v4227, 5
        %v4230 = vor.u32 %v4226, %v4229
        %v4231 = vrot.slane %v4230, 4
        %v4233 = vshll.u32 %v4050, 16
        %v4235 = vrot.slane %v4233, 5
        %v4236 = vsel %vm1224, %v4231, %v4235
        %v4237 = vshrl.u32 %v4050, 16
        %v4239 = vrot.slane %v4237, 4
        %v4240 = vor.u32 %v4239, %v4235
        %v4241 = vrot.slane %v4240, 4
        %v4243 = vshll.u32 %v4051, 16
        %v4245 = vrot.slane %v4243, 5
        %v4246 = vsel %vm1224, %v4241, %v4245
        %v4248 = vshrl.u32 %v4052, 16
        %v4250 = vrot.slane %v4248, 4
        %v4251 = vshll.u32 %v4052, 16
        %v4253 = vrot.slane %v4251, 5
        %v4254 = vor.u32 %v4250, %v4253
        %v4255 = vrot.slane %v4254, 4
        %v4257 = vshll.u32 %v4053, 16
        %v4259 = vrot.slane %v4257, 5
        %v4260 = vsel %vm1224, %v4255, %v4259
        %v4261 = vshrl.u32 %v4053, 16
        %v4263 = vrot.slane %v4261, 4
        %v4264 = vor.u32 %v4263, %v4259
        %v4265 = vrot.slane %v4264, 4
        %v4267 = vshll.u32 %v4054, 16
        %v4269 = vrot.slane %v4267, 5
        %v4270 = vsel %vm1224, %v4265, %v4269
        %v4272 = vshrl.u32 %v4055, 16
        %v4274 = vrot.slane %v4272, 4
        %v4275 = vshll.u32 %v4055, 16
        %v4277 = vrot.slane %v4275, 5
        %v4278 = vor.u32 %v4274, %v4277
        %v4279 = vrot.slane %v4278, 4
        %v4281 = vshll.u32 %v4056, 16
        %v4283 = vrot.slane %v4281, 5
        %v4284 = vsel %vm1224, %v4279, %v4283
        %v4285 = vshrl.u32 %v4056, 16
        %v4287 = vrot.slane %v4285, 4
        %v4288 = vor.u32 %v4287, %v4283
        %v4289 = vrot.slane %v4288, 4
        %v4291 = vshll.u32 %v4057, 16
        %v4293 = vrot.slane %v4291, 5
        %v4294 = vsel %vm1224, %v4289, %v4293
        %v4296 = vshrl.u32 %v4058, 16
        %v4298 = vrot.slane %v4296, 4
        %v4299 = vshll.u32 %v4058, 16
        %v4301 = vrot.slane %v4299, 5
        %v4302 = vor.u32 %v4298, %v4301
        %v4303 = vrot.slane %v4302, 4
        %v4305 = vshll.u32 %v4059, 16
        %v4307 = vrot.slane %v4305, 5
        %v4308 = vsel %vm1224, %v4303, %v4307
        %v4309 = vshrl.u32 %v4059, 16
        %v4311 = vrot.slane %v4309, 4
        %v4312 = vor.u32 %v4311, %v4307
        %v4313 = vrot.slane %v4312, 4
        %v4315 = vshll.u32 %v4060, 16
        %v4317 = vrot.slane %v4315, 5
        %v4318 = vsel %vm1224, %v4313, %v4317
        %v4320 = vshrl.u32 %v4061, 16
        %v4322 = vrot.slane %v4320, 4
        %v4323 = vshll.u32 %v4061, 16
        %v4325 = vrot.slane %v4323, 5
        %v4326 = vor.u32 %v4322, %v4325
        %v4327 = vrot.slane %v4326, 4
        %v4329 = vshll.u32 %v4062, 16
        %v4331 = vrot.slane %v4329, 5
        %v4332 = vsel %vm1224, %v4327, %v4331
        %v4333 = vshrl.u32 %v4062, 16
        %v4335 = vrot.slane %v4333, 4
        %v4336 = vor.u32 %v4335, %v4331
        %v4337 = vrot.slane %v4336, 4
        %v4339 = vshll.u32 %v4063, 16
        %v4341 = vrot.slane %v4339, 5
        %v4342 = vsel %vm1224, %v4337, %v4341
        %v4344 = vshrl.u32 %v4064, 16
        %v4346 = vrot.slane %v4344, 4
        %v4347 = vshll.u32 %v4064, 16
        %v4349 = vrot.slane %v4347, 5
        %v4350 = vor.u32 %v4346, %v4349
        %v4351 = vrot.slane %v4350, 4
        %v4353 = vshll.u32 %v4065, 16
        %v4355 = vrot.slane %v4353, 5
        %v4356 = vsel %vm1224, %v4351, %v4355
        %v4357 = vshrl.u32 %v4065, 16
        %v4359 = vrot.slane %v4357, 4
        %v4360 = vor.u32 %v4359, %v4355
        %v4361 = vrot.slane %v4360, 4
        %v4363 = vshll.u32 %v4066, 16
        %v4365 = vrot.slane %v4363, 5
        %v4366 = vsel %vm1224, %v4361, %v4365
        %v4368 = vshrl.u32 %v4067, 16
        %v4370 = vrot.slane %v4368, 4
        %v4371 = vshll.u32 %v4067, 16
        %v4373 = vrot.slane %v4371, 5
        %v4374 = vor.u32 %v4370, %v4373
        %v4375 = vrot.slane %v4374, 4
        %v4377 = vshll.u32 %v4068, 16
        %v4379 = vrot.slane %v4377, 5
        %v4380 = vsel %vm1224, %v4375, %v4379
        %v4381 = vshrl.u32 %v4068, 16
        %v4383 = vrot.slane %v4381, 4
        %v4384 = vor.u32 %v4383, %v4379
        %v4385 = vrot.slane %v4384, 4
        %v4387 = vshll.u32 %v4069, 16
        %v4389 = vrot.slane %v4387, 5
        %v4390 = vsel %vm1224, %v4385, %v4389
        %v4392 = vshrl.u32 %v4070, 16
        %v4394 = vrot.slane %v4392, 4
        %v4395 = vshll.u32 %v4070, 16
        %v4397 = vrot.slane %v4395, 5
        %v4398 = vor.u32 %v4394, %v4397
        %v4399 = vrot.slane %v4398, 4
        %v4401 = vshll.u32 %v4071, 16
        %v4403 = vrot.slane %v4401, 5
        %v4404 = vsel %vm1224, %v4399, %v4403
        %v4405 = vshrl.u32 %v4071, 16
        %v4407 = vrot.slane %v4405, 4
        %v4408 = vor.u32 %v4407, %v4403
        %v4409 = vrot.slane %v4408, 4
        %v4411 = vshll.u32 %v4072, 16
        %v4413 = vrot.slane %v4411, 5
        %v4414 = vsel %vm1224, %v4409, %v4413
        %v4416 = vshrl.u32 %v4073, 16
        %v4418 = vrot.slane %v4416, 4
        %v4419 = vshll.u32 %v4073, 16
        %v4421 = vrot.slane %v4419, 5
        %v4422 = vor.u32 %v4418, %v4421
        %v4423 = vrot.slane %v4422, 4
        %v4425 = vshll.u32 %v4074, 16
        %v4427 = vrot.slane %v4425, 5
        %v4428 = vsel %vm1224, %v4423, %v4427
        %v4429 = vshrl.u32 %v4074, 16
        %v4431 = vrot.slane %v4429, 4
        %v4432 = vor.u32 %v4431, %v4427
        %v4433 = vrot.slane %v4432, 4
        %v4435 = vshll.u32 %v4075, 16
        %v4437 = vrot.slane %v4435, 5
        %v4438 = vsel %vm1224, %v4433, %v4437
        %v4440 = vshrl.u32 %v4076, 16
        %v4442 = vrot.slane %v4440, 4
        %v4443 = vshll.u32 %v4076, 16
        %v4445 = vrot.slane %v4443, 5
        %v4446 = vor.u32 %v4442, %v4445
        %v4447 = vrot.slane %v4446, 4
        %v4449 = vshll.u32 %v4077, 16
        %v4451 = vrot.slane %v4449, 5
        %v4452 = vsel %vm1224, %v4447, %v4451
        %v4453 = vshrl.u32 %v4077, 16
        %v4455 = vrot.slane %v4453, 4
        %v4456 = vor.u32 %v4455, %v4451
        %v4457 = vrot.slane %v4456, 4
        %v4459 = vshll.u32 %v4078, 16
        %v4461 = vrot.slane %v4459, 5
        %v4462 = vsel %vm1224, %v4457, %v4461
        %s4463 = scalar_lea.vmem %s3, 14
        %v4464 = vld [vmem:[%s4463] sm:$0x3]
        %v4465 = vunpack.c.l.b16 %v4092
        %v4466 = vunpack.c.l.b16 %v4102
        %v4467 = vunpack.c.l.b16 %v4116
        %v4468 = vunpack.c.l.b16 %v4126
        %v4469 = vunpack.c.l.b16 %v4140
        %v4470 = vunpack.c.l.b16 %v4150
        %v4471 = vunpack.c.l.b16 %v4164
        %v4472 = vunpack.c.l.b16 %v4174
        %v4473 = vunpack.c.l.b16 %v4188
        %v4474 = vunpack.c.l.b16 %v4198
        %v4475 = vunpack.c.l.b16 %v4212
        %v4476 = vunpack.c.l.b16 %v4222
        %v4477 = vunpack.c.l.b16 %v4236
        %v4478 = vunpack.c.l.b16 %v4246
        %v4479 = vunpack.c.l.b16 %v4260
        %v4480 = vunpack.c.l.b16 %v4270
        %v4481 = vunpack.c.l.b16 %v4284
        %v4482 = vunpack.c.l.b16 %v4294
        %v4483 = vunpack.c.l.b16 %v4308
        %v4484 = vunpack.c.l.b16 %v4318
        %v4485 = vunpack.c.l.b16 %v4332
        %v4486 = vunpack.c.l.b16 %v4342
        %v4487 = vunpack.c.l.b16 %v4356
        %v4488 = vunpack.c.l.b16 %v4366
        %v4489 = vunpack.c.l.b16 %v4380
        %v4490 = vunpack.c.l.b16 %v4390
        %v4491 = vunpack.c.l.b16 %v4404
        %v4492 = vunpack.c.l.b16 %v4414
        %v4493 = vunpack.c.l.b16 %v4428
        %v4494 = vunpack.c.l.b16 %v4438
        %v4495 = vunpack.c.l.b16 %v4452
        %v4496 = vunpack.c.l.b16 %v4462
        %v4497 = vpack.c.b16 %v4466, %v4465
        %v4498 = vpack.c.b16 %v4468, %v4467
        %v4499 = vpack.c.b16 %v4470, %v4469
        %v4500 = vpack.c.b16 %v4472, %v4471
        %v4501 = vpack.c.b16 %v4474, %v4473
        %v4502 = vpack.c.b16 %v4476, %v4475
        %v4503 = vpack.c.b16 %v4478, %v4477
        %v4504 = vpack.c.b16 %v4480, %v4479
        %v4505 = vpack.c.b16 %v4482, %v4481
        %v4506 = vpack.c.b16 %v4484, %v4483
        %v4507 = vpack.c.b16 %v4486, %v4485
        %v4508 = vpack.c.b16 %v4488, %v4487
        %v4509 = vpack.c.b16 %v4490, %v4489
        %v4510 = vpack.c.b16 %v4492, %v4491
        %v4511 = vpack.c.b16 %v4494, %v4493
        %v4512 = vpack.c.b16 %v4496, %v4495
        %v4514 = vsel %vm1659, %v4497, 0
        %v4517 = vsel %vm1659, %v4498, 0
        %v4520 = vsel %vm1659, %v4499, 0
        %v4523 = vsel %vm1659, %v4500, 0
        %v4526 = vsel %vm1659, %v4501, 0
        %v4529 = vsel %vm1659, %v4502, 0
        %v4532 = vsel %vm1659, %v4503, 0
        %v4535 = vsel %vm1659, %v4504, 0
        %v4538 = vsel %vm1659, %v4505, 0
        %v4541 = vsel %vm1659, %v4506, 0
        %v4544 = vsel %vm1659, %v4507, 0
        %v4547 = vsel %vm1659, %v4508, 0
        %v4550 = vsel %vm1659, %v4509, 0
        %v4553 = vsel %vm1659, %v4510, 0
        %v4556 = vsel %vm1659, %v4511, 0
        %v4559 = vsel %vm1659, %v4512, 0
        %v4562 = vsel %vm1708, %v4464, 0
        %4564 = vmatpush.bf16.msra.mxu0 0
        %4565 = vmatpush.bf16.msra.mxu0 0
        %4566 = vmatpush.bf16.msra.mxu0 0
        %4567 = vmatpush.bf16.msra.mxu0 0
        %4568 = vmatpush.bf16.msra.mxu0 0
        %4569 = vmatpush.bf16.msra.mxu0 0
        %4570 = vmatpush.bf16.msra.mxu0 0
        %4571 = vmatpush.bf16.msra.mxu0 %v4562
        %4572 = vmatmul.bf16.gmra.mxu0 %v4514
        %v4573 = vpop.f32.mrf.mxu0
        %v4574 = vadd.f32 0.0, %v4573
        %v4575 = vpop.f32.mrf.mxu0
        %v4576 = vadd.f32 0.0, %v4575
        %4577 = vmatmul.bf16.gmra.mxu0 %v4517
        %v4578 = vpop.f32.mrf.mxu0
        %v4579 = vadd.f32 0.0, %v4578
        %v4580 = vpop.f32.mrf.mxu0
        %v4581 = vadd.f32 0.0, %v4580
        %4582 = vmatmul.bf16.gmra.mxu0 %v4520
        %v4583 = vpop.f32.mrf.mxu0
        %v4584 = vadd.f32 0.0, %v4583
        %v4585 = vpop.f32.mrf.mxu0
        %v4586 = vadd.f32 0.0, %v4585
        %4587 = vmatmul.bf16.gmra.mxu0 %v4523
        %v4588 = vpop.f32.mrf.mxu0
        %v4589 = vadd.f32 0.0, %v4588
        %v4590 = vpop.f32.mrf.mxu0
        %v4591 = vadd.f32 0.0, %v4590
        %4592 = vmatmul.bf16.gmra.mxu0 %v4526
        %v4593 = vpop.f32.mrf.mxu0
        %v4594 = vadd.f32 0.0, %v4593
        %v4595 = vpop.f32.mrf.mxu0
        %v4596 = vadd.f32 0.0, %v4595
        %4597 = vmatmul.bf16.gmra.mxu0 %v4529
        %v4598 = vpop.f32.mrf.mxu0
        %v4599 = vadd.f32 0.0, %v4598
        %v4600 = vpop.f32.mrf.mxu0
        %v4601 = vadd.f32 0.0, %v4600
        %4602 = vmatmul.bf16.gmra.mxu0 %v4532
        %v4603 = vpop.f32.mrf.mxu0
        %v4604 = vadd.f32 0.0, %v4603
        %v4605 = vpop.f32.mrf.mxu0
        %v4606 = vadd.f32 0.0, %v4605
        %4607 = vmatmul.bf16.gmra.mxu0 %v4535
        %v4608 = vpop.f32.mrf.mxu0
        %v4609 = vadd.f32 0.0, %v4608
        %v4610 = vpop.f32.mrf.mxu0
        %v4611 = vadd.f32 0.0, %v4610
        %4612 = vmatmul.bf16.gmra.mxu0 %v4538
        %v4613 = vpop.f32.mrf.mxu0
        %v4614 = vadd.f32 0.0, %v4613
        %v4615 = vpop.f32.mrf.mxu0
        %v4616 = vadd.f32 0.0, %v4615
        %4617 = vmatmul.bf16.gmra.mxu0 %v4541
        %v4618 = vpop.f32.mrf.mxu0
        %v4619 = vadd.f32 0.0, %v4618
        %v4620 = vpop.f32.mrf.mxu0
        %v4621 = vadd.f32 0.0, %v4620
        %4622 = vmatmul.bf16.gmra.mxu0 %v4544
        %v4623 = vpop.f32.mrf.mxu0
        %v4624 = vadd.f32 0.0, %v4623
        %v4625 = vpop.f32.mrf.mxu0
        %v4626 = vadd.f32 0.0, %v4625
        %4627 = vmatmul.bf16.gmra.mxu0 %v4547
        %v4628 = vpop.f32.mrf.mxu0
        %v4629 = vadd.f32 0.0, %v4628
        %v4630 = vpop.f32.mrf.mxu0
        %v4631 = vadd.f32 0.0, %v4630
        %4632 = vmatmul.bf16.gmra.mxu0 %v4550
        %v4633 = vpop.f32.mrf.mxu0
        %v4634 = vadd.f32 0.0, %v4633
        %v4635 = vpop.f32.mrf.mxu0
        %v4636 = vadd.f32 0.0, %v4635
        %4637 = vmatmul.bf16.gmra.mxu0 %v4553
        %v4638 = vpop.f32.mrf.mxu0
        %v4639 = vadd.f32 0.0, %v4638
        %v4640 = vpop.f32.mrf.mxu0
        %v4641 = vadd.f32 0.0, %v4640
        %4642 = vmatmul.bf16.gmra.mxu0 %v4556
        %v4643 = vpop.f32.mrf.mxu0
        %v4644 = vadd.f32 0.0, %v4643
        %v4645 = vpop.f32.mrf.mxu0
        %v4646 = vadd.f32 0.0, %v4645
        %4647 = vmatmul.bf16.gmra.mxu0 %v4559
        %v4648 = vpop.f32.mrf.mxu0
        %v4649 = vadd.f32 0.0, %v4648
        %v4650 = vpop.f32.mrf.mxu0
        %v4651 = vadd.f32 0.0, %v4650
        %4652 = vdwg.mxu0
        %v4653 = vadd.f32 %v3999, %v4574
        %v4654 = vadd.f32 %v4000, %v4576
        %v4655 = vadd.f32 %v4001, %v4579
        %v4656 = vadd.f32 %v4002, %v4581
        %v4657 = vadd.f32 %v4003, %v4584
        %v4658 = vadd.f32 %v4004, %v4586
        %v4659 = vadd.f32 %v4005, %v4589
        %v4660 = vadd.f32 %v4006, %v4591
        %v4661 = vadd.f32 %v4007, %v4594
        %v4662 = vadd.f32 %v4008, %v4596
        %v4663 = vadd.f32 %v4009, %v4599
        %v4664 = vadd.f32 %v4010, %v4601
        %v4665 = vadd.f32 %v4011, %v4604
        %v4666 = vadd.f32 %v4012, %v4606
        %v4667 = vadd.f32 %v4013, %v4609
        %v4668 = vadd.f32 %v4014, %v4611
        %v4669 = vadd.f32 %v4015, %v4614
        %v4670 = vadd.f32 %v4016, %v4616
        %v4671 = vadd.f32 %v4017, %v4619
        %v4672 = vadd.f32 %v4018, %v4621
        %v4673 = vadd.f32 %v4019, %v4624
        %v4674 = vadd.f32 %v4020, %v4626
        %v4675 = vadd.f32 %v4021, %v4629
        %v4676 = vadd.f32 %v4022, %v4631
        %v4677 = vadd.f32 %v4023, %v4634
        %v4678 = vadd.f32 %v4024, %v4636
        %v4679 = vadd.f32 %v4025, %v4639
        %v4680 = vadd.f32 %v4026, %v4641
        %v4681 = vadd.f32 %v4027, %v4644
        %v4682 = vadd.f32 %v4028, %v4646
        %v4683 = vadd.f32 %v4029, %v4649
        %v4684 = vadd.f32 %v4030, %v4651
        %v4685 = vld [vmem:[%s3744] sm:$0xe]
        %v4686 = vld [vmem:[%s3744 + $0xc] sm:$0xe]
        %v4687 = vld [vmem:[%s3744 + $0x18] sm:$0xe]
        %v4688 = vld [vmem:[%s3744 + $0x24] sm:$0xe]
        %v4689 = vld [vmem:[%s3744 + $0x30] sm:$0xe]
        %v4690 = vld [vmem:[%s3744 + $0x3c] sm:$0xe]
        %v4691 = vld [vmem:[%s3744 + $0x48] sm:$0xe]
        %v4692 = vld [vmem:[%s3744 + $0x54] sm:$0xe]
        %v4693 = vld [vmem:[%s3744 + $0x60] sm:$0xe]
        %v4694 = vld [vmem:[%s3744 + $0x6c] sm:$0xe]
        %v4695 = vld [vmem:[%s3744 + $0x78] sm:$0xe]
        %v4696 = vld [vmem:[%s3744 + $0x84] sm:$0xe]
        %v4697 = vld [vmem:[%s3744 + $0x90] sm:$0xe]
        %v4698 = vld [vmem:[%s3744 + $0x9c] sm:$0xe]
        %v4699 = vld [vmem:[%s3744 + $0xa8] sm:$0xe]
        %v4700 = vld [vmem:[%s3744 + $0xb4] sm:$0xe]
        %v4749 = vrot.slane %v4685, 5
        %v4750 = vrot.slane %v4749, 4
        %v4751 = vrot.slane %v4032, 5
        %v4752 = vsel %vm2071, %v4750, %v4751
        %v4753 = vrot.slane %v4751, 4
        %v4754 = vrot.slane %v4033, 5
        %v4755 = vsel %vm2071, %v4753, %v4754
        %v4756 = vrot.slane %v4686, 5
        %v4757 = vrot.slane %v4756, 4
        %v4758 = vrot.slane %v4035, 5
        %v4759 = vsel %vm2071, %v4757, %v4758
        %v4760 = vrot.slane %v4758, 4
        %v4761 = vrot.slane %v4036, 5
        %v4762 = vsel %vm2071, %v4760, %v4761
        %v4763 = vrot.slane %v4687, 5
        %v4764 = vrot.slane %v4763, 4
        %v4765 = vrot.slane %v4038, 5
        %v4766 = vsel %vm2071, %v4764, %v4765
        %v4767 = vrot.slane %v4765, 4
        %v4768 = vrot.slane %v4039, 5
        %v4769 = vsel %vm2071, %v4767, %v4768
        %v4770 = vrot.slane %v4688, 5
        %v4771 = vrot.slane %v4770, 4
        %v4772 = vrot.slane %v4041, 5
        %v4773 = vsel %vm2071, %v4771, %v4772
        %v4774 = vrot.slane %v4772, 4
        %v4775 = vrot.slane %v4042, 5
        %v4776 = vsel %vm2071, %v4774, %v4775
        %v4777 = vrot.slane %v4689, 5
        %v4778 = vrot.slane %v4777, 4
        %v4779 = vrot.slane %v4044, 5
        %v4780 = vsel %vm2071, %v4778, %v4779
        %v4781 = vrot.slane %v4779, 4
        %v4782 = vrot.slane %v4045, 5
        %v4783 = vsel %vm2071, %v4781, %v4782
        %v4784 = vrot.slane %v4690, 5
        %v4785 = vrot.slane %v4784, 4
        %v4786 = vrot.slane %v4047, 5
        %v4787 = vsel %vm2071, %v4785, %v4786
        %v4788 = vrot.slane %v4786, 4
        %v4789 = vrot.slane %v4048, 5
        %v4790 = vsel %vm2071, %v4788, %v4789
        %v4791 = vrot.slane %v4691, 5
        %v4792 = vrot.slane %v4791, 4
        %v4793 = vrot.slane %v4050, 5
        %v4794 = vsel %vm2071, %v4792, %v4793
        %v4795 = vrot.slane %v4793, 4
        %v4796 = vrot.slane %v4051, 5
        %v4797 = vsel %vm2071, %v4795, %v4796
        %v4798 = vrot.slane %v4692, 5
        %v4799 = vrot.slane %v4798, 4
        %v4800 = vrot.slane %v4053, 5
        %v4801 = vsel %vm2071, %v4799, %v4800
        %v4802 = vrot.slane %v4800, 4
        %v4803 = vrot.slane %v4054, 5
        %v4804 = vsel %vm2071, %v4802, %v4803
        %v4805 = vrot.slane %v4693, 5
        %v4806 = vrot.slane %v4805, 4
        %v4807 = vrot.slane %v4056, 5
        %v4808 = vsel %vm2071, %v4806, %v4807
        %v4809 = vrot.slane %v4807, 4
        %v4810 = vrot.slane %v4057, 5
        %v4811 = vsel %vm2071, %v4809, %v4810
        %v4812 = vrot.slane %v4694, 5
        %v4813 = vrot.slane %v4812, 4
        %v4814 = vrot.slane %v4059, 5
        %v4815 = vsel %vm2071, %v4813, %v4814
        %v4816 = vrot.slane %v4814, 4
        %v4817 = vrot.slane %v4060, 5
        %v4818 = vsel %vm2071, %v4816, %v4817
        %v4819 = vrot.slane %v4695, 5
        %v4820 = vrot.slane %v4819, 4
        %v4821 = vrot.slane %v4062, 5
        %v4822 = vsel %vm2071, %v4820, %v4821
        %v4823 = vrot.slane %v4821, 4
        %v4824 = vrot.slane %v4063, 5
        %v4825 = vsel %vm2071, %v4823, %v4824
        %v4826 = vrot.slane %v4696, 5
        %v4827 = vrot.slane %v4826, 4
        %v4828 = vrot.slane %v4065, 5
        %v4829 = vsel %vm2071, %v4827, %v4828
        %v4830 = vrot.slane %v4828, 4
        %v4831 = vrot.slane %v4066, 5
        %v4832 = vsel %vm2071, %v4830, %v4831
        %v4833 = vrot.slane %v4697, 5
        %v4834 = vrot.slane %v4833, 4
        %v4835 = vrot.slane %v4068, 5
        %v4836 = vsel %vm2071, %v4834, %v4835
        %v4837 = vrot.slane %v4835, 4
        %v4838 = vrot.slane %v4069, 5
        %v4839 = vsel %vm2071, %v4837, %v4838
        %v4840 = vrot.slane %v4698, 5
        %v4841 = vrot.slane %v4840, 4
        %v4842 = vrot.slane %v4071, 5
        %v4843 = vsel %vm2071, %v4841, %v4842
        %v4844 = vrot.slane %v4842, 4
        %v4845 = vrot.slane %v4072, 5
        %v4846 = vsel %vm2071, %v4844, %v4845
        %v4847 = vrot.slane %v4699, 5
        %v4848 = vrot.slane %v4847, 4
        %v4849 = vrot.slane %v4074, 5
        %v4850 = vsel %vm2071, %v4848, %v4849
        %v4851 = vrot.slane %v4849, 4
        %v4852 = vrot.slane %v4075, 5
        %v4853 = vsel %vm2071, %v4851, %v4852
        %v4854 = vrot.slane %v4700, 5
        %v4855 = vrot.slane %v4854, 4
        %v4856 = vrot.slane %v4077, 5
        %v4857 = vsel %vm2071, %v4855, %v4856
        %v4858 = vrot.slane %v4856, 4
        %v4859 = vrot.slane %v4078, 5
        %v4860 = vsel %vm2071, %v4858, %v4859
        %s4861 = scalar_lea.vmem %s3, 16
        %v4862 = vld [vmem:[%s4861] sm:$0x3]
        %v4863 = vunpack.c.l.b16 %v4752
        %v4864 = vunpack.c.l.b16 %v4755
        %v4865 = vunpack.c.l.b16 %v4759
        %v4866 = vunpack.c.l.b16 %v4762
        %v4867 = vunpack.c.l.b16 %v4766
        %v4868 = vunpack.c.l.b16 %v4769
        %v4869 = vunpack.c.l.b16 %v4773
        %v4870 = vunpack.c.l.b16 %v4776
        %v4871 = vunpack.c.l.b16 %v4780
        %v4872 = vunpack.c.l.b16 %v4783
        %v4873 = vunpack.c.l.b16 %v4787
        %v4874 = vunpack.c.l.b16 %v4790
        %v4875 = vunpack.c.l.b16 %v4794
        %v4876 = vunpack.c.l.b16 %v4797
        %v4877 = vunpack.c.l.b16 %v4801
        %v4878 = vunpack.c.l.b16 %v4804
        %v4879 = vunpack.c.l.b16 %v4808
        %v4880 = vunpack.c.l.b16 %v4811
        %v4881 = vunpack.c.l.b16 %v4815
        %v4882 = vunpack.c.l.b16 %v4818
        %v4883 = vunpack.c.l.b16 %v4822
        %v4884 = vunpack.c.l.b16 %v4825
        %v4885 = vunpack.c.l.b16 %v4829
        %v4886 = vunpack.c.l.b16 %v4832
        %v4887 = vunpack.c.l.b16 %v4836
        %v4888 = vunpack.c.l.b16 %v4839
        %v4889 = vunpack.c.l.b16 %v4843
        %v4890 = vunpack.c.l.b16 %v4846
        %v4891 = vunpack.c.l.b16 %v4850
        %v4892 = vunpack.c.l.b16 %v4853
        %v4893 = vunpack.c.l.b16 %v4857
        %v4894 = vunpack.c.l.b16 %v4860
        %v4895 = vpack.c.b16 %v4864, %v4863
        %v4896 = vpack.c.b16 %v4866, %v4865
        %v4897 = vpack.c.b16 %v4868, %v4867
        %v4898 = vpack.c.b16 %v4870, %v4869
        %v4899 = vpack.c.b16 %v4872, %v4871
        %v4900 = vpack.c.b16 %v4874, %v4873
        %v4901 = vpack.c.b16 %v4876, %v4875
        %v4902 = vpack.c.b16 %v4878, %v4877
        %v4903 = vpack.c.b16 %v4880, %v4879
        %v4904 = vpack.c.b16 %v4882, %v4881
        %v4905 = vpack.c.b16 %v4884, %v4883
        %v4906 = vpack.c.b16 %v4886, %v4885
        %v4907 = vpack.c.b16 %v4888, %v4887
        %v4908 = vpack.c.b16 %v4890, %v4889
        %v4909 = vpack.c.b16 %v4892, %v4891
        %v4910 = vpack.c.b16 %v4894, %v4893
        %v4912 = vsel %vm1659, %v4895, 0
        %v4915 = vsel %vm1659, %v4896, 0
        %v4918 = vsel %vm1659, %v4897, 0
        %v4921 = vsel %vm1659, %v4898, 0
        %v4924 = vsel %vm1659, %v4899, 0
        %v4927 = vsel %vm1659, %v4900, 0
        %v4930 = vsel %vm1659, %v4901, 0
        %v4933 = vsel %vm1659, %v4902, 0
        %v4936 = vsel %vm1659, %v4903, 0
        %v4939 = vsel %vm1659, %v4904, 0
        %v4942 = vsel %vm1659, %v4905, 0
        %v4945 = vsel %vm1659, %v4906, 0
        %v4948 = vsel %vm1659, %v4907, 0
        %v4951 = vsel %vm1659, %v4908, 0
        %v4954 = vsel %vm1659, %v4909, 0
        %v4957 = vsel %vm1659, %v4910, 0
        %v4960 = vsel %vm1708, %v4862, 0
        %4962 = vmatpush.bf16.msra.mxu0 0
        %4963 = vmatpush.bf16.msra.mxu0 0
        %4964 = vmatpush.bf16.msra.mxu0 0
        %4965 = vmatpush.bf16.msra.mxu0 0
        %4966 = vmatpush.bf16.msra.mxu0 0
        %4967 = vmatpush.bf16.msra.mxu0 0
        %4968 = vmatpush.bf16.msra.mxu0 0
        %4969 = vmatpush.bf16.msra.mxu0 %v4960
        %4970 = vmatmul.bf16.gmra.mxu0 %v4912
        %v4971 = vpop.f32.mrf.mxu0
        %v4972 = vadd.f32 0.0, %v4971
        %v4973 = vpop.f32.mrf.mxu0
        %v4974 = vadd.f32 0.0, %v4973
        %4975 = vmatmul.bf16.gmra.mxu0 %v4915
        %v4976 = vpop.f32.mrf.mxu0
        %v4977 = vadd.f32 0.0, %v4976
        %v4978 = vpop.f32.mrf.mxu0
        %v4979 = vadd.f32 0.0, %v4978
        %4980 = vmatmul.bf16.gmra.mxu0 %v4918
        %v4981 = vpop.f32.mrf.mxu0
        %v4982 = vadd.f32 0.0, %v4981
        %v4983 = vpop.f32.mrf.mxu0
        %v4984 = vadd.f32 0.0, %v4983
        %4985 = vmatmul.bf16.gmra.mxu0 %v4921
        %v4986 = vpop.f32.mrf.mxu0
        %v4987 = vadd.f32 0.0, %v4986
        %v4988 = vpop.f32.mrf.mxu0
        %v4989 = vadd.f32 0.0, %v4988
        %4990 = vmatmul.bf16.gmra.mxu0 %v4924
        %v4991 = vpop.f32.mrf.mxu0
        %v4992 = vadd.f32 0.0, %v4991
        %v4993 = vpop.f32.mrf.mxu0
        %v4994 = vadd.f32 0.0, %v4993
        %4995 = vmatmul.bf16.gmra.mxu0 %v4927
        %v4996 = vpop.f32.mrf.mxu0
        %v4997 = vadd.f32 0.0, %v4996
        %v4998 = vpop.f32.mrf.mxu0
        %v4999 = vadd.f32 0.0, %v4998
        %5000 = vmatmul.bf16.gmra.mxu0 %v4930
        %v5001 = vpop.f32.mrf.mxu0
        %v5002 = vadd.f32 0.0, %v5001
        %v5003 = vpop.f32.mrf.mxu0
        %v5004 = vadd.f32 0.0, %v5003
        %5005 = vmatmul.bf16.gmra.mxu0 %v4933
        %v5006 = vpop.f32.mrf.mxu0
        %v5007 = vadd.f32 0.0, %v5006
        %v5008 = vpop.f32.mrf.mxu0
        %v5009 = vadd.f32 0.0, %v5008
        %5010 = vmatmul.bf16.gmra.mxu0 %v4936
        %v5011 = vpop.f32.mrf.mxu0
        %v5012 = vadd.f32 0.0, %v5011
        %v5013 = vpop.f32.mrf.mxu0
        %v5014 = vadd.f32 0.0, %v5013
        %5015 = vmatmul.bf16.gmra.mxu0 %v4939
        %v5016 = vpop.f32.mrf.mxu0
        %v5017 = vadd.f32 0.0, %v5016
        %v5018 = vpop.f32.mrf.mxu0
        %v5019 = vadd.f32 0.0, %v5018
        %5020 = vmatmul.bf16.gmra.mxu0 %v4942
        %v5021 = vpop.f32.mrf.mxu0
        %v5022 = vadd.f32 0.0, %v5021
        %v5023 = vpop.f32.mrf.mxu0
        %v5024 = vadd.f32 0.0, %v5023
        %5025 = vmatmul.bf16.gmra.mxu0 %v4945
        %v5026 = vpop.f32.mrf.mxu0
        %v5027 = vadd.f32 0.0, %v5026
        %v5028 = vpop.f32.mrf.mxu0
        %v5029 = vadd.f32 0.0, %v5028
        %5030 = vmatmul.bf16.gmra.mxu0 %v4948
        %v5031 = vpop.f32.mrf.mxu0
        %v5032 = vadd.f32 0.0, %v5031
        %v5033 = vpop.f32.mrf.mxu0
        %v5034 = vadd.f32 0.0, %v5033
        %5035 = vmatmul.bf16.gmra.mxu0 %v4951
        %v5036 = vpop.f32.mrf.mxu0
        %v5037 = vadd.f32 0.0, %v5036
        %v5038 = vpop.f32.mrf.mxu0
        %v5039 = vadd.f32 0.0, %v5038
        %5040 = vmatmul.bf16.gmra.mxu0 %v4954
        %v5041 = vpop.f32.mrf.mxu0
        %v5042 = vadd.f32 0.0, %v5041
        %v5043 = vpop.f32.mrf.mxu0
        %v5044 = vadd.f32 0.0, %v5043
        %5045 = vmatmul.bf16.gmra.mxu0 %v4957
        %v5046 = vpop.f32.mrf.mxu0
        %v5047 = vadd.f32 0.0, %v5046
        %v5048 = vpop.f32.mrf.mxu0
        %v5049 = vadd.f32 0.0, %v5048
        %5050 = vdwg.mxu0
        %v5051 = vadd.f32 %v4653, %v4972
        %v5052 = vadd.f32 %v4654, %v4974
        %v5053 = vadd.f32 %v4655, %v4977
        %v5054 = vadd.f32 %v4656, %v4979
        %v5055 = vadd.f32 %v4657, %v4982
        %v5056 = vadd.f32 %v4658, %v4984
        %v5057 = vadd.f32 %v4659, %v4987
        %v5058 = vadd.f32 %v4660, %v4989
        %v5059 = vadd.f32 %v4661, %v4992
        %v5060 = vadd.f32 %v4662, %v4994
        %v5061 = vadd.f32 %v4663, %v4997
        %v5062 = vadd.f32 %v4664, %v4999
        %v5063 = vadd.f32 %v4665, %v5002
        %v5064 = vadd.f32 %v4666, %v5004
        %v5065 = vadd.f32 %v4667, %v5007
        %v5066 = vadd.f32 %v4668, %v5009
        %v5067 = vadd.f32 %v4669, %v5012
        %v5068 = vadd.f32 %v4670, %v5014
        %v5069 = vadd.f32 %v4671, %v5017
        %v5070 = vadd.f32 %v4672, %v5019
        %v5071 = vadd.f32 %v4673, %v5022
        %v5072 = vadd.f32 %v4674, %v5024
        %v5073 = vadd.f32 %v4675, %v5027
        %v5074 = vadd.f32 %v4676, %v5029
        %v5075 = vadd.f32 %v4677, %v5032
        %v5076 = vadd.f32 %v4678, %v5034
        %v5077 = vadd.f32 %v4679, %v5037
        %v5078 = vadd.f32 %v4680, %v5039
        %v5079 = vadd.f32 %v4681, %v5042
        %v5080 = vadd.f32 %v4682, %v5044
        %v5081 = vadd.f32 %v4683, %v5047
        %v5082 = vadd.f32 %v4684, %v5049
        %v5083 = vld [vmem:[%s4] sm:$0x1]
        %v5085 = vperm.slane %v5083, 0
        %v5087 = vadd.f32 %v5051, %v5085
        %v5088 = vadd.f32 %v5052, %v5085
        %v5089 = vadd.f32 %v5053, %v5085
        %v5090 = vadd.f32 %v5054, %v5085
        %v5091 = vadd.f32 %v5055, %v5085
        %v5092 = vadd.f32 %v5056, %v5085
        %v5093 = vadd.f32 %v5057, %v5085
        %v5094 = vadd.f32 %v5058, %v5085
        %v5095 = vadd.f32 %v5059, %v5085
        %v5096 = vadd.f32 %v5060, %v5085
        %v5097 = vadd.f32 %v5061, %v5085
        %v5098 = vadd.f32 %v5062, %v5085
        %v5099 = vadd.f32 %v5063, %v5085
        %v5100 = vadd.f32 %v5064, %v5085
        %v5101 = vadd.f32 %v5065, %v5085
        %v5102 = vadd.f32 %v5066, %v5085
        %v5103 = vadd.f32 %v5067, %v5085
        %v5104 = vadd.f32 %v5068, %v5085
        %v5105 = vadd.f32 %v5069, %v5085
        %v5106 = vadd.f32 %v5070, %v5085
        %v5107 = vadd.f32 %v5071, %v5085
        %v5108 = vadd.f32 %v5072, %v5085
        %v5109 = vadd.f32 %v5073, %v5085
        %v5110 = vadd.f32 %v5074, %v5085
        %v5111 = vadd.f32 %v5075, %v5085
        %v5112 = vadd.f32 %v5076, %v5085
        %v5113 = vadd.f32 %v5077, %v5085
        %v5114 = vadd.f32 %v5078, %v5085
        %v5115 = vadd.f32 %v5079, %v5085
        %v5116 = vadd.f32 %v5080, %v5085
        %v5117 = vadd.f32 %v5081, %v5085
        %v5118 = vadd.f32 %v5082, %v5085
        %v5119 = vmax.f32 %v5087, 0.0
        %v5120 = vmax.f32 %v5088, 0.0
        %v5121 = vmax.f32 %v5089, 0.0
        %v5122 = vmax.f32 %v5090, 0.0
        %v5123 = vmax.f32 %v5091, 0.0
        %v5124 = vmax.f32 %v5092, 0.0
        %v5125 = vmax.f32 %v5093, 0.0
        %v5126 = vmax.f32 %v5094, 0.0
        %v5127 = vmax.f32 %v5095, 0.0
        %v5128 = vmax.f32 %v5096, 0.0
        %v5129 = vmax.f32 %v5097, 0.0
        %v5130 = vmax.f32 %v5098, 0.0
        %v5131 = vmax.f32 %v5099, 0.0
        %v5132 = vmax.f32 %v5100, 0.0
        %v5133 = vmax.f32 %v5101, 0.0
        %v5134 = vmax.f32 %v5102, 0.0
        %v5135 = vmax.f32 %v5103, 0.0
        %v5136 = vmax.f32 %v5104, 0.0
        %v5137 = vmax.f32 %v5105, 0.0
        %v5138 = vmax.f32 %v5106, 0.0
        %v5139 = vmax.f32 %v5107, 0.0
        %v5140 = vmax.f32 %v5108, 0.0
        %v5141 = vmax.f32 %v5109, 0.0
        %v5142 = vmax.f32 %v5110, 0.0
        %v5143 = vmax.f32 %v5111, 0.0
        %v5144 = vmax.f32 %v5112, 0.0
        %v5145 = vmax.f32 %v5113, 0.0
        %v5146 = vmax.f32 %v5114, 0.0
        %v5147 = vmax.f32 %v5115, 0.0
        %v5148 = vmax.f32 %v5116, 0.0
        %v5149 = vmax.f32 %v5117, 0.0
        %v5150 = vmax.f32 %v5118, 0.0
        %v5151 = vpack.c.bf16 %v5120, %v5119
        %v5152 = vpack.c.bf16 %v5122, %v5121
        %v5153 = vpack.c.bf16 %v5124, %v5123
        %v5154 = vpack.c.bf16 %v5126, %v5125
        %v5155 = vpack.c.bf16 %v5128, %v5127
        %v5156 = vpack.c.bf16 %v5130, %v5129
        %v5157 = vpack.c.bf16 %v5132, %v5131
        %v5158 = vpack.c.bf16 %v5134, %v5133
        %v5159 = vpack.c.bf16 %v5136, %v5135
        %v5160 = vpack.c.bf16 %v5138, %v5137
        %v5161 = vpack.c.bf16 %v5140, %v5139
        %v5162 = vpack.c.bf16 %v5142, %v5141
        %v5163 = vpack.c.bf16 %v5144, %v5143
        %v5164 = vpack.c.bf16 %v5146, %v5145
        %v5165 = vpack.c.bf16 %v5148, %v5147
        %v5166 = vpack.c.bf16 %v5150, %v5149
        %v5167 = vld [vmem:[%s5] sm:$0x3]
        %v5168 = vld [vmem:[%s6] sm:$0x1]
        %v5170 = vperm.slane %v5168, 0
        %v5173 = vsel %vm1659, %v5151, 0
        %v5176 = vsel %vm1659, %v5152, 0
        %v5179 = vsel %vm1659, %v5153, 0
        %v5182 = vsel %vm1659, %v5154, 0
        %v5185 = vsel %vm1659, %v5155, 0
        %v5188 = vsel %vm1659, %v5156, 0
        %v5191 = vsel %vm1659, %v5157, 0
        %v5194 = vsel %vm1659, %v5158, 0
        %v5197 = vsel %vm1659, %v5159, 0
        %v5200 = vsel %vm1659, %v5160, 0
        %v5203 = vsel %vm1659, %v5161, 0
        %v5206 = vsel %vm1659, %v5162, 0
        %v5209 = vsel %vm1659, %v5163, 0
        %v5212 = vsel %vm1659, %v5164, 0
        %v5215 = vsel %vm1659, %v5165, 0
        %v5218 = vsel %vm1659, %v5166, 0
        %v5221 = vsel %vm1708, %v5167, 0
        %5223 = vmatpush.bf16.msra.mxu0 0
        %5224 = vmatpush.bf16.msra.mxu0 0
        %5225 = vmatpush.bf16.msra.mxu0 0
        %5226 = vmatpush.bf16.msra.mxu0 0
        %5227 = vmatpush.bf16.msra.mxu0 0
        %5228 = vmatpush.bf16.msra.mxu0 0
        %5229 = vmatpush.bf16.msra.mxu0 0
        %5230 = vmatpush.bf16.msra.mxu0 %v5221
        %5231 = vmatmul.bf16.gmra.mxu0 %v5173
        %v5232 = vpop.f32.mrf.mxu0
        %v5233 = vadd.f32 %v5170, %v5232
        %v5234 = vpop.f32.mrf.mxu0
        %v5235 = vadd.f32 %v5170, %v5234
        %5236 = vmatmul.bf16.gmra.mxu0 %v5176
        %v5237 = vpop.f32.mrf.mxu0
        %v5238 = vadd.f32 %v5170, %v5237
        %v5239 = vpop.f32.mrf.mxu0
        %v5240 = vadd.f32 %v5170, %v5239
        %5241 = vmatmul.bf16.gmra.mxu0 %v5179
        %v5242 = vpop.f32.mrf.mxu0
        %v5243 = vadd.f32 %v5170, %v5242
        %v5244 = vpop.f32.mrf.mxu0
        %v5245 = vadd.f32 %v5170, %v5244
        %5246 = vmatmul.bf16.gmra.mxu0 %v5182
        %v5247 = vpop.f32.mrf.mxu0
        %v5248 = vadd.f32 %v5170, %v5247
        %v5249 = vpop.f32.mrf.mxu0
        %v5250 = vadd.f32 %v5170, %v5249
        %5251 = vmatmul.bf16.gmra.mxu0 %v5185
        %v5252 = vpop.f32.mrf.mxu0
        %v5253 = vadd.f32 %v5170, %v5252
        %v5254 = vpop.f32.mrf.mxu0
        %v5255 = vadd.f32 %v5170, %v5254
        %5256 = vmatmul.bf16.gmra.mxu0 %v5188
        %v5257 = vpop.f32.mrf.mxu0
        %v5258 = vadd.f32 %v5170, %v5257
        %v5259 = vpop.f32.mrf.mxu0
        %v5260 = vadd.f32 %v5170, %v5259
        %5261 = vmatmul.bf16.gmra.mxu0 %v5191
        %v5262 = vpop.f32.mrf.mxu0
        %v5263 = vadd.f32 %v5170, %v5262
        %v5264 = vpop.f32.mrf.mxu0
        %v5265 = vadd.f32 %v5170, %v5264
        %5266 = vmatmul.bf16.gmra.mxu0 %v5194
        %v5267 = vpop.f32.mrf.mxu0
        %v5268 = vadd.f32 %v5170, %v5267
        %v5269 = vpop.f32.mrf.mxu0
        %v5270 = vadd.f32 %v5170, %v5269
        %5271 = vmatmul.bf16.gmra.mxu0 %v5197
        %v5272 = vpop.f32.mrf.mxu0
        %v5273 = vadd.f32 %v5170, %v5272
        %v5274 = vpop.f32.mrf.mxu0
        %v5275 = vadd.f32 %v5170, %v5274
        %5276 = vmatmul.bf16.gmra.mxu0 %v5200
        %v5277 = vpop.f32.mrf.mxu0
        %v5278 = vadd.f32 %v5170, %v5277
        %v5279 = vpop.f32.mrf.mxu0
        %v5280 = vadd.f32 %v5170, %v5279
        %5281 = vmatmul.bf16.gmra.mxu0 %v5203
        %v5282 = vpop.f32.mrf.mxu0
        %v5283 = vadd.f32 %v5170, %v5282
        %v5284 = vpop.f32.mrf.mxu0
        %v5285 = vadd.f32 %v5170, %v5284
        %5286 = vmatmul.bf16.gmra.mxu0 %v5206
        %v5287 = vpop.f32.mrf.mxu0
        %v5288 = vadd.f32 %v5170, %v5287
        %v5289 = vpop.f32.mrf.mxu0
        %v5290 = vadd.f32 %v5170, %v5289
        %5291 = vmatmul.bf16.gmra.mxu0 %v5209
        %v5292 = vpop.f32.mrf.mxu0
        %v5293 = vadd.f32 %v5170, %v5292
        %v5294 = vpop.f32.mrf.mxu0
        %v5295 = vadd.f32 %v5170, %v5294
        %5296 = vmatmul.bf16.gmra.mxu0 %v5212
        %v5297 = vpop.f32.mrf.mxu0
        %v5298 = vadd.f32 %v5170, %v5297
        %v5299 = vpop.f32.mrf.mxu0
        %v5300 = vadd.f32 %v5170, %v5299
        %5301 = vmatmul.bf16.gmra.mxu0 %v5215
        %v5302 = vpop.f32.mrf.mxu0
        %v5303 = vadd.f32 %v5170, %v5302
        %v5304 = vpop.f32.mrf.mxu0
        %v5305 = vadd.f32 %v5170, %v5304
        %5306 = vmatmul.bf16.gmra.mxu0 %v5218
        %v5307 = vpop.f32.mrf.mxu0
        %v5308 = vadd.f32 %v5170, %v5307
        %v5309 = vpop.f32.mrf.mxu0
        %v5310 = vadd.f32 %v5170, %v5309
        %5311 = vdwg.mxu0
        %v5312 = vld [vmem:[%s267] sm:$0xf]
        %v5313 = vld [vmem:[%s267 + $0x4] sm:$0xf]
        %v5314 = vld [vmem:[%s267 + $0x8] sm:$0xf]
        %v5315 = vld [vmem:[%s267 + $0xc] sm:$0xf]
        %v5316 = vld [vmem:[%s267 + $0x10] sm:$0xf]
        %v5317 = vld [vmem:[%s267 + $0x14] sm:$0xf]
        %v5318 = vld [vmem:[%s267 + $0x18] sm:$0xf]
        %v5319 = vld [vmem:[%s267 + $0x1c] sm:$0xf]
        %v5320 = vld [vmem:[%s267 + $0x20] sm:$0xf]
        %v5321 = vld [vmem:[%s267 + $0x24] sm:$0xf]
        %v5322 = vld [vmem:[%s267 + $0x28] sm:$0xf]
        %v5323 = vld [vmem:[%s267 + $0x2c] sm:$0xf]
        %v5324 = vld [vmem:[%s267 + $0x30] sm:$0xf]
        %v5325 = vld [vmem:[%s267 + $0x34] sm:$0xf]
        %v5326 = vld [vmem:[%s267 + $0x38] sm:$0xf]
        %v5327 = vld [vmem:[%s267 + $0x3c] sm:$0xf]
        %v5328 = vld [vmem:[%s267 + $0x40] sm:$0xf]
        %v5329 = vld [vmem:[%s267 + $0x44] sm:$0xf]
        %v5330 = vld [vmem:[%s267 + $0x48] sm:$0xf]
        %v5331 = vld [vmem:[%s267 + $0x4c] sm:$0xf]
        %v5332 = vld [vmem:[%s267 + $0x50] sm:$0xf]
        %v5333 = vld [vmem:[%s267 + $0x54] sm:$0xf]
        %v5334 = vld [vmem:[%s267 + $0x58] sm:$0xf]
        %v5335 = vld [vmem:[%s267 + $0x5c] sm:$0xf]
        %v5336 = vld [vmem:[%s267 + $0x60] sm:$0xf]
        %v5337 = vld [vmem:[%s267 + $0x64] sm:$0xf]
        %v5338 = vld [vmem:[%s267 + $0x68] sm:$0xf]
        %v5339 = vld [vmem:[%s267 + $0x6c] sm:$0xf]
        %v5340 = vld [vmem:[%s267 + $0x70] sm:$0xf]
        %v5341 = vld [vmem:[%s267 + $0x74] sm:$0xf]
        %v5342 = vld [vmem:[%s267 + $0x78] sm:$0xf]
        %v5343 = vld [vmem:[%s267 + $0x7c] sm:$0xf]
        %v5344 = vunpack.c.l.bf16 %v5312
        %v5345 = vunpack.c.l.bf16 %v5313
        %v5346 = vunpack.c.l.bf16 %v5314
        %v5347 = vunpack.c.l.bf16 %v5315
        %v5348 = vunpack.c.l.bf16 %v5316
        %v5349 = vunpack.c.l.bf16 %v5317
        %v5350 = vunpack.c.l.bf16 %v5318
        %v5351 = vunpack.c.l.bf16 %v5319
        %v5352 = vunpack.c.l.bf16 %v5320
        %v5353 = vunpack.c.l.bf16 %v5321
        %v5354 = vunpack.c.l.bf16 %v5322
        %v5355 = vunpack.c.l.bf16 %v5323
        %v5356 = vunpack.c.l.bf16 %v5324
        %v5357 = vunpack.c.l.bf16 %v5325
        %v5358 = vunpack.c.l.bf16 %v5326
        %v5359 = vunpack.c.l.bf16 %v5327
        %v5360 = vunpack.c.l.bf16 %v5328
        %v5361 = vunpack.c.l.bf16 %v5329
        %v5362 = vunpack.c.l.bf16 %v5330
        %v5363 = vunpack.c.l.bf16 %v5331
        %v5364 = vunpack.c.l.bf16 %v5332
        %v5365 = vunpack.c.l.bf16 %v5333
        %v5366 = vunpack.c.l.bf16 %v5334
        %v5367 = vunpack.c.l.bf16 %v5335
        %v5368 = vunpack.c.l.bf16 %v5336
        %v5369 = vunpack.c.l.bf16 %v5337
        %v5370 = vunpack.c.l.bf16 %v5338
        %v5371 = vunpack.c.l.bf16 %v5339
        %v5372 = vunpack.c.l.bf16 %v5340
        %v5373 = vunpack.c.l.bf16 %v5341
        %v5374 = vunpack.c.l.bf16 %v5342
        %v5375 = vunpack.c.l.bf16 %v5343
        %v5376 = vadd.f32 %v5233, %v5344
        %v5377 = vadd.f32 %v5235, %v5345
        %v5378 = vadd.f32 %v5238, %v5346
        %v5379 = vadd.f32 %v5240, %v5347
        %v5380 = vadd.f32 %v5243, %v5348
        %v5381 = vadd.f32 %v5245, %v5349
        %v5382 = vadd.f32 %v5248, %v5350
        %v5383 = vadd.f32 %v5250, %v5351
        %v5384 = vadd.f32 %v5253, %v5352
        %v5385 = vadd.f32 %v5255, %v5353
        %v5386 = vadd.f32 %v5258, %v5354
        %v5387 = vadd.f32 %v5260, %v5355
        %v5388 = vadd.f32 %v5263, %v5356
        %v5389 = vadd.f32 %v5265, %v5357
        %v5390 = vadd.f32 %v5268, %v5358
        %v5391 = vadd.f32 %v5270, %v5359
        %v5392 = vadd.f32 %v5273, %v5360
        %v5393 = vadd.f32 %v5275, %v5361
        %v5394 = vadd.f32 %v5278, %v5362
        %v5395 = vadd.f32 %v5280, %v5363
        %v5396 = vadd.f32 %v5283, %v5364
        %v5397 = vadd.f32 %v5285, %v5365
        %v5398 = vadd.f32 %v5288, %v5366
        %v5399 = vadd.f32 %v5290, %v5367
        %v5400 = vadd.f32 %v5293, %v5368
        %v5401 = vadd.f32 %v5295, %v5369
        %v5402 = vadd.f32 %v5298, %v5370
        %v5403 = vadd.f32 %v5300, %v5371
        %v5404 = vadd.f32 %v5303, %v5372
        %v5405 = vadd.f32 %v5305, %v5373
        %v5406 = vadd.f32 %v5308, %v5374
        %v5407 = vadd.f32 %v5310, %v5375
        %v5408 = vmax.f32 %v5376, 0.0
        %v5409 = vmax.f32 %v5377, 0.0
        %v5410 = vmax.f32 %v5378, 0.0
        %v5411 = vmax.f32 %v5379, 0.0
        %v5412 = vmax.f32 %v5380, 0.0
        %v5413 = vmax.f32 %v5381, 0.0
        %v5414 = vmax.f32 %v5382, 0.0
        %v5415 = vmax.f32 %v5383, 0.0
        %v5416 = vmax.f32 %v5384, 0.0
        %v5417 = vmax.f32 %v5385, 0.0
        %v5418 = vmax.f32 %v5386, 0.0
        %v5419 = vmax.f32 %v5387, 0.0
        %v5420 = vmax.f32 %v5388, 0.0
        %v5421 = vmax.f32 %v5389, 0.0
        %v5422 = vmax.f32 %v5390, 0.0
        %v5423 = vmax.f32 %v5391, 0.0
        %v5424 = vmax.f32 %v5392, 0.0
        %v5425 = vmax.f32 %v5393, 0.0
        %v5426 = vmax.f32 %v5394, 0.0
        %v5427 = vmax.f32 %v5395, 0.0
        %v5428 = vmax.f32 %v5396, 0.0
        %v5429 = vmax.f32 %v5397, 0.0
        %v5430 = vmax.f32 %v5398, 0.0
        %v5431 = vmax.f32 %v5399, 0.0
        %v5432 = vmax.f32 %v5400, 0.0
        %v5433 = vmax.f32 %v5401, 0.0
        %v5434 = vmax.f32 %v5402, 0.0
        %v5435 = vmax.f32 %v5403, 0.0
        %v5436 = vmax.f32 %v5404, 0.0
        %v5437 = vmax.f32 %v5405, 0.0
        %v5438 = vmax.f32 %v5406, 0.0
        %v5439 = vmax.f32 %v5407, 0.0
        %v5440 = vpack.c.bf16 %v5408, %v5408
        %v5441 = vpack.c.bf16 %v5409, %v5409
        %v5442 = vpack.c.bf16 %v5410, %v5410
        %v5443 = vpack.c.bf16 %v5411, %v5411
        %v5444 = vpack.c.bf16 %v5412, %v5412
        %v5445 = vpack.c.bf16 %v5413, %v5413
        %v5446 = vpack.c.bf16 %v5414, %v5414
        %v5447 = vpack.c.bf16 %v5415, %v5415
        %v5448 = vpack.c.bf16 %v5416, %v5416
        %v5449 = vpack.c.bf16 %v5417, %v5417
        %v5450 = vpack.c.bf16 %v5418, %v5418
        %v5451 = vpack.c.bf16 %v5419, %v5419
        %v5452 = vpack.c.bf16 %v5420, %v5420
        %v5453 = vpack.c.bf16 %v5421, %v5421
        %v5454 = vpack.c.bf16 %v5422, %v5422
        %v5455 = vpack.c.bf16 %v5423, %v5423
        %v5456 = vpack.c.bf16 %v5424, %v5424
        %v5457 = vpack.c.bf16 %v5425, %v5425
        %v5458 = vpack.c.bf16 %v5426, %v5426
        %v5459 = vpack.c.bf16 %v5427, %v5427
        %v5460 = vpack.c.bf16 %v5428, %v5428
        %v5461 = vpack.c.bf16 %v5429, %v5429
        %v5462 = vpack.c.bf16 %v5430, %v5430
        %v5463 = vpack.c.bf16 %v5431, %v5431
        %v5464 = vpack.c.bf16 %v5432, %v5432
        %v5465 = vpack.c.bf16 %v5433, %v5433
        %v5466 = vpack.c.bf16 %v5434, %v5434
        %v5467 = vpack.c.bf16 %v5435, %v5435
        %v5468 = vpack.c.bf16 %v5436, %v5436
        %v5469 = vpack.c.bf16 %v5437, %v5437
        %v5470 = vpack.c.bf16 %v5438, %v5438
        %v5471 = vpack.c.bf16 %v5439, %v5439
        %vm5472 = vcmask 125952
        %5473 = vst.msk [vmem:[%s298] sm:$0xf] %vm5472, %v5440
        %5474 = vst.msk [vmem:[%s298 + $0x4] sm:$0xf] %vm5472, %v5441
        %5475 = vst.msk [vmem:[%s298 + $0x8] sm:$0xf] %vm5472, %v5442
        %5476 = vst.msk [vmem:[%s298 + $0xc] sm:$0xf] %vm5472, %v5443
        %5477 = vst.msk [vmem:[%s298 + $0x10] sm:$0xf] %vm5472, %v5444
        %5478 = vst.msk [vmem:[%s298 + $0x14] sm:$0xf] %vm5472, %v5445
        %5479 = vst.msk [vmem:[%s298 + $0x18] sm:$0xf] %vm5472, %v5446
        %5480 = vst.msk [vmem:[%s298 + $0x1c] sm:$0xf] %vm5472, %v5447
        %5481 = vst.msk [vmem:[%s298 + $0x20] sm:$0xf] %vm5472, %v5448
        %5482 = vst.msk [vmem:[%s298 + $0x24] sm:$0xf] %vm5472, %v5449
        %5483 = vst.msk [vmem:[%s298 + $0x28] sm:$0xf] %vm5472, %v5450
        %5484 = vst.msk [vmem:[%s298 + $0x2c] sm:$0xf] %vm5472, %v5451
        %5485 = vst.msk [vmem:[%s298 + $0x30] sm:$0xf] %vm5472, %v5452
        %5486 = vst.msk [vmem:[%s298 + $0x34] sm:$0xf] %vm5472, %v5453
        %5487 = vst.msk [vmem:[%s298 + $0x38] sm:$0xf] %vm5472, %v5454
        %5488 = vst.msk [vmem:[%s298 + $0x3c] sm:$0xf] %vm5472, %v5455
        %5489 = vst.msk [vmem:[%s298 + $0x40] sm:$0xf] %vm5472, %v5456
        %5490 = vst.msk [vmem:[%s298 + $0x44] sm:$0xf] %vm5472, %v5457
        %5491 = vst.msk [vmem:[%s298 + $0x48] sm:$0xf] %vm5472, %v5458
        %5492 = vst.msk [vmem:[%s298 + $0x4c] sm:$0xf] %vm5472, %v5459
        %5493 = vst.msk [vmem:[%s298 + $0x50] sm:$0xf] %vm5472, %v5460
        %5494 = vst.msk [vmem:[%s298 + $0x54] sm:$0xf] %vm5472, %v5461
        %5495 = vst.msk [vmem:[%s298 + $0x58] sm:$0xf] %vm5472, %v5462
        %5496 = vst.msk [vmem:[%s298 + $0x5c] sm:$0xf] %vm5472, %v5463
        %5497 = vst.msk [vmem:[%s298 + $0x60] sm:$0xf] %vm5472, %v5464
        %5498 = vst.msk [vmem:[%s298 + $0x64] sm:$0xf] %vm5472, %v5465
        %5499 = vst.msk [vmem:[%s298 + $0x68] sm:$0xf] %vm5472, %v5466
        %5500 = vst.msk [vmem:[%s298 + $0x6c] sm:$0xf] %vm5472, %v5467
        %5501 = vst.msk [vmem:[%s298 + $0x70] sm:$0xf] %vm5472, %v5468
        %5502 = vst.msk [vmem:[%s298 + $0x74] sm:$0xf] %vm5472, %v5469
        %5503 = vst.msk [vmem:[%s298 + $0x78] sm:$0xf] %vm5472, %v5470
        %5504 = vst.msk [vmem:[%s298 + $0x7c] sm:$0xf] %vm5472, %v5471
        %s5505 = sand.u32 %s184, 1
        %s5506 = scalar_lea.sflag [#allocation5], %s5505
        %s5507 = sand.u32 %s184, 1
        %s5508 = smul.addr %s5507, 128
        %s5509 = scalar_lea.vmem [#allocation6], %s5508
        // Predicated region
        $region53: #{tpu_custom_call.1} parent=47 // pred_check
          %p5510 = pneg %p194
        $region54: #{tpu_custom_call.1} parent=47 // pred_check_branch
          %5512 = sbr.rel (%p5510) target = $region56
        $region55: #{tpu_custom_call.1} parent=47 // pred_region
          %5514 = vsyncadd %s5506, 0
          %s5515 = smul.addr %s24, 32
          %s5516 = smul.addr %s5515, 4
          %s5517 = scalar_lea.hbm %s7, %s5516
          %s5518 = sshll.u32 %s5509, 4
          %s5519 = int_to_ptr.vmem [resolvable:$true] %s5518
          %s5520 = sshll.u32 %s5517, 4
          %s5521 = int_to_ptr.hbm [resolvable:$true] %s5520
          %5526 = dma.vmem_to_hbm [thread:$0]  %s5519, 2048, %s5521, %s5506, 64, 64, 4
        $region56: #{tpu_custom_call.1} parent=47 // pred_fallthru
          _
      $region48: #{tpu_custom_call.1} parent=5 // pred_fallthru
        _
      %p5527 = scmp.le.s32.totalorder 2, %s19
      // Predicated region
      $region57: #{tpu_custom_call.1} parent=5 // pred_check
        %p5528 = pneg %p5527
      $region58: #{tpu_custom_call.1} parent=5 // pred_check_branch
        %5530 = sbr.rel (%p5528) target = $region60
      $region59: #{tpu_custom_call.1} parent=5 // pred_region
        %s5531 = ssub.s32 %s19, 2
        // Predicated region
        $region61: #{tpu_custom_call.1} parent=59 // pred_check
          %p5532 = pneg %p200
        $region62: #{tpu_custom_call.1} parent=59 // pred_check_branch
          %5534 = sbr.rel (%p5532) target = $region64
        $region63: #{tpu_custom_call.1} parent=59 // pred_region
          %s5535 = sand.u32 %s185, 1
          %s5536 = scalar_lea.sflag [#allocation5], %s5535
          %s5537 = sand.u32 %s185, 1
          %s5538 = smul.addr %s5537, 128
          %s5539 = scalar_lea.vmem [#allocation6], %s5538
          %5541 = dma.done %s5536, 2048
        $region64: #{tpu_custom_call.1} parent=59 // pred_fallthru
          _
      $region60: #{tpu_custom_call.1} parent=5 // pred_fallthru
        _
    $region6: #{tpu_custom_call.1} parent=1 // loop_footer
      %s23 = sadd.s32 1, %s19
    $region7: #{tpu_custom_call.1} parent=1 // loop_footer_branch
      %18 = sbr.rel target = $region3
    $region8: #{tpu_custom_call.1} parent=1 // loop_exit
      _
    %5542 = vsyncpa [#allocation4], 1
    %s5543 = scalar_lea.sflag [#allocation4], 1
    %5544 = vsyncpa %s5543, 1
    %5545 = vsyncpa [#allocation5], 1
    %s5546 = scalar_lea.sflag [#allocation5], 1
    %5547 = vsyncpa %s5546, 1

</llo_original>
